<compile_context>
chip_gen: v7x
topology: tpu7x:2x2x1
jax: 0.10.0
libtpu: 0.0.40
codegen_flags: <defaults>
</compile_context>

<pallas_src>
import jax
import jax.numpy as jnp
from jax.experimental import pallas as pl
from jax.experimental.pallas import tpu as pltpu

EMBED = 128
HIDDEN = 128
LAYERS = 3
VOCAB = 50           # synthetic vocab size (len(dataset.uniq_words))
VPAD = 128           # lane-dense padded vocab for the fc output


def _lstm_cell(gates, c_prev):
    """gates: (B, 4H) f32 pre-activation in PyTorch order [i, f, g, o]."""
    H = HIDDEN
    i_f = jax.nn.sigmoid(gates[:, :2 * H])          # one EUP region for i & f
    g_g = jnp.tanh(gates[:, 2 * H:3 * H])
    o_g = jax.nn.sigmoid(gates[:, 3 * H:])
    c_new = i_f[:, H:] * c_prev + i_f[:, :H] * g_g
    h_new = o_g * jnp.tanh(c_new)
    return h_new, c_new


# ---------------------------------------------------------------------------
# Fused kernel: 3 LSTM layers (combined b_ih + b_hh) in a layer/time wavefront
# followed by the fc projection.  All weights + state resident in VMEM.
# ---------------------------------------------------------------------------
def fused_lstm_fc_kernel(x_ref, h0_ref, c0_ref, wih_ref, whh_ref, b_ref,
                         wfc_ref, bfc_ref,
                         logits_ref, hT_ref, cT_ref, gx_scr, act_scr):
    H = HIDDEN
    B = h0_ref.shape[1]
    T = x_ref.shape[0] // B

    # --- Layer-0 input projection hoisted out of the recurrence --------------
    # One big (T*B, E) @ (E, 4H) matmul; result spilled into VMEM scratch so
    # only 4 vregs per timestep are live inside the unrolled recurrence.
    gx0 = jnp.dot(x_ref[...], wih_ref[0], preferred_element_type=jnp.float32)
    gx_scr[...] = gx0 + b_ref[0]                        # (T*B, 4H) f32

    whh0, whh1, whh2 = whh_ref[0], whh_ref[1], whh_ref[2]
    wih1, wih2 = wih_ref[1], wih_ref[2]
    b1, b2 = b_ref[1], b_ref[2]

    h0, c0 = h0_ref[0], c0_ref[0]
    h1, c1 = h0_ref[1], c0_ref[1]
    h2, c2 = h0_ref[2], c0_ref[2]

    # --- Wavefront over (layer, time): 3-way ILP per step --------------------
    # TODO(synk): inter-layer dropout (p=0.2) omitted — eval/inference semantics.
    for s in range(T + LAYERS - 1):                     # static unroll (10 steps)
        t0, t1, t2 = s, s - 1, s - 2
        a0 = 0 <= t0 < T
        a1 = 0 <= t1 < T
        a2 = 0 <= t2 < T

        # Pre-step hidden states cast once to bf16; each cast feeds both the
        # layer's own recurrence matmul and the next layer's input matmul.
        h0b = h0.astype(jnp.bfloat16) if (a0 or a1) else None
        h1b = h1.astype(jnp.bfloat16) if (a1 or a2) else None
        h2b = h2.astype(jnp.bfloat16) if a2 else None

        if a0:
            g0 = gx_scr[t0 * B:(t0 + 1) * B, :] + jnp.dot(
                h0b, whh0, preferred_element_type=jnp.float32)
            nh0, nc0 = _lstm_cell(g0, c0)
        if a1:
            g1 = (jnp.dot(h0b, wih1, preferred_element_type=jnp.float32)
                  + jnp.dot(h1b, whh1, preferred_element_type=jnp.float32)
                  + b1)
            nh1, nc1 = _lstm_cell(g1, c1)
        if a2:
            g2 = (jnp.dot(h1b, wih2, preferred_element_type=jnp.float32)
                  + jnp.dot(h2b, whh2, preferred_element_type=jnp.float32)
                  + b2)
            nh2, nc2 = _lstm_cell(g2, c2)
            act_scr[t2 * B:(t2 + 1) * B, :] = nh2       # top-layer output for fc

        # Commit after all reads of the pre-step values.
        if a0:
            h0, c0 = nh0, nc0
        if a1:
            h1, c1 = nh1, nc1
        if a2:
            h2, c2 = nh2, nc2

    hT_ref[0] = h0
    cT_ref[0] = c0
    hT_ref[1] = h1
    cT_ref[1] = c1
    hT_ref[2] = h2
    cT_ref[2] = c2

    # --- Fused fc: (T*B, H) @ (H, VPAD) + bias, lane-dense padded output -----
    top = act_scr[...].astype(jnp.bfloat16)
    logits = jnp.dot(top, wfc_ref[...], preferred_element_type=jnp.float32)
    logits_ref[...] = logits + bfc_ref[...]


# ---------------------------------------------------------------------------
# Model forward (wrapper glue: embedding gather, batch padding, final slicing).
# ---------------------------------------------------------------------------
def model_forward(params, x_tokens, prev_state):
    B, T = x_tokens.shape
    h0, c0 = prev_state                               # each (LAYERS, B, H)

    # Time-major embedding gather (only the tiny (B,T) index matrix is
    # transposed); slab handed to the kernel pre-flattened in bf16.
    emb_tm = params["embedding"][x_tokens.T].astype(jnp.bfloat16)   # (T, B, E)

    # Pad batch up to a sublane-full multiple of 8.
    b_pad = max(8, ((B + 7) // 8) * 8)
    pad = b_pad - B
    emb_tm = jnp.pad(emb_tm, ((0, 0), (0, pad), (0, 0)))
    h0p = jnp.pad(h0, ((0, 0), (0, pad), (0, 0)))
    c0p = jnp.pad(c0, ((0, 0), (0, pad), (0, 0)))
    emb_flat = emb_tm.reshape(T * b_pad, EMBED)

    logits_pad, hT, cT = pl.pallas_call(
        fused_lstm_fc_kernel,
        out_shape=(jax.ShapeDtypeStruct((T * b_pad, VPAD), jnp.float32),
                   jax.ShapeDtypeStruct((LAYERS, b_pad, HIDDEN), jnp.float32),
                   jax.ShapeDtypeStruct((LAYERS, b_pad, HIDDEN), jnp.float32)),
        scratch_shapes=[
            pltpu.VMEM((T * b_pad, 4 * HIDDEN), jnp.float32),   # gx spill
            pltpu.VMEM((T * b_pad, HIDDEN), jnp.float32),       # top-layer acts
        ],
    )(emb_flat, h0p, c0p,
      params["wih_t"], params["whh_t"], params["bias"],
      params["w_fc_t_pad"], params["b_fc_pad"])

    # Strip padding and return batch-first logits (tiny arrays, negligible cost).
    logits = jnp.transpose(
        logits_pad.reshape(T, b_pad, VPAD)[:, :B, :VOCAB], (1, 0, 2))  # (B, T, V)
    return logits, (hT[:, :B, :], cT[:, :B, :])


def init_params(key):
    ks = jax.random.split(key, 7)
    s = 1.0 / jnp.sqrt(HIDDEN)
    w_fc = jax.random.uniform(ks[5], (HIDDEN, VOCAB), jnp.float32, -s, s)
    b_fc = jax.random.uniform(ks[6], (1, VOCAB), jnp.float32, -s, s)
    params = {
        "embedding": jax.random.normal(ks[0], (VOCAB, EMBED), jnp.float32),
        # per layer: W_ih^T (E,4H), W_hh^T (H,4H) stored bf16 (f32 accumulation
        # in-kernel), combined bias b_ih + b_hh (1,4H) kept f32.
        "wih_t": jax.random.uniform(ks[1], (LAYERS, EMBED, 4 * HIDDEN),
                                    jnp.float32, -s, s).astype(jnp.bfloat16),
        "whh_t": jax.random.uniform(ks[2], (LAYERS, HIDDEN, 4 * HIDDEN),
                                    jnp.float32, -s, s).astype(jnp.bfloat16),
        "bias": (jax.random.uniform(ks[3], (LAYERS, 1, 4 * HIDDEN),
                                    jnp.float32, -s, s)
                 + jax.random.uniform(ks[4], (LAYERS, 1, 4 * HIDDEN),
                                      jnp.float32, -s, s)),
        # fc weights pre-padded to a lane-dense (H, 128) tile; extra cols are 0.
        "w_fc_t_pad": jnp.zeros((HIDDEN, VPAD), jnp.bfloat16)
                         .at[:, :VOCAB].set(w_fc.astype(jnp.bfloat16)),
        "b_fc_pad": jnp.zeros((1, VPAD), jnp.float32).at[:, :VOCAB].set(b_fc),
    }
    return params


def reference_forward(params, x_tokens, prev_state):
    """Pure-JAX f32 reference of the same forward (for numerical validation)."""
    h0, c0 = prev_state
    x = params["embedding"][x_tokens]                           # (B, T, E)
    wih = params["wih_t"].astype(jnp.float32)
    whh = params["whh_t"].astype(jnp.float32)
    bias = params["bias"]
    hs, cs = [], []
    for l in range(LAYERS):
        h, c = h0[l], c0[l]
        outs = []
        for t in range(x.shape[1]):
            g = x[:, t] @ wih[l] + h @ whh[l] + bias[l]
            i = jax.nn.sigmoid(g[:, :HIDDEN])
            f = jax.nn.sigmoid(g[:, HIDDEN:2 * HIDDEN])
            gg = jnp.tanh(g[:, 2 * HIDDEN:3 * HIDDEN])
            o = jax.nn.sigmoid(g[:, 3 * HIDDEN:])
            c = f * c + i * gg
            h = o * jnp.tanh(c)
            outs.append(h)
        x = jnp.stack(outs, axis=1)
        hs.append(h)
        cs.append(c)
    wfc = params["w_fc_t_pad"].astype(jnp.float32)[:, :VOCAB]
    bfc = params["b_fc_pad"][:, :VOCAB]
    logits = x @ wfc + bfc
    return logits, (jnp.stack(hs), jnp.stack(cs))


if __name__ == "__main__":
    B, T = 2, 8
    key = jax.random.PRNGKey(0)
    k_tok, k_par = jax.random.split(key)

    params = init_params(k_par)
    x_tokens = jax.random.randint(k_tok, (B, T), 0, VOCAB, dtype=jnp.int32)
    prev_state = (jnp.zeros((LAYERS, B, HIDDEN), jnp.float32),   # init_state h0
                  jnp.zeros((LAYERS, B, HIDDEN), jnp.float32))   # init_state c0

    fwd = jax.jit(model_forward)
    logits, (h_n, c_n) = fwd(params, x_tokens, prev_state)
    jax.block_until_ready((logits, h_n, c_n))

    assert logits.shape == (B, T, VOCAB)
    assert h_n.shape == (LAYERS, B, HIDDEN)
    assert c_n.shape == (LAYERS, B, HIDDEN)

    # Loose tolerance: bf16 MXU operands with f32 accumulation across 3 layers.
    ref_logits, (ref_h, ref_c) = reference_forward(params, x_tokens, prev_state)
    assert float(jnp.max(jnp.abs(logits - ref_logits))) < 1e-1
    assert float(jnp.max(jnp.abs(h_n - ref_h))) < 1e-1
    assert float(jnp.max(jnp.abs(c_n - ref_c))) < 1e-1

    print("KERNEL_OK")
</pallas_src>

<mosaic_0001>
module attributes {stable_mosaic.version = 11 : i64} {
  func.func @fused_lstm_fc_kernel(%arg0: memref<64x128xbf16, #tpu.memory_space<vmem>>, %arg1: memref<3x8x128xf32, #tpu.memory_space<vmem>>, %arg2: memref<3x8x128xf32, #tpu.memory_space<vmem>>, %arg3: memref<3x128x512xbf16, #tpu.memory_space<vmem>>, %arg4: memref<3x128x512xbf16, #tpu.memory_space<vmem>>, %arg5: memref<3x1x512xf32, #tpu.memory_space<vmem>>, %arg6: memref<128x128xbf16, #tpu.memory_space<vmem>>, %arg7: memref<1x128xf32, #tpu.memory_space<vmem>>, %arg8: memref<64x128xf32, #tpu.memory_space<vmem>>, %arg9: memref<3x8x128xf32, #tpu.memory_space<vmem>>, %arg10: memref<3x8x128xf32, #tpu.memory_space<vmem>>, %arg11: memref<64x512xf32, #tpu.memory_space<vmem>>, %arg12: memref<64x128xf32, #tpu.memory_space<vmem>>) attributes {dimension_semantics = [], scalar_prefetch = 0 : i64, scratch_operands = 2 : i64, tpu.core_type = #tpu.core_type<tc>} {
    %c0 = arith.constant 0 : index
    %c0_0 = arith.constant 0 : index
    %0 = vector.load %arg0[%c0, %c0_0] : memref<64x128xbf16, #tpu.memory_space<vmem>>, vector<64x128xbf16>
    %c0_1 = arith.constant 0 : index
    %c0_2 = arith.constant 0 : index
    %c0_3 = arith.constant 0 : index
    %1 = vector.load %arg3[%c0_1, %c0_2, %c0_3] : memref<3x128x512xbf16, #tpu.memory_space<vmem>>, vector<1x128x512xbf16>
    %2 = vector.shape_cast %1 : vector<1x128x512xbf16> to vector<128x512xbf16>
    %cst = arith.constant dense<0.000000e+00> : vector<64x512xf32>
    %3 = tpu.matmul %0, %2, %cst {dimension_numbers = #tpu.dot_dimension_numbers<[1], [0], [0], [1], [0, 0, 1, 1], [], []>} : vector<64x128xbf16>, vector<128x512xbf16>, vector<64x512xf32> -> vector<64x512xf32>
    %c0_4 = arith.constant 0 : index
    %c0_5 = arith.constant 0 : index
    %c0_6 = arith.constant 0 : index
    %4 = vector.load %arg5[%c0_4, %c0_5, %c0_6] : memref<3x1x512xf32, #tpu.memory_space<vmem>>, vector<1x1x512xf32>
    %5 = vector.shape_cast %4 : vector<1x1x512xf32> to vector<1x512xf32>
    %6 = vector.broadcast %5 : vector<1x512xf32> to vector<64x512xf32>
    %7 = arith.addf %3, %6 : vector<64x512xf32>
    %c0_7 = arith.constant 0 : index
    %c0_8 = arith.constant 0 : index
    %8 = vector.load %arg11[%c0_7, %c0_8] : memref<64x512xf32, #tpu.memory_space<vmem>>, vector<64x512xf32>
    tpu.vector_store %arg11[%c0_7, %c0_8], %7 {strides = array<i32>} : memref<64x512xf32, #tpu.memory_space<vmem>>, vector<64x512xf32>,
    %c0_9 = arith.constant 0 : index
    %c0_10 = arith.constant 0 : index
    %c0_11 = arith.constant 0 : index
    %9 = vector.load %arg4[%c0_9, %c0_10, %c0_11] : memref<3x128x512xbf16, #tpu.memory_space<vmem>>, vector<1x128x512xbf16>
    %10 = vector.shape_cast %9 : vector<1x128x512xbf16> to vector<128x512xbf16>
    %c1 = arith.constant 1 : index
    %c0_12 = arith.constant 0 : index
    %c0_13 = arith.constant 0 : index
    %11 = vector.load %arg4[%c1, %c0_12, %c0_13] : memref<3x128x512xbf16, #tpu.memory_space<vmem>>, vector<1x128x512xbf16>
    %12 = vector.shape_cast %11 : vector<1x128x512xbf16> to vector<128x512xbf16>
    %c2 = arith.constant 2 : index
    %c0_14 = arith.constant 0 : index
    %c0_15 = arith.constant 0 : index
    %13 = vector.load %arg4[%c2, %c0_14, %c0_15] : memref<3x128x512xbf16, #tpu.memory_space<vmem>>, vector<1x128x512xbf16>
    %14 = vector.shape_cast %13 : vector<1x128x512xbf16> to vector<128x512xbf16>
    %c1_16 = arith.constant 1 : index
    %c0_17 = arith.constant 0 : index
    %c0_18 = arith.constant 0 : index
    %15 = vector.load %arg3[%c1_16, %c0_17, %c0_18] : memref<3x128x512xbf16, #tpu.memory_space<vmem>>, vector<1x128x512xbf16>
    %16 = vector.shape_cast %15 : vector<1x128x512xbf16> to vector<128x512xbf16>
    %c2_19 = arith.constant 2 : index
    %c0_20 = arith.constant 0 : index
    %c0_21 = arith.constant 0 : index
    %17 = vector.load %arg3[%c2_19, %c0_20, %c0_21] : memref<3x128x512xbf16, #tpu.memory_space<vmem>>, vector<1x128x512xbf16>
    %18 = vector.shape_cast %17 : vector<1x128x512xbf16> to vector<128x512xbf16>
    %c1_22 = arith.constant 1 : index
    %c0_23 = arith.constant 0 : index
    %c0_24 = arith.constant 0 : index
    %19 = vector.load %arg5[%c1_22, %c0_23, %c0_24] : memref<3x1x512xf32, #tpu.memory_space<vmem>>, vector<1x1x512xf32>
    %20 = vector.shape_cast %19 : vector<1x1x512xf32> to vector<1x512xf32>
    %c2_25 = arith.constant 2 : index
    %c0_26 = arith.constant 0 : index
    %c0_27 = arith.constant 0 : index
    %21 = vector.load %arg5[%c2_25, %c0_26, %c0_27] : memref<3x1x512xf32, #tpu.memory_space<vmem>>, vector<1x1x512xf32>
    %22 = vector.shape_cast %21 : vector<1x1x512xf32> to vector<1x512xf32>
    %c0_28 = arith.constant 0 : index
    %c0_29 = arith.constant 0 : index
    %c0_30 = arith.constant 0 : index
    %23 = vector.load %arg1[%c0_28, %c0_29, %c0_30] : memref<3x8x128xf32, #tpu.memory_space<vmem>>, vector<1x8x128xf32>
    %24 = vector.shape_cast %23 : vector<1x8x128xf32> to vector<8x128xf32>
    %c0_31 = arith.constant 0 : index
    %c0_32 = arith.constant 0 : index
    %c0_33 = arith.constant 0 : index
    %25 = vector.load %arg2[%c0_31, %c0_32, %c0_33] : memref<3x8x128xf32, #tpu.memory_space<vmem>>, vector<1x8x128xf32>
    %26 = vector.shape_cast %25 : vector<1x8x128xf32> to vector<8x128xf32>
    %c1_34 = arith.constant 1 : index
    %c0_35 = arith.constant 0 : index
    %c0_36 = arith.constant 0 : index
    %27 = vector.load %arg1[%c1_34, %c0_35, %c0_36] : memref<3x8x128xf32, #tpu.memory_space<vmem>>, vector<1x8x128xf32>
    %28 = vector.shape_cast %27 : vector<1x8x128xf32> to vector<8x128xf32>
    %c1_37 = arith.constant 1 : index
    %c0_38 = arith.constant 0 : index
    %c0_39 = arith.constant 0 : index
    %29 = vector.load %arg2[%c1_37, %c0_38, %c0_39] : memref<3x8x128xf32, #tpu.memory_space<vmem>>, vector<1x8x128xf32>
    %30 = vector.shape_cast %29 : vector<1x8x128xf32> to vector<8x128xf32>
    %c2_40 = arith.constant 2 : index
    %c0_41 = arith.constant 0 : index
    %c0_42 = arith.constant 0 : index
    %31 = vector.load %arg1[%c2_40, %c0_41, %c0_42] : memref<3x8x128xf32, #tpu.memory_space<vmem>>, vector<1x8x128xf32>
    %32 = vector.shape_cast %31 : vector<1x8x128xf32> to vector<8x128xf32>
    %c2_43 = arith.constant 2 : index
    %c0_44 = arith.constant 0 : index
    %c0_45 = arith.constant 0 : index
    %33 = vector.load %arg2[%c2_43, %c0_44, %c0_45] : memref<3x8x128xf32, #tpu.memory_space<vmem>>, vector<1x8x128xf32>
    %34 = vector.shape_cast %33 : vector<1x8x128xf32> to vector<8x128xf32>
    %35 = arith.truncf %24 : vector<8x128xf32> to vector<8x128xbf16>
    %c0_46 = arith.constant 0 : index
    %c0_47 = arith.constant 0 : index
    %36 = vector.load %arg11[%c0_46, %c0_47] : memref<64x512xf32, #tpu.memory_space<vmem>>, vector<8x512xf32>
    %cst_48 = arith.constant dense<0.000000e+00> : vector<8x512xf32>
    %37 = tpu.matmul %35, %10, %cst_48 {dimension_numbers = #tpu.dot_dimension_numbers<[1], [0], [0], [1], [0, 0, 1, 1], [], []>} : vector<8x128xbf16>, vector<128x512xbf16>, vector<8x512xf32> -> vector<8x512xf32>
    %38 = arith.addf %36, %37 : vector<8x512xf32>
    %39 = vector.extract_strided_slice %38 {offsets = [0, 0], sizes = [8, 256], strides = [1, 1]} : vector<8x512xf32> to vector<8x256xf32>
    %40 = arith.negf %39 : vector<8x256xf32>
    %41 = math.exp %40 : vector<8x256xf32>
    %cst_49 = arith.constant 1.000000e+00 : f32
    %42 = vector.broadcast %cst_49 : f32 to vector<8x256xf32>
    %43 = arith.addf %42, %41 : vector<8x256xf32>
    %44 = arith.divf %42, %43 : vector<8x256xf32>
    %45 = vector.extract_strided_slice %38 {offsets = [0, 256], sizes = [8, 128], strides = [1, 1]} : vector<8x512xf32> to vector<8x128xf32>
    %46 = math.tanh %45 : vector<8x128xf32>
    %47 = vector.extract_strided_slice %38 {offsets = [0, 384], sizes = [8, 128], strides = [1, 1]} : vector<8x512xf32> to vector<8x128xf32>
    %48 = arith.negf %47 : vector<8x128xf32>
    %49 = math.exp %48 : vector<8x128xf32>
    %cst_50 = arith.constant 1.000000e+00 : f32
    %50 = vector.broadcast %cst_50 : f32 to vector<8x128xf32>
    %51 = arith.addf %50, %49 : vector<8x128xf32>
    %52 = arith.divf %50, %51 : vector<8x128xf32>
    %53 = vector.extract_strided_slice %44 {offsets = [0, 128], sizes = [8, 128], strides = [1, 1]} : vector<8x256xf32> to vector<8x128xf32>
    %54 = arith.mulf %53, %26 : vector<8x128xf32>
    %55 = vector.extract_strided_slice %44 {offsets = [0, 0], sizes = [8, 128], strides = [1, 1]} : vector<8x256xf32> to vector<8x128xf32>
    %56 = arith.mulf %55, %46 : vector<8x128xf32>
    %57 = arith.addf %54, %56 : vector<8x128xf32>
    %58 = math.tanh %57 : vector<8x128xf32>
    %59 = arith.mulf %52, %58 : vector<8x128xf32>
    %60 = arith.truncf %59 : vector<8x128xf32> to vector<8x128xbf16>
    %61 = arith.truncf %28 : vector<8x128xf32> to vector<8x128xbf16>
    %c8 = arith.constant 8 : index
    %c0_51 = arith.constant 0 : index
    %62 = vector.load %arg11[%c8, %c0_51] : memref<64x512xf32, #tpu.memory_space<vmem>>, vector<8x512xf32>
    %cst_52 = arith.constant dense<0.000000e+00> : vector<8x512xf32>
    %63 = tpu.matmul %60, %10, %cst_52 {dimension_numbers = #tpu.dot_dimension_numbers<[1], [0], [0], [1], [0, 0, 1, 1], [], []>} : vector<8x128xbf16>, vector<128x512xbf16>, vector<8x512xf32> -> vector<8x512xf32>
    %64 = arith.addf %62, %63 : vector<8x512xf32>
    %65 = vector.extract_strided_slice %64 {offsets = [0, 0], sizes = [8, 256], strides = [1, 1]} : vector<8x512xf32> to vector<8x256xf32>
    %66 = arith.negf %65 : vector<8x256xf32>
    %67 = math.exp %66 : vector<8x256xf32>
    %cst_53 = arith.constant 1.000000e+00 : f32
    %68 = vector.broadcast %cst_53 : f32 to vector<8x256xf32>
    %69 = arith.addf %68, %67 : vector<8x256xf32>
    %70 = arith.divf %68, %69 : vector<8x256xf32>
    %71 = vector.extract_strided_slice %64 {offsets = [0, 256], sizes = [8, 128], strides = [1, 1]} : vector<8x512xf32> to vector<8x128xf32>
    %72 = math.tanh %71 : vector<8x128xf32>
    %73 = vector.extract_strided_slice %64 {offsets = [0, 384], sizes = [8, 128], strides = [1, 1]} : vector<8x512xf32> to vector<8x128xf32>
    %74 = arith.negf %73 : vector<8x128xf32>
    %75 = math.exp %74 : vector<8x128xf32>
    %cst_54 = arith.constant 1.000000e+00 : f32
    %76 = vector.broadcast %cst_54 : f32 to vector<8x128xf32>
    %77 = arith.addf %76, %75 : vector<8x128xf32>
    %78 = arith.divf %76, %77 : vector<8x128xf32>
    %79 = vector.extract_strided_slice %70 {offsets = [0, 128], sizes = [8, 128], strides = [1, 1]} : vector<8x256xf32> to vector<8x128xf32>
    %80 = arith.mulf %79, %57 : vector<8x128xf32>
    %81 = vector.extract_strided_slice %70 {offsets = [0, 0], sizes = [8, 128], strides = [1, 1]} : vector<8x256xf32> to vector<8x128xf32>
    %82 = arith.mulf %81, %72 : vector<8x128xf32>
    %83 = arith.addf %80, %82 : vector<8x128xf32>
    %84 = math.tanh %83 : vector<8x128xf32>
    %85 = arith.mulf %78, %84 : vector<8x128xf32>
    %cst_55 = arith.constant dense<0.000000e+00> : vector<8x512xf32>
    %86 = tpu.matmul %60, %16, %cst_55 {dimension_numbers = #tpu.dot_dimension_numbers<[1], [0], [0], [1], [0, 0, 1, 1], [], []>} : vector<8x128xbf16>, vector<128x512xbf16>, vector<8x512xf32> -> vector<8x512xf32>
    %cst_56 = arith.constant dense<0.000000e+00> : vector<8x512xf32>
    %87 = tpu.matmul %61, %12, %cst_56 {dimension_numbers = #tpu.dot_dimension_numbers<[1], [0], [0], [1], [0, 0, 1, 1], [], []>} : vector<8x128xbf16>, vector<128x512xbf16>, vector<8x512xf32> -> vector<8x512xf32>
    %88 = arith.addf %86, %87 : vector<8x512xf32>
    %89 = vector.broadcast %20 : vector<1x512xf32> to vector<8x512xf32>
    %90 = arith.addf %88, %89 : vector<8x512xf32>
    %91 = vector.extract_strided_slice %90 {offsets = [0, 0], sizes = [8, 256], strides = [1, 1]} : vector<8x512xf32> to vector<8x256xf32>
    %92 = arith.negf %91 : vector<8x256xf32>
    %93 = math.exp %92 : vector<8x256xf32>
    %cst_57 = arith.constant 1.000000e+00 : f32
    %94 = vector.broadcast %cst_57 : f32 to vector<8x256xf32>
    %95 = arith.addf %94, %93 : vector<8x256xf32>
    %96 = arith.divf %94, %95 : vector<8x256xf32>
    %97 = vector.extract_strided_slice %90 {offsets = [0, 256], sizes = [8, 128], strides = [1, 1]} : vector<8x512xf32> to vector<8x128xf32>
    %98 = math.tanh %97 : vector<8x128xf32>
    %99 = vector.extract_strided_slice %90 {offsets = [0, 384], sizes = [8, 128], strides = [1, 1]} : vector<8x512xf32> to vector<8x128xf32>
    %100 = arith.negf %99 : vector<8x128xf32>
    %101 = math.exp %100 : vector<8x128xf32>
    %cst_58 = arith.constant 1.000000e+00 : f32
    %102 = vector.broadcast %cst_58 : f32 to vector<8x128xf32>
    %103 = arith.addf %102, %101 : vector<8x128xf32>
    %104 = arith.divf %102, %103 : vector<8x128xf32>
    %105 = vector.extract_strided_slice %96 {offsets = [0, 128], sizes = [8, 128], strides = [1, 1]} : vector<8x256xf32> to vector<8x128xf32>
    %106 = arith.mulf %105, %30 : vector<8x128xf32>
    %107 = vector.extract_strided_slice %96 {offsets = [0, 0], sizes = [8, 128], strides = [1, 1]} : vector<8x256xf32> to vector<8x128xf32>
    %108 = arith.mulf %107, %98 : vector<8x128xf32>
    %109 = arith.addf %106, %108 : vector<8x128xf32>
    %110 = math.tanh %109 : vector<8x128xf32>
    %111 = arith.mulf %104, %110 : vector<8x128xf32>
    %112 = arith.truncf %85 : vector<8x128xf32> to vector<8x128xbf16>
    %113 = arith.truncf %111 : vector<8x128xf32> to vector<8x128xbf16>
    %114 = arith.truncf %32 : vector<8x128xf32> to vector<8x128xbf16>
    %c16 = arith.constant 16 : index
    %c0_59 = arith.constant 0 : index
    %115 = vector.load %arg11[%c16, %c0_59] : memref<64x512xf32, #tpu.memory_space<vmem>>, vector<8x512xf32>
    %cst_60 = arith.constant dense<0.000000e+00> : vector<8x512xf32>
    %116 = tpu.matmul %112, %10, %cst_60 {dimension_numbers = #tpu.dot_dimension_numbers<[1], [0], [0], [1], [0, 0, 1, 1], [], []>} : vector<8x128xbf16>, vector<128x512xbf16>, vector<8x512xf32> -> vector<8x512xf32>
    %117 = arith.addf %115, %116 : vector<8x512xf32>
    %118 = vector.extract_strided_slice %117 {offsets = [0, 0], sizes = [8, 256], strides = [1, 1]} : vector<8x512xf32> to vector<8x256xf32>
    %119 = arith.negf %118 : vector<8x256xf32>
    %120 = math.exp %119 : vector<8x256xf32>
    %cst_61 = arith.constant 1.000000e+00 : f32
    %121 = vector.broadcast %cst_61 : f32 to vector<8x256xf32>
    %122 = arith.addf %121, %120 : vector<8x256xf32>
    %123 = arith.divf %121, %122 : vector<8x256xf32>
    %124 = vector.extract_strided_slice %117 {offsets = [0, 256], sizes = [8, 128], strides = [1, 1]} : vector<8x512xf32> to vector<8x128xf32>
    %125 = math.tanh %124 : vector<8x128xf32>
    %126 = vector.extract_strided_slice %117 {offsets = [0, 384], sizes = [8, 128], strides = [1, 1]} : vector<8x512xf32> to vector<8x128xf32>
    %127 = arith.negf %126 : vector<8x128xf32>
    %128 = math.exp %127 : vector<8x128xf32>
    %cst_62 = arith.constant 1.000000e+00 : f32
    %129 = vector.broadcast %cst_62 : f32 to vector<8x128xf32>
    %130 = arith.addf %129, %128 : vector<8x128xf32>
    %131 = arith.divf %129, %130 : vector<8x128xf32>
    %132 = vector.extract_strided_slice %123 {offsets = [0, 128], sizes = [8, 128], strides = [1, 1]} : vector<8x256xf32> to vector<8x128xf32>
    %133 = arith.mulf %132, %83 : vector<8x128xf32>
    %134 = vector.extract_strided_slice %123 {offsets = [0, 0], sizes = [8, 128], strides = [1, 1]} : vector<8x256xf32> to vector<8x128xf32>
    %135 = arith.mulf %134, %125 : vector<8x128xf32>
    %136 = arith.addf %133, %135 : vector<8x128xf32>
    %137 = math.tanh %136 : vector<8x128xf32>
    %138 = arith.mulf %131, %137 : vector<8x128xf32>
    %cst_63 = arith.constant dense<0.000000e+00> : vector<8x512xf32>
    %139 = tpu.matmul %112, %16, %cst_63 {dimension_numbers = #tpu.dot_dimension_numbers<[1], [0], [0], [1], [0, 0, 1, 1], [], []>} : vector<8x128xbf16>, vector<128x512xbf16>, vector<8x512xf32> -> vector<8x512xf32>
    %cst_64 = arith.constant dense<0.000000e+00> : vector<8x512xf32>
    %140 = tpu.matmul %113, %12, %cst_64 {dimension_numbers = #tpu.dot_dimension_numbers<[1], [0], [0], [1], [0, 0, 1, 1], [], []>} : vector<8x128xbf16>, vector<128x512xbf16>, vector<8x512xf32> -> vector<8x512xf32>
    %141 = arith.addf %139, %140 : vector<8x512xf32>
    %142 = vector.broadcast %20 : vector<1x512xf32> to vector<8x512xf32>
    %143 = arith.addf %141, %142 : vector<8x512xf32>
    %144 = vector.extract_strided_slice %143 {offsets = [0, 0], sizes = [8, 256], strides = [1, 1]} : vector<8x512xf32> to vector<8x256xf32>
    %145 = arith.negf %144 : vector<8x256xf32>
    %146 = math.exp %145 : vector<8x256xf32>
    %cst_65 = arith.constant 1.000000e+00 : f32
    %147 = vector.broadcast %cst_65 : f32 to vector<8x256xf32>
    %148 = arith.addf %147, %146 : vector<8x256xf32>
    %149 = arith.divf %147, %148 : vector<8x256xf32>
    %150 = vector.extract_strided_slice %143 {offsets = [0, 256], sizes = [8, 128], strides = [1, 1]} : vector<8x512xf32> to vector<8x128xf32>
    %151 = math.tanh %150 : vector<8x128xf32>
    %152 = vector.extract_strided_slice %143 {offsets = [0, 384], sizes = [8, 128], strides = [1, 1]} : vector<8x512xf32> to vector<8x128xf32>
    %153 = arith.negf %152 : vector<8x128xf32>
    %154 = math.exp %153 : vector<8x128xf32>
    %cst_66 = arith.constant 1.000000e+00 : f32
    %155 = vector.broadcast %cst_66 : f32 to vector<8x128xf32>
    %156 = arith.addf %155, %154 : vector<8x128xf32>
    %157 = arith.divf %155, %156 : vector<8x128xf32>
    %158 = vector.extract_strided_slice %149 {offsets = [0, 128], sizes = [8, 128], strides = [1, 1]} : vector<8x256xf32> to vector<8x128xf32>
    %159 = arith.mulf %158, %109 : vector<8x128xf32>
    %160 = vector.extract_strided_slice %149 {offsets = [0, 0], sizes = [8, 128], strides = [1, 1]} : vector<8x256xf32> to vector<8x128xf32>
    %161 = arith.mulf %160, %151 : vector<8x128xf32>
    %162 = arith.addf %159, %161 : vector<8x128xf32>
    %163 = math.tanh %162 : vector<8x128xf32>
    %164 = arith.mulf %157, %163 : vector<8x128xf32>
    %cst_67 = arith.constant dense<0.000000e+00> : vector<8x512xf32>
    %165 = tpu.matmul %113, %18, %cst_67 {dimension_numbers = #tpu.dot_dimension_numbers<[1], [0], [0], [1], [0, 0, 1, 1], [], []>} : vector<8x128xbf16>, vector<128x512xbf16>, vector<8x512xf32> -> vector<8x512xf32>
    %cst_68 = arith.constant dense<0.000000e+00> : vector<8x512xf32>
    %166 = tpu.matmul %114, %14, %cst_68 {dimension_numbers = #tpu.dot_dimension_numbers<[1], [0], [0], [1], [0, 0, 1, 1], [], []>} : vector<8x128xbf16>, vector<128x512xbf16>, vector<8x512xf32> -> vector<8x512xf32>
    %167 = arith.addf %165, %166 : vector<8x512xf32>
    %168 = vector.broadcast %22 : vector<1x512xf32> to vector<8x512xf32>
    %169 = arith.addf %167, %168 : vector<8x512xf32>
    %170 = vector.extract_strided_slice %169 {offsets = [0, 0], sizes = [8, 256], strides = [1, 1]} : vector<8x512xf32> to vector<8x256xf32>
    %171 = arith.negf %170 : vector<8x256xf32>
    %172 = math.exp %171 : vector<8x256xf32>
    %cst_69 = arith.constant 1.000000e+00 : f32
    %173 = vector.broadcast %cst_69 : f32 to vector<8x256xf32>
    %174 = arith.addf %173, %172 : vector<8x256xf32>
    %175 = arith.divf %173, %174 : vector<8x256xf32>
    %176 = vector.extract_strided_slice %169 {offsets = [0, 256], sizes = [8, 128], strides = [1, 1]} : vector<8x512xf32> to vector<8x128xf32>
    %177 = math.tanh %176 : vector<8x128xf32>
    %178 = vector.extract_strided_slice %169 {offsets = [0, 384], sizes = [8, 128], strides = [1, 1]} : vector<8x512xf32> to vector<8x128xf32>
    %179 = arith.negf %178 : vector<8x128xf32>
    %180 = math.exp %179 : vector<8x128xf32>
    %cst_70 = arith.constant 1.000000e+00 : f32
    %181 = vector.broadcast %cst_70 : f32 to vector<8x128xf32>
    %182 = arith.addf %181, %180 : vector<8x128xf32>
    %183 = arith.divf %181, %182 : vector<8x128xf32>
    %184 = vector.extract_strided_slice %175 {offsets = [0, 128], sizes = [8, 128], strides = [1, 1]} : vector<8x256xf32> to vector<8x128xf32>
    %185 = arith.mulf %184, %34 : vector<8x128xf32>
    %186 = vector.extract_strided_slice %175 {offsets = [0, 0], sizes = [8, 128], strides = [1, 1]} : vector<8x256xf32> to vector<8x128xf32>
    %187 = arith.mulf %186, %177 : vector<8x128xf32>
    %188 = arith.addf %185, %187 : vector<8x128xf32>
    %189 = math.tanh %188 : vector<8x128xf32>
    %190 = arith.mulf %183, %189 : vector<8x128xf32>
    %c0_71 = arith.constant 0 : index
    %c0_72 = arith.constant 0 : index
    %191 = vector.load %arg12[%c0_71, %c0_72] : memref<64x128xf32, #tpu.memory_space<vmem>>, vector<8x128xf32>
    tpu.vector_store %arg12[%c0_71, %c0_72], %190 {strides = array<i32>} : memref<64x128xf32, #tpu.memory_space<vmem>>, vector<8x128xf32>,
    %192 = arith.truncf %138 : vector<8x128xf32> to vector<8x128xbf16>
    %193 = arith.truncf %164 : vector<8x128xf32> to vector<8x128xbf16>
    %194 = arith.truncf %190 : vector<8x128xf32> to vector<8x128xbf16>
    %c24 = arith.constant 24 : index
    %c0_73 = arith.constant 0 : index
    %195 = vector.load %arg11[%c24, %c0_73] : memref<64x512xf32, #tpu.memory_space<vmem>>, vector<8x512xf32>
    %cst_74 = arith.constant dense<0.000000e+00> : vector<8x512xf32>
    %196 = tpu.matmul %192, %10, %cst_74 {dimension_numbers = #tpu.dot_dimension_numbers<[1], [0], [0], [1], [0, 0, 1, 1], [], []>} : vector<8x128xbf16>, vector<128x512xbf16>, vector<8x512xf32> -> vector<8x512xf32>
    %197 = arith.addf %195, %196 : vector<8x512xf32>
    %198 = vector.extract_strided_slice %197 {offsets = [0, 0], sizes = [8, 256], strides = [1, 1]} : vector<8x512xf32> to vector<8x256xf32>
    %199 = arith.negf %198 : vector<8x256xf32>
    %200 = math.exp %199 : vector<8x256xf32>
    %cst_75 = arith.constant 1.000000e+00 : f32
    %201 = vector.broadcast %cst_75 : f32 to vector<8x256xf32>
    %202 = arith.addf %201, %200 : vector<8x256xf32>
    %203 = arith.divf %201, %202 : vector<8x256xf32>
    %204 = vector.extract_strided_slice %197 {offsets = [0, 256], sizes = [8, 128], strides = [1, 1]} : vector<8x512xf32> to vector<8x128xf32>
    %205 = math.tanh %204 : vector<8x128xf32>
    %206 = vector.extract_strided_slice %197 {offsets = [0, 384], sizes = [8, 128], strides = [1, 1]} : vector<8x512xf32> to vector<8x128xf32>
    %207 = arith.negf %206 : vector<8x128xf32>
    %208 = math.exp %207 : vector<8x128xf32>
    %cst_76 = arith.constant 1.000000e+00 : f32
    %209 = vector.broadcast %cst_76 : f32 to vector<8x128xf32>
    %210 = arith.addf %209, %208 : vector<8x128xf32>
    %211 = arith.divf %209, %210 : vector<8x128xf32>
    %212 = vector.extract_strided_slice %203 {offsets = [0, 128], sizes = [8, 128], strides = [1, 1]} : vector<8x256xf32> to vector<8x128xf32>
    %213 = arith.mulf %212, %136 : vector<8x128xf32>
    %214 = vector.extract_strided_slice %203 {offsets = [0, 0], sizes = [8, 128], strides = [1, 1]} : vector<8x256xf32> to vector<8x128xf32>
    %215 = arith.mulf %214, %205 : vector<8x128xf32>
    %216 = arith.addf %213, %215 : vector<8x128xf32>
    %217 = math.tanh %216 : vector<8x128xf32>
    %218 = arith.mulf %211, %217 : vector<8x128xf32>
    %cst_77 = arith.constant dense<0.000000e+00> : vector<8x512xf32>
    %219 = tpu.matmul %192, %16, %cst_77 {dimension_numbers = #tpu.dot_dimension_numbers<[1], [0], [0], [1], [0, 0, 1, 1], [], []>} : vector<8x128xbf16>, vector<128x512xbf16>, vector<8x512xf32> -> vector<8x512xf32>
    %cst_78 = arith.constant dense<0.000000e+00> : vector<8x512xf32>
    %220 = tpu.matmul %193, %12, %cst_78 {dimension_numbers = #tpu.dot_dimension_numbers<[1], [0], [0], [1], [0, 0, 1, 1], [], []>} : vector<8x128xbf16>, vector<128x512xbf16>, vector<8x512xf32> -> vector<8x512xf32>
    %221 = arith.addf %219, %220 : vector<8x512xf32>
    %222 = vector.broadcast %20 : vector<1x512xf32> to vector<8x512xf32>
    %223 = arith.addf %221, %222 : vector<8x512xf32>
    %224 = vector.extract_strided_slice %223 {offsets = [0, 0], sizes = [8, 256], strides = [1, 1]} : vector<8x512xf32> to vector<8x256xf32>
    %225 = arith.negf %224 : vector<8x256xf32>
    %226 = math.exp %225 : vector<8x256xf32>
    %cst_79 = arith.constant 1.000000e+00 : f32
    %227 = vector.broadcast %cst_79 : f32 to vector<8x256xf32>
    %228 = arith.addf %227, %226 : vector<8x256xf32>
    %229 = arith.divf %227, %228 : vector<8x256xf32>
    %230 = vector.extract_strided_slice %223 {offsets = [0, 256], sizes = [8, 128], strides = [1, 1]} : vector<8x512xf32> to vector<8x128xf32>
    %231 = math.tanh %230 : vector<8x128xf32>
    %232 = vector.extract_strided_slice %223 {offsets = [0, 384], sizes = [8, 128], strides = [1, 1]} : vector<8x512xf32> to vector<8x128xf32>
    %233 = arith.negf %232 : vector<8x128xf32>
    %234 = math.exp %233 : vector<8x128xf32>
    %cst_80 = arith.constant 1.000000e+00 : f32
    %235 = vector.broadcast %cst_80 : f32 to vector<8x128xf32>
    %236 = arith.addf %235, %234 : vector<8x128xf32>
    %237 = arith.divf %235, %236 : vector<8x128xf32>
    %238 = vector.extract_strided_slice %229 {offsets = [0, 128], sizes = [8, 128], strides = [1, 1]} : vector<8x256xf32> to vector<8x128xf32>
    %239 = arith.mulf %238, %162 : vector<8x128xf32>
    %240 = vector.extract_strided_slice %229 {offsets = [0, 0], sizes = [8, 128], strides = [1, 1]} : vector<8x256xf32> to vector<8x128xf32>
    %241 = arith.mulf %240, %231 : vector<8x128xf32>
    %242 = arith.addf %239, %241 : vector<8x128xf32>
    %243 = math.tanh %242 : vector<8x128xf32>
    %244 = arith.mulf %237, %243 : vector<8x128xf32>
    %cst_81 = arith.constant dense<0.000000e+00> : vector<8x512xf32>
    %245 = tpu.matmul %193, %18, %cst_81 {dimension_numbers = #tpu.dot_dimension_numbers<[1], [0], [0], [1], [0, 0, 1, 1], [], []>} : vector<8x128xbf16>, vector<128x512xbf16>, vector<8x512xf32> -> vector<8x512xf32>
    %cst_82 = arith.constant dense<0.000000e+00> : vector<8x512xf32>
    %246 = tpu.matmul %194, %14, %cst_82 {dimension_numbers = #tpu.dot_dimension_numbers<[1], [0], [0], [1], [0, 0, 1, 1], [], []>} : vector<8x128xbf16>, vector<128x512xbf16>, vector<8x512xf32> -> vector<8x512xf32>
    %247 = arith.addf %245, %246 : vector<8x512xf32>
    %248 = vector.broadcast %22 : vector<1x512xf32> to vector<8x512xf32>
    %249 = arith.addf %247, %248 : vector<8x512xf32>
    %250 = vector.extract_strided_slice %249 {offsets = [0, 0], sizes = [8, 256], strides = [1, 1]} : vector<8x512xf32> to vector<8x256xf32>
    %251 = arith.negf %250 : vector<8x256xf32>
    %252 = math.exp %251 : vector<8x256xf32>
    %cst_83 = arith.constant 1.000000e+00 : f32
    %253 = vector.broadcast %cst_83 : f32 to vector<8x256xf32>
    %254 = arith.addf %253, %252 : vector<8x256xf32>
    %255 = arith.divf %253, %254 : vector<8x256xf32>
    %256 = vector.extract_strided_slice %249 {offsets = [0, 256], sizes = [8, 128], strides = [1, 1]} : vector<8x512xf32> to vector<8x128xf32>
    %257 = math.tanh %256 : vector<8x128xf32>
    %258 = vector.extract_strided_slice %249 {offsets = [0, 384], sizes = [8, 128], strides = [1, 1]} : vector<8x512xf32> to vector<8x128xf32>
    %259 = arith.negf %258 : vector<8x128xf32>
    %260 = math.exp %259 : vector<8x128xf32>
    %cst_84 = arith.constant 1.000000e+00 : f32
    %261 = vector.broadcast %cst_84 : f32 to vector<8x128xf32>
    %262 = arith.addf %261, %260 : vector<8x128xf32>
    %263 = arith.divf %261, %262 : vector<8x128xf32>
    %264 = vector.extract_strided_slice %255 {offsets = [0, 128], sizes = [8, 128], strides = [1, 1]} : vector<8x256xf32> to vector<8x128xf32>
    %265 = arith.mulf %264, %188 : vector<8x128xf32>
    %266 = vector.extract_strided_slice %255 {offsets = [0, 0], sizes = [8, 128], strides = [1, 1]} : vector<8x256xf32> to vector<8x128xf32>
    %267 = arith.mulf %266, %257 : vector<8x128xf32>
    %268 = arith.addf %265, %267 : vector<8x128xf32>
    %269 = math.tanh %268 : vector<8x128xf32>
    %270 = arith.mulf %263, %269 : vector<8x128xf32>
    %c8_85 = arith.constant 8 : index
    %c0_86 = arith.constant 0 : index
    %271 = vector.load %arg12[%c8_85, %c0_86] : memref<64x128xf32, #tpu.memory_space<vmem>>, vector<8x128xf32>
    tpu.vector_store %arg12[%c8_85, %c0_86], %270 {strides = array<i32>} : memref<64x128xf32, #tpu.memory_space<vmem>>, vector<8x128xf32>,
    %272 = arith.truncf %218 : vector<8x128xf32> to vector<8x128xbf16>
    %273 = arith.truncf %244 : vector<8x128xf32> to vector<8x128xbf16>
    %274 = arith.truncf %270 : vector<8x128xf32> to vector<8x128xbf16>
    %c32 = arith.constant 32 : index
    %c0_87 = arith.constant 0 : index
    %275 = vector.load %arg11[%c32, %c0_87] : memref<64x512xf32, #tpu.memory_space<vmem>>, vector<8x512xf32>
    %cst_88 = arith.constant dense<0.000000e+00> : vector<8x512xf32>
    %276 = tpu.matmul %272, %10, %cst_88 {dimension_numbers = #tpu.dot_dimension_numbers<[1], [0], [0], [1], [0, 0, 1, 1], [], []>} : vector<8x128xbf16>, vector<128x512xbf16>, vector<8x512xf32> -> vector<8x512xf32>
    %277 = arith.addf %275, %276 : vector<8x512xf32>
    %278 = vector.extract_strided_slice %277 {offsets = [0, 0], sizes = [8, 256], strides = [1, 1]} : vector<8x512xf32> to vector<8x256xf32>
    %279 = arith.negf %278 : vector<8x256xf32>
    %280 = math.exp %279 : vector<8x256xf32>
    %cst_89 = arith.constant 1.000000e+00 : f32
    %281 = vector.broadcast %cst_89 : f32 to vector<8x256xf32>
    %282 = arith.addf %281, %280 : vector<8x256xf32>
    %283 = arith.divf %281, %282 : vector<8x256xf32>
    %284 = vector.extract_strided_slice %277 {offsets = [0, 256], sizes = [8, 128], strides = [1, 1]} : vector<8x512xf32> to vector<8x128xf32>
    %285 = math.tanh %284 : vector<8x128xf32>
    %286 = vector.extract_strided_slice %277 {offsets = [0, 384], sizes = [8, 128], strides = [1, 1]} : vector<8x512xf32> to vector<8x128xf32>
    %287 = arith.negf %286 : vector<8x128xf32>
    %288 = math.exp %287 : vector<8x128xf32>
    %cst_90 = arith.constant 1.000000e+00 : f32
    %289 = vector.broadcast %cst_90 : f32 to vector<8x128xf32>
    %290 = arith.addf %289, %288 : vector<8x128xf32>
    %291 = arith.divf %289, %290 : vector<8x128xf32>
    %292 = vector.extract_strided_slice %283 {offsets = [0, 128], sizes = [8, 128], strides = [1, 1]} : vector<8x256xf32> to vector<8x128xf32>
    %293 = arith.mulf %292, %216 : vector<8x128xf32>
    %294 = vector.extract_strided_slice %283 {offsets = [0, 0], sizes = [8, 128], strides = [1, 1]} : vector<8x256xf32> to vector<8x128xf32>
    %295 = arith.mulf %294, %285 : vector<8x128xf32>
    %296 = arith.addf %293, %295 : vector<8x128xf32>
    %297 = math.tanh %296 : vector<8x128xf32>
    %298 = arith.mulf %291, %297 : vector<8x128xf32>
    %cst_91 = arith.constant dense<0.000000e+00> : vector<8x512xf32>
    %299 = tpu.matmul %272, %16, %cst_91 {dimension_numbers = #tpu.dot_dimension_numbers<[1], [0], [0], [1], [0, 0, 1, 1], [], []>} : vector<8x128xbf16>, vector<128x512xbf16>, vector<8x512xf32> -> vector<8x512xf32>
    %cst_92 = arith.constant dense<0.000000e+00> : vector<8x512xf32>
    %300 = tpu.matmul %273, %12, %cst_92 {dimension_numbers = #tpu.dot_dimension_numbers<[1], [0], [0], [1], [0, 0, 1, 1], [], []>} : vector<8x128xbf16>, vector<128x512xbf16>, vector<8x512xf32> -> vector<8x512xf32>
    %301 = arith.addf %299, %300 : vector<8x512xf32>
    %302 = vector.broadcast %20 : vector<1x512xf32> to vector<8x512xf32>
    %303 = arith.addf %301, %302 : vector<8x512xf32>
    %304 = vector.extract_strided_slice %303 {offsets = [0, 0], sizes = [8, 256], strides = [1, 1]} : vector<8x512xf32> to vector<8x256xf32>
    %305 = arith.negf %304 : vector<8x256xf32>
    %306 = math.exp %305 : vector<8x256xf32>
    %cst_93 = arith.constant 1.000000e+00 : f32
    %307 = vector.broadcast %cst_93 : f32 to vector<8x256xf32>
    %308 = arith.addf %307, %306 : vector<8x256xf32>
    %309 = arith.divf %307, %308 : vector<8x256xf32>
    %310 = vector.extract_strided_slice %303 {offsets = [0, 256], sizes = [8, 128], strides = [1, 1]} : vector<8x512xf32> to vector<8x128xf32>
    %311 = math.tanh %310 : vector<8x128xf32>
    %312 = vector.extract_strided_slice %303 {offsets = [0, 384], sizes = [8, 128], strides = [1, 1]} : vector<8x512xf32> to vector<8x128xf32>
    %313 = arith.negf %312 : vector<8x128xf32>
    %314 = math.exp %313 : vector<8x128xf32>
    %cst_94 = arith.constant 1.000000e+00 : f32
    %315 = vector.broadcast %cst_94 : f32 to vector<8x128xf32>
    %316 = arith.addf %315, %314 : vector<8x128xf32>
    %317 = arith.divf %315, %316 : vector<8x128xf32>
    %318 = vector.extract_strided_slice %309 {offsets = [0, 128], sizes = [8, 128], strides = [1, 1]} : vector<8x256xf32> to vector<8x128xf32>
    %319 = arith.mulf %318, %242 : vector<8x128xf32>
    %320 = vector.extract_strided_slice %309 {offsets = [0, 0], sizes = [8, 128], strides = [1, 1]} : vector<8x256xf32> to vector<8x128xf32>
    %321 = arith.mulf %320, %311 : vector<8x128xf32>
    %322 = arith.addf %319, %321 : vector<8x128xf32>
    %323 = math.tanh %322 : vector<8x128xf32>
    %324 = arith.mulf %317, %323 : vector<8x128xf32>
    %cst_95 = arith.constant dense<0.000000e+00> : vector<8x512xf32>
    %325 = tpu.matmul %273, %18, %cst_95 {dimension_numbers = #tpu.dot_dimension_numbers<[1], [0], [0], [1], [0, 0, 1, 1], [], []>} : vector<8x128xbf16>, vector<128x512xbf16>, vector<8x512xf32> -> vector<8x512xf32>
    %cst_96 = arith.constant dense<0.000000e+00> : vector<8x512xf32>
    %326 = tpu.matmul %274, %14, %cst_96 {dimension_numbers = #tpu.dot_dimension_numbers<[1], [0], [0], [1], [0, 0, 1, 1], [], []>} : vector<8x128xbf16>, vector<128x512xbf16>, vector<8x512xf32> -> vector<8x512xf32>
    %327 = arith.addf %325, %326 : vector<8x512xf32>
    %328 = vector.broadcast %22 : vector<1x512xf32> to vector<8x512xf32>
    %329 = arith.addf %327, %328 : vector<8x512xf32>
    %330 = vector.extract_strided_slice %329 {offsets = [0, 0], sizes = [8, 256], strides = [1, 1]} : vector<8x512xf32> to vector<8x256xf32>
    %331 = arith.negf %330 : vector<8x256xf32>
    %332 = math.exp %331 : vector<8x256xf32>
    %cst_97 = arith.constant 1.000000e+00 : f32
    %333 = vector.broadcast %cst_97 : f32 to vector<8x256xf32>
    %334 = arith.addf %333, %332 : vector<8x256xf32>
    %335 = arith.divf %333, %334 : vector<8x256xf32>
    %336 = vector.extract_strided_slice %329 {offsets = [0, 256], sizes = [8, 128], strides = [1, 1]} : vector<8x512xf32> to vector<8x128xf32>
    %337 = math.tanh %336 : vector<8x128xf32>
    %338 = vector.extract_strided_slice %329 {offsets = [0, 384], sizes = [8, 128], strides = [1, 1]} : vector<8x512xf32> to vector<8x128xf32>
    %339 = arith.negf %338 : vector<8x128xf32>
    %340 = math.exp %339 : vector<8x128xf32>
    %cst_98 = arith.constant 1.000000e+00 : f32
    %341 = vector.broadcast %cst_98 : f32 to vector<8x128xf32>
    %342 = arith.addf %341, %340 : vector<8x128xf32>
    %343 = arith.divf %341, %342 : vector<8x128xf32>
    %344 = vector.extract_strided_slice %335 {offsets = [0, 128], sizes = [8, 128], strides = [1, 1]} : vector<8x256xf32> to vector<8x128xf32>
    %345 = arith.mulf %344, %268 : vector<8x128xf32>
    %346 = vector.extract_strided_slice %335 {offsets = [0, 0], sizes = [8, 128], strides = [1, 1]} : vector<8x256xf32> to vector<8x128xf32>
    %347 = arith.mulf %346, %337 : vector<8x128xf32>
    %348 = arith.addf %345, %347 : vector<8x128xf32>
    %349 = math.tanh %348 : vector<8x128xf32>
    %350 = arith.mulf %343, %349 : vector<8x128xf32>
    %c16_99 = arith.constant 16 : index
    %c0_100 = arith.constant 0 : index
    %351 = vector.load %arg12[%c16_99, %c0_100] : memref<64x128xf32, #tpu.memory_space<vmem>>, vector<8x128xf32>
    tpu.vector_store %arg12[%c16_99, %c0_100], %350 {strides = array<i32>} : memref<64x128xf32, #tpu.memory_space<vmem>>, vector<8x128xf32>,
    %352 = arith.truncf %298 : vector<8x128xf32> to vector<8x128xbf16>
    %353 = arith.truncf %324 : vector<8x128xf32> to vector<8x128xbf16>
    %354 = arith.truncf %350 : vector<8x128xf32> to vector<8x128xbf16>
    %c40 = arith.constant 40 : index
    %c0_101 = arith.constant 0 : index
    %355 = vector.load %arg11[%c40, %c0_101] : memref<64x512xf32, #tpu.memory_space<vmem>>, vector<8x512xf32>
    %cst_102 = arith.constant dense<0.000000e+00> : vector<8x512xf32>
    %356 = tpu.matmul %352, %10, %cst_102 {dimension_numbers = #tpu.dot_dimension_numbers<[1], [0], [0], [1], [0, 0, 1, 1], [], []>} : vector<8x128xbf16>, vector<128x512xbf16>, vector<8x512xf32> -> vector<8x512xf32>
    %357 = arith.addf %355, %356 : vector<8x512xf32>
    %358 = vector.extract_strided_slice %357 {offsets = [0, 0], sizes = [8, 256], strides = [1, 1]} : vector<8x512xf32> to vector<8x256xf32>
    %359 = arith.negf %358 : vector<8x256xf32>
    %360 = math.exp %359 : vector<8x256xf32>
    %cst_103 = arith.constant 1.000000e+00 : f32
    %361 = vector.broadcast %cst_103 : f32 to vector<8x256xf32>
    %362 = arith.addf %361, %360 : vector<8x256xf32>
    %363 = arith.divf %361, %362 : vector<8x256xf32>
    %364 = vector.extract_strided_slice %357 {offsets = [0, 256], sizes = [8, 128], strides = [1, 1]} : vector<8x512xf32> to vector<8x128xf32>
    %365 = math.tanh %364 : vector<8x128xf32>
    %366 = vector.extract_strided_slice %357 {offsets = [0, 384], sizes = [8, 128], strides = [1, 1]} : vector<8x512xf32> to vector<8x128xf32>
    %367 = arith.negf %366 : vector<8x128xf32>
    %368 = math.exp %367 : vector<8x128xf32>
    %cst_104 = arith.constant 1.000000e+00 : f32
    %369 = vector.broadcast %cst_104 : f32 to vector<8x128xf32>
    %370 = arith.addf %369, %368 : vector<8x128xf32>
    %371 = arith.divf %369, %370 : vector<8x128xf32>
    %372 = vector.extract_strided_slice %363 {offsets = [0, 128], sizes = [8, 128], strides = [1, 1]} : vector<8x256xf32> to vector<8x128xf32>
    %373 = arith.mulf %372, %296 : vector<8x128xf32>
    %374 = vector.extract_strided_slice %363 {offsets = [0, 0], sizes = [8, 128], strides = [1, 1]} : vector<8x256xf32> to vector<8x128xf32>
    %375 = arith.mulf %374, %365 : vector<8x128xf32>
    %376 = arith.addf %373, %375 : vector<8x128xf32>
    %377 = math.tanh %376 : vector<8x128xf32>
    %378 = arith.mulf %371, %377 : vector<8x128xf32>
    %cst_105 = arith.constant dense<0.000000e+00> : vector<8x512xf32>
    %379 = tpu.matmul %352, %16, %cst_105 {dimension_numbers = #tpu.dot_dimension_numbers<[1], [0], [0], [1], [0, 0, 1, 1], [], []>} : vector<8x128xbf16>, vector<128x512xbf16>, vector<8x512xf32> -> vector<8x512xf32>
    %cst_106 = arith.constant dense<0.000000e+00> : vector<8x512xf32>
    %380 = tpu.matmul %353, %12, %cst_106 {dimension_numbers = #tpu.dot_dimension_numbers<[1], [0], [0], [1], [0, 0, 1, 1], [], []>} : vector<8x128xbf16>, vector<128x512xbf16>, vector<8x512xf32> -> vector<8x512xf32>
    %381 = arith.addf %379, %380 : vector<8x512xf32>
    %382 = vector.broadcast %20 : vector<1x512xf32> to vector<8x512xf32>
    %383 = arith.addf %381, %382 : vector<8x512xf32>
    %384 = vector.extract_strided_slice %383 {offsets = [0, 0], sizes = [8, 256], strides = [1, 1]} : vector<8x512xf32> to vector<8x256xf32>
    %385 = arith.negf %384 : vector<8x256xf32>
    %386 = math.exp %385 : vector<8x256xf32>
    %cst_107 = arith.constant 1.000000e+00 : f32
    %387 = vector.broadcast %cst_107 : f32 to vector<8x256xf32>
    %388 = arith.addf %387, %386 : vector<8x256xf32>
    %389 = arith.divf %387, %388 : vector<8x256xf32>
    %390 = vector.extract_strided_slice %383 {offsets = [0, 256], sizes = [8, 128], strides = [1, 1]} : vector<8x512xf32> to vector<8x128xf32>
    %391 = math.tanh %390 : vector<8x128xf32>
    %392 = vector.extract_strided_slice %383 {offsets = [0, 384], sizes = [8, 128], strides = [1, 1]} : vector<8x512xf32> to vector<8x128xf32>
    %393 = arith.negf %392 : vector<8x128xf32>
    %394 = math.exp %393 : vector<8x128xf32>
    %cst_108 = arith.constant 1.000000e+00 : f32
    %395 = vector.broadcast %cst_108 : f32 to vector<8x128xf32>
    %396 = arith.addf %395, %394 : vector<8x128xf32>
    %397 = arith.divf %395, %396 : vector<8x128xf32>
    %398 = vector.extract_strided_slice %389 {offsets = [0, 128], sizes = [8, 128], strides = [1, 1]} : vector<8x256xf32> to vector<8x128xf32>
    %399 = arith.mulf %398, %322 : vector<8x128xf32>
    %400 = vector.extract_strided_slice %389 {offsets = [0, 0], sizes = [8, 128], strides = [1, 1]} : vector<8x256xf32> to vector<8x128xf32>
    %401 = arith.mulf %400, %391 : vector<8x128xf32>
    %402 = arith.addf %399, %401 : vector<8x128xf32>
    %403 = math.tanh %402 : vector<8x128xf32>
    %404 = arith.mulf %397, %403 : vector<8x128xf32>
    %cst_109 = arith.constant dense<0.000000e+00> : vector<8x512xf32>
    %405 = tpu.matmul %353, %18, %cst_109 {dimension_numbers = #tpu.dot_dimension_numbers<[1], [0], [0], [1], [0, 0, 1, 1], [], []>} : vector<8x128xbf16>, vector<128x512xbf16>, vector<8x512xf32> -> vector<8x512xf32>
    %cst_110 = arith.constant dense<0.000000e+00> : vector<8x512xf32>
    %406 = tpu.matmul %354, %14, %cst_110 {dimension_numbers = #tpu.dot_dimension_numbers<[1], [0], [0], [1], [0, 0, 1, 1], [], []>} : vector<8x128xbf16>, vector<128x512xbf16>, vector<8x512xf32> -> vector<8x512xf32>
    %407 = arith.addf %405, %406 : vector<8x512xf32>
    %408 = vector.broadcast %22 : vector<1x512xf32> to vector<8x512xf32>
    %409 = arith.addf %407, %408 : vector<8x512xf32>
    %410 = vector.extract_strided_slice %409 {offsets = [0, 0], sizes = [8, 256], strides = [1, 1]} : vector<8x512xf32> to vector<8x256xf32>
    %411 = arith.negf %410 : vector<8x256xf32>
    %412 = math.exp %411 : vector<8x256xf32>
    %cst_111 = arith.constant 1.000000e+00 : f32
    %413 = vector.broadcast %cst_111 : f32 to vector<8x256xf32>
    %414 = arith.addf %413, %412 : vector<8x256xf32>
    %415 = arith.divf %413, %414 : vector<8x256xf32>
    %416 = vector.extract_strided_slice %409 {offsets = [0, 256], sizes = [8, 128], strides = [1, 1]} : vector<8x512xf32> to vector<8x128xf32>
    %417 = math.tanh %416 : vector<8x128xf32>
    %418 = vector.extract_strided_slice %409 {offsets = [0, 384], sizes = [8, 128], strides = [1, 1]} : vector<8x512xf32> to vector<8x128xf32>
    %419 = arith.negf %418 : vector<8x128xf32>
    %420 = math.exp %419 : vector<8x128xf32>
    %cst_112 = arith.constant 1.000000e+00 : f32
    %421 = vector.broadcast %cst_112 : f32 to vector<8x128xf32>
    %422 = arith.addf %421, %420 : vector<8x128xf32>
    %423 = arith.divf %421, %422 : vector<8x128xf32>
    %424 = vector.extract_strided_slice %415 {offsets = [0, 128], sizes = [8, 128], strides = [1, 1]} : vector<8x256xf32> to vector<8x128xf32>
    %425 = arith.mulf %424, %348 : vector<8x128xf32>
    %426 = vector.extract_strided_slice %415 {offsets = [0, 0], sizes = [8, 128], strides = [1, 1]} : vector<8x256xf32> to vector<8x128xf32>
    %427 = arith.mulf %426, %417 : vector<8x128xf32>
    %428 = arith.addf %425, %427 : vector<8x128xf32>
    %429 = math.tanh %428 : vector<8x128xf32>
    %430 = arith.mulf %423, %429 : vector<8x128xf32>
    %c24_113 = arith.constant 24 : index
    %c0_114 = arith.constant 0 : index
    %431 = vector.load %arg12[%c24_113, %c0_114] : memref<64x128xf32, #tpu.memory_space<vmem>>, vector<8x128xf32>
    tpu.vector_store %arg12[%c24_113, %c0_114], %430 {strides = array<i32>} : memref<64x128xf32, #tpu.memory_space<vmem>>, vector<8x128xf32>,
    %432 = arith.truncf %378 : vector<8x128xf32> to vector<8x128xbf16>
    %433 = arith.truncf %404 : vector<8x128xf32> to vector<8x128xbf16>
    %434 = arith.truncf %430 : vector<8x128xf32> to vector<8x128xbf16>
    %c48 = arith.constant 48 : index
    %c0_115 = arith.constant 0 : index
    %435 = vector.load %arg11[%c48, %c0_115] : memref<64x512xf32, #tpu.memory_space<vmem>>, vector<8x512xf32>
    %cst_116 = arith.constant dense<0.000000e+00> : vector<8x512xf32>
    %436 = tpu.matmul %432, %10, %cst_116 {dimension_numbers = #tpu.dot_dimension_numbers<[1], [0], [0], [1], [0, 0, 1, 1], [], []>} : vector<8x128xbf16>, vector<128x512xbf16>, vector<8x512xf32> -> vector<8x512xf32>
    %437 = arith.addf %435, %436 : vector<8x512xf32>
    %438 = vector.extract_strided_slice %437 {offsets = [0, 0], sizes = [8, 256], strides = [1, 1]} : vector<8x512xf32> to vector<8x256xf32>
    %439 = arith.negf %438 : vector<8x256xf32>
    %440 = math.exp %439 : vector<8x256xf32>
    %cst_117 = arith.constant 1.000000e+00 : f32
    %441 = vector.broadcast %cst_117 : f32 to vector<8x256xf32>
    %442 = arith.addf %441, %440 : vector<8x256xf32>
    %443 = arith.divf %441, %442 : vector<8x256xf32>
    %444 = vector.extract_strided_slice %437 {offsets = [0, 256], sizes = [8, 128], strides = [1, 1]} : vector<8x512xf32> to vector<8x128xf32>
    %445 = math.tanh %444 : vector<8x128xf32>
    %446 = vector.extract_strided_slice %437 {offsets = [0, 384], sizes = [8, 128], strides = [1, 1]} : vector<8x512xf32> to vector<8x128xf32>
    %447 = arith.negf %446 : vector<8x128xf32>
    %448 = math.exp %447 : vector<8x128xf32>
    %cst_118 = arith.constant 1.000000e+00 : f32
    %449 = vector.broadcast %cst_118 : f32 to vector<8x128xf32>
    %450 = arith.addf %449, %448 : vector<8x128xf32>
    %451 = arith.divf %449, %450 : vector<8x128xf32>
    %452 = vector.extract_strided_slice %443 {offsets = [0, 128], sizes = [8, 128], strides = [1, 1]} : vector<8x256xf32> to vector<8x128xf32>
    %453 = arith.mulf %452, %376 : vector<8x128xf32>
    %454 = vector.extract_strided_slice %443 {offsets = [0, 0], sizes = [8, 128], strides = [1, 1]} : vector<8x256xf32> to vector<8x128xf32>
    %455 = arith.mulf %454, %445 : vector<8x128xf32>
    %456 = arith.addf %453, %455 : vector<8x128xf32>
    %457 = math.tanh %456 : vector<8x128xf32>
    %458 = arith.mulf %451, %457 : vector<8x128xf32>
    %cst_119 = arith.constant dense<0.000000e+00> : vector<8x512xf32>
    %459 = tpu.matmul %432, %16, %cst_119 {dimension_numbers = #tpu.dot_dimension_numbers<[1], [0], [0], [1], [0, 0, 1, 1], [], []>} : vector<8x128xbf16>, vector<128x512xbf16>, vector<8x512xf32> -> vector<8x512xf32>
    %cst_120 = arith.constant dense<0.000000e+00> : vector<8x512xf32>
    %460 = tpu.matmul %433, %12, %cst_120 {dimension_numbers = #tpu.dot_dimension_numbers<[1], [0], [0], [1], [0, 0, 1, 1], [], []>} : vector<8x128xbf16>, vector<128x512xbf16>, vector<8x512xf32> -> vector<8x512xf32>
    %461 = arith.addf %459, %460 : vector<8x512xf32>
    %462 = vector.broadcast %20 : vector<1x512xf32> to vector<8x512xf32>
    %463 = arith.addf %461, %462 : vector<8x512xf32>
    %464 = vector.extract_strided_slice %463 {offsets = [0, 0], sizes = [8, 256], strides = [1, 1]} : vector<8x512xf32> to vector<8x256xf32>
    %465 = arith.negf %464 : vector<8x256xf32>
    %466 = math.exp %465 : vector<8x256xf32>
    %cst_121 = arith.constant 1.000000e+00 : f32
    %467 = vector.broadcast %cst_121 : f32 to vector<8x256xf32>
    %468 = arith.addf %467, %466 : vector<8x256xf32>
    %469 = arith.divf %467, %468 : vector<8x256xf32>
    %470 = vector.extract_strided_slice %463 {offsets = [0, 256], sizes = [8, 128], strides = [1, 1]} : vector<8x512xf32> to vector<8x128xf32>
    %471 = math.tanh %470 : vector<8x128xf32>
    %472 = vector.extract_strided_slice %463 {offsets = [0, 384], sizes = [8, 128], strides = [1, 1]} : vector<8x512xf32> to vector<8x128xf32>
    %473 = arith.negf %472 : vector<8x128xf32>
    %474 = math.exp %473 : vector<8x128xf32>
    %cst_122 = arith.constant 1.000000e+00 : f32
    %475 = vector.broadcast %cst_122 : f32 to vector<8x128xf32>
    %476 = arith.addf %475, %474 : vector<8x128xf32>
    %477 = arith.divf %475, %476 : vector<8x128xf32>
    %478 = vector.extract_strided_slice %469 {offsets = [0, 128], sizes = [8, 128], strides = [1, 1]} : vector<8x256xf32> to vector<8x128xf32>
    %479 = arith.mulf %478, %402 : vector<8x128xf32>
    %480 = vector.extract_strided_slice %469 {offsets = [0, 0], sizes = [8, 128], strides = [1, 1]} : vector<8x256xf32> to vector<8x128xf32>
    %481 = arith.mulf %480, %471 : vector<8x128xf32>
    %482 = arith.addf %479, %481 : vector<8x128xf32>
    %483 = math.tanh %482 : vector<8x128xf32>
    %484 = arith.mulf %477, %483 : vector<8x128xf32>
    %cst_123 = arith.constant dense<0.000000e+00> : vector<8x512xf32>
    %485 = tpu.matmul %433, %18, %cst_123 {dimension_numbers = #tpu.dot_dimension_numbers<[1], [0], [0], [1], [0, 0, 1, 1], [], []>} : vector<8x128xbf16>, vector<128x512xbf16>, vector<8x512xf32> -> vector<8x512xf32>
    %cst_124 = arith.constant dense<0.000000e+00> : vector<8x512xf32>
    %486 = tpu.matmul %434, %14, %cst_124 {dimension_numbers = #tpu.dot_dimension_numbers<[1], [0], [0], [1], [0, 0, 1, 1], [], []>} : vector<8x128xbf16>, vector<128x512xbf16>, vector<8x512xf32> -> vector<8x512xf32>
    %487 = arith.addf %485, %486 : vector<8x512xf32>
    %488 = vector.broadcast %22 : vector<1x512xf32> to vector<8x512xf32>
    %489 = arith.addf %487, %488 : vector<8x512xf32>
    %490 = vector.extract_strided_slice %489 {offsets = [0, 0], sizes = [8, 256], strides = [1, 1]} : vector<8x512xf32> to vector<8x256xf32>
    %491 = arith.negf %490 : vector<8x256xf32>
    %492 = math.exp %491 : vector<8x256xf32>
    %cst_125 = arith.constant 1.000000e+00 : f32
    %493 = vector.broadcast %cst_125 : f32 to vector<8x256xf32>
    %494 = arith.addf %493, %492 : vector<8x256xf32>
    %495 = arith.divf %493, %494 : vector<8x256xf32>
    %496 = vector.extract_strided_slice %489 {offsets = [0, 256], sizes = [8, 128], strides = [1, 1]} : vector<8x512xf32> to vector<8x128xf32>
    %497 = math.tanh %496 : vector<8x128xf32>
    %498 = vector.extract_strided_slice %489 {offsets = [0, 384], sizes = [8, 128], strides = [1, 1]} : vector<8x512xf32> to vector<8x128xf32>
    %499 = arith.negf %498 : vector<8x128xf32>
    %500 = math.exp %499 : vector<8x128xf32>
    %cst_126 = arith.constant 1.000000e+00 : f32
    %501 = vector.broadcast %cst_126 : f32 to vector<8x128xf32>
    %502 = arith.addf %501, %500 : vector<8x128xf32>
    %503 = arith.divf %501, %502 : vector<8x128xf32>
    %504 = vector.extract_strided_slice %495 {offsets = [0, 128], sizes = [8, 128], strides = [1, 1]} : vector<8x256xf32> to vector<8x128xf32>
    %505 = arith.mulf %504, %428 : vector<8x128xf32>
    %506 = vector.extract_strided_slice %495 {offsets = [0, 0], sizes = [8, 128], strides = [1, 1]} : vector<8x256xf32> to vector<8x128xf32>
    %507 = arith.mulf %506, %497 : vector<8x128xf32>
    %508 = arith.addf %505, %507 : vector<8x128xf32>
    %509 = math.tanh %508 : vector<8x128xf32>
    %510 = arith.mulf %503, %509 : vector<8x128xf32>
    %c32_127 = arith.constant 32 : index
    %c0_128 = arith.constant 0 : index
    %511 = vector.load %arg12[%c32_127, %c0_128] : memref<64x128xf32, #tpu.memory_space<vmem>>, vector<8x128xf32>
    tpu.vector_store %arg12[%c32_127, %c0_128], %510 {strides = array<i32>} : memref<64x128xf32, #tpu.memory_space<vmem>>, vector<8x128xf32>,
    %512 = arith.truncf %458 : vector<8x128xf32> to vector<8x128xbf16>
    %513 = arith.truncf %484 : vector<8x128xf32> to vector<8x128xbf16>
    %514 = arith.truncf %510 : vector<8x128xf32> to vector<8x128xbf16>
    %c56 = arith.constant 56 : index
    %c0_129 = arith.constant 0 : index
    %515 = vector.load %arg11[%c56, %c0_129] : memref<64x512xf32, #tpu.memory_space<vmem>>, vector<8x512xf32>
    %cst_130 = arith.constant dense<0.000000e+00> : vector<8x512xf32>
    %516 = tpu.matmul %512, %10, %cst_130 {dimension_numbers = #tpu.dot_dimension_numbers<[1], [0], [0], [1], [0, 0, 1, 1], [], []>} : vector<8x128xbf16>, vector<128x512xbf16>, vector<8x512xf32> -> vector<8x512xf32>
    %517 = arith.addf %515, %516 : vector<8x512xf32>
    %518 = vector.extract_strided_slice %517 {offsets = [0, 0], sizes = [8, 256], strides = [1, 1]} : vector<8x512xf32> to vector<8x256xf32>
    %519 = arith.negf %518 : vector<8x256xf32>
    %520 = math.exp %519 : vector<8x256xf32>
    %cst_131 = arith.constant 1.000000e+00 : f32
    %521 = vector.broadcast %cst_131 : f32 to vector<8x256xf32>
    %522 = arith.addf %521, %520 : vector<8x256xf32>
    %523 = arith.divf %521, %522 : vector<8x256xf32>
    %524 = vector.extract_strided_slice %517 {offsets = [0, 256], sizes = [8, 128], strides = [1, 1]} : vector<8x512xf32> to vector<8x128xf32>
    %525 = math.tanh %524 : vector<8x128xf32>
    %526 = vector.extract_strided_slice %517 {offsets = [0, 384], sizes = [8, 128], strides = [1, 1]} : vector<8x512xf32> to vector<8x128xf32>
    %527 = arith.negf %526 : vector<8x128xf32>
    %528 = math.exp %527 : vector<8x128xf32>
    %cst_132 = arith.constant 1.000000e+00 : f32
    %529 = vector.broadcast %cst_132 : f32 to vector<8x128xf32>
    %530 = arith.addf %529, %528 : vector<8x128xf32>
    %531 = arith.divf %529, %530 : vector<8x128xf32>
    %532 = vector.extract_strided_slice %523 {offsets = [0, 128], sizes = [8, 128], strides = [1, 1]} : vector<8x256xf32> to vector<8x128xf32>
    %533 = arith.mulf %532, %456 : vector<8x128xf32>
    %534 = vector.extract_strided_slice %523 {offsets = [0, 0], sizes = [8, 128], strides = [1, 1]} : vector<8x256xf32> to vector<8x128xf32>
    %535 = arith.mulf %534, %525 : vector<8x128xf32>
    %536 = arith.addf %533, %535 : vector<8x128xf32>
    %537 = math.tanh %536 : vector<8x128xf32>
    %538 = arith.mulf %531, %537 : vector<8x128xf32>
    %cst_133 = arith.constant dense<0.000000e+00> : vector<8x512xf32>
    %539 = tpu.matmul %512, %16, %cst_133 {dimension_numbers = #tpu.dot_dimension_numbers<[1], [0], [0], [1], [0, 0, 1, 1], [], []>} : vector<8x128xbf16>, vector<128x512xbf16>, vector<8x512xf32> -> vector<8x512xf32>
    %cst_134 = arith.constant dense<0.000000e+00> : vector<8x512xf32>
    %540 = tpu.matmul %513, %12, %cst_134 {dimension_numbers = #tpu.dot_dimension_numbers<[1], [0], [0], [1], [0, 0, 1, 1], [], []>} : vector<8x128xbf16>, vector<128x512xbf16>, vector<8x512xf32> -> vector<8x512xf32>
    %541 = arith.addf %539, %540 : vector<8x512xf32>
    %542 = vector.broadcast %20 : vector<1x512xf32> to vector<8x512xf32>
    %543 = arith.addf %541, %542 : vector<8x512xf32>
    %544 = vector.extract_strided_slice %543 {offsets = [0, 0], sizes = [8, 256], strides = [1, 1]} : vector<8x512xf32> to vector<8x256xf32>
    %545 = arith.negf %544 : vector<8x256xf32>
    %546 = math.exp %545 : vector<8x256xf32>
    %cst_135 = arith.constant 1.000000e+00 : f32
    %547 = vector.broadcast %cst_135 : f32 to vector<8x256xf32>
    %548 = arith.addf %547, %546 : vector<8x256xf32>
    %549 = arith.divf %547, %548 : vector<8x256xf32>
    %550 = vector.extract_strided_slice %543 {offsets = [0, 256], sizes = [8, 128], strides = [1, 1]} : vector<8x512xf32> to vector<8x128xf32>
    %551 = math.tanh %550 : vector<8x128xf32>
    %552 = vector.extract_strided_slice %543 {offsets = [0, 384], sizes = [8, 128], strides = [1, 1]} : vector<8x512xf32> to vector<8x128xf32>
    %553 = arith.negf %552 : vector<8x128xf32>
    %554 = math.exp %553 : vector<8x128xf32>
    %cst_136 = arith.constant 1.000000e+00 : f32
    %555 = vector.broadcast %cst_136 : f32 to vector<8x128xf32>
    %556 = arith.addf %555, %554 : vector<8x128xf32>
    %557 = arith.divf %555, %556 : vector<8x128xf32>
    %558 = vector.extract_strided_slice %549 {offsets = [0, 128], sizes = [8, 128], strides = [1, 1]} : vector<8x256xf32> to vector<8x128xf32>
    %559 = arith.mulf %558, %482 : vector<8x128xf32>
    %560 = vector.extract_strided_slice %549 {offsets = [0, 0], sizes = [8, 128], strides = [1, 1]} : vector<8x256xf32> to vector<8x128xf32>
    %561 = arith.mulf %560, %551 : vector<8x128xf32>
    %562 = arith.addf %559, %561 : vector<8x128xf32>
    %563 = math.tanh %562 : vector<8x128xf32>
    %564 = arith.mulf %557, %563 : vector<8x128xf32>
    %cst_137 = arith.constant dense<0.000000e+00> : vector<8x512xf32>
    %565 = tpu.matmul %513, %18, %cst_137 {dimension_numbers = #tpu.dot_dimension_numbers<[1], [0], [0], [1], [0, 0, 1, 1], [], []>} : vector<8x128xbf16>, vector<128x512xbf16>, vector<8x512xf32> -> vector<8x512xf32>
    %cst_138 = arith.constant dense<0.000000e+00> : vector<8x512xf32>
    %566 = tpu.matmul %514, %14, %cst_138 {dimension_numbers = #tpu.dot_dimension_numbers<[1], [0], [0], [1], [0, 0, 1, 1], [], []>} : vector<8x128xbf16>, vector<128x512xbf16>, vector<8x512xf32> -> vector<8x512xf32>
    %567 = arith.addf %565, %566 : vector<8x512xf32>
    %568 = vector.broadcast %22 : vector<1x512xf32> to vector<8x512xf32>
    %569 = arith.addf %567, %568 : vector<8x512xf32>
    %570 = vector.extract_strided_slice %569 {offsets = [0, 0], sizes = [8, 256], strides = [1, 1]} : vector<8x512xf32> to vector<8x256xf32>
    %571 = arith.negf %570 : vector<8x256xf32>
    %572 = math.exp %571 : vector<8x256xf32>
    %cst_139 = arith.constant 1.000000e+00 : f32
    %573 = vector.broadcast %cst_139 : f32 to vector<8x256xf32>
    %574 = arith.addf %573, %572 : vector<8x256xf32>
    %575 = arith.divf %573, %574 : vector<8x256xf32>
    %576 = vector.extract_strided_slice %569 {offsets = [0, 256], sizes = [8, 128], strides = [1, 1]} : vector<8x512xf32> to vector<8x128xf32>
    %577 = math.tanh %576 : vector<8x128xf32>
    %578 = vector.extract_strided_slice %569 {offsets = [0, 384], sizes = [8, 128], strides = [1, 1]} : vector<8x512xf32> to vector<8x128xf32>
    %579 = arith.negf %578 : vector<8x128xf32>
    %580 = math.exp %579 : vector<8x128xf32>
    %cst_140 = arith.constant 1.000000e+00 : f32
    %581 = vector.broadcast %cst_140 : f32 to vector<8x128xf32>
    %582 = arith.addf %581, %580 : vector<8x128xf32>
    %583 = arith.divf %581, %582 : vector<8x128xf32>
    %584 = vector.extract_strided_slice %575 {offsets = [0, 128], sizes = [8, 128], strides = [1, 1]} : vector<8x256xf32> to vector<8x128xf32>
    %585 = arith.mulf %584, %508 : vector<8x128xf32>
    %586 = vector.extract_strided_slice %575 {offsets = [0, 0], sizes = [8, 128], strides = [1, 1]} : vector<8x256xf32> to vector<8x128xf32>
    %587 = arith.mulf %586, %577 : vector<8x128xf32>
    %588 = arith.addf %585, %587 : vector<8x128xf32>
    %589 = math.tanh %588 : vector<8x128xf32>
    %590 = arith.mulf %583, %589 : vector<8x128xf32>
    %c40_141 = arith.constant 40 : index
    %c0_142 = arith.constant 0 : index
    %591 = vector.load %arg12[%c40_141, %c0_142] : memref<64x128xf32, #tpu.memory_space<vmem>>, vector<8x128xf32>
    tpu.vector_store %arg12[%c40_141, %c0_142], %590 {strides = array<i32>} : memref<64x128xf32, #tpu.memory_space<vmem>>, vector<8x128xf32>,
    %592 = arith.truncf %538 : vector<8x128xf32> to vector<8x128xbf16>
    %593 = arith.truncf %564 : vector<8x128xf32> to vector<8x128xbf16>
    %594 = arith.truncf %590 : vector<8x128xf32> to vector<8x128xbf16>
    %cst_143 = arith.constant dense<0.000000e+00> : vector<8x512xf32>
    %595 = tpu.matmul %592, %16, %cst_143 {dimension_numbers = #tpu.dot_dimension_numbers<[1], [0], [0], [1], [0, 0, 1, 1], [], []>} : vector<8x128xbf16>, vector<128x512xbf16>, vector<8x512xf32> -> vector<8x512xf32>
    %cst_144 = arith.constant dense<0.000000e+00> : vector<8x512xf32>
    %596 = tpu.matmul %593, %12, %cst_144 {dimension_numbers = #tpu.dot_dimension_numbers<[1], [0], [0], [1], [0, 0, 1, 1], [], []>} : vector<8x128xbf16>, vector<128x512xbf16>, vector<8x512xf32> -> vector<8x512xf32>
    %597 = arith.addf %595, %596 : vector<8x512xf32>
    %598 = vector.broadcast %20 : vector<1x512xf32> to vector<8x512xf32>
    %599 = arith.addf %597, %598 : vector<8x512xf32>
    %600 = vector.extract_strided_slice %599 {offsets = [0, 0], sizes = [8, 256], strides = [1, 1]} : vector<8x512xf32> to vector<8x256xf32>
    %601 = arith.negf %600 : vector<8x256xf32>
    %602 = math.exp %601 : vector<8x256xf32>
    %cst_145 = arith.constant 1.000000e+00 : f32
    %603 = vector.broadcast %cst_145 : f32 to vector<8x256xf32>
    %604 = arith.addf %603, %602 : vector<8x256xf32>
    %605 = arith.divf %603, %604 : vector<8x256xf32>
    %606 = vector.extract_strided_slice %599 {offsets = [0, 256], sizes = [8, 128], strides = [1, 1]} : vector<8x512xf32> to vector<8x128xf32>
    %607 = math.tanh %606 : vector<8x128xf32>
    %608 = vector.extract_strided_slice %599 {offsets = [0, 384], sizes = [8, 128], strides = [1, 1]} : vector<8x512xf32> to vector<8x128xf32>
    %609 = arith.negf %608 : vector<8x128xf32>
    %610 = math.exp %609 : vector<8x128xf32>
    %cst_146 = arith.constant 1.000000e+00 : f32
    %611 = vector.broadcast %cst_146 : f32 to vector<8x128xf32>
    %612 = arith.addf %611, %610 : vector<8x128xf32>
    %613 = arith.divf %611, %612 : vector<8x128xf32>
    %614 = vector.extract_strided_slice %605 {offsets = [0, 128], sizes = [8, 128], strides = [1, 1]} : vector<8x256xf32> to vector<8x128xf32>
    %615 = arith.mulf %614, %562 : vector<8x128xf32>
    %616 = vector.extract_strided_slice %605 {offsets = [0, 0], sizes = [8, 128], strides = [1, 1]} : vector<8x256xf32> to vector<8x128xf32>
    %617 = arith.mulf %616, %607 : vector<8x128xf32>
    %618 = arith.addf %615, %617 : vector<8x128xf32>
    %619 = math.tanh %618 : vector<8x128xf32>
    %620 = arith.mulf %613, %619 : vector<8x128xf32>
    %cst_147 = arith.constant dense<0.000000e+00> : vector<8x512xf32>
    %621 = tpu.matmul %593, %18, %cst_147 {dimension_numbers = #tpu.dot_dimension_numbers<[1], [0], [0], [1], [0, 0, 1, 1], [], []>} : vector<8x128xbf16>, vector<128x512xbf16>, vector<8x512xf32> -> vector<8x512xf32>
    %cst_148 = arith.constant dense<0.000000e+00> : vector<8x512xf32>
    %622 = tpu.matmul %594, %14, %cst_148 {dimension_numbers = #tpu.dot_dimension_numbers<[1], [0], [0], [1], [0, 0, 1, 1], [], []>} : vector<8x128xbf16>, vector<128x512xbf16>, vector<8x512xf32> -> vector<8x512xf32>
    %623 = arith.addf %621, %622 : vector<8x512xf32>
    %624 = vector.broadcast %22 : vector<1x512xf32> to vector<8x512xf32>
    %625 = arith.addf %623, %624 : vector<8x512xf32>
    %626 = vector.extract_strided_slice %625 {offsets = [0, 0], sizes = [8, 256], strides = [1, 1]} : vector<8x512xf32> to vector<8x256xf32>
    %627 = arith.negf %626 : vector<8x256xf32>
    %628 = math.exp %627 : vector<8x256xf32>
    %cst_149 = arith.constant 1.000000e+00 : f32
    %629 = vector.broadcast %cst_149 : f32 to vector<8x256xf32>
    %630 = arith.addf %629, %628 : vector<8x256xf32>
    %631 = arith.divf %629, %630 : vector<8x256xf32>
    %632 = vector.extract_strided_slice %625 {offsets = [0, 256], sizes = [8, 128], strides = [1, 1]} : vector<8x512xf32> to vector<8x128xf32>
    %633 = math.tanh %632 : vector<8x128xf32>
    %634 = vector.extract_strided_slice %625 {offsets = [0, 384], sizes = [8, 128], strides = [1, 1]} : vector<8x512xf32> to vector<8x128xf32>
    %635 = arith.negf %634 : vector<8x128xf32>
    %636 = math.exp %635 : vector<8x128xf32>
    %cst_150 = arith.constant 1.000000e+00 : f32
    %637 = vector.broadcast %cst_150 : f32 to vector<8x128xf32>
    %638 = arith.addf %637, %636 : vector<8x128xf32>
    %639 = arith.divf %637, %638 : vector<8x128xf32>
    %640 = vector.extract_strided_slice %631 {offsets = [0, 128], sizes = [8, 128], strides = [1, 1]} : vector<8x256xf32> to vector<8x128xf32>
    %641 = arith.mulf %640, %588 : vector<8x128xf32>
    %642 = vector.extract_strided_slice %631 {offsets = [0, 0], sizes = [8, 128], strides = [1, 1]} : vector<8x256xf32> to vector<8x128xf32>
    %643 = arith.mulf %642, %633 : vector<8x128xf32>
    %644 = arith.addf %641, %643 : vector<8x128xf32>
    %645 = math.tanh %644 : vector<8x128xf32>
    %646 = arith.mulf %639, %645 : vector<8x128xf32>
    %c48_151 = arith.constant 48 : index
    %c0_152 = arith.constant 0 : index
    %647 = vector.load %arg12[%c48_151, %c0_152] : memref<64x128xf32, #tpu.memory_space<vmem>>, vector<8x128xf32>
    tpu.vector_store %arg12[%c48_151, %c0_152], %646 {strides = array<i32>} : memref<64x128xf32, #tpu.memory_space<vmem>>, vector<8x128xf32>,
    %648 = arith.truncf %620 : vector<8x128xf32> to vector<8x128xbf16>
    %649 = arith.truncf %646 : vector<8x128xf32> to vector<8x128xbf16>
    %cst_153 = arith.constant dense<0.000000e+00> : vector<8x512xf32>
    %650 = tpu.matmul %648, %18, %cst_153 {dimension_numbers = #tpu.dot_dimension_numbers<[1], [0], [0], [1], [0, 0, 1, 1], [], []>} : vector<8x128xbf16>, vector<128x512xbf16>, vector<8x512xf32> -> vector<8x512xf32>
    %cst_154 = arith.constant dense<0.000000e+00> : vector<8x512xf32>
    %651 = tpu.matmul %649, %14, %cst_154 {dimension_numbers = #tpu.dot_dimension_numbers<[1], [0], [0], [1], [0, 0, 1, 1], [], []>} : vector<8x128xbf16>, vector<128x512xbf16>, vector<8x512xf32> -> vector<8x512xf32>
    %652 = arith.addf %650, %651 : vector<8x512xf32>
    %653 = vector.broadcast %22 : vector<1x512xf32> to vector<8x512xf32>
    %654 = arith.addf %652, %653 : vector<8x512xf32>
    %655 = vector.extract_strided_slice %654 {offsets = [0, 0], sizes = [8, 256], strides = [1, 1]} : vector<8x512xf32> to vector<8x256xf32>
    %656 = arith.negf %655 : vector<8x256xf32>
    %657 = math.exp %656 : vector<8x256xf32>
    %cst_155 = arith.constant 1.000000e+00 : f32
    %658 = vector.broadcast %cst_155 : f32 to vector<8x256xf32>
    %659 = arith.addf %658, %657 : vector<8x256xf32>
    %660 = arith.divf %658, %659 : vector<8x256xf32>
    %661 = vector.extract_strided_slice %654 {offsets = [0, 256], sizes = [8, 128], strides = [1, 1]} : vector<8x512xf32> to vector<8x128xf32>
    %662 = math.tanh %661 : vector<8x128xf32>
    %663 = vector.extract_strided_slice %654 {offsets = [0, 384], sizes = [8, 128], strides = [1, 1]} : vector<8x512xf32> to vector<8x128xf32>
    %664 = arith.negf %663 : vector<8x128xf32>
    %665 = math.exp %664 : vector<8x128xf32>
    %cst_156 = arith.constant 1.000000e+00 : f32
    %666 = vector.broadcast %cst_156 : f32 to vector<8x128xf32>
    %667 = arith.addf %666, %665 : vector<8x128xf32>
    %668 = arith.divf %666, %667 : vector<8x128xf32>
    %669 = vector.extract_strided_slice %660 {offsets = [0, 128], sizes = [8, 128], strides = [1, 1]} : vector<8x256xf32> to vector<8x128xf32>
    %670 = arith.mulf %669, %644 : vector<8x128xf32>
    %671 = vector.extract_strided_slice %660 {offsets = [0, 0], sizes = [8, 128], strides = [1, 1]} : vector<8x256xf32> to vector<8x128xf32>
    %672 = arith.mulf %671, %662 : vector<8x128xf32>
    %673 = arith.addf %670, %672 : vector<8x128xf32>
    %674 = math.tanh %673 : vector<8x128xf32>
    %675 = arith.mulf %668, %674 : vector<8x128xf32>
    %c56_157 = arith.constant 56 : index
    %c0_158 = arith.constant 0 : index
    %676 = vector.load %arg12[%c56_157, %c0_158] : memref<64x128xf32, #tpu.memory_space<vmem>>, vector<8x128xf32>
    tpu.vector_store %arg12[%c56_157, %c0_158], %675 {strides = array<i32>} : memref<64x128xf32, #tpu.memory_space<vmem>>, vector<8x128xf32>,
    %c0_159 = arith.constant 0 : index
    %c0_160 = arith.constant 0 : index
    %c0_161 = arith.constant 0 : index
    %677 = vector.load %arg9[%c0_159, %c0_160, %c0_161] : memref<3x8x128xf32, #tpu.memory_space<vmem>>, vector<1x8x128xf32>
    %678 = vector.shape_cast %677 : vector<1x8x128xf32> to vector<8x128xf32>
    %679 = vector.shape_cast %538 : vector<8x128xf32> to vector<1x8x128xf32>
    tpu.vector_store %arg9[%c0_159, %c0_160, %c0_161], %679 {strides = array<i32>} : memref<3x8x128xf32, #tpu.memory_space<vmem>>, vector<1x8x128xf32>,
    %c0_162 = arith.constant 0 : index
    %c0_163 = arith.constant 0 : index
    %c0_164 = arith.constant 0 : index
    %680 = vector.load %arg10[%c0_162, %c0_163, %c0_164] : memref<3x8x128xf32, #tpu.memory_space<vmem>>, vector<1x8x128xf32>
    %681 = vector.shape_cast %680 : vector<1x8x128xf32> to vector<8x128xf32>
    %682 = vector.shape_cast %536 : vector<8x128xf32> to vector<1x8x128xf32>
    tpu.vector_store %arg10[%c0_162, %c0_163, %c0_164], %682 {strides = array<i32>} : memref<3x8x128xf32, #tpu.memory_space<vmem>>, vector<1x8x128xf32>,
    %c1_165 = arith.constant 1 : index
    %c0_166 = arith.constant 0 : index
    %c0_167 = arith.constant 0 : index
    %683 = vector.load %arg9[%c1_165, %c0_166, %c0_167] : memref<3x8x128xf32, #tpu.memory_space<vmem>>, vector<1x8x128xf32>
    %684 = vector.shape_cast %683 : vector<1x8x128xf32> to vector<8x128xf32>
    %685 = vector.shape_cast %620 : vector<8x128xf32> to vector<1x8x128xf32>
    tpu.vector_store %arg9[%c1_165, %c0_166, %c0_167], %685 {strides = array<i32>} : memref<3x8x128xf32, #tpu.memory_space<vmem>>, vector<1x8x128xf32>,
    %c1_168 = arith.constant 1 : index
    %c0_169 = arith.constant 0 : index
    %c0_170 = arith.constant 0 : index
    %686 = vector.load %arg10[%c1_168, %c0_169, %c0_170] : memref<3x8x128xf32, #tpu.memory_space<vmem>>, vector<1x8x128xf32>
    %687 = vector.shape_cast %686 : vector<1x8x128xf32> to vector<8x128xf32>
    %688 = vector.shape_cast %618 : vector<8x128xf32> to vector<1x8x128xf32>
    tpu.vector_store %arg10[%c1_168, %c0_169, %c0_170], %688 {strides = array<i32>} : memref<3x8x128xf32, #tpu.memory_space<vmem>>, vector<1x8x128xf32>,
    %c2_171 = arith.constant 2 : index
    %c0_172 = arith.constant 0 : index
    %c0_173 = arith.constant 0 : index
    %689 = vector.load %arg9[%c2_171, %c0_172, %c0_173] : memref<3x8x128xf32, #tpu.memory_space<vmem>>, vector<1x8x128xf32>
    %690 = vector.shape_cast %689 : vector<1x8x128xf32> to vector<8x128xf32>
    %691 = vector.shape_cast %675 : vector<8x128xf32> to vector<1x8x128xf32>
    tpu.vector_store %arg9[%c2_171, %c0_172, %c0_173], %691 {strides = array<i32>} : memref<3x8x128xf32, #tpu.memory_space<vmem>>, vector<1x8x128xf32>,
    %c2_174 = arith.constant 2 : index
    %c0_175 = arith.constant 0 : index
    %c0_176 = arith.constant 0 : index
    %692 = vector.load %arg10[%c2_174, %c0_175, %c0_176] : memref<3x8x128xf32, #tpu.memory_space<vmem>>, vector<1x8x128xf32>
    %693 = vector.shape_cast %692 : vector<1x8x128xf32> to vector<8x128xf32>
    %694 = vector.shape_cast %673 : vector<8x128xf32> to vector<1x8x128xf32>
    tpu.vector_store %arg10[%c2_174, %c0_175, %c0_176], %694 {strides = array<i32>} : memref<3x8x128xf32, #tpu.memory_space<vmem>>, vector<1x8x128xf32>,
    %c0_177 = arith.constant 0 : index
    %c0_178 = arith.constant 0 : index
    %695 = vector.load %arg12[%c0_177, %c0_178] : memref<64x128xf32, #tpu.memory_space<vmem>>, vector<64x128xf32>
    %696 = arith.truncf %695 : vector<64x128xf32> to vector<64x128xbf16>
    %c0_179 = arith.constant 0 : index
    %c0_180 = arith.constant 0 : index
    %697 = vector.load %arg6[%c0_179, %c0_180] : memref<128x128xbf16, #tpu.memory_space<vmem>>, vector<128x128xbf16>
    %cst_181 = arith.constant dense<0.000000e+00> : vector<64x128xf32>
    %698 = tpu.matmul %696, %697, %cst_181 {dimension_numbers = #tpu.dot_dimension_numbers<[1], [0], [0], [1], [0, 0, 1, 1], [], []>} : vector<64x128xbf16>, vector<128x128xbf16>, vector<64x128xf32> -> vector<64x128xf32>
    %c0_182 = arith.constant 0 : index
    %c0_183 = arith.constant 0 : index
    %699 = vector.load %arg7[%c0_182, %c0_183] : memref<1x128xf32, #tpu.memory_space<vmem>>, vector<1x128xf32>
    %700 = vector.broadcast %699 : vector<1x128xf32> to vector<64x128xf32>
    %701 = arith.addf %698, %700 : vector<64x128xf32>
    %c0_184 = arith.constant 0 : index
    %c0_185 = arith.constant 0 : index
    %702 = vector.load %arg8[%c0_184, %c0_185] : memref<64x128xf32, #tpu.memory_space<vmem>>, vector<64x128xf32>
    tpu.vector_store %arg8[%c0_184, %c0_185], %701 {strides = array<i32>} : memref<64x128xf32, #tpu.memory_space<vmem>>, vector<64x128xf32>,
    return
  }
}

</mosaic_0001>

<llo_original>
// kernel: model_forward.1
$region0: #{model_forward.1}
  #allocation0 [shape = 'u32[]', space=smem, size = 0x4, offset = 0x4, fixed_abs, tag = 'smem constant byte address 0x4 - core index']
  #allocation1 [shape = 'u32[144,128]{1,0:T(1,128)}', space=vmem, size = 0x12000, scoped, tag = 'internal scratch']
  #allocation2 [shape = 'f32[64,512]{1,0:T(8,128)}', space=vmem, size = 0x20000, scoped, tag = 'scratch operand']
  #allocation3 [shape = 'f32[64,128]{1,0:T(8,128)}', space=vmem, size = 0x8000, scoped, tag = 'scratch operand']
  %s0 = inlined_call_operand.vmem [shape: bf16[64,128], index: 0, kind: input, shape index: {}]
  %s1 = inlined_call_operand.vmem [shape: f32[3,8,128], index: 1, kind: input, shape index: {}]
  %s2 = inlined_call_operand.vmem [shape: f32[3,8,128], index: 2, kind: input, shape index: {}]
  %s3 = inlined_call_operand.hbm [shape: bf16[3,128,512], index: 3, kind: input, shape index: {}]
  %s4 = inlined_call_operand.hbm [shape: bf16[3,128,512], index: 4, kind: input, shape index: {}]
  %s5 = inlined_call_operand.vmem [shape: f32[3,1,512], index: 5, kind: input, shape index: {}]
  %s6 = inlined_call_operand.vmem [shape: bf16[128,128], index: 6, kind: input, shape index: {}]
  %s7 = inlined_call_operand.vmem [shape: f32[1,128], index: 7, kind: input, shape index: {}]
  %s8 = inlined_call_operand.vmem [shape: f32[64,128], index: 8, kind: output, shape index: {0}]
  %s9 = inlined_call_operand.vmem [shape: f32[3,8,128], index: 9, kind: output, shape index: {1}]
  %s10 = inlined_call_operand.vmem [shape: f32[3,8,128], index: 10, kind: output, shape index: {2}]
  %11 = xla_tuple %s8, %s9, %s10
  %s12 = sld [smem:[#allocation0]]
  $region66: #{model_forward.1} parent=0
    _
  %s14 = ssub.s32 1, %s12
  %s15 = scalar_select 0, %s14, %s12
  $region1: #{model_forward.1} parent=0
    #allocation4 [shape = 'u8[393216]{0}', space=vmem, size = 0x60000, scoped, tag = 'input window, operand 3, single buffered']
    #allocation5 [shape = 's32[1]{0}', space=sflag, size = 0x4, scoped, tag = 'scoped memory for model_forward.1']
    #allocation6 [shape = 'u8[393216]{0}', space=vmem, size = 0x60000, scoped, tag = 'input window, operand 4, single buffered']
    #allocation7 [shape = 's32[1]{0}', space=sflag, size = 0x4, scoped, tag = 'scoped memory for model_forward.1']
    %16 = vsyncpa [#allocation5], 0
    %17 = vsyncpa [#allocation7], 0
    // Predicated region
    $region2: #{model_forward.1} parent=1 // pred_check
      _
    $region3: #{model_forward.1} parent=1 // pred_check_branch
      %19 = sbr.rel (0) target = $region5
    $region4: #{model_forward.1} parent=1 // pred_region
      _
    $region5: #{model_forward.1} parent=1 // pred_fallthru
      _
    // Predicated region
    $region6: #{model_forward.1} parent=1 // pred_check
      _
    $region7: #{model_forward.1} parent=1 // pred_check_branch
      %21 = sbr.rel (0) target = $region9
    $region8: #{model_forward.1} parent=1 // pred_region
      _
    $region9: #{model_forward.1} parent=1 // pred_fallthru
      _
    // Predicated region
    $region10: #{model_forward.1} parent=1 // pred_check
      _
    $region11: #{model_forward.1} parent=1 // pred_check_branch
      %23 = sbr.rel (0) target = $region13
    $region12: #{model_forward.1} parent=1 // pred_region
      _
    $region13: #{model_forward.1} parent=1 // pred_fallthru
      _
    // Predicated region
    $region14: #{model_forward.1} parent=1 // pred_check
      _
    $region15: #{model_forward.1} parent=1 // pred_check_branch
      %25 = sbr.rel (0) target = $region17
    $region16: #{model_forward.1} parent=1 // pred_region
      %s27 = ssub.s32 12288, 12288
      %28 = vsyncadd [#allocation5], %s27
      %s29 = sshll.u32 [#allocation4], 4
      %s30 = int_to_ptr.vmem [resolvable:$true] %s29
      %35 = dma.hbm_to_vmem [thread:$0]  %s3, 12288, %s30, [#allocation5], 256, 256, 16
    $region17: #{model_forward.1} parent=1 // pred_fallthru
      _
    // Predicated region
    $region18: #{model_forward.1} parent=1 // pred_check
      _
    $region19: #{model_forward.1} parent=1 // pred_check_branch
      %37 = sbr.rel (0) target = $region21
    $region20: #{model_forward.1} parent=1 // pred_region
      %s39 = ssub.s32 12288, 12288
      %40 = vsyncadd [#allocation7], %s39
      %s41 = sshll.u32 [#allocation6], 4
      %s42 = int_to_ptr.vmem [resolvable:$true] %s41
      %47 = dma.hbm_to_vmem [thread:$0]  %s4, 12288, %s42, [#allocation7], 256, 256, 16
    $region21: #{model_forward.1} parent=1 // pred_fallthru
      _
    // Predicated region
    $region22: #{model_forward.1} parent=1 // pred_check
      _
    $region23: #{model_forward.1} parent=1 // pred_check_branch
      %49 = sbr.rel (0) target = $region25
    $region24: #{model_forward.1} parent=1 // pred_region
      _
    $region25: #{model_forward.1} parent=1 // pred_fallthru
      _
    // Predicated region
    $region26: #{model_forward.1} parent=1 // pred_check
      _
    $region27: #{model_forward.1} parent=1 // pred_check_branch
      %51 = sbr.rel (0) target = $region29
    $region28: #{model_forward.1} parent=1 // pred_region
      _
    $region29: #{model_forward.1} parent=1 // pred_fallthru
      _
    // Predicated region
    $region30: #{model_forward.1} parent=1 // pred_check
      _
    $region31: #{model_forward.1} parent=1 // pred_check_branch
      %53 = sbr.rel (0) target = $region33
    $region32: #{model_forward.1} parent=1 // pred_region
      _
    $region33: #{model_forward.1} parent=1 // pred_fallthru
      _
    // Predicated region
    $region34: #{model_forward.1} parent=1 // pred_check
      _
    $region35: #{model_forward.1} parent=1 // pred_check_branch
      %55 = sbr.rel (0) target = $region37
    $region36: #{model_forward.1} parent=1 // pred_region
      %56 = dma.done [#allocation5], 12288
    $region37: #{model_forward.1} parent=1 // pred_fallthru
      _
    // Predicated region
    $region38: #{model_forward.1} parent=1 // pred_check
      _
    $region39: #{model_forward.1} parent=1 // pred_check_branch
      %58 = sbr.rel (0) target = $region41
    $region40: #{model_forward.1} parent=1 // pred_region
      %59 = dma.done [#allocation7], 12288
    $region41: #{model_forward.1} parent=1 // pred_fallthru
      _
    %v61 = vld [vmem:[%s0] sm:$0xf]
    %v62 = vld [vmem:[%s0 + $0x4] sm:$0xf]
    %v63 = vld [vmem:[%s0 + $0x8] sm:$0xf]
    %v64 = vld [vmem:[%s0 + $0xc] sm:$0xf]
    %v65 = vld [vmem:[%s0 + $0x10] sm:$0xf]
    %v66 = vld [vmem:[%s0 + $0x14] sm:$0xf]
    %v67 = vld [vmem:[%s0 + $0x18] sm:$0xf]
    %v68 = vld [vmem:[%s0 + $0x1c] sm:$0xf]
    %v69 = vld [vmem:[#allocation4] sm:$0xff]
    %v70 = vld [vmem:[#allocation4 + $0x8] sm:$0xff]
    %v71 = vld [vmem:[#allocation4 + $0x10] sm:$0xff]
    %v72 = vld [vmem:[#allocation4 + $0x18] sm:$0xff]
    %v73 = vld [vmem:[#allocation4 + $0x20] sm:$0xff]
    %v74 = vld [vmem:[#allocation4 + $0x28] sm:$0xff]
    %v75 = vld [vmem:[#allocation4 + $0x30] sm:$0xff]
    %v76 = vld [vmem:[#allocation4 + $0x38] sm:$0xff]
    %v77 = vld [vmem:[#allocation4 + $0x40] sm:$0xff]
    %v78 = vld [vmem:[#allocation4 + $0x48] sm:$0xff]
    %v79 = vld [vmem:[#allocation4 + $0x50] sm:$0xff]
    %v80 = vld [vmem:[#allocation4 + $0x58] sm:$0xff]
    %v81 = vld [vmem:[#allocation4 + $0x60] sm:$0xff]
    %v82 = vld [vmem:[#allocation4 + $0x68] sm:$0xff]
    %v83 = vld [vmem:[#allocation4 + $0x70] sm:$0xff]
    %v84 = vld [vmem:[#allocation4 + $0x78] sm:$0xff]
    %v85 = vld [vmem:[#allocation4 + $0x80] sm:$0xff]
    %v86 = vld [vmem:[#allocation4 + $0x88] sm:$0xff]
    %v87 = vld [vmem:[#allocation4 + $0x90] sm:$0xff]
    %v88 = vld [vmem:[#allocation4 + $0x98] sm:$0xff]
    %v89 = vld [vmem:[#allocation4 + $0xa0] sm:$0xff]
    %v90 = vld [vmem:[#allocation4 + $0xa8] sm:$0xff]
    %v91 = vld [vmem:[#allocation4 + $0xb0] sm:$0xff]
    %v92 = vld [vmem:[#allocation4 + $0xb8] sm:$0xff]
    %v93 = vld [vmem:[#allocation4 + $0xc0] sm:$0xff]
    %v94 = vld [vmem:[#allocation4 + $0xc8] sm:$0xff]
    %v95 = vld [vmem:[#allocation4 + $0xd0] sm:$0xff]
    %v96 = vld [vmem:[#allocation4 + $0xd8] sm:$0xff]
    %v97 = vld [vmem:[#allocation4 + $0xe0] sm:$0xff]
    %v98 = vld [vmem:[#allocation4 + $0xe8] sm:$0xff]
    %v99 = vld [vmem:[#allocation4 + $0xf0] sm:$0xff]
    %v100 = vld [vmem:[#allocation4 + $0xf8] sm:$0xff]
    %v101 = vld [vmem:[%s5] sm:$0xf]
    %v103 = vlaneseq
    %v104 = vshrl.u32 %v103, 7
    %v105 = vsub.s32 0, %v104
    %v106 = vrot.slane %v101, %v105
    %v107 = vlaneseq
    %v108 = vshrl.u32 %v107, 7
    %v109 = vsub.s32 1, %v108
    %v110 = vrot.slane %v101, %v109
    %v111 = vlaneseq
    %v112 = vshrl.u32 %v111, 7
    %v113 = vsub.s32 2, %v112
    %v114 = vrot.slane %v101, %v113
    %v115 = vlaneseq
    %v116 = vshrl.u32 %v115, 7
    %v117 = vsub.s32 3, %v116
    %v118 = vrot.slane %v101, %v117
    %v131 = vunpack.c.l.b16 %v61
    %v132 = vunpack.c.l.b16 %v62
    %v133 = vunpack.c.l.b16 %v63
    %v134 = vunpack.c.l.b16 %v64
    %v135 = vunpack.c.l.b16 %v65
    %v136 = vunpack.c.l.b16 %v66
    %v137 = vunpack.c.l.b16 %v67
    %v138 = vunpack.c.l.b16 %v68
    %v139 = vpack.c.b16 %v132, %v131
    %v140 = vpack.c.b16 %v134, %v133
    %v141 = vpack.c.b16 %v136, %v135
    %v142 = vpack.c.b16 %v138, %v137
    %v179 = vunpack.c.l.b16 %v69
    %v180 = vunpack.c.h.b16 %v69
    %v181 = vunpack.c.l.b16 %v70
    %v182 = vunpack.c.h.b16 %v70
    %v183 = vunpack.c.l.b16 %v71
    %v184 = vunpack.c.h.b16 %v71
    %v185 = vunpack.c.l.b16 %v72
    %v186 = vunpack.c.h.b16 %v72
    %v187 = vunpack.c.l.b16 %v73
    %v188 = vunpack.c.h.b16 %v73
    %v189 = vunpack.c.l.b16 %v74
    %v190 = vunpack.c.h.b16 %v74
    %v191 = vunpack.c.l.b16 %v75
    %v192 = vunpack.c.h.b16 %v75
    %v193 = vunpack.c.l.b16 %v76
    %v194 = vunpack.c.h.b16 %v76
    %v195 = vunpack.c.l.b16 %v77
    %v196 = vunpack.c.h.b16 %v77
    %v197 = vunpack.c.l.b16 %v78
    %v198 = vunpack.c.h.b16 %v78
    %v199 = vunpack.c.l.b16 %v79
    %v200 = vunpack.c.h.b16 %v79
    %v201 = vunpack.c.l.b16 %v80
    %v202 = vunpack.c.h.b16 %v80
    %v203 = vunpack.c.l.b16 %v81
    %v204 = vunpack.c.h.b16 %v81
    %v205 = vunpack.c.l.b16 %v82
    %v206 = vunpack.c.h.b16 %v82
    %v207 = vunpack.c.l.b16 %v83
    %v208 = vunpack.c.h.b16 %v83
    %v209 = vunpack.c.l.b16 %v84
    %v210 = vunpack.c.h.b16 %v84
    %v211 = vunpack.c.l.b16 %v85
    %v212 = vunpack.c.h.b16 %v85
    %v213 = vunpack.c.l.b16 %v86
    %v214 = vunpack.c.h.b16 %v86
    %v215 = vunpack.c.l.b16 %v87
    %v216 = vunpack.c.h.b16 %v87
    %v217 = vunpack.c.l.b16 %v88
    %v218 = vunpack.c.h.b16 %v88
    %v219 = vunpack.c.l.b16 %v89
    %v220 = vunpack.c.h.b16 %v89
    %v221 = vunpack.c.l.b16 %v90
    %v222 = vunpack.c.h.b16 %v90
    %v223 = vunpack.c.l.b16 %v91
    %v224 = vunpack.c.h.b16 %v91
    %v225 = vunpack.c.l.b16 %v92
    %v226 = vunpack.c.h.b16 %v92
    %v227 = vunpack.c.l.b16 %v93
    %v228 = vunpack.c.h.b16 %v93
    %v229 = vunpack.c.l.b16 %v94
    %v230 = vunpack.c.h.b16 %v94
    %v231 = vunpack.c.l.b16 %v95
    %v232 = vunpack.c.h.b16 %v95
    %v233 = vunpack.c.l.b16 %v96
    %v234 = vunpack.c.h.b16 %v96
    %v235 = vunpack.c.l.b16 %v97
    %v236 = vunpack.c.h.b16 %v97
    %v237 = vunpack.c.l.b16 %v98
    %v238 = vunpack.c.h.b16 %v98
    %v239 = vunpack.c.l.b16 %v99
    %v240 = vunpack.c.h.b16 %v99
    %v241 = vunpack.c.l.b16 %v100
    %v242 = vunpack.c.h.b16 %v100
    %v243 = vpack.c.b16 %v183, %v179
    %v244 = vpack.c.b16 %v184, %v180
    %v245 = vpack.c.b16 %v185, %v181
    %v246 = vpack.c.b16 %v186, %v182
    %v247 = vpack.c.b16 %v191, %v187
    %v248 = vpack.c.b16 %v192, %v188
    %v249 = vpack.c.b16 %v193, %v189
    %v250 = vpack.c.b16 %v194, %v190
    %v251 = vpack.c.b16 %v199, %v195
    %v252 = vpack.c.b16 %v200, %v196
    %v253 = vpack.c.b16 %v201, %v197
    %v254 = vpack.c.b16 %v202, %v198
    %v255 = vpack.c.b16 %v207, %v203
    %v256 = vpack.c.b16 %v208, %v204
    %v257 = vpack.c.b16 %v209, %v205
    %v258 = vpack.c.b16 %v210, %v206
    %v259 = vpack.c.b16 %v215, %v211
    %v260 = vpack.c.b16 %v216, %v212
    %v261 = vpack.c.b16 %v217, %v213
    %v262 = vpack.c.b16 %v218, %v214
    %v263 = vpack.c.b16 %v223, %v219
    %v264 = vpack.c.b16 %v224, %v220
    %v265 = vpack.c.b16 %v225, %v221
    %v266 = vpack.c.b16 %v226, %v222
    %v267 = vpack.c.b16 %v231, %v227
    %v268 = vpack.c.b16 %v232, %v228
    %v269 = vpack.c.b16 %v233, %v229
    %v270 = vpack.c.b16 %v234, %v230
    %v271 = vpack.c.b16 %v239, %v235
    %v272 = vpack.c.b16 %v240, %v236
    %v273 = vpack.c.b16 %v241, %v237
    %v274 = vpack.c.b16 %v242, %v238
    %307 = vmatprep.subr.bf16.mxu0 %v244
    %308 = vmatpush1.bf16.msra.mxu0 %v243
    %309 = vmatprep.subr.bf16.mxu0 %v248
    %310 = vmatpush1.bf16.msra.mxu0 %v247
    %311 = vmatprep.subr.bf16.mxu0 %v252
    %312 = vmatpush1.bf16.msra.mxu0 %v251
    %313 = vmatprep.subr.bf16.mxu0 %v256
    %314 = vmatpush1.bf16.msra.mxu0 %v255
    %315 = vmatprep.subr.bf16.mxu0 %v260
    %316 = vmatpush1.bf16.msra.mxu0 %v259
    %317 = vmatprep.subr.bf16.mxu0 %v264
    %318 = vmatpush1.bf16.msra.mxu0 %v263
    %319 = vmatprep.subr.bf16.mxu0 %v268
    %320 = vmatpush1.bf16.msra.mxu0 %v267
    %321 = vmatprep.subr.bf16.mxu0 %v272
    %322 = vmatpush1.bf16.msra.mxu0 %v271
    %323 = vmatprep.subr.bf16.mxu0 0
    %324 = vmatpush1.bf16.msra.mxu0 0
    %325 = vmatprep.subr.bf16.mxu0 0
    %326 = vmatpush1.bf16.msra.mxu0 0
    %327 = vmatprep.subr.bf16.mxu0 0
    %328 = vmatpush1.bf16.msra.mxu0 0
    %329 = vmatprep.subr.bf16.mxu0 0
    %330 = vmatpush1.bf16.msra.mxu0 0
    %331 = vmatprep.subr.bf16.mxu0 0
    %332 = vmatpush1.bf16.msra.mxu0 0
    %333 = vmatprep.subr.bf16.mxu0 0
    %334 = vmatpush1.bf16.msra.mxu0 0
    %335 = vmatprep.subr.bf16.mxu0 0
    %336 = vmatpush1.bf16.msra.mxu0 0
    %337 = vmatprep.subr.bf16.mxu0 0
    %338 = vmatpush1.bf16.msra.mxu0 0
    %339 = vmatprep.mubr.bf16.mxu0 0
    %340 = vmatmul.mubr.bf16.gmra.mrb[0].mxu0 %v139
    %v341 = vpop.f32.mrb[0].mxu0
    %v342 = vadd.f32 %v106, %v341
    %v343 = vpop.f32.mrb[0].mxu0
    %v344 = vadd.f32 %v110, %v343
    %v345 = vpop.f32.mrb[0].mxu0
    %v346 = vadd.f32 %v106, %v345
    %v347 = vpop.f32.mrb[0].mxu0
    %v348 = vadd.f32 %v110, %v347
    %349 = vmatprep.mubr.bf16.mxu0 0
    %350 = vmatmul.mubr.bf16.gmra.mrb[0].mxu0 %v140
    %v351 = vpop.f32.mrb[0].mxu0
    %v352 = vadd.f32 %v106, %v351
    %v353 = vpop.f32.mrb[0].mxu0
    %v354 = vadd.f32 %v110, %v353
    %v355 = vpop.f32.mrb[0].mxu0
    %v356 = vadd.f32 %v106, %v355
    %v357 = vpop.f32.mrb[0].mxu0
    %v358 = vadd.f32 %v110, %v357
    %359 = vmatprep.mubr.bf16.mxu0 0
    %360 = vmatmul.mubr.bf16.gmra.mrb[0].mxu0 %v141
    %v361 = vpop.f32.mrb[0].mxu0
    %v362 = vadd.f32 %v106, %v361
    %v363 = vpop.f32.mrb[0].mxu0
    %v364 = vadd.f32 %v110, %v363
    %v365 = vpop.f32.mrb[0].mxu0
    %v366 = vadd.f32 %v106, %v365
    %v367 = vpop.f32.mrb[0].mxu0
    %v368 = vadd.f32 %v110, %v367
    %369 = vmatprep.mubr.bf16.mxu0 0
    %370 = vmatmul.mubr.bf16.gmra.mrb[0].mxu0 %v142
    %v371 = vpop.f32.mrb[0].mxu0
    %v372 = vadd.f32 %v106, %v371
    %v373 = vpop.f32.mrb[0].mxu0
    %v374 = vadd.f32 %v110, %v373
    %v375 = vpop.f32.mrb[0].mxu0
    %v376 = vadd.f32 %v106, %v375
    %v377 = vpop.f32.mrb[0].mxu0
    %v378 = vadd.f32 %v110, %v377
    %379 = vdwg.mxu0
    %380 = vmatprep.subr.bf16.mxu0 %v246
    %381 = vmatpush1.bf16.msra.mxu0 %v245
    %382 = vmatprep.subr.bf16.mxu0 %v250
    %383 = vmatpush1.bf16.msra.mxu0 %v249
    %384 = vmatprep.subr.bf16.mxu0 %v254
    %385 = vmatpush1.bf16.msra.mxu0 %v253
    %386 = vmatprep.subr.bf16.mxu0 %v258
    %387 = vmatpush1.bf16.msra.mxu0 %v257
    %388 = vmatprep.subr.bf16.mxu0 %v262
    %389 = vmatpush1.bf16.msra.mxu0 %v261
    %390 = vmatprep.subr.bf16.mxu0 %v266
    %391 = vmatpush1.bf16.msra.mxu0 %v265
    %392 = vmatprep.subr.bf16.mxu0 %v270
    %393 = vmatpush1.bf16.msra.mxu0 %v269
    %394 = vmatprep.subr.bf16.mxu0 %v274
    %395 = vmatpush1.bf16.msra.mxu0 %v273
    %396 = vmatprep.subr.bf16.mxu0 0
    %397 = vmatpush1.bf16.msra.mxu0 0
    %398 = vmatprep.subr.bf16.mxu0 0
    %399 = vmatpush1.bf16.msra.mxu0 0
    %400 = vmatprep.subr.bf16.mxu0 0
    %401 = vmatpush1.bf16.msra.mxu0 0
    %402 = vmatprep.subr.bf16.mxu0 0
    %403 = vmatpush1.bf16.msra.mxu0 0
    %404 = vmatprep.subr.bf16.mxu0 0
    %405 = vmatpush1.bf16.msra.mxu0 0
    %406 = vmatprep.subr.bf16.mxu0 0
    %407 = vmatpush1.bf16.msra.mxu0 0
    %408 = vmatprep.subr.bf16.mxu0 0
    %409 = vmatpush1.bf16.msra.mxu0 0
    %410 = vmatprep.subr.bf16.mxu0 0
    %411 = vmatpush1.bf16.msra.mxu0 0
    %412 = vmatprep.mubr.bf16.mxu0 0
    %413 = vmatmul.mubr.bf16.gmra.mrb[0].mxu0 %v139
    %v414 = vpop.f32.mrb[0].mxu0
    %v415 = vadd.f32 %v114, %v414
    %v416 = vpop.f32.mrb[0].mxu0
    %v417 = vadd.f32 %v118, %v416
    %v418 = vpop.f32.mrb[0].mxu0
    %v419 = vadd.f32 %v114, %v418
    %v420 = vpop.f32.mrb[0].mxu0
    %v421 = vadd.f32 %v118, %v420
    %422 = vmatprep.mubr.bf16.mxu0 0
    %423 = vmatmul.mubr.bf16.gmra.mrb[0].mxu0 %v140
    %v424 = vpop.f32.mrb[0].mxu0
    %v425 = vadd.f32 %v114, %v424
    %v426 = vpop.f32.mrb[0].mxu0
    %v427 = vadd.f32 %v118, %v426
    %v428 = vpop.f32.mrb[0].mxu0
    %v429 = vadd.f32 %v114, %v428
    %v430 = vpop.f32.mrb[0].mxu0
    %v431 = vadd.f32 %v118, %v430
    %432 = vmatprep.mubr.bf16.mxu0 0
    %433 = vmatmul.mubr.bf16.gmra.mrb[0].mxu0 %v141
    %v434 = vpop.f32.mrb[0].mxu0
    %v435 = vadd.f32 %v114, %v434
    %v436 = vpop.f32.mrb[0].mxu0
    %v437 = vadd.f32 %v118, %v436
    %v438 = vpop.f32.mrb[0].mxu0
    %v439 = vadd.f32 %v114, %v438
    %v440 = vpop.f32.mrb[0].mxu0
    %v441 = vadd.f32 %v118, %v440
    %442 = vmatprep.mubr.bf16.mxu0 0
    %443 = vmatmul.mubr.bf16.gmra.mrb[0].mxu0 %v142
    %v444 = vpop.f32.mrb[0].mxu0
    %v445 = vadd.f32 %v114, %v444
    %v446 = vpop.f32.mrb[0].mxu0
    %v447 = vadd.f32 %v118, %v446
    %v448 = vpop.f32.mrb[0].mxu0
    %v449 = vadd.f32 %v114, %v448
    %v450 = vpop.f32.mrb[0].mxu0
    %v451 = vadd.f32 %v118, %v450
    %452 = vdwg.mxu0
    %453 = vst [vmem:[#allocation2] sm:$0xff] %v342
    %454 = vst [vmem:[#allocation2 + $0x8] sm:$0xff] %v344
    %455 = vst [vmem:[#allocation2 + $0x10] sm:$0xff] %v415
    %456 = vst [vmem:[#allocation2 + $0x18] sm:$0xff] %v417
    %457 = vst [vmem:[#allocation2 + $0x20] sm:$0xff] %v346
    %458 = vst [vmem:[#allocation2 + $0x28] sm:$0xff] %v348
    %459 = vst [vmem:[#allocation2 + $0x30] sm:$0xff] %v419
    %460 = vst [vmem:[#allocation2 + $0x38] sm:$0xff] %v421
    %461 = vst [vmem:[#allocation2 + $0x40] sm:$0xff] %v352
    %462 = vst [vmem:[#allocation2 + $0x48] sm:$0xff] %v354
    %463 = vst [vmem:[#allocation2 + $0x50] sm:$0xff] %v425
    %464 = vst [vmem:[#allocation2 + $0x58] sm:$0xff] %v427
    %465 = vst [vmem:[#allocation2 + $0x60] sm:$0xff] %v356
    %466 = vst [vmem:[#allocation2 + $0x68] sm:$0xff] %v358
    %467 = vst [vmem:[#allocation2 + $0x70] sm:$0xff] %v429
    %468 = vst [vmem:[#allocation2 + $0x78] sm:$0xff] %v431
    %469 = vst [vmem:[#allocation2 + $0x80] sm:$0xff] %v362
    %470 = vst [vmem:[#allocation2 + $0x88] sm:$0xff] %v364
    %471 = vst [vmem:[#allocation2 + $0x90] sm:$0xff] %v435
    %472 = vst [vmem:[#allocation2 + $0x98] sm:$0xff] %v437
    %473 = vst [vmem:[#allocation2 + $0xa0] sm:$0xff] %v366
    %474 = vst [vmem:[#allocation2 + $0xa8] sm:$0xff] %v368
    %475 = vst [vmem:[#allocation2 + $0xb0] sm:$0xff] %v439
    %476 = vst [vmem:[#allocation2 + $0xb8] sm:$0xff] %v441
    %477 = vst [vmem:[#allocation2 + $0xc0] sm:$0xff] %v372
    %478 = vst [vmem:[#allocation2 + $0xc8] sm:$0xff] %v374
    %479 = vst [vmem:[#allocation2 + $0xd0] sm:$0xff] %v445
    %480 = vst [vmem:[#allocation2 + $0xd8] sm:$0xff] %v447
    %481 = vst [vmem:[#allocation2 + $0xe0] sm:$0xff] %v376
    %482 = vst [vmem:[#allocation2 + $0xe8] sm:$0xff] %v378
    %483 = vst [vmem:[#allocation2 + $0xf0] sm:$0xff] %v449
    %484 = vst [vmem:[#allocation2 + $0xf8] sm:$0xff] %v451
    %v485 = vld [vmem:[#allocation6] sm:$0xff]
    %v486 = vld [vmem:[#allocation6 + $0x8] sm:$0xff]
    %v487 = vld [vmem:[#allocation6 + $0x10] sm:$0xff]
    %v488 = vld [vmem:[#allocation6 + $0x18] sm:$0xff]
    %v489 = vld [vmem:[#allocation6 + $0x20] sm:$0xff]
    %v490 = vld [vmem:[#allocation6 + $0x28] sm:$0xff]
    %v491 = vld [vmem:[#allocation6 + $0x30] sm:$0xff]
    %v492 = vld [vmem:[#allocation6 + $0x38] sm:$0xff]
    %v493 = vld [vmem:[#allocation6 + $0x40] sm:$0xff]
    %v494 = vld [vmem:[#allocation6 + $0x48] sm:$0xff]
    %v495 = vld [vmem:[#allocation6 + $0x50] sm:$0xff]
    %v496 = vld [vmem:[#allocation6 + $0x58] sm:$0xff]
    %v497 = vld [vmem:[#allocation6 + $0x60] sm:$0xff]
    %v498 = vld [vmem:[#allocation6 + $0x68] sm:$0xff]
    %v499 = vld [vmem:[#allocation6 + $0x70] sm:$0xff]
    %v500 = vld [vmem:[#allocation6 + $0x78] sm:$0xff]
    %v501 = vld [vmem:[#allocation6 + $0x80] sm:$0xff]
    %v502 = vld [vmem:[#allocation6 + $0x88] sm:$0xff]
    %v503 = vld [vmem:[#allocation6 + $0x90] sm:$0xff]
    %v504 = vld [vmem:[#allocation6 + $0x98] sm:$0xff]
    %v505 = vld [vmem:[#allocation6 + $0xa0] sm:$0xff]
    %v506 = vld [vmem:[#allocation6 + $0xa8] sm:$0xff]
    %v507 = vld [vmem:[#allocation6 + $0xb0] sm:$0xff]
    %v508 = vld [vmem:[#allocation6 + $0xb8] sm:$0xff]
    %v509 = vld [vmem:[#allocation6 + $0xc0] sm:$0xff]
    %v510 = vld [vmem:[#allocation6 + $0xc8] sm:$0xff]
    %v511 = vld [vmem:[#allocation6 + $0xd0] sm:$0xff]
    %v512 = vld [vmem:[#allocation6 + $0xd8] sm:$0xff]
    %v513 = vld [vmem:[#allocation6 + $0xe0] sm:$0xff]
    %v514 = vld [vmem:[#allocation6 + $0xe8] sm:$0xff]
    %v515 = vld [vmem:[#allocation6 + $0xf0] sm:$0xff]
    %v516 = vld [vmem:[#allocation6 + $0xf8] sm:$0xff]
    %s517 = scalar_lea.vmem [#allocation6], 256
    %v518 = vld [vmem:[%s517] sm:$0xff]
    %v519 = vld [vmem:[%s517 + $0x8] sm:$0xff]
    %v520 = vld [vmem:[%s517 + $0x10] sm:$0xff]
    %v521 = vld [vmem:[%s517 + $0x18] sm:$0xff]
    %v522 = vld [vmem:[%s517 + $0x20] sm:$0xff]
    %v523 = vld [vmem:[%s517 + $0x28] sm:$0xff]
    %v524 = vld [vmem:[%s517 + $0x30] sm:$0xff]
    %v525 = vld [vmem:[%s517 + $0x38] sm:$0xff]
    %v526 = vld [vmem:[%s517 + $0x40] sm:$0xff]
    %v527 = vld [vmem:[%s517 + $0x48] sm:$0xff]
    %v528 = vld [vmem:[%s517 + $0x50] sm:$0xff]
    %v529 = vld [vmem:[%s517 + $0x58] sm:$0xff]
    %v530 = vld [vmem:[%s517 + $0x60] sm:$0xff]
    %v531 = vld [vmem:[%s517 + $0x68] sm:$0xff]
    %v532 = vld [vmem:[%s517 + $0x70] sm:$0xff]
    %v533 = vld [vmem:[%s517 + $0x78] sm:$0xff]
    %v534 = vld [vmem:[%s517 + $0x80] sm:$0xff]
    %v535 = vld [vmem:[%s517 + $0x88] sm:$0xff]
    %v536 = vld [vmem:[%s517 + $0x90] sm:$0xff]
    %v537 = vld [vmem:[%s517 + $0x98] sm:$0xff]
    %v538 = vld [vmem:[%s517 + $0xa0] sm:$0xff]
    %v539 = vld [vmem:[%s517 + $0xa8] sm:$0xff]
    %v540 = vld [vmem:[%s517 + $0xb0] sm:$0xff]
    %v541 = vld [vmem:[%s517 + $0xb8] sm:$0xff]
    %v542 = vld [vmem:[%s517 + $0xc0] sm:$0xff]
    %v543 = vld [vmem:[%s517 + $0xc8] sm:$0xff]
    %v544 = vld [vmem:[%s517 + $0xd0] sm:$0xff]
    %v545 = vld [vmem:[%s517 + $0xd8] sm:$0xff]
    %v546 = vld [vmem:[%s517 + $0xe0] sm:$0xff]
    %v547 = vld [vmem:[%s517 + $0xe8] sm:$0xff]
    %v548 = vld [vmem:[%s517 + $0xf0] sm:$0xff]
    %v549 = vld [vmem:[%s517 + $0xf8] sm:$0xff]
    %s550 = scalar_lea.vmem [#allocation6], 512
    %v551 = vld [vmem:[%s550] sm:$0xff]
    %v552 = vld [vmem:[%s550 + $0x8] sm:$0xff]
    %v553 = vld [vmem:[%s550 + $0x10] sm:$0xff]
    %v554 = vld [vmem:[%s550 + $0x18] sm:$0xff]
    %v555 = vld [vmem:[%s550 + $0x20] sm:$0xff]
    %v556 = vld [vmem:[%s550 + $0x28] sm:$0xff]
    %v557 = vld [vmem:[%s550 + $0x30] sm:$0xff]
    %v558 = vld [vmem:[%s550 + $0x38] sm:$0xff]
    %v559 = vld [vmem:[%s550 + $0x40] sm:$0xff]
    %v560 = vld [vmem:[%s550 + $0x48] sm:$0xff]
    %v561 = vld [vmem:[%s550 + $0x50] sm:$0xff]
    %v562 = vld [vmem:[%s550 + $0x58] sm:$0xff]
    %v563 = vld [vmem:[%s550 + $0x60] sm:$0xff]
    %v564 = vld [vmem:[%s550 + $0x68] sm:$0xff]
    %v565 = vld [vmem:[%s550 + $0x70] sm:$0xff]
    %v566 = vld [vmem:[%s550 + $0x78] sm:$0xff]
    %v567 = vld [vmem:[%s550 + $0x80] sm:$0xff]
    %v568 = vld [vmem:[%s550 + $0x88] sm:$0xff]
    %v569 = vld [vmem:[%s550 + $0x90] sm:$0xff]
    %v570 = vld [vmem:[%s550 + $0x98] sm:$0xff]
    %v571 = vld [vmem:[%s550 + $0xa0] sm:$0xff]
    %v572 = vld [vmem:[%s550 + $0xa8] sm:$0xff]
    %v573 = vld [vmem:[%s550 + $0xb0] sm:$0xff]
    %v574 = vld [vmem:[%s550 + $0xb8] sm:$0xff]
    %v575 = vld [vmem:[%s550 + $0xc0] sm:$0xff]
    %v576 = vld [vmem:[%s550 + $0xc8] sm:$0xff]
    %v577 = vld [vmem:[%s550 + $0xd0] sm:$0xff]
    %v578 = vld [vmem:[%s550 + $0xd8] sm:$0xff]
    %v579 = vld [vmem:[%s550 + $0xe0] sm:$0xff]
    %v580 = vld [vmem:[%s550 + $0xe8] sm:$0xff]
    %v581 = vld [vmem:[%s550 + $0xf0] sm:$0xff]
    %v582 = vld [vmem:[%s550 + $0xf8] sm:$0xff]
    %s583 = scalar_lea.vmem [#allocation4], 256
    %v584 = vld [vmem:[%s583] sm:$0xff]
    %v585 = vld [vmem:[%s583 + $0x8] sm:$0xff]
    %v586 = vld [vmem:[%s583 + $0x10] sm:$0xff]
    %v587 = vld [vmem:[%s583 + $0x18] sm:$0xff]
    %v588 = vld [vmem:[%s583 + $0x20] sm:$0xff]
    %v589 = vld [vmem:[%s583 + $0x28] sm:$0xff]
    %v590 = vld [vmem:[%s583 + $0x30] sm:$0xff]
    %v591 = vld [vmem:[%s583 + $0x38] sm:$0xff]
    %v592 = vld [vmem:[%s583 + $0x40] sm:$0xff]
    %v593 = vld [vmem:[%s583 + $0x48] sm:$0xff]
    %v594 = vld [vmem:[%s583 + $0x50] sm:$0xff]
    %v595 = vld [vmem:[%s583 + $0x58] sm:$0xff]
    %v596 = vld [vmem:[%s583 + $0x60] sm:$0xff]
    %v597 = vld [vmem:[%s583 + $0x68] sm:$0xff]
    %v598 = vld [vmem:[%s583 + $0x70] sm:$0xff]
    %v599 = vld [vmem:[%s583 + $0x78] sm:$0xff]
    %v600 = vld [vmem:[%s583 + $0x80] sm:$0xff]
    %v601 = vld [vmem:[%s583 + $0x88] sm:$0xff]
    %v602 = vld [vmem:[%s583 + $0x90] sm:$0xff]
    %v603 = vld [vmem:[%s583 + $0x98] sm:$0xff]
    %v604 = vld [vmem:[%s583 + $0xa0] sm:$0xff]
    %v605 = vld [vmem:[%s583 + $0xa8] sm:$0xff]
    %v606 = vld [vmem:[%s583 + $0xb0] sm:$0xff]
    %v607 = vld [vmem:[%s583 + $0xb8] sm:$0xff]
    %v608 = vld [vmem:[%s583 + $0xc0] sm:$0xff]
    %v609 = vld [vmem:[%s583 + $0xc8] sm:$0xff]
    %v610 = vld [vmem:[%s583 + $0xd0] sm:$0xff]
    %v611 = vld [vmem:[%s583 + $0xd8] sm:$0xff]
    %v612 = vld [vmem:[%s583 + $0xe0] sm:$0xff]
    %v613 = vld [vmem:[%s583 + $0xe8] sm:$0xff]
    %v614 = vld [vmem:[%s583 + $0xf0] sm:$0xff]
    %v615 = vld [vmem:[%s583 + $0xf8] sm:$0xff]
    %s616 = scalar_lea.vmem [#allocation4], 512
    %v617 = vld [vmem:[%s616] sm:$0xff]
    %v618 = vld [vmem:[%s616 + $0x8] sm:$0xff]
    %v619 = vld [vmem:[%s616 + $0x10] sm:$0xff]
    %v620 = vld [vmem:[%s616 + $0x18] sm:$0xff]
    %v621 = vld [vmem:[%s616 + $0x20] sm:$0xff]
    %v622 = vld [vmem:[%s616 + $0x28] sm:$0xff]
    %v623 = vld [vmem:[%s616 + $0x30] sm:$0xff]
    %v624 = vld [vmem:[%s616 + $0x38] sm:$0xff]
    %v625 = vld [vmem:[%s616 + $0x40] sm:$0xff]
    %v626 = vld [vmem:[%s616 + $0x48] sm:$0xff]
    %v627 = vld [vmem:[%s616 + $0x50] sm:$0xff]
    %v628 = vld [vmem:[%s616 + $0x58] sm:$0xff]
    %v629 = vld [vmem:[%s616 + $0x60] sm:$0xff]
    %v630 = vld [vmem:[%s616 + $0x68] sm:$0xff]
    %v631 = vld [vmem:[%s616 + $0x70] sm:$0xff]
    %v632 = vld [vmem:[%s616 + $0x78] sm:$0xff]
    %v633 = vld [vmem:[%s616 + $0x80] sm:$0xff]
    %v634 = vld [vmem:[%s616 + $0x88] sm:$0xff]
    %v635 = vld [vmem:[%s616 + $0x90] sm:$0xff]
    %v636 = vld [vmem:[%s616 + $0x98] sm:$0xff]
    %v637 = vld [vmem:[%s616 + $0xa0] sm:$0xff]
    %v638 = vld [vmem:[%s616 + $0xa8] sm:$0xff]
    %v639 = vld [vmem:[%s616 + $0xb0] sm:$0xff]
    %v640 = vld [vmem:[%s616 + $0xb8] sm:$0xff]
    %v641 = vld [vmem:[%s616 + $0xc0] sm:$0xff]
    %v642 = vld [vmem:[%s616 + $0xc8] sm:$0xff]
    %v643 = vld [vmem:[%s616 + $0xd0] sm:$0xff]
    %v644 = vld [vmem:[%s616 + $0xd8] sm:$0xff]
    %v645 = vld [vmem:[%s616 + $0xe0] sm:$0xff]
    %v646 = vld [vmem:[%s616 + $0xe8] sm:$0xff]
    %v647 = vld [vmem:[%s616 + $0xf0] sm:$0xff]
    %v648 = vld [vmem:[%s616 + $0xf8] sm:$0xff]
    %s649 = scalar_lea.vmem %s5, 4
    %v650 = vld [vmem:[%s649] sm:$0xf]
    %s651 = scalar_lea.vmem %s5, 8
    %v652 = vld [vmem:[%s651] sm:$0xf]
    %v653 = vld [vmem:[%s1] sm:$0xff]
    %v654 = vld [vmem:[%s2] sm:$0xff]
    %s655 = scalar_lea.vmem %s1, 8
    %v656 = vld [vmem:[%s655] sm:$0xff]
    %s657 = scalar_lea.vmem %s2, 8
    %v658 = vld [vmem:[%s657] sm:$0xff]
    %s659 = scalar_lea.vmem %s1, 16
    %v660 = vld [vmem:[%s659] sm:$0xff]
    %s661 = scalar_lea.vmem %s2, 16
    %v662 = vld [vmem:[%s661] sm:$0xff]
    %v663 = vpack.c.bf16 %v653, %v653
    %v664 = vld [vmem:[#allocation2] sm:$0xff]
    %v665 = vld [vmem:[#allocation2 + $0x8] sm:$0xff]
    %v666 = vld [vmem:[#allocation2 + $0x10] sm:$0xff]
    %v667 = vld [vmem:[#allocation2 + $0x18] sm:$0xff]
    %v700 = vunpack.c.l.b16 %v485
    %v701 = vunpack.c.h.b16 %v485
    %v702 = vunpack.c.l.b16 %v486
    %v703 = vunpack.c.h.b16 %v486
    %v704 = vunpack.c.l.b16 %v487
    %v705 = vunpack.c.h.b16 %v487
    %v706 = vunpack.c.l.b16 %v488
    %v707 = vunpack.c.h.b16 %v488
    %v708 = vunpack.c.l.b16 %v489
    %v709 = vunpack.c.h.b16 %v489
    %v710 = vunpack.c.l.b16 %v490
    %v711 = vunpack.c.h.b16 %v490
    %v712 = vunpack.c.l.b16 %v491
    %v713 = vunpack.c.h.b16 %v491
    %v714 = vunpack.c.l.b16 %v492
    %v715 = vunpack.c.h.b16 %v492
    %v716 = vunpack.c.l.b16 %v493
    %v717 = vunpack.c.h.b16 %v493
    %v718 = vunpack.c.l.b16 %v494
    %v719 = vunpack.c.h.b16 %v494
    %v720 = vunpack.c.l.b16 %v495
    %v721 = vunpack.c.h.b16 %v495
    %v722 = vunpack.c.l.b16 %v496
    %v723 = vunpack.c.h.b16 %v496
    %v724 = vunpack.c.l.b16 %v497
    %v725 = vunpack.c.h.b16 %v497
    %v726 = vunpack.c.l.b16 %v498
    %v727 = vunpack.c.h.b16 %v498
    %v728 = vunpack.c.l.b16 %v499
    %v729 = vunpack.c.h.b16 %v499
    %v730 = vunpack.c.l.b16 %v500
    %v731 = vunpack.c.h.b16 %v500
    %v732 = vunpack.c.l.b16 %v501
    %v733 = vunpack.c.h.b16 %v501
    %v734 = vunpack.c.l.b16 %v502
    %v735 = vunpack.c.h.b16 %v502
    %v736 = vunpack.c.l.b16 %v503
    %v737 = vunpack.c.h.b16 %v503
    %v738 = vunpack.c.l.b16 %v504
    %v739 = vunpack.c.h.b16 %v504
    %v740 = vunpack.c.l.b16 %v505
    %v741 = vunpack.c.h.b16 %v505
    %v742 = vunpack.c.l.b16 %v506
    %v743 = vunpack.c.h.b16 %v506
    %v744 = vunpack.c.l.b16 %v507
    %v745 = vunpack.c.h.b16 %v507
    %v746 = vunpack.c.l.b16 %v508
    %v747 = vunpack.c.h.b16 %v508
    %v748 = vunpack.c.l.b16 %v509
    %v749 = vunpack.c.h.b16 %v509
    %v750 = vunpack.c.l.b16 %v510
    %v751 = vunpack.c.h.b16 %v510
    %v752 = vunpack.c.l.b16 %v511
    %v753 = vunpack.c.h.b16 %v511
    %v754 = vunpack.c.l.b16 %v512
    %v755 = vunpack.c.h.b16 %v512
    %v756 = vunpack.c.l.b16 %v513
    %v757 = vunpack.c.h.b16 %v513
    %v758 = vunpack.c.l.b16 %v514
    %v759 = vunpack.c.h.b16 %v514
    %v760 = vunpack.c.l.b16 %v515
    %v761 = vunpack.c.h.b16 %v515
    %v762 = vunpack.c.l.b16 %v516
    %v763 = vunpack.c.h.b16 %v516
    %v764 = vpack.c.b16 %v704, %v700
    %v765 = vpack.c.b16 %v705, %v701
    %v766 = vpack.c.b16 %v706, %v702
    %v767 = vpack.c.b16 %v707, %v703
    %v768 = vpack.c.b16 %v712, %v708
    %v769 = vpack.c.b16 %v713, %v709
    %v770 = vpack.c.b16 %v714, %v710
    %v771 = vpack.c.b16 %v715, %v711
    %v772 = vpack.c.b16 %v720, %v716
    %v773 = vpack.c.b16 %v721, %v717
    %v774 = vpack.c.b16 %v722, %v718
    %v775 = vpack.c.b16 %v723, %v719
    %v776 = vpack.c.b16 %v728, %v724
    %v777 = vpack.c.b16 %v729, %v725
    %v778 = vpack.c.b16 %v730, %v726
    %v779 = vpack.c.b16 %v731, %v727
    %v780 = vpack.c.b16 %v736, %v732
    %v781 = vpack.c.b16 %v737, %v733
    %v782 = vpack.c.b16 %v738, %v734
    %v783 = vpack.c.b16 %v739, %v735
    %v784 = vpack.c.b16 %v744, %v740
    %v785 = vpack.c.b16 %v745, %v741
    %v786 = vpack.c.b16 %v746, %v742
    %v787 = vpack.c.b16 %v747, %v743
    %v788 = vpack.c.b16 %v752, %v748
    %v789 = vpack.c.b16 %v753, %v749
    %v790 = vpack.c.b16 %v754, %v750
    %v791 = vpack.c.b16 %v755, %v751
    %v792 = vpack.c.b16 %v760, %v756
    %v793 = vpack.c.b16 %v761, %v757
    %v794 = vpack.c.b16 %v762, %v758
    %v795 = vpack.c.b16 %v763, %v759
    %828 = vmatprep.subr.bf16.mxu0 %v765
    %829 = vmatpush1.bf16.msra.mxu0 %v764
    %830 = vmatprep.subr.bf16.mxu0 %v769
    %831 = vmatpush1.bf16.msra.mxu0 %v768
    %832 = vmatprep.subr.bf16.mxu0 %v773
    %833 = vmatpush1.bf16.msra.mxu0 %v772
    %834 = vmatprep.subr.bf16.mxu0 %v777
    %835 = vmatpush1.bf16.msra.mxu0 %v776
    %836 = vmatprep.subr.bf16.mxu0 %v781
    %837 = vmatpush1.bf16.msra.mxu0 %v780
    %838 = vmatprep.subr.bf16.mxu0 %v785
    %839 = vmatpush1.bf16.msra.mxu0 %v784
    %840 = vmatprep.subr.bf16.mxu0 %v789
    %841 = vmatpush1.bf16.msra.mxu0 %v788
    %842 = vmatprep.subr.bf16.mxu0 %v793
    %843 = vmatpush1.bf16.msra.mxu0 %v792
    %844 = vmatprep.subr.bf16.mxu0 0
    %845 = vmatpush1.bf16.msra.mxu0 0
    %846 = vmatprep.subr.bf16.mxu0 0
    %847 = vmatpush1.bf16.msra.mxu0 0
    %848 = vmatprep.subr.bf16.mxu0 0
    %849 = vmatpush1.bf16.msra.mxu0 0
    %850 = vmatprep.subr.bf16.mxu0 0
    %851 = vmatpush1.bf16.msra.mxu0 0
    %852 = vmatprep.subr.bf16.mxu0 0
    %853 = vmatpush1.bf16.msra.mxu0 0
    %854 = vmatprep.subr.bf16.mxu0 0
    %855 = vmatpush1.bf16.msra.mxu0 0
    %856 = vmatprep.subr.bf16.mxu0 0
    %857 = vmatpush1.bf16.msra.mxu0 0
    %858 = vmatprep.subr.bf16.mxu0 0
    %859 = vmatpush1.bf16.msra.mxu0 0
    %860 = vmatprep.mubr.bf16.mxu0 0
    %861 = vmatmul.mubr.bf16.gmra.mrb[0].mxu0 %v663
    %v862 = vpop.f32.mrb[0].mxu0
    %v863 = vadd.f32 0.0, %v862
    %v864 = vpop.f32.mrb[0].mxu0
    %v865 = vadd.f32 0.0, %v864
    %v866 = vpop.f32.mrb[0].mxu0
    %v867 = vpop.f32.mrb[0].mxu0
    %868 = vdwg.mxu0
    %869 = vmatprep.subr.bf16.mxu0 %v767
    %870 = vmatpush1.bf16.msra.mxu0 %v766
    %871 = vmatprep.subr.bf16.mxu0 %v771
    %872 = vmatpush1.bf16.msra.mxu0 %v770
    %873 = vmatprep.subr.bf16.mxu0 %v775
    %874 = vmatpush1.bf16.msra.mxu0 %v774
    %875 = vmatprep.subr.bf16.mxu0 %v779
    %876 = vmatpush1.bf16.msra.mxu0 %v778
    %877 = vmatprep.subr.bf16.mxu0 %v783
    %878 = vmatpush1.bf16.msra.mxu0 %v782
    %879 = vmatprep.subr.bf16.mxu0 %v787
    %880 = vmatpush1.bf16.msra.mxu0 %v786
    %881 = vmatprep.subr.bf16.mxu0 %v791
    %882 = vmatpush1.bf16.msra.mxu0 %v790
    %883 = vmatprep.subr.bf16.mxu0 %v795
    %884 = vmatpush1.bf16.msra.mxu0 %v794
    %885 = vmatprep.subr.bf16.mxu0 0
    %886 = vmatpush1.bf16.msra.mxu0 0
    %887 = vmatprep.subr.bf16.mxu0 0
    %888 = vmatpush1.bf16.msra.mxu0 0
    %889 = vmatprep.subr.bf16.mxu0 0
    %890 = vmatpush1.bf16.msra.mxu0 0
    %891 = vmatprep.subr.bf16.mxu0 0
    %892 = vmatpush1.bf16.msra.mxu0 0
    %893 = vmatprep.subr.bf16.mxu0 0
    %894 = vmatpush1.bf16.msra.mxu0 0
    %895 = vmatprep.subr.bf16.mxu0 0
    %896 = vmatpush1.bf16.msra.mxu0 0
    %897 = vmatprep.subr.bf16.mxu0 0
    %898 = vmatpush1.bf16.msra.mxu0 0
    %899 = vmatprep.subr.bf16.mxu0 0
    %900 = vmatpush1.bf16.msra.mxu0 0
    %901 = vmatprep.mubr.bf16.mxu0 0
    %902 = vmatmul.mubr.bf16.gmra.mrb[0].mxu0 %v663
    %v903 = vpop.f32.mrb[0].mxu0
    %v904 = vadd.f32 0.0, %v903
    %v905 = vpop.f32.mrb[0].mxu0
    %v906 = vadd.f32 0.0, %v905
    %v907 = vpop.f32.mrb[0].mxu0
    %v908 = vpop.f32.mrb[0].mxu0
    %909 = vdwg.mxu0
    %v910 = vadd.f32 %v664, %v863
    %v911 = vadd.f32 %v665, %v865
    %v912 = vadd.f32 %v666, %v904
    %v913 = vadd.f32 %v667, %v906
    %v914 = vxor.u32 %v910, 2147483648
    %v915 = vxor.u32 %v911, 2147483648
    %v916 = vmul.f32 %v914, 1.442695
    %v917 = vpow.pop %v916
    %v918 = vmul.f32 %v915, 1.442695
    %v919 = vpow.pop %v918
    %v920 = vadd.f32 %v917, 1.0
    %v921 = vadd.f32 %v919, 1.0
    %v922 = vrcp.pop %v920
    %v923 = vmul.f32 1.0, %v922
    %v924 = vrcp.pop %v921
    %v925 = vmul.f32 1.0, %v924
    %v926 = vtanh.pop %v912
    %v927 = vxor.u32 %v913, 2147483648
    %v928 = vmul.f32 %v927, 1.442695
    %v929 = vpow.pop %v928
    %v930 = vadd.f32 %v929, 1.0
    %v931 = vrcp.pop %v930
    %v932 = vmul.f32 1.0, %v931
    %v933 = vmul.f32 %v925, %v654
    %v934 = vmul.f32 %v923, %v926
    %v935 = vadd.f32 %v933, %v934
    %v936 = vtanh.pop %v935
    %v937 = vmul.f32 %v932, %v936
    %v938 = vpack.c.bf16 %v937, %v937
    %v939 = vpack.c.bf16 %v656, %v656
    %v940 = vld [vmem:[#allocation2 + $0x20] sm:$0xff]
    %v941 = vld [vmem:[#allocation2 + $0x28] sm:$0xff]
    %v942 = vld [vmem:[#allocation2 + $0x30] sm:$0xff]
    %v943 = vld [vmem:[#allocation2 + $0x38] sm:$0xff]
    %944 = vmatprep.subr.bf16.mxu0 %v765
    %945 = vmatpush1.bf16.msra.mxu0 %v764
    %946 = vmatprep.subr.bf16.mxu0 %v769
    %947 = vmatpush1.bf16.msra.mxu0 %v768
    %948 = vmatprep.subr.bf16.mxu0 %v773
    %949 = vmatpush1.bf16.msra.mxu0 %v772
    %950 = vmatprep.subr.bf16.mxu0 %v777
    %951 = vmatpush1.bf16.msra.mxu0 %v776
    %952 = vmatprep.subr.bf16.mxu0 %v781
    %953 = vmatpush1.bf16.msra.mxu0 %v780
    %954 = vmatprep.subr.bf16.mxu0 %v785
    %955 = vmatpush1.bf16.msra.mxu0 %v784
    %956 = vmatprep.subr.bf16.mxu0 %v789
    %957 = vmatpush1.bf16.msra.mxu0 %v788
    %958 = vmatprep.subr.bf16.mxu0 %v793
    %959 = vmatpush1.bf16.msra.mxu0 %v792
    %960 = vmatprep.subr.bf16.mxu0 0
    %961 = vmatpush1.bf16.msra.mxu0 0
    %962 = vmatprep.subr.bf16.mxu0 0
    %963 = vmatpush1.bf16.msra.mxu0 0
    %964 = vmatprep.subr.bf16.mxu0 0
    %965 = vmatpush1.bf16.msra.mxu0 0
    %966 = vmatprep.subr.bf16.mxu0 0
    %967 = vmatpush1.bf16.msra.mxu0 0
    %968 = vmatprep.subr.bf16.mxu0 0
    %969 = vmatpush1.bf16.msra.mxu0 0
    %970 = vmatprep.subr.bf16.mxu0 0
    %971 = vmatpush1.bf16.msra.mxu0 0
    %972 = vmatprep.subr.bf16.mxu0 0
    %973 = vmatpush1.bf16.msra.mxu0 0
    %974 = vmatprep.subr.bf16.mxu0 0
    %975 = vmatpush1.bf16.msra.mxu0 0
    %976 = vmatprep.mubr.bf16.mxu0 0
    %977 = vmatmul.mubr.bf16.gmra.mrb[0].mxu0 %v938
    %v978 = vpop.f32.mrb[0].mxu0
    %v979 = vadd.f32 0.0, %v978
    %v980 = vpop.f32.mrb[0].mxu0
    %v981 = vadd.f32 0.0, %v980
    %v982 = vpop.f32.mrb[0].mxu0
    %v983 = vpop.f32.mrb[0].mxu0
    %984 = vdwg.mxu0
    %985 = vmatprep.subr.bf16.mxu0 %v767
    %986 = vmatpush1.bf16.msra.mxu0 %v766
    %987 = vmatprep.subr.bf16.mxu0 %v771
    %988 = vmatpush1.bf16.msra.mxu0 %v770
    %989 = vmatprep.subr.bf16.mxu0 %v775
    %990 = vmatpush1.bf16.msra.mxu0 %v774
    %991 = vmatprep.subr.bf16.mxu0 %v779
    %992 = vmatpush1.bf16.msra.mxu0 %v778
    %993 = vmatprep.subr.bf16.mxu0 %v783
    %994 = vmatpush1.bf16.msra.mxu0 %v782
    %995 = vmatprep.subr.bf16.mxu0 %v787
    %996 = vmatpush1.bf16.msra.mxu0 %v786
    %997 = vmatprep.subr.bf16.mxu0 %v791
    %998 = vmatpush1.bf16.msra.mxu0 %v790
    %999 = vmatprep.subr.bf16.mxu0 %v795
    %1000 = vmatpush1.bf16.msra.mxu0 %v794
    %1001 = vmatprep.subr.bf16.mxu0 0
    %1002 = vmatpush1.bf16.msra.mxu0 0
    %1003 = vmatprep.subr.bf16.mxu0 0
    %1004 = vmatpush1.bf16.msra.mxu0 0
    %1005 = vmatprep.subr.bf16.mxu0 0
    %1006 = vmatpush1.bf16.msra.mxu0 0
    %1007 = vmatprep.subr.bf16.mxu0 0
    %1008 = vmatpush1.bf16.msra.mxu0 0
    %1009 = vmatprep.subr.bf16.mxu0 0
    %1010 = vmatpush1.bf16.msra.mxu0 0
    %1011 = vmatprep.subr.bf16.mxu0 0
    %1012 = vmatpush1.bf16.msra.mxu0 0
    %1013 = vmatprep.subr.bf16.mxu0 0
    %1014 = vmatpush1.bf16.msra.mxu0 0
    %1015 = vmatprep.subr.bf16.mxu0 0
    %1016 = vmatpush1.bf16.msra.mxu0 0
    %1017 = vmatprep.mubr.bf16.mxu0 0
    %1018 = vmatmul.mubr.bf16.gmra.mrb[0].mxu0 %v938
    %v1019 = vpop.f32.mrb[0].mxu0
    %v1020 = vadd.f32 0.0, %v1019
    %v1021 = vpop.f32.mrb[0].mxu0
    %v1022 = vadd.f32 0.0, %v1021
    %v1023 = vpop.f32.mrb[0].mxu0
    %v1024 = vpop.f32.mrb[0].mxu0
    %1025 = vdwg.mxu0
    %v1026 = vadd.f32 %v940, %v979
    %v1027 = vadd.f32 %v941, %v981
    %v1028 = vadd.f32 %v942, %v1020
    %v1029 = vadd.f32 %v943, %v1022
    %v1030 = vxor.u32 %v1026, 2147483648
    %v1031 = vxor.u32 %v1027, 2147483648
    %v1032 = vmul.f32 %v1030, 1.442695
    %v1033 = vpow.pop %v1032
    %v1034 = vmul.f32 %v1031, 1.442695
    %v1035 = vpow.pop %v1034
    %v1036 = vadd.f32 %v1033, 1.0
    %v1037 = vadd.f32 %v1035, 1.0
    %v1038 = vrcp.pop %v1036
    %v1039 = vmul.f32 1.0, %v1038
    %v1040 = vrcp.pop %v1037
    %v1041 = vmul.f32 1.0, %v1040
    %v1042 = vtanh.pop %v1028
    %v1043 = vxor.u32 %v1029, 2147483648
    %v1044 = vmul.f32 %v1043, 1.442695
    %v1045 = vpow.pop %v1044
    %v1046 = vadd.f32 %v1045, 1.0
    %v1047 = vrcp.pop %v1046
    %v1048 = vmul.f32 1.0, %v1047
    %v1049 = vmul.f32 %v1041, %v935
    %v1050 = vmul.f32 %v1039, %v1042
    %v1051 = vadd.f32 %v1049, %v1050
    %v1052 = vtanh.pop %v1051
    %v1053 = vmul.f32 %v1048, %v1052
    %v1086 = vunpack.c.l.b16 %v518
    %v1087 = vunpack.c.h.b16 %v518
    %v1088 = vunpack.c.l.b16 %v519
    %v1089 = vunpack.c.h.b16 %v519
    %v1090 = vunpack.c.l.b16 %v520
    %v1091 = vunpack.c.h.b16 %v520
    %v1092 = vunpack.c.l.b16 %v521
    %v1093 = vunpack.c.h.b16 %v521
    %v1094 = vunpack.c.l.b16 %v522
    %v1095 = vunpack.c.h.b16 %v522
    %v1096 = vunpack.c.l.b16 %v523
    %v1097 = vunpack.c.h.b16 %v523
    %v1098 = vunpack.c.l.b16 %v524
    %v1099 = vunpack.c.h.b16 %v524
    %v1100 = vunpack.c.l.b16 %v525
    %v1101 = vunpack.c.h.b16 %v525
    %v1102 = vunpack.c.l.b16 %v526
    %v1103 = vunpack.c.h.b16 %v526
    %v1104 = vunpack.c.l.b16 %v527
    %v1105 = vunpack.c.h.b16 %v527
    %v1106 = vunpack.c.l.b16 %v528
    %v1107 = vunpack.c.h.b16 %v528
    %v1108 = vunpack.c.l.b16 %v529
    %v1109 = vunpack.c.h.b16 %v529
    %v1110 = vunpack.c.l.b16 %v530
    %v1111 = vunpack.c.h.b16 %v530
    %v1112 = vunpack.c.l.b16 %v531
    %v1113 = vunpack.c.h.b16 %v531
    %v1114 = vunpack.c.l.b16 %v532
    %v1115 = vunpack.c.h.b16 %v532
    %v1116 = vunpack.c.l.b16 %v533
    %v1117 = vunpack.c.h.b16 %v533
    %v1118 = vunpack.c.l.b16 %v534
    %v1119 = vunpack.c.h.b16 %v534
    %v1120 = vunpack.c.l.b16 %v535
    %v1121 = vunpack.c.h.b16 %v535
    %v1122 = vunpack.c.l.b16 %v536
    %v1123 = vunpack.c.h.b16 %v536
    %v1124 = vunpack.c.l.b16 %v537
    %v1125 = vunpack.c.h.b16 %v537
    %v1126 = vunpack.c.l.b16 %v538
    %v1127 = vunpack.c.h.b16 %v538
    %v1128 = vunpack.c.l.b16 %v539
    %v1129 = vunpack.c.h.b16 %v539
    %v1130 = vunpack.c.l.b16 %v540
    %v1131 = vunpack.c.h.b16 %v540
    %v1132 = vunpack.c.l.b16 %v541
    %v1133 = vunpack.c.h.b16 %v541
    %v1134 = vunpack.c.l.b16 %v542
    %v1135 = vunpack.c.h.b16 %v542
    %v1136 = vunpack.c.l.b16 %v543
    %v1137 = vunpack.c.h.b16 %v543
    %v1138 = vunpack.c.l.b16 %v544
    %v1139 = vunpack.c.h.b16 %v544
    %v1140 = vunpack.c.l.b16 %v545
    %v1141 = vunpack.c.h.b16 %v545
    %v1142 = vunpack.c.l.b16 %v546
    %v1143 = vunpack.c.h.b16 %v546
    %v1144 = vunpack.c.l.b16 %v547
    %v1145 = vunpack.c.h.b16 %v547
    %v1146 = vunpack.c.l.b16 %v548
    %v1147 = vunpack.c.h.b16 %v548
    %v1148 = vunpack.c.l.b16 %v549
    %v1149 = vunpack.c.h.b16 %v549
    %v1150 = vpack.c.b16 %v1090, %v1086
    %v1151 = vpack.c.b16 %v1091, %v1087
    %v1152 = vpack.c.b16 %v1092, %v1088
    %v1153 = vpack.c.b16 %v1093, %v1089
    %v1154 = vpack.c.b16 %v1098, %v1094
    %v1155 = vpack.c.b16 %v1099, %v1095
    %v1156 = vpack.c.b16 %v1100, %v1096
    %v1157 = vpack.c.b16 %v1101, %v1097
    %v1158 = vpack.c.b16 %v1106, %v1102
    %v1159 = vpack.c.b16 %v1107, %v1103
    %v1160 = vpack.c.b16 %v1108, %v1104
    %v1161 = vpack.c.b16 %v1109, %v1105
    %v1162 = vpack.c.b16 %v1114, %v1110
    %v1163 = vpack.c.b16 %v1115, %v1111
    %v1164 = vpack.c.b16 %v1116, %v1112
    %v1165 = vpack.c.b16 %v1117, %v1113
    %v1166 = vpack.c.b16 %v1122, %v1118
    %v1167 = vpack.c.b16 %v1123, %v1119
    %v1168 = vpack.c.b16 %v1124, %v1120
    %v1169 = vpack.c.b16 %v1125, %v1121
    %v1170 = vpack.c.b16 %v1130, %v1126
    %v1171 = vpack.c.b16 %v1131, %v1127
    %v1172 = vpack.c.b16 %v1132, %v1128
    %v1173 = vpack.c.b16 %v1133, %v1129
    %v1174 = vpack.c.b16 %v1138, %v1134
    %v1175 = vpack.c.b16 %v1139, %v1135
    %v1176 = vpack.c.b16 %v1140, %v1136
    %v1177 = vpack.c.b16 %v1141, %v1137
    %v1178 = vpack.c.b16 %v1146, %v1142
    %v1179 = vpack.c.b16 %v1147, %v1143
    %v1180 = vpack.c.b16 %v1148, %v1144
    %v1181 = vpack.c.b16 %v1149, %v1145
    %1214 = vmatprep.subr.bf16.mxu0 %v1151
    %1215 = vmatpush1.bf16.msra.mxu0 %v1150
    %1216 = vmatprep.subr.bf16.mxu0 %v1155
    %1217 = vmatpush1.bf16.msra.mxu0 %v1154
    %1218 = vmatprep.subr.bf16.mxu0 %v1159
    %1219 = vmatpush1.bf16.msra.mxu0 %v1158
    %1220 = vmatprep.subr.bf16.mxu0 %v1163
    %1221 = vmatpush1.bf16.msra.mxu0 %v1162
    %1222 = vmatprep.subr.bf16.mxu0 %v1167
    %1223 = vmatpush1.bf16.msra.mxu0 %v1166
    %1224 = vmatprep.subr.bf16.mxu0 %v1171
    %1225 = vmatpush1.bf16.msra.mxu0 %v1170
    %1226 = vmatprep.subr.bf16.mxu0 %v1175
    %1227 = vmatpush1.bf16.msra.mxu0 %v1174
    %1228 = vmatprep.subr.bf16.mxu0 %v1179
    %1229 = vmatpush1.bf16.msra.mxu0 %v1178
    %1230 = vmatprep.subr.bf16.mxu0 0
    %1231 = vmatpush1.bf16.msra.mxu0 0
    %1232 = vmatprep.subr.bf16.mxu0 0
    %1233 = vmatpush1.bf16.msra.mxu0 0
    %1234 = vmatprep.subr.bf16.mxu0 0
    %1235 = vmatpush1.bf16.msra.mxu0 0
    %1236 = vmatprep.subr.bf16.mxu0 0
    %1237 = vmatpush1.bf16.msra.mxu0 0
    %1238 = vmatprep.subr.bf16.mxu0 0
    %1239 = vmatpush1.bf16.msra.mxu0 0
    %1240 = vmatprep.subr.bf16.mxu0 0
    %1241 = vmatpush1.bf16.msra.mxu0 0
    %1242 = vmatprep.subr.bf16.mxu0 0
    %1243 = vmatpush1.bf16.msra.mxu0 0
    %1244 = vmatprep.subr.bf16.mxu0 0
    %1245 = vmatpush1.bf16.msra.mxu0 0
    %1246 = vmatprep.mubr.bf16.mxu0 0
    %1247 = vmatmul.mubr.bf16.gmra.mrb[0].mxu0 %v939
    %v1248 = vpop.f32.mrb[0].mxu0
    %v1249 = vadd.f32 0.0, %v1248
    %v1250 = vpop.f32.mrb[0].mxu0
    %v1251 = vadd.f32 0.0, %v1250
    %v1252 = vpop.f32.mrb[0].mxu0
    %v1253 = vpop.f32.mrb[0].mxu0
    %1254 = vdwg.mxu0
    %1255 = vmatprep.subr.bf16.mxu0 %v1153
    %1256 = vmatpush1.bf16.msra.mxu0 %v1152
    %1257 = vmatprep.subr.bf16.mxu0 %v1157
    %1258 = vmatpush1.bf16.msra.mxu0 %v1156
    %1259 = vmatprep.subr.bf16.mxu0 %v1161
    %1260 = vmatpush1.bf16.msra.mxu0 %v1160
    %1261 = vmatprep.subr.bf16.mxu0 %v1165
    %1262 = vmatpush1.bf16.msra.mxu0 %v1164
    %1263 = vmatprep.subr.bf16.mxu0 %v1169
    %1264 = vmatpush1.bf16.msra.mxu0 %v1168
    %1265 = vmatprep.subr.bf16.mxu0 %v1173
    %1266 = vmatpush1.bf16.msra.mxu0 %v1172
    %1267 = vmatprep.subr.bf16.mxu0 %v1177
    %1268 = vmatpush1.bf16.msra.mxu0 %v1176
    %1269 = vmatprep.subr.bf16.mxu0 %v1181
    %1270 = vmatpush1.bf16.msra.mxu0 %v1180
    %1271 = vmatprep.subr.bf16.mxu0 0
    %1272 = vmatpush1.bf16.msra.mxu0 0
    %1273 = vmatprep.subr.bf16.mxu0 0
    %1274 = vmatpush1.bf16.msra.mxu0 0
    %1275 = vmatprep.subr.bf16.mxu0 0
    %1276 = vmatpush1.bf16.msra.mxu0 0
    %1277 = vmatprep.subr.bf16.mxu0 0
    %1278 = vmatpush1.bf16.msra.mxu0 0
    %1279 = vmatprep.subr.bf16.mxu0 0
    %1280 = vmatpush1.bf16.msra.mxu0 0
    %1281 = vmatprep.subr.bf16.mxu0 0
    %1282 = vmatpush1.bf16.msra.mxu0 0
    %1283 = vmatprep.subr.bf16.mxu0 0
    %1284 = vmatpush1.bf16.msra.mxu0 0
    %1285 = vmatprep.subr.bf16.mxu0 0
    %1286 = vmatpush1.bf16.msra.mxu0 0
    %1287 = vmatprep.mubr.bf16.mxu0 0
    %1288 = vmatmul.mubr.bf16.gmra.mrb[0].mxu0 %v939
    %v1289 = vpop.f32.mrb[0].mxu0
    %v1290 = vadd.f32 0.0, %v1289
    %v1291 = vpop.f32.mrb[0].mxu0
    %v1292 = vadd.f32 0.0, %v1291
    %v1293 = vpop.f32.mrb[0].mxu0
    %v1294 = vpop.f32.mrb[0].mxu0
    %1295 = vdwg.mxu0
    %v1328 = vunpack.c.l.b16 %v584
    %v1329 = vunpack.c.h.b16 %v584
    %v1330 = vunpack.c.l.b16 %v585
    %v1331 = vunpack.c.h.b16 %v585
    %v1332 = vunpack.c.l.b16 %v586
    %v1333 = vunpack.c.h.b16 %v586
    %v1334 = vunpack.c.l.b16 %v587
    %v1335 = vunpack.c.h.b16 %v587
    %v1336 = vunpack.c.l.b16 %v588
    %v1337 = vunpack.c.h.b16 %v588
    %v1338 = vunpack.c.l.b16 %v589
    %v1339 = vunpack.c.h.b16 %v589
    %v1340 = vunpack.c.l.b16 %v590
    %v1341 = vunpack.c.h.b16 %v590
    %v1342 = vunpack.c.l.b16 %v591
    %v1343 = vunpack.c.h.b16 %v591
    %v1344 = vunpack.c.l.b16 %v592
    %v1345 = vunpack.c.h.b16 %v592
    %v1346 = vunpack.c.l.b16 %v593
    %v1347 = vunpack.c.h.b16 %v593
    %v1348 = vunpack.c.l.b16 %v594
    %v1349 = vunpack.c.h.b16 %v594
    %v1350 = vunpack.c.l.b16 %v595
    %v1351 = vunpack.c.h.b16 %v595
    %v1352 = vunpack.c.l.b16 %v596
    %v1353 = vunpack.c.h.b16 %v596
    %v1354 = vunpack.c.l.b16 %v597
    %v1355 = vunpack.c.h.b16 %v597
    %v1356 = vunpack.c.l.b16 %v598
    %v1357 = vunpack.c.h.b16 %v598
    %v1358 = vunpack.c.l.b16 %v599
    %v1359 = vunpack.c.h.b16 %v599
    %v1360 = vunpack.c.l.b16 %v600
    %v1361 = vunpack.c.h.b16 %v600
    %v1362 = vunpack.c.l.b16 %v601
    %v1363 = vunpack.c.h.b16 %v601
    %v1364 = vunpack.c.l.b16 %v602
    %v1365 = vunpack.c.h.b16 %v602
    %v1366 = vunpack.c.l.b16 %v603
    %v1367 = vunpack.c.h.b16 %v603
    %v1368 = vunpack.c.l.b16 %v604
    %v1369 = vunpack.c.h.b16 %v604
    %v1370 = vunpack.c.l.b16 %v605
    %v1371 = vunpack.c.h.b16 %v605
    %v1372 = vunpack.c.l.b16 %v606
    %v1373 = vunpack.c.h.b16 %v606
    %v1374 = vunpack.c.l.b16 %v607
    %v1375 = vunpack.c.h.b16 %v607
    %v1376 = vunpack.c.l.b16 %v608
    %v1377 = vunpack.c.h.b16 %v608
    %v1378 = vunpack.c.l.b16 %v609
    %v1379 = vunpack.c.h.b16 %v609
    %v1380 = vunpack.c.l.b16 %v610
    %v1381 = vunpack.c.h.b16 %v610
    %v1382 = vunpack.c.l.b16 %v611
    %v1383 = vunpack.c.h.b16 %v611
    %v1384 = vunpack.c.l.b16 %v612
    %v1385 = vunpack.c.h.b16 %v612
    %v1386 = vunpack.c.l.b16 %v613
    %v1387 = vunpack.c.h.b16 %v613
    %v1388 = vunpack.c.l.b16 %v614
    %v1389 = vunpack.c.h.b16 %v614
    %v1390 = vunpack.c.l.b16 %v615
    %v1391 = vunpack.c.h.b16 %v615
    %v1392 = vpack.c.b16 %v1332, %v1328
    %v1393 = vpack.c.b16 %v1333, %v1329
    %v1394 = vpack.c.b16 %v1334, %v1330
    %v1395 = vpack.c.b16 %v1335, %v1331
    %v1396 = vpack.c.b16 %v1340, %v1336
    %v1397 = vpack.c.b16 %v1341, %v1337
    %v1398 = vpack.c.b16 %v1342, %v1338
    %v1399 = vpack.c.b16 %v1343, %v1339
    %v1400 = vpack.c.b16 %v1348, %v1344
    %v1401 = vpack.c.b16 %v1349, %v1345
    %v1402 = vpack.c.b16 %v1350, %v1346
    %v1403 = vpack.c.b16 %v1351, %v1347
    %v1404 = vpack.c.b16 %v1356, %v1352
    %v1405 = vpack.c.b16 %v1357, %v1353
    %v1406 = vpack.c.b16 %v1358, %v1354
    %v1407 = vpack.c.b16 %v1359, %v1355
    %v1408 = vpack.c.b16 %v1364, %v1360
    %v1409 = vpack.c.b16 %v1365, %v1361
    %v1410 = vpack.c.b16 %v1366, %v1362
    %v1411 = vpack.c.b16 %v1367, %v1363
    %v1412 = vpack.c.b16 %v1372, %v1368
    %v1413 = vpack.c.b16 %v1373, %v1369
    %v1414 = vpack.c.b16 %v1374, %v1370
    %v1415 = vpack.c.b16 %v1375, %v1371
    %v1416 = vpack.c.b16 %v1380, %v1376
    %v1417 = vpack.c.b16 %v1381, %v1377
    %v1418 = vpack.c.b16 %v1382, %v1378
    %v1419 = vpack.c.b16 %v1383, %v1379
    %v1420 = vpack.c.b16 %v1388, %v1384
    %v1421 = vpack.c.b16 %v1389, %v1385
    %v1422 = vpack.c.b16 %v1390, %v1386
    %v1423 = vpack.c.b16 %v1391, %v1387
    %1456 = vmatprep.subr.bf16.mxu0 %v1393
    %1457 = vmatpush1.bf16.msra.mxu0 %v1392
    %1458 = vmatprep.subr.bf16.mxu0 %v1397
    %1459 = vmatpush1.bf16.msra.mxu0 %v1396
    %1460 = vmatprep.subr.bf16.mxu0 %v1401
    %1461 = vmatpush1.bf16.msra.mxu0 %v1400
    %1462 = vmatprep.subr.bf16.mxu0 %v1405
    %1463 = vmatpush1.bf16.msra.mxu0 %v1404
    %1464 = vmatprep.subr.bf16.mxu0 %v1409
    %1465 = vmatpush1.bf16.msra.mxu0 %v1408
    %1466 = vmatprep.subr.bf16.mxu0 %v1413
    %1467 = vmatpush1.bf16.msra.mxu0 %v1412
    %1468 = vmatprep.subr.bf16.mxu0 %v1417
    %1469 = vmatpush1.bf16.msra.mxu0 %v1416
    %1470 = vmatprep.subr.bf16.mxu0 %v1421
    %1471 = vmatpush1.bf16.msra.mxu0 %v1420
    %1472 = vmatprep.subr.bf16.mxu0 0
    %1473 = vmatpush1.bf16.msra.mxu0 0
    %1474 = vmatprep.subr.bf16.mxu0 0
    %1475 = vmatpush1.bf16.msra.mxu0 0
    %1476 = vmatprep.subr.bf16.mxu0 0
    %1477 = vmatpush1.bf16.msra.mxu0 0
    %1478 = vmatprep.subr.bf16.mxu0 0
    %1479 = vmatpush1.bf16.msra.mxu0 0
    %1480 = vmatprep.subr.bf16.mxu0 0
    %1481 = vmatpush1.bf16.msra.mxu0 0
    %1482 = vmatprep.subr.bf16.mxu0 0
    %1483 = vmatpush1.bf16.msra.mxu0 0
    %1484 = vmatprep.subr.bf16.mxu0 0
    %1485 = vmatpush1.bf16.msra.mxu0 0
    %1486 = vmatprep.subr.bf16.mxu0 0
    %1487 = vmatpush1.bf16.msra.mxu0 0
    %1488 = vmatprep.mubr.bf16.mxu0 0
    %1489 = vmatmul.mubr.bf16.gmra.mrb[0].mxu0 %v938
    %v1490 = vpop.f32.mrb[0].mxu0
    %v1491 = vadd.f32 %v1249, %v1490
    %v1492 = vpop.f32.mrb[0].mxu0
    %v1493 = vadd.f32 %v1251, %v1492
    %v1494 = vpop.f32.mrb[0].mxu0
    %v1495 = vpop.f32.mrb[0].mxu0
    %1496 = vdwg.mxu0
    %1497 = vmatprep.subr.bf16.mxu0 %v1395
    %1498 = vmatpush1.bf16.msra.mxu0 %v1394
    %1499 = vmatprep.subr.bf16.mxu0 %v1399
    %1500 = vmatpush1.bf16.msra.mxu0 %v1398
    %1501 = vmatprep.subr.bf16.mxu0 %v1403
    %1502 = vmatpush1.bf16.msra.mxu0 %v1402
    %1503 = vmatprep.subr.bf16.mxu0 %v1407
    %1504 = vmatpush1.bf16.msra.mxu0 %v1406
    %1505 = vmatprep.subr.bf16.mxu0 %v1411
    %1506 = vmatpush1.bf16.msra.mxu0 %v1410
    %1507 = vmatprep.subr.bf16.mxu0 %v1415
    %1508 = vmatpush1.bf16.msra.mxu0 %v1414
    %1509 = vmatprep.subr.bf16.mxu0 %v1419
    %1510 = vmatpush1.bf16.msra.mxu0 %v1418
    %1511 = vmatprep.subr.bf16.mxu0 %v1423
    %1512 = vmatpush1.bf16.msra.mxu0 %v1422
    %1513 = vmatprep.subr.bf16.mxu0 0
    %1514 = vmatpush1.bf16.msra.mxu0 0
    %1515 = vmatprep.subr.bf16.mxu0 0
    %1516 = vmatpush1.bf16.msra.mxu0 0
    %1517 = vmatprep.subr.bf16.mxu0 0
    %1518 = vmatpush1.bf16.msra.mxu0 0
    %1519 = vmatprep.subr.bf16.mxu0 0
    %1520 = vmatpush1.bf16.msra.mxu0 0
    %1521 = vmatprep.subr.bf16.mxu0 0
    %1522 = vmatpush1.bf16.msra.mxu0 0
    %1523 = vmatprep.subr.bf16.mxu0 0
    %1524 = vmatpush1.bf16.msra.mxu0 0
    %1525 = vmatprep.subr.bf16.mxu0 0
    %1526 = vmatpush1.bf16.msra.mxu0 0
    %1527 = vmatprep.subr.bf16.mxu0 0
    %1528 = vmatpush1.bf16.msra.mxu0 0
    %1529 = vmatprep.mubr.bf16.mxu0 0
    %1530 = vmatmul.mubr.bf16.gmra.mrb[0].mxu0 %v938
    %v1531 = vpop.f32.mrb[0].mxu0
    %v1532 = vadd.f32 %v1290, %v1531
    %v1533 = vpop.f32.mrb[0].mxu0
    %v1534 = vadd.f32 %v1292, %v1533
    %v1535 = vpop.f32.mrb[0].mxu0
    %v1536 = vpop.f32.mrb[0].mxu0
    %1537 = vdwg.mxu0
    %v1539 = vlaneseq
    %v1540 = vshrl.u32 %v1539, 7
    %v1541 = vsub.s32 0, %v1540
    %v1542 = vrot.slane %v650, %v1541
    %v1543 = vlaneseq
    %v1544 = vshrl.u32 %v1543, 7
    %v1545 = vsub.s32 1, %v1544
    %v1546 = vrot.slane %v650, %v1545
    %v1547 = vlaneseq
    %v1548 = vshrl.u32 %v1547, 7
    %v1549 = vsub.s32 2, %v1548
    %v1550 = vrot.slane %v650, %v1549
    %v1551 = vlaneseq
    %v1552 = vshrl.u32 %v1551, 7
    %v1553 = vsub.s32 3, %v1552
    %v1554 = vrot.slane %v650, %v1553
    %v1559 = vadd.f32 %v1491, %v1542
    %v1560 = vadd.f32 %v1493, %v1546
    %v1561 = vadd.f32 %v1532, %v1550
    %v1562 = vadd.f32 %v1534, %v1554
    %v1563 = vxor.u32 %v1559, 2147483648
    %v1564 = vxor.u32 %v1560, 2147483648
    %v1565 = vmul.f32 %v1563, 1.442695
    %v1566 = vpow.pop %v1565
    %v1567 = vmul.f32 %v1564, 1.442695
    %v1568 = vpow.pop %v1567
    %v1569 = vadd.f32 %v1566, 1.0
    %v1570 = vadd.f32 %v1568, 1.0
    %v1571 = vrcp.pop %v1569
    %v1572 = vmul.f32 1.0, %v1571
    %v1573 = vrcp.pop %v1570
    %v1574 = vmul.f32 1.0, %v1573
    %v1575 = vtanh.pop %v1561
    %v1576 = vxor.u32 %v1562, 2147483648
    %v1577 = vmul.f32 %v1576, 1.442695
    %v1578 = vpow.pop %v1577
    %v1579 = vadd.f32 %v1578, 1.0
    %v1580 = vrcp.pop %v1579
    %v1581 = vmul.f32 1.0, %v1580
    %v1582 = vmul.f32 %v1574, %v658
    %v1583 = vmul.f32 %v1572, %v1575
    %v1584 = vadd.f32 %v1582, %v1583
    %v1585 = vtanh.pop %v1584
    %v1586 = vmul.f32 %v1581, %v1585
    %v1587 = vpack.c.bf16 %v1053, %v1053
    %v1588 = vpack.c.bf16 %v1586, %v1586
    %v1589 = vpack.c.bf16 %v660, %v660
    %v1590 = vld [vmem:[#allocation2 + $0x40] sm:$0xff]
    %v1591 = vld [vmem:[#allocation2 + $0x48] sm:$0xff]
    %v1592 = vld [vmem:[#allocation2 + $0x50] sm:$0xff]
    %v1593 = vld [vmem:[#allocation2 + $0x58] sm:$0xff]
    %1594 = vmatprep.subr.bf16.mxu0 %v765
    %1595 = vmatpush1.bf16.msra.mxu0 %v764
    %1596 = vmatprep.subr.bf16.mxu0 %v769
    %1597 = vmatpush1.bf16.msra.mxu0 %v768
    %1598 = vmatprep.subr.bf16.mxu0 %v773
    %1599 = vmatpush1.bf16.msra.mxu0 %v772
    %1600 = vmatprep.subr.bf16.mxu0 %v777
    %1601 = vmatpush1.bf16.msra.mxu0 %v776
    %1602 = vmatprep.subr.bf16.mxu0 %v781
    %1603 = vmatpush1.bf16.msra.mxu0 %v780
    %1604 = vmatprep.subr.bf16.mxu0 %v785
    %1605 = vmatpush1.bf16.msra.mxu0 %v784
    %1606 = vmatprep.subr.bf16.mxu0 %v789
    %1607 = vmatpush1.bf16.msra.mxu0 %v788
    %1608 = vmatprep.subr.bf16.mxu0 %v793
    %1609 = vmatpush1.bf16.msra.mxu0 %v792
    %1610 = vmatprep.subr.bf16.mxu0 0
    %1611 = vmatpush1.bf16.msra.mxu0 0
    %1612 = vmatprep.subr.bf16.mxu0 0
    %1613 = vmatpush1.bf16.msra.mxu0 0
    %1614 = vmatprep.subr.bf16.mxu0 0
    %1615 = vmatpush1.bf16.msra.mxu0 0
    %1616 = vmatprep.subr.bf16.mxu0 0
    %1617 = vmatpush1.bf16.msra.mxu0 0
    %1618 = vmatprep.subr.bf16.mxu0 0
    %1619 = vmatpush1.bf16.msra.mxu0 0
    %1620 = vmatprep.subr.bf16.mxu0 0
    %1621 = vmatpush1.bf16.msra.mxu0 0
    %1622 = vmatprep.subr.bf16.mxu0 0
    %1623 = vmatpush1.bf16.msra.mxu0 0
    %1624 = vmatprep.subr.bf16.mxu0 0
    %1625 = vmatpush1.bf16.msra.mxu0 0
    %1626 = vmatprep.mubr.bf16.mxu0 0
    %1627 = vmatmul.mubr.bf16.gmra.mrb[0].mxu0 %v1587
    %v1628 = vpop.f32.mrb[0].mxu0
    %v1629 = vadd.f32 0.0, %v1628
    %v1630 = vpop.f32.mrb[0].mxu0
    %v1631 = vadd.f32 0.0, %v1630
    %v1632 = vpop.f32.mrb[0].mxu0
    %v1633 = vpop.f32.mrb[0].mxu0
    %1634 = vdwg.mxu0
    %1635 = vmatprep.subr.bf16.mxu0 %v767
    %1636 = vmatpush1.bf16.msra.mxu0 %v766
    %1637 = vmatprep.subr.bf16.mxu0 %v771
    %1638 = vmatpush1.bf16.msra.mxu0 %v770
    %1639 = vmatprep.subr.bf16.mxu0 %v775
    %1640 = vmatpush1.bf16.msra.mxu0 %v774
    %1641 = vmatprep.subr.bf16.mxu0 %v779
    %1642 = vmatpush1.bf16.msra.mxu0 %v778
    %1643 = vmatprep.subr.bf16.mxu0 %v783
    %1644 = vmatpush1.bf16.msra.mxu0 %v782
    %1645 = vmatprep.subr.bf16.mxu0 %v787
    %1646 = vmatpush1.bf16.msra.mxu0 %v786
    %1647 = vmatprep.subr.bf16.mxu0 %v791
    %1648 = vmatpush1.bf16.msra.mxu0 %v790
    %1649 = vmatprep.subr.bf16.mxu0 %v795
    %1650 = vmatpush1.bf16.msra.mxu0 %v794
    %1651 = vmatprep.subr.bf16.mxu0 0
    %1652 = vmatpush1.bf16.msra.mxu0 0
    %1653 = vmatprep.subr.bf16.mxu0 0
    %1654 = vmatpush1.bf16.msra.mxu0 0
    %1655 = vmatprep.subr.bf16.mxu0 0
    %1656 = vmatpush1.bf16.msra.mxu0 0
    %1657 = vmatprep.subr.bf16.mxu0 0
    %1658 = vmatpush1.bf16.msra.mxu0 0
    %1659 = vmatprep.subr.bf16.mxu0 0
    %1660 = vmatpush1.bf16.msra.mxu0 0
    %1661 = vmatprep.subr.bf16.mxu0 0
    %1662 = vmatpush1.bf16.msra.mxu0 0
    %1663 = vmatprep.subr.bf16.mxu0 0
    %1664 = vmatpush1.bf16.msra.mxu0 0
    %1665 = vmatprep.subr.bf16.mxu0 0
    %1666 = vmatpush1.bf16.msra.mxu0 0
    %1667 = vmatprep.mubr.bf16.mxu0 0
    %1668 = vmatmul.mubr.bf16.gmra.mrb[0].mxu0 %v1587
    %v1669 = vpop.f32.mrb[0].mxu0
    %v1670 = vadd.f32 0.0, %v1669
    %v1671 = vpop.f32.mrb[0].mxu0
    %v1672 = vadd.f32 0.0, %v1671
    %v1673 = vpop.f32.mrb[0].mxu0
    %v1674 = vpop.f32.mrb[0].mxu0
    %1675 = vdwg.mxu0
    %v1676 = vadd.f32 %v1590, %v1629
    %v1677 = vadd.f32 %v1591, %v1631
    %v1678 = vadd.f32 %v1592, %v1670
    %v1679 = vadd.f32 %v1593, %v1672
    %v1680 = vxor.u32 %v1676, 2147483648
    %v1681 = vxor.u32 %v1677, 2147483648
    %v1682 = vmul.f32 %v1680, 1.442695
    %v1683 = vpow.pop %v1682
    %v1684 = vmul.f32 %v1681, 1.442695
    %v1685 = vpow.pop %v1684
    %v1686 = vadd.f32 %v1683, 1.0
    %v1687 = vadd.f32 %v1685, 1.0
    %v1688 = vrcp.pop %v1686
    %v1689 = vmul.f32 1.0, %v1688
    %v1690 = vrcp.pop %v1687
    %v1691 = vmul.f32 1.0, %v1690
    %v1692 = vtanh.pop %v1678
    %v1693 = vxor.u32 %v1679, 2147483648
    %v1694 = vmul.f32 %v1693, 1.442695
    %v1695 = vpow.pop %v1694
    %v1696 = vadd.f32 %v1695, 1.0
    %v1697 = vrcp.pop %v1696
    %v1698 = vmul.f32 1.0, %v1697
    %v1699 = vmul.f32 %v1691, %v1051
    %v1700 = vmul.f32 %v1689, %v1692
    %v1701 = vadd.f32 %v1699, %v1700
    %v1702 = vtanh.pop %v1701
    %v1703 = vmul.f32 %v1698, %v1702
    %1704 = vmatprep.subr.bf16.mxu0 %v1151
    %1705 = vmatpush1.bf16.msra.mxu0 %v1150
    %1706 = vmatprep.subr.bf16.mxu0 %v1155
    %1707 = vmatpush1.bf16.msra.mxu0 %v1154
    %1708 = vmatprep.subr.bf16.mxu0 %v1159
    %1709 = vmatpush1.bf16.msra.mxu0 %v1158
    %1710 = vmatprep.subr.bf16.mxu0 %v1163
    %1711 = vmatpush1.bf16.msra.mxu0 %v1162
    %1712 = vmatprep.subr.bf16.mxu0 %v1167
    %1713 = vmatpush1.bf16.msra.mxu0 %v1166
    %1714 = vmatprep.subr.bf16.mxu0 %v1171
    %1715 = vmatpush1.bf16.msra.mxu0 %v1170
    %1716 = vmatprep.subr.bf16.mxu0 %v1175
    %1717 = vmatpush1.bf16.msra.mxu0 %v1174
    %1718 = vmatprep.subr.bf16.mxu0 %v1179
    %1719 = vmatpush1.bf16.msra.mxu0 %v1178
    %1720 = vmatprep.subr.bf16.mxu0 0
    %1721 = vmatpush1.bf16.msra.mxu0 0
    %1722 = vmatprep.subr.bf16.mxu0 0
    %1723 = vmatpush1.bf16.msra.mxu0 0
    %1724 = vmatprep.subr.bf16.mxu0 0
    %1725 = vmatpush1.bf16.msra.mxu0 0
    %1726 = vmatprep.subr.bf16.mxu0 0
    %1727 = vmatpush1.bf16.msra.mxu0 0
    %1728 = vmatprep.subr.bf16.mxu0 0
    %1729 = vmatpush1.bf16.msra.mxu0 0
    %1730 = vmatprep.subr.bf16.mxu0 0
    %1731 = vmatpush1.bf16.msra.mxu0 0
    %1732 = vmatprep.subr.bf16.mxu0 0
    %1733 = vmatpush1.bf16.msra.mxu0 0
    %1734 = vmatprep.subr.bf16.mxu0 0
    %1735 = vmatpush1.bf16.msra.mxu0 0
    %1736 = vmatprep.mubr.bf16.mxu0 0
    %1737 = vmatmul.mubr.bf16.gmra.mrb[0].mxu0 %v1588
    %v1738 = vpop.f32.mrb[0].mxu0
    %v1739 = vadd.f32 0.0, %v1738
    %v1740 = vpop.f32.mrb[0].mxu0
    %v1741 = vadd.f32 0.0, %v1740
    %v1742 = vpop.f32.mrb[0].mxu0
    %v1743 = vpop.f32.mrb[0].mxu0
    %1744 = vdwg.mxu0
    %1745 = vmatprep.subr.bf16.mxu0 %v1153
    %1746 = vmatpush1.bf16.msra.mxu0 %v1152
    %1747 = vmatprep.subr.bf16.mxu0 %v1157
    %1748 = vmatpush1.bf16.msra.mxu0 %v1156
    %1749 = vmatprep.subr.bf16.mxu0 %v1161
    %1750 = vmatpush1.bf16.msra.mxu0 %v1160
    %1751 = vmatprep.subr.bf16.mxu0 %v1165
    %1752 = vmatpush1.bf16.msra.mxu0 %v1164
    %1753 = vmatprep.subr.bf16.mxu0 %v1169
    %1754 = vmatpush1.bf16.msra.mxu0 %v1168
    %1755 = vmatprep.subr.bf16.mxu0 %v1173
    %1756 = vmatpush1.bf16.msra.mxu0 %v1172
    %1757 = vmatprep.subr.bf16.mxu0 %v1177
    %1758 = vmatpush1.bf16.msra.mxu0 %v1176
    %1759 = vmatprep.subr.bf16.mxu0 %v1181
    %1760 = vmatpush1.bf16.msra.mxu0 %v1180
    %1761 = vmatprep.subr.bf16.mxu0 0
    %1762 = vmatpush1.bf16.msra.mxu0 0
    %1763 = vmatprep.subr.bf16.mxu0 0
    %1764 = vmatpush1.bf16.msra.mxu0 0
    %1765 = vmatprep.subr.bf16.mxu0 0
    %1766 = vmatpush1.bf16.msra.mxu0 0
    %1767 = vmatprep.subr.bf16.mxu0 0
    %1768 = vmatpush1.bf16.msra.mxu0 0
    %1769 = vmatprep.subr.bf16.mxu0 0
    %1770 = vmatpush1.bf16.msra.mxu0 0
    %1771 = vmatprep.subr.bf16.mxu0 0
    %1772 = vmatpush1.bf16.msra.mxu0 0
    %1773 = vmatprep.subr.bf16.mxu0 0
    %1774 = vmatpush1.bf16.msra.mxu0 0
    %1775 = vmatprep.subr.bf16.mxu0 0
    %1776 = vmatpush1.bf16.msra.mxu0 0
    %1777 = vmatprep.mubr.bf16.mxu0 0
    %1778 = vmatmul.mubr.bf16.gmra.mrb[0].mxu0 %v1588
    %v1779 = vpop.f32.mrb[0].mxu0
    %v1780 = vadd.f32 0.0, %v1779
    %v1781 = vpop.f32.mrb[0].mxu0
    %v1782 = vadd.f32 0.0, %v1781
    %v1783 = vpop.f32.mrb[0].mxu0
    %v1784 = vpop.f32.mrb[0].mxu0
    %1785 = vdwg.mxu0
    %1786 = vmatprep.subr.bf16.mxu0 %v1393
    %1787 = vmatpush1.bf16.msra.mxu0 %v1392
    %1788 = vmatprep.subr.bf16.mxu0 %v1397
    %1789 = vmatpush1.bf16.msra.mxu0 %v1396
    %1790 = vmatprep.subr.bf16.mxu0 %v1401
    %1791 = vmatpush1.bf16.msra.mxu0 %v1400
    %1792 = vmatprep.subr.bf16.mxu0 %v1405
    %1793 = vmatpush1.bf16.msra.mxu0 %v1404
    %1794 = vmatprep.subr.bf16.mxu0 %v1409
    %1795 = vmatpush1.bf16.msra.mxu0 %v1408
    %1796 = vmatprep.subr.bf16.mxu0 %v1413
    %1797 = vmatpush1.bf16.msra.mxu0 %v1412
    %1798 = vmatprep.subr.bf16.mxu0 %v1417
    %1799 = vmatpush1.bf16.msra.mxu0 %v1416
    %1800 = vmatprep.subr.bf16.mxu0 %v1421
    %1801 = vmatpush1.bf16.msra.mxu0 %v1420
    %1802 = vmatprep.subr.bf16.mxu0 0
    %1803 = vmatpush1.bf16.msra.mxu0 0
    %1804 = vmatprep.subr.bf16.mxu0 0
    %1805 = vmatpush1.bf16.msra.mxu0 0
    %1806 = vmatprep.subr.bf16.mxu0 0
    %1807 = vmatpush1.bf16.msra.mxu0 0
    %1808 = vmatprep.subr.bf16.mxu0 0
    %1809 = vmatpush1.bf16.msra.mxu0 0
    %1810 = vmatprep.subr.bf16.mxu0 0
    %1811 = vmatpush1.bf16.msra.mxu0 0
    %1812 = vmatprep.subr.bf16.mxu0 0
    %1813 = vmatpush1.bf16.msra.mxu0 0
    %1814 = vmatprep.subr.bf16.mxu0 0
    %1815 = vmatpush1.bf16.msra.mxu0 0
    %1816 = vmatprep.subr.bf16.mxu0 0
    %1817 = vmatpush1.bf16.msra.mxu0 0
    %1818 = vmatprep.mubr.bf16.mxu0 0
    %1819 = vmatmul.mubr.bf16.gmra.mrb[0].mxu0 %v1587
    %v1820 = vpop.f32.mrb[0].mxu0
    %v1821 = vadd.f32 %v1739, %v1820
    %v1822 = vpop.f32.mrb[0].mxu0
    %v1823 = vadd.f32 %v1741, %v1822
    %v1824 = vpop.f32.mrb[0].mxu0
    %v1825 = vpop.f32.mrb[0].mxu0
    %1826 = vdwg.mxu0
    %1827 = vmatprep.subr.bf16.mxu0 %v1395
    %1828 = vmatpush1.bf16.msra.mxu0 %v1394
    %1829 = vmatprep.subr.bf16.mxu0 %v1399
    %1830 = vmatpush1.bf16.msra.mxu0 %v1398
    %1831 = vmatprep.subr.bf16.mxu0 %v1403
    %1832 = vmatpush1.bf16.msra.mxu0 %v1402
    %1833 = vmatprep.subr.bf16.mxu0 %v1407
    %1834 = vmatpush1.bf16.msra.mxu0 %v1406
    %1835 = vmatprep.subr.bf16.mxu0 %v1411
    %1836 = vmatpush1.bf16.msra.mxu0 %v1410
    %1837 = vmatprep.subr.bf16.mxu0 %v1415
    %1838 = vmatpush1.bf16.msra.mxu0 %v1414
    %1839 = vmatprep.subr.bf16.mxu0 %v1419
    %1840 = vmatpush1.bf16.msra.mxu0 %v1418
    %1841 = vmatprep.subr.bf16.mxu0 %v1423
    %1842 = vmatpush1.bf16.msra.mxu0 %v1422
    %1843 = vmatprep.subr.bf16.mxu0 0
    %1844 = vmatpush1.bf16.msra.mxu0 0
    %1845 = vmatprep.subr.bf16.mxu0 0
    %1846 = vmatpush1.bf16.msra.mxu0 0
    %1847 = vmatprep.subr.bf16.mxu0 0
    %1848 = vmatpush1.bf16.msra.mxu0 0
    %1849 = vmatprep.subr.bf16.mxu0 0
    %1850 = vmatpush1.bf16.msra.mxu0 0
    %1851 = vmatprep.subr.bf16.mxu0 0
    %1852 = vmatpush1.bf16.msra.mxu0 0
    %1853 = vmatprep.subr.bf16.mxu0 0
    %1854 = vmatpush1.bf16.msra.mxu0 0
    %1855 = vmatprep.subr.bf16.mxu0 0
    %1856 = vmatpush1.bf16.msra.mxu0 0
    %1857 = vmatprep.subr.bf16.mxu0 0
    %1858 = vmatpush1.bf16.msra.mxu0 0
    %1859 = vmatprep.mubr.bf16.mxu0 0
    %1860 = vmatmul.mubr.bf16.gmra.mrb[0].mxu0 %v1587
    %v1861 = vpop.f32.mrb[0].mxu0
    %v1862 = vadd.f32 %v1780, %v1861
    %v1863 = vpop.f32.mrb[0].mxu0
    %v1864 = vadd.f32 %v1782, %v1863
    %v1865 = vpop.f32.mrb[0].mxu0
    %v1866 = vpop.f32.mrb[0].mxu0
    %1867 = vdwg.mxu0
    %v1868 = vadd.f32 %v1821, %v1542
    %v1869 = vadd.f32 %v1823, %v1546
    %v1870 = vadd.f32 %v1862, %v1550
    %v1871 = vadd.f32 %v1864, %v1554
    %v1872 = vxor.u32 %v1868, 2147483648
    %v1873 = vxor.u32 %v1869, 2147483648
    %v1874 = vmul.f32 %v1872, 1.442695
    %v1875 = vpow.pop %v1874
    %v1876 = vmul.f32 %v1873, 1.442695
    %v1877 = vpow.pop %v1876
    %v1878 = vadd.f32 %v1875, 1.0
    %v1879 = vadd.f32 %v1877, 1.0
    %v1880 = vrcp.pop %v1878
    %v1881 = vmul.f32 1.0, %v1880
    %v1882 = vrcp.pop %v1879
    %v1883 = vmul.f32 1.0, %v1882
    %v1884 = vtanh.pop %v1870
    %v1885 = vxor.u32 %v1871, 2147483648
    %v1886 = vmul.f32 %v1885, 1.442695
    %v1887 = vpow.pop %v1886
    %v1888 = vadd.f32 %v1887, 1.0
    %v1889 = vrcp.pop %v1888
    %v1890 = vmul.f32 1.0, %v1889
    %v1891 = vmul.f32 %v1883, %v1584
    %v1892 = vmul.f32 %v1881, %v1884
    %v1893 = vadd.f32 %v1891, %v1892
    %v1894 = vtanh.pop %v1893
    %v1895 = vmul.f32 %v1890, %v1894
    %v1928 = vunpack.c.l.b16 %v551
    %v1929 = vunpack.c.h.b16 %v551
    %v1930 = vunpack.c.l.b16 %v552
    %v1931 = vunpack.c.h.b16 %v552
    %v1932 = vunpack.c.l.b16 %v553
    %v1933 = vunpack.c.h.b16 %v553
    %v1934 = vunpack.c.l.b16 %v554
    %v1935 = vunpack.c.h.b16 %v554
    %v1936 = vunpack.c.l.b16 %v555
    %v1937 = vunpack.c.h.b16 %v555
    %v1938 = vunpack.c.l.b16 %v556
    %v1939 = vunpack.c.h.b16 %v556
    %v1940 = vunpack.c.l.b16 %v557
    %v1941 = vunpack.c.h.b16 %v557
    %v1942 = vunpack.c.l.b16 %v558
    %v1943 = vunpack.c.h.b16 %v558
    %v1944 = vunpack.c.l.b16 %v559
    %v1945 = vunpack.c.h.b16 %v559
    %v1946 = vunpack.c.l.b16 %v560
    %v1947 = vunpack.c.h.b16 %v560
    %v1948 = vunpack.c.l.b16 %v561
    %v1949 = vunpack.c.h.b16 %v561
    %v1950 = vunpack.c.l.b16 %v562
    %v1951 = vunpack.c.h.b16 %v562
    %v1952 = vunpack.c.l.b16 %v563
    %v1953 = vunpack.c.h.b16 %v563
    %v1954 = vunpack.c.l.b16 %v564
    %v1955 = vunpack.c.h.b16 %v564
    %v1956 = vunpack.c.l.b16 %v565
    %v1957 = vunpack.c.h.b16 %v565
    %v1958 = vunpack.c.l.b16 %v566
    %v1959 = vunpack.c.h.b16 %v566
    %v1960 = vunpack.c.l.b16 %v567
    %v1961 = vunpack.c.h.b16 %v567
    %v1962 = vunpack.c.l.b16 %v568
    %v1963 = vunpack.c.h.b16 %v568
    %v1964 = vunpack.c.l.b16 %v569
    %v1965 = vunpack.c.h.b16 %v569
    %v1966 = vunpack.c.l.b16 %v570
    %v1967 = vunpack.c.h.b16 %v570
    %v1968 = vunpack.c.l.b16 %v571
    %v1969 = vunpack.c.h.b16 %v571
    %v1970 = vunpack.c.l.b16 %v572
    %v1971 = vunpack.c.h.b16 %v572
    %v1972 = vunpack.c.l.b16 %v573
    %v1973 = vunpack.c.h.b16 %v573
    %v1974 = vunpack.c.l.b16 %v574
    %v1975 = vunpack.c.h.b16 %v574
    %v1976 = vunpack.c.l.b16 %v575
    %v1977 = vunpack.c.h.b16 %v575
    %v1978 = vunpack.c.l.b16 %v576
    %v1979 = vunpack.c.h.b16 %v576
    %v1980 = vunpack.c.l.b16 %v577
    %v1981 = vunpack.c.h.b16 %v577
    %v1982 = vunpack.c.l.b16 %v578
    %v1983 = vunpack.c.h.b16 %v578
    %v1984 = vunpack.c.l.b16 %v579
    %v1985 = vunpack.c.h.b16 %v579
    %v1986 = vunpack.c.l.b16 %v580
    %v1987 = vunpack.c.h.b16 %v580
    %v1988 = vunpack.c.l.b16 %v581
    %v1989 = vunpack.c.h.b16 %v581
    %v1990 = vunpack.c.l.b16 %v582
    %v1991 = vunpack.c.h.b16 %v582
    %v1992 = vpack.c.b16 %v1932, %v1928
    %v1993 = vpack.c.b16 %v1933, %v1929
    %v1994 = vpack.c.b16 %v1934, %v1930
    %v1995 = vpack.c.b16 %v1935, %v1931
    %v1996 = vpack.c.b16 %v1940, %v1936
    %v1997 = vpack.c.b16 %v1941, %v1937
    %v1998 = vpack.c.b16 %v1942, %v1938
    %v1999 = vpack.c.b16 %v1943, %v1939
    %v2000 = vpack.c.b16 %v1948, %v1944
    %v2001 = vpack.c.b16 %v1949, %v1945
    %v2002 = vpack.c.b16 %v1950, %v1946
    %v2003 = vpack.c.b16 %v1951, %v1947
    %v2004 = vpack.c.b16 %v1956, %v1952
    %v2005 = vpack.c.b16 %v1957, %v1953
    %v2006 = vpack.c.b16 %v1958, %v1954
    %v2007 = vpack.c.b16 %v1959, %v1955
    %v2008 = vpack.c.b16 %v1964, %v1960
    %v2009 = vpack.c.b16 %v1965, %v1961
    %v2010 = vpack.c.b16 %v1966, %v1962
    %v2011 = vpack.c.b16 %v1967, %v1963
    %v2012 = vpack.c.b16 %v1972, %v1968
    %v2013 = vpack.c.b16 %v1973, %v1969
    %v2014 = vpack.c.b16 %v1974, %v1970
    %v2015 = vpack.c.b16 %v1975, %v1971
    %v2016 = vpack.c.b16 %v1980, %v1976
    %v2017 = vpack.c.b16 %v1981, %v1977
    %v2018 = vpack.c.b16 %v1982, %v1978
    %v2019 = vpack.c.b16 %v1983, %v1979
    %v2020 = vpack.c.b16 %v1988, %v1984
    %v2021 = vpack.c.b16 %v1989, %v1985
    %v2022 = vpack.c.b16 %v1990, %v1986
    %v2023 = vpack.c.b16 %v1991, %v1987
    %2056 = vmatprep.subr.bf16.mxu0 %v1993
    %2057 = vmatpush1.bf16.msra.mxu0 %v1992
    %2058 = vmatprep.subr.bf16.mxu0 %v1997
    %2059 = vmatpush1.bf16.msra.mxu0 %v1996
    %2060 = vmatprep.subr.bf16.mxu0 %v2001
    %2061 = vmatpush1.bf16.msra.mxu0 %v2000
    %2062 = vmatprep.subr.bf16.mxu0 %v2005
    %2063 = vmatpush1.bf16.msra.mxu0 %v2004
    %2064 = vmatprep.subr.bf16.mxu0 %v2009
    %2065 = vmatpush1.bf16.msra.mxu0 %v2008
    %2066 = vmatprep.subr.bf16.mxu0 %v2013
    %2067 = vmatpush1.bf16.msra.mxu0 %v2012
    %2068 = vmatprep.subr.bf16.mxu0 %v2017
    %2069 = vmatpush1.bf16.msra.mxu0 %v2016
    %2070 = vmatprep.subr.bf16.mxu0 %v2021
    %2071 = vmatpush1.bf16.msra.mxu0 %v2020
    %2072 = vmatprep.subr.bf16.mxu0 0
    %2073 = vmatpush1.bf16.msra.mxu0 0
    %2074 = vmatprep.subr.bf16.mxu0 0
    %2075 = vmatpush1.bf16.msra.mxu0 0
    %2076 = vmatprep.subr.bf16.mxu0 0
    %2077 = vmatpush1.bf16.msra.mxu0 0
    %2078 = vmatprep.subr.bf16.mxu0 0
    %2079 = vmatpush1.bf16.msra.mxu0 0
    %2080 = vmatprep.subr.bf16.mxu0 0
    %2081 = vmatpush1.bf16.msra.mxu0 0
    %2082 = vmatprep.subr.bf16.mxu0 0
    %2083 = vmatpush1.bf16.msra.mxu0 0
    %2084 = vmatprep.subr.bf16.mxu0 0
    %2085 = vmatpush1.bf16.msra.mxu0 0
    %2086 = vmatprep.subr.bf16.mxu0 0
    %2087 = vmatpush1.bf16.msra.mxu0 0
    %2088 = vmatprep.mubr.bf16.mxu0 0
    %2089 = vmatmul.mubr.bf16.gmra.mrb[0].mxu0 %v1589
    %v2090 = vpop.f32.mrb[0].mxu0
    %v2091 = vadd.f32 0.0, %v2090
    %v2092 = vpop.f32.mrb[0].mxu0
    %v2093 = vadd.f32 0.0, %v2092
    %v2094 = vpop.f32.mrb[0].mxu0
    %v2095 = vpop.f32.mrb[0].mxu0
    %2096 = vdwg.mxu0
    %2097 = vmatprep.subr.bf16.mxu0 %v1995
    %2098 = vmatpush1.bf16.msra.mxu0 %v1994
    %2099 = vmatprep.subr.bf16.mxu0 %v1999
    %2100 = vmatpush1.bf16.msra.mxu0 %v1998
    %2101 = vmatprep.subr.bf16.mxu0 %v2003
    %2102 = vmatpush1.bf16.msra.mxu0 %v2002
    %2103 = vmatprep.subr.bf16.mxu0 %v2007
    %2104 = vmatpush1.bf16.msra.mxu0 %v2006
    %2105 = vmatprep.subr.bf16.mxu0 %v2011
    %2106 = vmatpush1.bf16.msra.mxu0 %v2010
    %2107 = vmatprep.subr.bf16.mxu0 %v2015
    %2108 = vmatpush1.bf16.msra.mxu0 %v2014
    %2109 = vmatprep.subr.bf16.mxu0 %v2019
    %2110 = vmatpush1.bf16.msra.mxu0 %v2018
    %2111 = vmatprep.subr.bf16.mxu0 %v2023
    %2112 = vmatpush1.bf16.msra.mxu0 %v2022
    %2113 = vmatprep.subr.bf16.mxu0 0
    %2114 = vmatpush1.bf16.msra.mxu0 0
    %2115 = vmatprep.subr.bf16.mxu0 0
    %2116 = vmatpush1.bf16.msra.mxu0 0
    %2117 = vmatprep.subr.bf16.mxu0 0
    %2118 = vmatpush1.bf16.msra.mxu0 0
    %2119 = vmatprep.subr.bf16.mxu0 0
    %2120 = vmatpush1.bf16.msra.mxu0 0
    %2121 = vmatprep.subr.bf16.mxu0 0
    %2122 = vmatpush1.bf16.msra.mxu0 0
    %2123 = vmatprep.subr.bf16.mxu0 0
    %2124 = vmatpush1.bf16.msra.mxu0 0
    %2125 = vmatprep.subr.bf16.mxu0 0
    %2126 = vmatpush1.bf16.msra.mxu0 0
    %2127 = vmatprep.subr.bf16.mxu0 0
    %2128 = vmatpush1.bf16.msra.mxu0 0
    %2129 = vmatprep.mubr.bf16.mxu0 0
    %2130 = vmatmul.mubr.bf16.gmra.mrb[0].mxu0 %v1589
    %v2131 = vpop.f32.mrb[0].mxu0
    %v2132 = vadd.f32 0.0, %v2131
    %v2133 = vpop.f32.mrb[0].mxu0
    %v2134 = vadd.f32 0.0, %v2133
    %v2135 = vpop.f32.mrb[0].mxu0
    %v2136 = vpop.f32.mrb[0].mxu0
    %2137 = vdwg.mxu0
    %v2170 = vunpack.c.l.b16 %v617
    %v2171 = vunpack.c.h.b16 %v617
    %v2172 = vunpack.c.l.b16 %v618
    %v2173 = vunpack.c.h.b16 %v618
    %v2174 = vunpack.c.l.b16 %v619
    %v2175 = vunpack.c.h.b16 %v619
    %v2176 = vunpack.c.l.b16 %v620
    %v2177 = vunpack.c.h.b16 %v620
    %v2178 = vunpack.c.l.b16 %v621
    %v2179 = vunpack.c.h.b16 %v621
    %v2180 = vunpack.c.l.b16 %v622
    %v2181 = vunpack.c.h.b16 %v622
    %v2182 = vunpack.c.l.b16 %v623
    %v2183 = vunpack.c.h.b16 %v623
    %v2184 = vunpack.c.l.b16 %v624
    %v2185 = vunpack.c.h.b16 %v624
    %v2186 = vunpack.c.l.b16 %v625
    %v2187 = vunpack.c.h.b16 %v625
    %v2188 = vunpack.c.l.b16 %v626
    %v2189 = vunpack.c.h.b16 %v626
    %v2190 = vunpack.c.l.b16 %v627
    %v2191 = vunpack.c.h.b16 %v627
    %v2192 = vunpack.c.l.b16 %v628
    %v2193 = vunpack.c.h.b16 %v628
    %v2194 = vunpack.c.l.b16 %v629
    %v2195 = vunpack.c.h.b16 %v629
    %v2196 = vunpack.c.l.b16 %v630
    %v2197 = vunpack.c.h.b16 %v630
    %v2198 = vunpack.c.l.b16 %v631
    %v2199 = vunpack.c.h.b16 %v631
    %v2200 = vunpack.c.l.b16 %v632
    %v2201 = vunpack.c.h.b16 %v632
    %v2202 = vunpack.c.l.b16 %v633
    %v2203 = vunpack.c.h.b16 %v633
    %v2204 = vunpack.c.l.b16 %v634
    %v2205 = vunpack.c.h.b16 %v634
    %v2206 = vunpack.c.l.b16 %v635
    %v2207 = vunpack.c.h.b16 %v635
    %v2208 = vunpack.c.l.b16 %v636
    %v2209 = vunpack.c.h.b16 %v636
    %v2210 = vunpack.c.l.b16 %v637
    %v2211 = vunpack.c.h.b16 %v637
    %v2212 = vunpack.c.l.b16 %v638
    %v2213 = vunpack.c.h.b16 %v638
    %v2214 = vunpack.c.l.b16 %v639
    %v2215 = vunpack.c.h.b16 %v639
    %v2216 = vunpack.c.l.b16 %v640
    %v2217 = vunpack.c.h.b16 %v640
    %v2218 = vunpack.c.l.b16 %v641
    %v2219 = vunpack.c.h.b16 %v641
    %v2220 = vunpack.c.l.b16 %v642
    %v2221 = vunpack.c.h.b16 %v642
    %v2222 = vunpack.c.l.b16 %v643
    %v2223 = vunpack.c.h.b16 %v643
    %v2224 = vunpack.c.l.b16 %v644
    %v2225 = vunpack.c.h.b16 %v644
    %v2226 = vunpack.c.l.b16 %v645
    %v2227 = vunpack.c.h.b16 %v645
    %v2228 = vunpack.c.l.b16 %v646
    %v2229 = vunpack.c.h.b16 %v646
    %v2230 = vunpack.c.l.b16 %v647
    %v2231 = vunpack.c.h.b16 %v647
    %v2232 = vunpack.c.l.b16 %v648
    %v2233 = vunpack.c.h.b16 %v648
    %v2234 = vpack.c.b16 %v2174, %v2170
    %v2235 = vpack.c.b16 %v2175, %v2171
    %v2236 = vpack.c.b16 %v2176, %v2172
    %v2237 = vpack.c.b16 %v2177, %v2173
    %v2238 = vpack.c.b16 %v2182, %v2178
    %v2239 = vpack.c.b16 %v2183, %v2179
    %v2240 = vpack.c.b16 %v2184, %v2180
    %v2241 = vpack.c.b16 %v2185, %v2181
    %v2242 = vpack.c.b16 %v2190, %v2186
    %v2243 = vpack.c.b16 %v2191, %v2187
    %v2244 = vpack.c.b16 %v2192, %v2188
    %v2245 = vpack.c.b16 %v2193, %v2189
    %v2246 = vpack.c.b16 %v2198, %v2194
    %v2247 = vpack.c.b16 %v2199, %v2195
    %v2248 = vpack.c.b16 %v2200, %v2196
    %v2249 = vpack.c.b16 %v2201, %v2197
    %v2250 = vpack.c.b16 %v2206, %v2202
    %v2251 = vpack.c.b16 %v2207, %v2203
    %v2252 = vpack.c.b16 %v2208, %v2204
    %v2253 = vpack.c.b16 %v2209, %v2205
    %v2254 = vpack.c.b16 %v2214, %v2210
    %v2255 = vpack.c.b16 %v2215, %v2211
    %v2256 = vpack.c.b16 %v2216, %v2212
    %v2257 = vpack.c.b16 %v2217, %v2213
    %v2258 = vpack.c.b16 %v2222, %v2218
    %v2259 = vpack.c.b16 %v2223, %v2219
    %v2260 = vpack.c.b16 %v2224, %v2220
    %v2261 = vpack.c.b16 %v2225, %v2221
    %v2262 = vpack.c.b16 %v2230, %v2226
    %v2263 = vpack.c.b16 %v2231, %v2227
    %v2264 = vpack.c.b16 %v2232, %v2228
    %v2265 = vpack.c.b16 %v2233, %v2229
    %2298 = vmatprep.subr.bf16.mxu0 %v2235
    %2299 = vmatpush1.bf16.msra.mxu0 %v2234
    %2300 = vmatprep.subr.bf16.mxu0 %v2239
    %2301 = vmatpush1.bf16.msra.mxu0 %v2238
    %2302 = vmatprep.subr.bf16.mxu0 %v2243
    %2303 = vmatpush1.bf16.msra.mxu0 %v2242
    %2304 = vmatprep.subr.bf16.mxu0 %v2247
    %2305 = vmatpush1.bf16.msra.mxu0 %v2246
    %2306 = vmatprep.subr.bf16.mxu0 %v2251
    %2307 = vmatpush1.bf16.msra.mxu0 %v2250
    %2308 = vmatprep.subr.bf16.mxu0 %v2255
    %2309 = vmatpush1.bf16.msra.mxu0 %v2254
    %2310 = vmatprep.subr.bf16.mxu0 %v2259
    %2311 = vmatpush1.bf16.msra.mxu0 %v2258
    %2312 = vmatprep.subr.bf16.mxu0 %v2263
    %2313 = vmatpush1.bf16.msra.mxu0 %v2262
    %2314 = vmatprep.subr.bf16.mxu0 0
    %2315 = vmatpush1.bf16.msra.mxu0 0
    %2316 = vmatprep.subr.bf16.mxu0 0
    %2317 = vmatpush1.bf16.msra.mxu0 0
    %2318 = vmatprep.subr.bf16.mxu0 0
    %2319 = vmatpush1.bf16.msra.mxu0 0
    %2320 = vmatprep.subr.bf16.mxu0 0
    %2321 = vmatpush1.bf16.msra.mxu0 0
    %2322 = vmatprep.subr.bf16.mxu0 0
    %2323 = vmatpush1.bf16.msra.mxu0 0
    %2324 = vmatprep.subr.bf16.mxu0 0
    %2325 = vmatpush1.bf16.msra.mxu0 0
    %2326 = vmatprep.subr.bf16.mxu0 0
    %2327 = vmatpush1.bf16.msra.mxu0 0
    %2328 = vmatprep.subr.bf16.mxu0 0
    %2329 = vmatpush1.bf16.msra.mxu0 0
    %2330 = vmatprep.mubr.bf16.mxu0 0
    %2331 = vmatmul.mubr.bf16.gmra.mrb[0].mxu0 %v1588
    %v2332 = vpop.f32.mrb[0].mxu0
    %v2333 = vadd.f32 %v2091, %v2332
    %v2334 = vpop.f32.mrb[0].mxu0
    %v2335 = vadd.f32 %v2093, %v2334
    %v2336 = vpop.f32.mrb[0].mxu0
    %v2337 = vpop.f32.mrb[0].mxu0
    %2338 = vdwg.mxu0
    %2339 = vmatprep.subr.bf16.mxu0 %v2237
    %2340 = vmatpush1.bf16.msra.mxu0 %v2236
    %2341 = vmatprep.subr.bf16.mxu0 %v2241
    %2342 = vmatpush1.bf16.msra.mxu0 %v2240
    %2343 = vmatprep.subr.bf16.mxu0 %v2245
    %2344 = vmatpush1.bf16.msra.mxu0 %v2244
    %2345 = vmatprep.subr.bf16.mxu0 %v2249
    %2346 = vmatpush1.bf16.msra.mxu0 %v2248
    %2347 = vmatprep.subr.bf16.mxu0 %v2253
    %2348 = vmatpush1.bf16.msra.mxu0 %v2252
    %2349 = vmatprep.subr.bf16.mxu0 %v2257
    %2350 = vmatpush1.bf16.msra.mxu0 %v2256
    %2351 = vmatprep.subr.bf16.mxu0 %v2261
    %2352 = vmatpush1.bf16.msra.mxu0 %v2260
    %2353 = vmatprep.subr.bf16.mxu0 %v2265
    %2354 = vmatpush1.bf16.msra.mxu0 %v2264
    %2355 = vmatprep.subr.bf16.mxu0 0
    %2356 = vmatpush1.bf16.msra.mxu0 0
    %2357 = vmatprep.subr.bf16.mxu0 0
    %2358 = vmatpush1.bf16.msra.mxu0 0
    %2359 = vmatprep.subr.bf16.mxu0 0
    %2360 = vmatpush1.bf16.msra.mxu0 0
    %2361 = vmatprep.subr.bf16.mxu0 0
    %2362 = vmatpush1.bf16.msra.mxu0 0
    %2363 = vmatprep.subr.bf16.mxu0 0
    %2364 = vmatpush1.bf16.msra.mxu0 0
    %2365 = vmatprep.subr.bf16.mxu0 0
    %2366 = vmatpush1.bf16.msra.mxu0 0
    %2367 = vmatprep.subr.bf16.mxu0 0
    %2368 = vmatpush1.bf16.msra.mxu0 0
    %2369 = vmatprep.subr.bf16.mxu0 0
    %2370 = vmatpush1.bf16.msra.mxu0 0
    %2371 = vmatprep.mubr.bf16.mxu0 0
    %2372 = vmatmul.mubr.bf16.gmra.mrb[0].mxu0 %v1588
    %v2373 = vpop.f32.mrb[0].mxu0
    %v2374 = vadd.f32 %v2132, %v2373
    %v2375 = vpop.f32.mrb[0].mxu0
    %v2376 = vadd.f32 %v2134, %v2375
    %v2377 = vpop.f32.mrb[0].mxu0
    %v2378 = vpop.f32.mrb[0].mxu0
    %2379 = vdwg.mxu0
    %v2381 = vlaneseq
    %v2382 = vshrl.u32 %v2381, 7
    %v2383 = vsub.s32 0, %v2382
    %v2384 = vrot.slane %v652, %v2383
    %v2385 = vlaneseq
    %v2386 = vshrl.u32 %v2385, 7
    %v2387 = vsub.s32 1, %v2386
    %v2388 = vrot.slane %v652, %v2387
    %v2389 = vlaneseq
    %v2390 = vshrl.u32 %v2389, 7
    %v2391 = vsub.s32 2, %v2390
    %v2392 = vrot.slane %v652, %v2391
    %v2393 = vlaneseq
    %v2394 = vshrl.u32 %v2393, 7
    %v2395 = vsub.s32 3, %v2394
    %v2396 = vrot.slane %v652, %v2395
    %v2401 = vadd.f32 %v2333, %v2384
    %v2402 = vadd.f32 %v2335, %v2388
    %v2403 = vadd.f32 %v2374, %v2392
    %v2404 = vadd.f32 %v2376, %v2396
    %v2405 = vxor.u32 %v2401, 2147483648
    %v2406 = vxor.u32 %v2402, 2147483648
    %v2407 = vmul.f32 %v2405, 1.442695
    %v2408 = vpow.pop %v2407
    %v2409 = vmul.f32 %v2406, 1.442695
    %v2410 = vpow.pop %v2409
    %v2411 = vadd.f32 %v2408, 1.0
    %v2412 = vadd.f32 %v2410, 1.0
    %v2413 = vrcp.pop %v2411
    %v2414 = vmul.f32 1.0, %v2413
    %v2415 = vrcp.pop %v2412
    %v2416 = vmul.f32 1.0, %v2415
    %v2417 = vtanh.pop %v2403
    %v2418 = vxor.u32 %v2404, 2147483648
    %v2419 = vmul.f32 %v2418, 1.442695
    %v2420 = vpow.pop %v2419
    %v2421 = vadd.f32 %v2420, 1.0
    %v2422 = vrcp.pop %v2421
    %v2423 = vmul.f32 1.0, %v2422
    %v2424 = vmul.f32 %v2416, %v662
    %v2425 = vmul.f32 %v2414, %v2417
    %v2426 = vadd.f32 %v2424, %v2425
    %v2427 = vtanh.pop %v2426
    %v2428 = vmul.f32 %v2423, %v2427
    %2429 = vst [vmem:[#allocation3] sm:$0xff] %v2428
    %v2430 = vpack.c.bf16 %v1703, %v1703
    %v2431 = vpack.c.bf16 %v1895, %v1895
    %v2432 = vpack.c.bf16 %v2428, %v2428
    %v2433 = vld [vmem:[#allocation2 + $0x60] sm:$0xff]
    %v2434 = vld [vmem:[#allocation2 + $0x68] sm:$0xff]
    %v2435 = vld [vmem:[#allocation2 + $0x70] sm:$0xff]
    %v2436 = vld [vmem:[#allocation2 + $0x78] sm:$0xff]
    %2437 = vmatprep.subr.bf16.mxu0 %v765
    %2438 = vmatpush1.bf16.msra.mxu0 %v764
    %2439 = vmatprep.subr.bf16.mxu0 %v769
    %2440 = vmatpush1.bf16.msra.mxu0 %v768
    %2441 = vmatprep.subr.bf16.mxu0 %v773
    %2442 = vmatpush1.bf16.msra.mxu0 %v772
    %2443 = vmatprep.subr.bf16.mxu0 %v777
    %2444 = vmatpush1.bf16.msra.mxu0 %v776
    %2445 = vmatprep.subr.bf16.mxu0 %v781
    %2446 = vmatpush1.bf16.msra.mxu0 %v780
    %2447 = vmatprep.subr.bf16.mxu0 %v785
    %2448 = vmatpush1.bf16.msra.mxu0 %v784
    %2449 = vmatprep.subr.bf16.mxu0 %v789
    %2450 = vmatpush1.bf16.msra.mxu0 %v788
    %2451 = vmatprep.subr.bf16.mxu0 %v793
    %2452 = vmatpush1.bf16.msra.mxu0 %v792
    %2453 = vmatprep.subr.bf16.mxu0 0
    %2454 = vmatpush1.bf16.msra.mxu0 0
    %2455 = vmatprep.subr.bf16.mxu0 0
    %2456 = vmatpush1.bf16.msra.mxu0 0
    %2457 = vmatprep.subr.bf16.mxu0 0
    %2458 = vmatpush1.bf16.msra.mxu0 0
    %2459 = vmatprep.subr.bf16.mxu0 0
    %2460 = vmatpush1.bf16.msra.mxu0 0
    %2461 = vmatprep.subr.bf16.mxu0 0
    %2462 = vmatpush1.bf16.msra.mxu0 0
    %2463 = vmatprep.subr.bf16.mxu0 0
    %2464 = vmatpush1.bf16.msra.mxu0 0
    %2465 = vmatprep.subr.bf16.mxu0 0
    %2466 = vmatpush1.bf16.msra.mxu0 0
    %2467 = vmatprep.subr.bf16.mxu0 0
    %2468 = vmatpush1.bf16.msra.mxu0 0
    %2469 = vmatprep.mubr.bf16.mxu0 0
    %2470 = vmatmul.mubr.bf16.gmra.mrb[0].mxu0 %v2430
    %v2471 = vpop.f32.mrb[0].mxu0
    %v2472 = vadd.f32 0.0, %v2471
    %v2473 = vpop.f32.mrb[0].mxu0
    %v2474 = vadd.f32 0.0, %v2473
    %v2475 = vpop.f32.mrb[0].mxu0
    %v2476 = vpop.f32.mrb[0].mxu0
    %2477 = vdwg.mxu0
    %2478 = vmatprep.subr.bf16.mxu0 %v767
    %2479 = vmatpush1.bf16.msra.mxu0 %v766
    %2480 = vmatprep.subr.bf16.mxu0 %v771
    %2481 = vmatpush1.bf16.msra.mxu0 %v770
    %2482 = vmatprep.subr.bf16.mxu0 %v775
    %2483 = vmatpush1.bf16.msra.mxu0 %v774
    %2484 = vmatprep.subr.bf16.mxu0 %v779
    %2485 = vmatpush1.bf16.msra.mxu0 %v778
    %2486 = vmatprep.subr.bf16.mxu0 %v783
    %2487 = vmatpush1.bf16.msra.mxu0 %v782
    %2488 = vmatprep.subr.bf16.mxu0 %v787
    %2489 = vmatpush1.bf16.msra.mxu0 %v786
    %2490 = vmatprep.subr.bf16.mxu0 %v791
    %2491 = vmatpush1.bf16.msra.mxu0 %v790
    %2492 = vmatprep.subr.bf16.mxu0 %v795
    %2493 = vmatpush1.bf16.msra.mxu0 %v794
    %2494 = vmatprep.subr.bf16.mxu0 0
    %2495 = vmatpush1.bf16.msra.mxu0 0
    %2496 = vmatprep.subr.bf16.mxu0 0
    %2497 = vmatpush1.bf16.msra.mxu0 0
    %2498 = vmatprep.subr.bf16.mxu0 0
    %2499 = vmatpush1.bf16.msra.mxu0 0
    %2500 = vmatprep.subr.bf16.mxu0 0
    %2501 = vmatpush1.bf16.msra.mxu0 0
    %2502 = vmatprep.subr.bf16.mxu0 0
    %2503 = vmatpush1.bf16.msra.mxu0 0
    %2504 = vmatprep.subr.bf16.mxu0 0
    %2505 = vmatpush1.bf16.msra.mxu0 0
    %2506 = vmatprep.subr.bf16.mxu0 0
    %2507 = vmatpush1.bf16.msra.mxu0 0
    %2508 = vmatprep.subr.bf16.mxu0 0
    %2509 = vmatpush1.bf16.msra.mxu0 0
    %2510 = vmatprep.mubr.bf16.mxu0 0
    %2511 = vmatmul.mubr.bf16.gmra.mrb[0].mxu0 %v2430
    %v2512 = vpop.f32.mrb[0].mxu0
    %v2513 = vadd.f32 0.0, %v2512
    %v2514 = vpop.f32.mrb[0].mxu0
    %v2515 = vadd.f32 0.0, %v2514
    %v2516 = vpop.f32.mrb[0].mxu0
    %v2517 = vpop.f32.mrb[0].mxu0
    %2518 = vdwg.mxu0
    %v2519 = vadd.f32 %v2433, %v2472
    %v2520 = vadd.f32 %v2434, %v2474
    %v2521 = vadd.f32 %v2435, %v2513
    %v2522 = vadd.f32 %v2436, %v2515
    %v2523 = vxor.u32 %v2519, 2147483648
    %v2524 = vxor.u32 %v2520, 2147483648
    %v2525 = vmul.f32 %v2523, 1.442695
    %v2526 = vpow.pop %v2525
    %v2527 = vmul.f32 %v2524, 1.442695
    %v2528 = vpow.pop %v2527
    %v2529 = vadd.f32 %v2526, 1.0
    %v2530 = vadd.f32 %v2528, 1.0
    %v2531 = vrcp.pop %v2529
    %v2532 = vmul.f32 1.0, %v2531
    %v2533 = vrcp.pop %v2530
    %v2534 = vmul.f32 1.0, %v2533
    %v2535 = vtanh.pop %v2521
    %v2536 = vxor.u32 %v2522, 2147483648
    %v2537 = vmul.f32 %v2536, 1.442695
    %v2538 = vpow.pop %v2537
    %v2539 = vadd.f32 %v2538, 1.0
    %v2540 = vrcp.pop %v2539
    %v2541 = vmul.f32 1.0, %v2540
    %v2542 = vmul.f32 %v2534, %v1701
    %v2543 = vmul.f32 %v2532, %v2535
    %v2544 = vadd.f32 %v2542, %v2543
    %v2545 = vtanh.pop %v2544
    %v2546 = vmul.f32 %v2541, %v2545
    %2547 = vmatprep.subr.bf16.mxu0 %v1151
    %2548 = vmatpush1.bf16.msra.mxu0 %v1150
    %2549 = vmatprep.subr.bf16.mxu0 %v1155
    %2550 = vmatpush1.bf16.msra.mxu0 %v1154
    %2551 = vmatprep.subr.bf16.mxu0 %v1159
    %2552 = vmatpush1.bf16.msra.mxu0 %v1158
    %2553 = vmatprep.subr.bf16.mxu0 %v1163
    %2554 = vmatpush1.bf16.msra.mxu0 %v1162
    %2555 = vmatprep.subr.bf16.mxu0 %v1167
    %2556 = vmatpush1.bf16.msra.mxu0 %v1166
    %2557 = vmatprep.subr.bf16.mxu0 %v1171
    %2558 = vmatpush1.bf16.msra.mxu0 %v1170
    %2559 = vmatprep.subr.bf16.mxu0 %v1175
    %2560 = vmatpush1.bf16.msra.mxu0 %v1174
    %2561 = vmatprep.subr.bf16.mxu0 %v1179
    %2562 = vmatpush1.bf16.msra.mxu0 %v1178
    %2563 = vmatprep.subr.bf16.mxu0 0
    %2564 = vmatpush1.bf16.msra.mxu0 0
    %2565 = vmatprep.subr.bf16.mxu0 0
    %2566 = vmatpush1.bf16.msra.mxu0 0
    %2567 = vmatprep.subr.bf16.mxu0 0
    %2568 = vmatpush1.bf16.msra.mxu0 0
    %2569 = vmatprep.subr.bf16.mxu0 0
    %2570 = vmatpush1.bf16.msra.mxu0 0
    %2571 = vmatprep.subr.bf16.mxu0 0
    %2572 = vmatpush1.bf16.msra.mxu0 0
    %2573 = vmatprep.subr.bf16.mxu0 0
    %2574 = vmatpush1.bf16.msra.mxu0 0
    %2575 = vmatprep.subr.bf16.mxu0 0
    %2576 = vmatpush1.bf16.msra.mxu0 0
    %2577 = vmatprep.subr.bf16.mxu0 0
    %2578 = vmatpush1.bf16.msra.mxu0 0
    %2579 = vmatprep.mubr.bf16.mxu0 0
    %2580 = vmatmul.mubr.bf16.gmra.mrb[0].mxu0 %v2431
    %v2581 = vpop.f32.mrb[0].mxu0
    %v2582 = vadd.f32 0.0, %v2581
    %v2583 = vpop.f32.mrb[0].mxu0
    %v2584 = vadd.f32 0.0, %v2583
    %v2585 = vpop.f32.mrb[0].mxu0
    %v2586 = vpop.f32.mrb[0].mxu0
    %2587 = vdwg.mxu0
    %2588 = vmatprep.subr.bf16.mxu0 %v1153
    %2589 = vmatpush1.bf16.msra.mxu0 %v1152
    %2590 = vmatprep.subr.bf16.mxu0 %v1157
    %2591 = vmatpush1.bf16.msra.mxu0 %v1156
    %2592 = vmatprep.subr.bf16.mxu0 %v1161
    %2593 = vmatpush1.bf16.msra.mxu0 %v1160
    %2594 = vmatprep.subr.bf16.mxu0 %v1165
    %2595 = vmatpush1.bf16.msra.mxu0 %v1164
    %2596 = vmatprep.subr.bf16.mxu0 %v1169
    %2597 = vmatpush1.bf16.msra.mxu0 %v1168
    %2598 = vmatprep.subr.bf16.mxu0 %v1173
    %2599 = vmatpush1.bf16.msra.mxu0 %v1172
    %2600 = vmatprep.subr.bf16.mxu0 %v1177
    %2601 = vmatpush1.bf16.msra.mxu0 %v1176
    %2602 = vmatprep.subr.bf16.mxu0 %v1181
    %2603 = vmatpush1.bf16.msra.mxu0 %v1180
    %2604 = vmatprep.subr.bf16.mxu0 0
    %2605 = vmatpush1.bf16.msra.mxu0 0
    %2606 = vmatprep.subr.bf16.mxu0 0
    %2607 = vmatpush1.bf16.msra.mxu0 0
    %2608 = vmatprep.subr.bf16.mxu0 0
    %2609 = vmatpush1.bf16.msra.mxu0 0
    %2610 = vmatprep.subr.bf16.mxu0 0
    %2611 = vmatpush1.bf16.msra.mxu0 0
    %2612 = vmatprep.subr.bf16.mxu0 0
    %2613 = vmatpush1.bf16.msra.mxu0 0
    %2614 = vmatprep.subr.bf16.mxu0 0
    %2615 = vmatpush1.bf16.msra.mxu0 0
    %2616 = vmatprep.subr.bf16.mxu0 0
    %2617 = vmatpush1.bf16.msra.mxu0 0
    %2618 = vmatprep.subr.bf16.mxu0 0
    %2619 = vmatpush1.bf16.msra.mxu0 0
    %2620 = vmatprep.mubr.bf16.mxu0 0
    %2621 = vmatmul.mubr.bf16.gmra.mrb[0].mxu0 %v2431
    %v2622 = vpop.f32.mrb[0].mxu0
    %v2623 = vadd.f32 0.0, %v2622
    %v2624 = vpop.f32.mrb[0].mxu0
    %v2625 = vadd.f32 0.0, %v2624
    %v2626 = vpop.f32.mrb[0].mxu0
    %v2627 = vpop.f32.mrb[0].mxu0
    %2628 = vdwg.mxu0
    %2629 = vmatprep.subr.bf16.mxu0 %v1393
    %2630 = vmatpush1.bf16.msra.mxu0 %v1392
    %2631 = vmatprep.subr.bf16.mxu0 %v1397
    %2632 = vmatpush1.bf16.msra.mxu0 %v1396
    %2633 = vmatprep.subr.bf16.mxu0 %v1401
    %2634 = vmatpush1.bf16.msra.mxu0 %v1400
    %2635 = vmatprep.subr.bf16.mxu0 %v1405
    %2636 = vmatpush1.bf16.msra.mxu0 %v1404
    %2637 = vmatprep.subr.bf16.mxu0 %v1409
    %2638 = vmatpush1.bf16.msra.mxu0 %v1408
    %2639 = vmatprep.subr.bf16.mxu0 %v1413
    %2640 = vmatpush1.bf16.msra.mxu0 %v1412
    %2641 = vmatprep.subr.bf16.mxu0 %v1417
    %2642 = vmatpush1.bf16.msra.mxu0 %v1416
    %2643 = vmatprep.subr.bf16.mxu0 %v1421
    %2644 = vmatpush1.bf16.msra.mxu0 %v1420
    %2645 = vmatprep.subr.bf16.mxu0 0
    %2646 = vmatpush1.bf16.msra.mxu0 0
    %2647 = vmatprep.subr.bf16.mxu0 0
    %2648 = vmatpush1.bf16.msra.mxu0 0
    %2649 = vmatprep.subr.bf16.mxu0 0
    %2650 = vmatpush1.bf16.msra.mxu0 0
    %2651 = vmatprep.subr.bf16.mxu0 0
    %2652 = vmatpush1.bf16.msra.mxu0 0
    %2653 = vmatprep.subr.bf16.mxu0 0
    %2654 = vmatpush1.bf16.msra.mxu0 0
    %2655 = vmatprep.subr.bf16.mxu0 0
    %2656 = vmatpush1.bf16.msra.mxu0 0
    %2657 = vmatprep.subr.bf16.mxu0 0
    %2658 = vmatpush1.bf16.msra.mxu0 0
    %2659 = vmatprep.subr.bf16.mxu0 0
    %2660 = vmatpush1.bf16.msra.mxu0 0
    %2661 = vmatprep.mubr.bf16.mxu0 0
    %2662 = vmatmul.mubr.bf16.gmra.mrb[0].mxu0 %v2430
    %v2663 = vpop.f32.mrb[0].mxu0
    %v2664 = vadd.f32 %v2582, %v2663
    %v2665 = vpop.f32.mrb[0].mxu0
    %v2666 = vadd.f32 %v2584, %v2665
    %v2667 = vpop.f32.mrb[0].mxu0
    %v2668 = vpop.f32.mrb[0].mxu0
    %2669 = vdwg.mxu0
    %2670 = vmatprep.subr.bf16.mxu0 %v1395
    %2671 = vmatpush1.bf16.msra.mxu0 %v1394
    %2672 = vmatprep.subr.bf16.mxu0 %v1399
    %2673 = vmatpush1.bf16.msra.mxu0 %v1398
    %2674 = vmatprep.subr.bf16.mxu0 %v1403
    %2675 = vmatpush1.bf16.msra.mxu0 %v1402
    %2676 = vmatprep.subr.bf16.mxu0 %v1407
    %2677 = vmatpush1.bf16.msra.mxu0 %v1406
    %2678 = vmatprep.subr.bf16.mxu0 %v1411
    %2679 = vmatpush1.bf16.msra.mxu0 %v1410
    %2680 = vmatprep.subr.bf16.mxu0 %v1415
    %2681 = vmatpush1.bf16.msra.mxu0 %v1414
    %2682 = vmatprep.subr.bf16.mxu0 %v1419
    %2683 = vmatpush1.bf16.msra.mxu0 %v1418
    %2684 = vmatprep.subr.bf16.mxu0 %v1423
    %2685 = vmatpush1.bf16.msra.mxu0 %v1422
    %2686 = vmatprep.subr.bf16.mxu0 0
    %2687 = vmatpush1.bf16.msra.mxu0 0
    %2688 = vmatprep.subr.bf16.mxu0 0
    %2689 = vmatpush1.bf16.msra.mxu0 0
    %2690 = vmatprep.subr.bf16.mxu0 0
    %2691 = vmatpush1.bf16.msra.mxu0 0
    %2692 = vmatprep.subr.bf16.mxu0 0
    %2693 = vmatpush1.bf16.msra.mxu0 0
    %2694 = vmatprep.subr.bf16.mxu0 0
    %2695 = vmatpush1.bf16.msra.mxu0 0
    %2696 = vmatprep.subr.bf16.mxu0 0
    %2697 = vmatpush1.bf16.msra.mxu0 0
    %2698 = vmatprep.subr.bf16.mxu0 0
    %2699 = vmatpush1.bf16.msra.mxu0 0
    %2700 = vmatprep.subr.bf16.mxu0 0
    %2701 = vmatpush1.bf16.msra.mxu0 0
    %2702 = vmatprep.mubr.bf16.mxu0 0
    %2703 = vmatmul.mubr.bf16.gmra.mrb[0].mxu0 %v2430
    %v2704 = vpop.f32.mrb[0].mxu0
    %v2705 = vadd.f32 %v2623, %v2704
    %v2706 = vpop.f32.mrb[0].mxu0
    %v2707 = vadd.f32 %v2625, %v2706
    %v2708 = vpop.f32.mrb[0].mxu0
    %v2709 = vpop.f32.mrb[0].mxu0
    %2710 = vdwg.mxu0
    %v2711 = vadd.f32 %v2664, %v1542
    %v2712 = vadd.f32 %v2666, %v1546
    %v2713 = vadd.f32 %v2705, %v1550
    %v2714 = vadd.f32 %v2707, %v1554
    %v2715 = vxor.u32 %v2711, 2147483648
    %v2716 = vxor.u32 %v2712, 2147483648
    %v2717 = vmul.f32 %v2715, 1.442695
    %v2718 = vpow.pop %v2717
    %v2719 = vmul.f32 %v2716, 1.442695
    %v2720 = vpow.pop %v2719
    %v2721 = vadd.f32 %v2718, 1.0
    %v2722 = vadd.f32 %v2720, 1.0
    %v2723 = vrcp.pop %v2721
    %v2724 = vmul.f32 1.0, %v2723
    %v2725 = vrcp.pop %v2722
    %v2726 = vmul.f32 1.0, %v2725
    %v2727 = vtanh.pop %v2713
    %v2728 = vxor.u32 %v2714, 2147483648
    %v2729 = vmul.f32 %v2728, 1.442695
    %v2730 = vpow.pop %v2729
    %v2731 = vadd.f32 %v2730, 1.0
    %v2732 = vrcp.pop %v2731
    %v2733 = vmul.f32 1.0, %v2732
    %v2734 = vmul.f32 %v2726, %v1893
    %v2735 = vmul.f32 %v2724, %v2727
    %v2736 = vadd.f32 %v2734, %v2735
    %v2737 = vtanh.pop %v2736
    %v2738 = vmul.f32 %v2733, %v2737
    %2739 = vmatprep.subr.bf16.mxu0 %v1993
    %2740 = vmatpush1.bf16.msra.mxu0 %v1992
    %2741 = vmatprep.subr.bf16.mxu0 %v1997
    %2742 = vmatpush1.bf16.msra.mxu0 %v1996
    %2743 = vmatprep.subr.bf16.mxu0 %v2001
    %2744 = vmatpush1.bf16.msra.mxu0 %v2000
    %2745 = vmatprep.subr.bf16.mxu0 %v2005
    %2746 = vmatpush1.bf16.msra.mxu0 %v2004
    %2747 = vmatprep.subr.bf16.mxu0 %v2009
    %2748 = vmatpush1.bf16.msra.mxu0 %v2008
    %2749 = vmatprep.subr.bf16.mxu0 %v2013
    %2750 = vmatpush1.bf16.msra.mxu0 %v2012
    %2751 = vmatprep.subr.bf16.mxu0 %v2017
    %2752 = vmatpush1.bf16.msra.mxu0 %v2016
    %2753 = vmatprep.subr.bf16.mxu0 %v2021
    %2754 = vmatpush1.bf16.msra.mxu0 %v2020
    %2755 = vmatprep.subr.bf16.mxu0 0
    %2756 = vmatpush1.bf16.msra.mxu0 0
    %2757 = vmatprep.subr.bf16.mxu0 0
    %2758 = vmatpush1.bf16.msra.mxu0 0
    %2759 = vmatprep.subr.bf16.mxu0 0
    %2760 = vmatpush1.bf16.msra.mxu0 0
    %2761 = vmatprep.subr.bf16.mxu0 0
    %2762 = vmatpush1.bf16.msra.mxu0 0
    %2763 = vmatprep.subr.bf16.mxu0 0
    %2764 = vmatpush1.bf16.msra.mxu0 0
    %2765 = vmatprep.subr.bf16.mxu0 0
    %2766 = vmatpush1.bf16.msra.mxu0 0
    %2767 = vmatprep.subr.bf16.mxu0 0
    %2768 = vmatpush1.bf16.msra.mxu0 0
    %2769 = vmatprep.subr.bf16.mxu0 0
    %2770 = vmatpush1.bf16.msra.mxu0 0
    %2771 = vmatprep.mubr.bf16.mxu0 0
    %2772 = vmatmul.mubr.bf16.gmra.mrb[0].mxu0 %v2432
    %v2773 = vpop.f32.mrb[0].mxu0
    %v2774 = vadd.f32 0.0, %v2773
    %v2775 = vpop.f32.mrb[0].mxu0
    %v2776 = vadd.f32 0.0, %v2775
    %v2777 = vpop.f32.mrb[0].mxu0
    %v2778 = vpop.f32.mrb[0].mxu0
    %2779 = vdwg.mxu0
    %2780 = vmatprep.subr.bf16.mxu0 %v1995
    %2781 = vmatpush1.bf16.msra.mxu0 %v1994
    %2782 = vmatprep.subr.bf16.mxu0 %v1999
    %2783 = vmatpush1.bf16.msra.mxu0 %v1998
    %2784 = vmatprep.subr.bf16.mxu0 %v2003
    %2785 = vmatpush1.bf16.msra.mxu0 %v2002
    %2786 = vmatprep.subr.bf16.mxu0 %v2007
    %2787 = vmatpush1.bf16.msra.mxu0 %v2006
    %2788 = vmatprep.subr.bf16.mxu0 %v2011
    %2789 = vmatpush1.bf16.msra.mxu0 %v2010
    %2790 = vmatprep.subr.bf16.mxu0 %v2015
    %2791 = vmatpush1.bf16.msra.mxu0 %v2014
    %2792 = vmatprep.subr.bf16.mxu0 %v2019
    %2793 = vmatpush1.bf16.msra.mxu0 %v2018
    %2794 = vmatprep.subr.bf16.mxu0 %v2023
    %2795 = vmatpush1.bf16.msra.mxu0 %v2022
    %2796 = vmatprep.subr.bf16.mxu0 0
    %2797 = vmatpush1.bf16.msra.mxu0 0
    %2798 = vmatprep.subr.bf16.mxu0 0
    %2799 = vmatpush1.bf16.msra.mxu0 0
    %2800 = vmatprep.subr.bf16.mxu0 0
    %2801 = vmatpush1.bf16.msra.mxu0 0
    %2802 = vmatprep.subr.bf16.mxu0 0
    %2803 = vmatpush1.bf16.msra.mxu0 0
    %2804 = vmatprep.subr.bf16.mxu0 0
    %2805 = vmatpush1.bf16.msra.mxu0 0
    %2806 = vmatprep.subr.bf16.mxu0 0
    %2807 = vmatpush1.bf16.msra.mxu0 0
    %2808 = vmatprep.subr.bf16.mxu0 0
    %2809 = vmatpush1.bf16.msra.mxu0 0
    %2810 = vmatprep.subr.bf16.mxu0 0
    %2811 = vmatpush1.bf16.msra.mxu0 0
    %2812 = vmatprep.mubr.bf16.mxu0 0
    %2813 = vmatmul.mubr.bf16.gmra.mrb[0].mxu0 %v2432
    %v2814 = vpop.f32.mrb[0].mxu0
    %v2815 = vadd.f32 0.0, %v2814
    %v2816 = vpop.f32.mrb[0].mxu0
    %v2817 = vadd.f32 0.0, %v2816
    %v2818 = vpop.f32.mrb[0].mxu0
    %v2819 = vpop.f32.mrb[0].mxu0
    %2820 = vdwg.mxu0
    %2821 = vmatprep.subr.bf16.mxu0 %v2235
    %2822 = vmatpush1.bf16.msra.mxu0 %v2234
    %2823 = vmatprep.subr.bf16.mxu0 %v2239
    %2824 = vmatpush1.bf16.msra.mxu0 %v2238
    %2825 = vmatprep.subr.bf16.mxu0 %v2243
    %2826 = vmatpush1.bf16.msra.mxu0 %v2242
    %2827 = vmatprep.subr.bf16.mxu0 %v2247
    %2828 = vmatpush1.bf16.msra.mxu0 %v2246
    %2829 = vmatprep.subr.bf16.mxu0 %v2251
    %2830 = vmatpush1.bf16.msra.mxu0 %v2250
    %2831 = vmatprep.subr.bf16.mxu0 %v2255
    %2832 = vmatpush1.bf16.msra.mxu0 %v2254
    %2833 = vmatprep.subr.bf16.mxu0 %v2259
    %2834 = vmatpush1.bf16.msra.mxu0 %v2258
    %2835 = vmatprep.subr.bf16.mxu0 %v2263
    %2836 = vmatpush1.bf16.msra.mxu0 %v2262
    %2837 = vmatprep.subr.bf16.mxu0 0
    %2838 = vmatpush1.bf16.msra.mxu0 0
    %2839 = vmatprep.subr.bf16.mxu0 0
    %2840 = vmatpush1.bf16.msra.mxu0 0
    %2841 = vmatprep.subr.bf16.mxu0 0
    %2842 = vmatpush1.bf16.msra.mxu0 0
    %2843 = vmatprep.subr.bf16.mxu0 0
    %2844 = vmatpush1.bf16.msra.mxu0 0
    %2845 = vmatprep.subr.bf16.mxu0 0
    %2846 = vmatpush1.bf16.msra.mxu0 0
    %2847 = vmatprep.subr.bf16.mxu0 0
    %2848 = vmatpush1.bf16.msra.mxu0 0
    %2849 = vmatprep.subr.bf16.mxu0 0
    %2850 = vmatpush1.bf16.msra.mxu0 0
    %2851 = vmatprep.subr.bf16.mxu0 0
    %2852 = vmatpush1.bf16.msra.mxu0 0
    %2853 = vmatprep.mubr.bf16.mxu0 0
    %2854 = vmatmul.mubr.bf16.gmra.mrb[0].mxu0 %v2431
    %v2855 = vpop.f32.mrb[0].mxu0
    %v2856 = vadd.f32 %v2774, %v2855
    %v2857 = vpop.f32.mrb[0].mxu0
    %v2858 = vadd.f32 %v2776, %v2857
    %v2859 = vpop.f32.mrb[0].mxu0
    %v2860 = vpop.f32.mrb[0].mxu0
    %2861 = vdwg.mxu0
    %2862 = vmatprep.subr.bf16.mxu0 %v2237
    %2863 = vmatpush1.bf16.msra.mxu0 %v2236
    %2864 = vmatprep.subr.bf16.mxu0 %v2241
    %2865 = vmatpush1.bf16.msra.mxu0 %v2240
    %2866 = vmatprep.subr.bf16.mxu0 %v2245
    %2867 = vmatpush1.bf16.msra.mxu0 %v2244
    %2868 = vmatprep.subr.bf16.mxu0 %v2249
    %2869 = vmatpush1.bf16.msra.mxu0 %v2248
    %2870 = vmatprep.subr.bf16.mxu0 %v2253
    %2871 = vmatpush1.bf16.msra.mxu0 %v2252
    %2872 = vmatprep.subr.bf16.mxu0 %v2257
    %2873 = vmatpush1.bf16.msra.mxu0 %v2256
    %2874 = vmatprep.subr.bf16.mxu0 %v2261
    %2875 = vmatpush1.bf16.msra.mxu0 %v2260
    %2876 = vmatprep.subr.bf16.mxu0 %v2265
    %2877 = vmatpush1.bf16.msra.mxu0 %v2264
    %2878 = vmatprep.subr.bf16.mxu0 0
    %2879 = vmatpush1.bf16.msra.mxu0 0
    %2880 = vmatprep.subr.bf16.mxu0 0
    %2881 = vmatpush1.bf16.msra.mxu0 0
    %2882 = vmatprep.subr.bf16.mxu0 0
    %2883 = vmatpush1.bf16.msra.mxu0 0
    %2884 = vmatprep.subr.bf16.mxu0 0
    %2885 = vmatpush1.bf16.msra.mxu0 0
    %2886 = vmatprep.subr.bf16.mxu0 0
    %2887 = vmatpush1.bf16.msra.mxu0 0
    %2888 = vmatprep.subr.bf16.mxu0 0
    %2889 = vmatpush1.bf16.msra.mxu0 0
    %2890 = vmatprep.subr.bf16.mxu0 0
    %2891 = vmatpush1.bf16.msra.mxu0 0
    %2892 = vmatprep.subr.bf16.mxu0 0
    %2893 = vmatpush1.bf16.msra.mxu0 0
    %2894 = vmatprep.mubr.bf16.mxu0 0
    %2895 = vmatmul.mubr.bf16.gmra.mrb[0].mxu0 %v2431
    %v2896 = vpop.f32.mrb[0].mxu0
    %v2897 = vadd.f32 %v2815, %v2896
    %v2898 = vpop.f32.mrb[0].mxu0
    %v2899 = vadd.f32 %v2817, %v2898
    %v2900 = vpop.f32.mrb[0].mxu0
    %v2901 = vpop.f32.mrb[0].mxu0
    %2902 = vdwg.mxu0
    %v2903 = vadd.f32 %v2856, %v2384
    %v2904 = vadd.f32 %v2858, %v2388
    %v2905 = vadd.f32 %v2897, %v2392
    %v2906 = vadd.f32 %v2899, %v2396
    %v2907 = vxor.u32 %v2903, 2147483648
    %v2908 = vxor.u32 %v2904, 2147483648
    %v2909 = vmul.f32 %v2907, 1.442695
    %v2910 = vpow.pop %v2909
    %v2911 = vmul.f32 %v2908, 1.442695
    %v2912 = vpow.pop %v2911
    %v2913 = vadd.f32 %v2910, 1.0
    %v2914 = vadd.f32 %v2912, 1.0
    %v2915 = vrcp.pop %v2913
    %v2916 = vmul.f32 1.0, %v2915
    %v2917 = vrcp.pop %v2914
    %v2918 = vmul.f32 1.0, %v2917
    %v2919 = vtanh.pop %v2905
    %v2920 = vxor.u32 %v2906, 2147483648
    %v2921 = vmul.f32 %v2920, 1.442695
    %v2922 = vpow.pop %v2921
    %v2923 = vadd.f32 %v2922, 1.0
    %v2924 = vrcp.pop %v2923
    %v2925 = vmul.f32 1.0, %v2924
    %v2926 = vmul.f32 %v2918, %v2426
    %v2927 = vmul.f32 %v2916, %v2919
    %v2928 = vadd.f32 %v2926, %v2927
    %v2929 = vtanh.pop %v2928
    %v2930 = vmul.f32 %v2925, %v2929
    %2931 = vst [vmem:[#allocation3 + $0x8] sm:$0xff] %v2930
    %v2932 = vpack.c.bf16 %v2546, %v2546
    %v2933 = vpack.c.bf16 %v2738, %v2738
    %v2934 = vpack.c.bf16 %v2930, %v2930
    %v2935 = vld [vmem:[#allocation2 + $0x80] sm:$0xff]
    %v2936 = vld [vmem:[#allocation2 + $0x88] sm:$0xff]
    %v2937 = vld [vmem:[#allocation2 + $0x90] sm:$0xff]
    %v2938 = vld [vmem:[#allocation2 + $0x98] sm:$0xff]
    %2939 = vmatprep.subr.bf16.mxu0 %v765
    %2940 = vmatpush1.bf16.msra.mxu0 %v764
    %2941 = vmatprep.subr.bf16.mxu0 %v769
    %2942 = vmatpush1.bf16.msra.mxu0 %v768
    %2943 = vmatprep.subr.bf16.mxu0 %v773
    %2944 = vmatpush1.bf16.msra.mxu0 %v772
    %2945 = vmatprep.subr.bf16.mxu0 %v777
    %2946 = vmatpush1.bf16.msra.mxu0 %v776
    %2947 = vmatprep.subr.bf16.mxu0 %v781
    %2948 = vmatpush1.bf16.msra.mxu0 %v780
    %2949 = vmatprep.subr.bf16.mxu0 %v785
    %2950 = vmatpush1.bf16.msra.mxu0 %v784
    %2951 = vmatprep.subr.bf16.mxu0 %v789
    %2952 = vmatpush1.bf16.msra.mxu0 %v788
    %2953 = vmatprep.subr.bf16.mxu0 %v793
    %2954 = vmatpush1.bf16.msra.mxu0 %v792
    %2955 = vmatprep.subr.bf16.mxu0 0
    %2956 = vmatpush1.bf16.msra.mxu0 0
    %2957 = vmatprep.subr.bf16.mxu0 0
    %2958 = vmatpush1.bf16.msra.mxu0 0
    %2959 = vmatprep.subr.bf16.mxu0 0
    %2960 = vmatpush1.bf16.msra.mxu0 0
    %2961 = vmatprep.subr.bf16.mxu0 0
    %2962 = vmatpush1.bf16.msra.mxu0 0
    %2963 = vmatprep.subr.bf16.mxu0 0
    %2964 = vmatpush1.bf16.msra.mxu0 0
    %2965 = vmatprep.subr.bf16.mxu0 0
    %2966 = vmatpush1.bf16.msra.mxu0 0
    %2967 = vmatprep.subr.bf16.mxu0 0
    %2968 = vmatpush1.bf16.msra.mxu0 0
    %2969 = vmatprep.subr.bf16.mxu0 0
    %2970 = vmatpush1.bf16.msra.mxu0 0
    %2971 = vmatprep.mubr.bf16.mxu0 0
    %2972 = vmatmul.mubr.bf16.gmra.mrb[0].mxu0 %v2932
    %v2973 = vpop.f32.mrb[0].mxu0
    %v2974 = vadd.f32 0.0, %v2973
    %v2975 = vpop.f32.mrb[0].mxu0
    %v2976 = vadd.f32 0.0, %v2975
    %v2977 = vpop.f32.mrb[0].mxu0
    %v2978 = vpop.f32.mrb[0].mxu0
    %2979 = vdwg.mxu0
    %2980 = vmatprep.subr.bf16.mxu0 %v767
    %2981 = vmatpush1.bf16.msra.mxu0 %v766
    %2982 = vmatprep.subr.bf16.mxu0 %v771
    %2983 = vmatpush1.bf16.msra.mxu0 %v770
    %2984 = vmatprep.subr.bf16.mxu0 %v775
    %2985 = vmatpush1.bf16.msra.mxu0 %v774
    %2986 = vmatprep.subr.bf16.mxu0 %v779
    %2987 = vmatpush1.bf16.msra.mxu0 %v778
    %2988 = vmatprep.subr.bf16.mxu0 %v783
    %2989 = vmatpush1.bf16.msra.mxu0 %v782
    %2990 = vmatprep.subr.bf16.mxu0 %v787
    %2991 = vmatpush1.bf16.msra.mxu0 %v786
    %2992 = vmatprep.subr.bf16.mxu0 %v791
    %2993 = vmatpush1.bf16.msra.mxu0 %v790
    %2994 = vmatprep.subr.bf16.mxu0 %v795
    %2995 = vmatpush1.bf16.msra.mxu0 %v794
    %2996 = vmatprep.subr.bf16.mxu0 0
    %2997 = vmatpush1.bf16.msra.mxu0 0
    %2998 = vmatprep.subr.bf16.mxu0 0
    %2999 = vmatpush1.bf16.msra.mxu0 0
    %3000 = vmatprep.subr.bf16.mxu0 0
    %3001 = vmatpush1.bf16.msra.mxu0 0
    %3002 = vmatprep.subr.bf16.mxu0 0
    %3003 = vmatpush1.bf16.msra.mxu0 0
    %3004 = vmatprep.subr.bf16.mxu0 0
    %3005 = vmatpush1.bf16.msra.mxu0 0
    %3006 = vmatprep.subr.bf16.mxu0 0
    %3007 = vmatpush1.bf16.msra.mxu0 0
    %3008 = vmatprep.subr.bf16.mxu0 0
    %3009 = vmatpush1.bf16.msra.mxu0 0
    %3010 = vmatprep.subr.bf16.mxu0 0
    %3011 = vmatpush1.bf16.msra.mxu0 0
    %3012 = vmatprep.mubr.bf16.mxu0 0
    %3013 = vmatmul.mubr.bf16.gmra.mrb[0].mxu0 %v2932
    %v3014 = vpop.f32.mrb[0].mxu0
    %v3015 = vadd.f32 0.0, %v3014
    %v3016 = vpop.f32.mrb[0].mxu0
    %v3017 = vadd.f32 0.0, %v3016
    %v3018 = vpop.f32.mrb[0].mxu0
    %v3019 = vpop.f32.mrb[0].mxu0
    %3020 = vdwg.mxu0
    %v3021 = vadd.f32 %v2935, %v2974
    %v3022 = vadd.f32 %v2936, %v2976
    %v3023 = vadd.f32 %v2937, %v3015
    %v3024 = vadd.f32 %v2938, %v3017
    %v3025 = vxor.u32 %v3021, 2147483648
    %v3026 = vxor.u32 %v3022, 2147483648
    %v3027 = vmul.f32 %v3025, 1.442695
    %v3028 = vpow.pop %v3027
    %v3029 = vmul.f32 %v3026, 1.442695
    %v3030 = vpow.pop %v3029
    %v3031 = vadd.f32 %v3028, 1.0
    %v3032 = vadd.f32 %v3030, 1.0
    %v3033 = vrcp.pop %v3031
    %v3034 = vmul.f32 1.0, %v3033
    %v3035 = vrcp.pop %v3032
    %v3036 = vmul.f32 1.0, %v3035
    %v3037 = vtanh.pop %v3023
    %v3038 = vxor.u32 %v3024, 2147483648
    %v3039 = vmul.f32 %v3038, 1.442695
    %v3040 = vpow.pop %v3039
    %v3041 = vadd.f32 %v3040, 1.0
    %v3042 = vrcp.pop %v3041
    %v3043 = vmul.f32 1.0, %v3042
    %v3044 = vmul.f32 %v3036, %v2544
    %v3045 = vmul.f32 %v3034, %v3037
    %v3046 = vadd.f32 %v3044, %v3045
    %v3047 = vtanh.pop %v3046
    %v3048 = vmul.f32 %v3043, %v3047
    %3049 = vmatprep.subr.bf16.mxu0 %v1151
    %3050 = vmatpush1.bf16.msra.mxu0 %v1150
    %3051 = vmatprep.subr.bf16.mxu0 %v1155
    %3052 = vmatpush1.bf16.msra.mxu0 %v1154
    %3053 = vmatprep.subr.bf16.mxu0 %v1159
    %3054 = vmatpush1.bf16.msra.mxu0 %v1158
    %3055 = vmatprep.subr.bf16.mxu0 %v1163
    %3056 = vmatpush1.bf16.msra.mxu0 %v1162
    %3057 = vmatprep.subr.bf16.mxu0 %v1167
    %3058 = vmatpush1.bf16.msra.mxu0 %v1166
    %3059 = vmatprep.subr.bf16.mxu0 %v1171
    %3060 = vmatpush1.bf16.msra.mxu0 %v1170
    %3061 = vmatprep.subr.bf16.mxu0 %v1175
    %3062 = vmatpush1.bf16.msra.mxu0 %v1174
    %3063 = vmatprep.subr.bf16.mxu0 %v1179
    %3064 = vmatpush1.bf16.msra.mxu0 %v1178
    %3065 = vmatprep.subr.bf16.mxu0 0
    %3066 = vmatpush1.bf16.msra.mxu0 0
    %3067 = vmatprep.subr.bf16.mxu0 0
    %3068 = vmatpush1.bf16.msra.mxu0 0
    %3069 = vmatprep.subr.bf16.mxu0 0
    %3070 = vmatpush1.bf16.msra.mxu0 0
    %3071 = vmatprep.subr.bf16.mxu0 0
    %3072 = vmatpush1.bf16.msra.mxu0 0
    %3073 = vmatprep.subr.bf16.mxu0 0
    %3074 = vmatpush1.bf16.msra.mxu0 0
    %3075 = vmatprep.subr.bf16.mxu0 0
    %3076 = vmatpush1.bf16.msra.mxu0 0
    %3077 = vmatprep.subr.bf16.mxu0 0
    %3078 = vmatpush1.bf16.msra.mxu0 0
    %3079 = vmatprep.subr.bf16.mxu0 0
    %3080 = vmatpush1.bf16.msra.mxu0 0
    %3081 = vmatprep.mubr.bf16.mxu0 0
    %3082 = vmatmul.mubr.bf16.gmra.mrb[0].mxu0 %v2933
    %v3083 = vpop.f32.mrb[0].mxu0
    %v3084 = vadd.f32 0.0, %v3083
    %v3085 = vpop.f32.mrb[0].mxu0
    %v3086 = vadd.f32 0.0, %v3085
    %v3087 = vpop.f32.mrb[0].mxu0
    %v3088 = vpop.f32.mrb[0].mxu0
    %3089 = vdwg.mxu0
    %3090 = vmatprep.subr.bf16.mxu0 %v1153
    %3091 = vmatpush1.bf16.msra.mxu0 %v1152
    %3092 = vmatprep.subr.bf16.mxu0 %v1157
    %3093 = vmatpush1.bf16.msra.mxu0 %v1156
    %3094 = vmatprep.subr.bf16.mxu0 %v1161
    %3095 = vmatpush1.bf16.msra.mxu0 %v1160
    %3096 = vmatprep.subr.bf16.mxu0 %v1165
    %3097 = vmatpush1.bf16.msra.mxu0 %v1164
    %3098 = vmatprep.subr.bf16.mxu0 %v1169
    %3099 = vmatpush1.bf16.msra.mxu0 %v1168
    %3100 = vmatprep.subr.bf16.mxu0 %v1173
    %3101 = vmatpush1.bf16.msra.mxu0 %v1172
    %3102 = vmatprep.subr.bf16.mxu0 %v1177
    %3103 = vmatpush1.bf16.msra.mxu0 %v1176
    %3104 = vmatprep.subr.bf16.mxu0 %v1181
    %3105 = vmatpush1.bf16.msra.mxu0 %v1180
    %3106 = vmatprep.subr.bf16.mxu0 0
    %3107 = vmatpush1.bf16.msra.mxu0 0
    %3108 = vmatprep.subr.bf16.mxu0 0
    %3109 = vmatpush1.bf16.msra.mxu0 0
    %3110 = vmatprep.subr.bf16.mxu0 0
    %3111 = vmatpush1.bf16.msra.mxu0 0
    %3112 = vmatprep.subr.bf16.mxu0 0
    %3113 = vmatpush1.bf16.msra.mxu0 0
    %3114 = vmatprep.subr.bf16.mxu0 0
    %3115 = vmatpush1.bf16.msra.mxu0 0
    %3116 = vmatprep.subr.bf16.mxu0 0
    %3117 = vmatpush1.bf16.msra.mxu0 0
    %3118 = vmatprep.subr.bf16.mxu0 0
    %3119 = vmatpush1.bf16.msra.mxu0 0
    %3120 = vmatprep.subr.bf16.mxu0 0
    %3121 = vmatpush1.bf16.msra.mxu0 0
    %3122 = vmatprep.mubr.bf16.mxu0 0
    %3123 = vmatmul.mubr.bf16.gmra.mrb[0].mxu0 %v2933
    %v3124 = vpop.f32.mrb[0].mxu0
    %v3125 = vadd.f32 0.0, %v3124
    %v3126 = vpop.f32.mrb[0].mxu0
    %v3127 = vadd.f32 0.0, %v3126
    %v3128 = vpop.f32.mrb[0].mxu0
    %v3129 = vpop.f32.mrb[0].mxu0
    %3130 = vdwg.mxu0
    %3131 = vmatprep.subr.bf16.mxu0 %v1393
    %3132 = vmatpush1.bf16.msra.mxu0 %v1392
    %3133 = vmatprep.subr.bf16.mxu0 %v1397
    %3134 = vmatpush1.bf16.msra.mxu0 %v1396
    %3135 = vmatprep.subr.bf16.mxu0 %v1401
    %3136 = vmatpush1.bf16.msra.mxu0 %v1400
    %3137 = vmatprep.subr.bf16.mxu0 %v1405
    %3138 = vmatpush1.bf16.msra.mxu0 %v1404
    %3139 = vmatprep.subr.bf16.mxu0 %v1409
    %3140 = vmatpush1.bf16.msra.mxu0 %v1408
    %3141 = vmatprep.subr.bf16.mxu0 %v1413
    %3142 = vmatpush1.bf16.msra.mxu0 %v1412
    %3143 = vmatprep.subr.bf16.mxu0 %v1417
    %3144 = vmatpush1.bf16.msra.mxu0 %v1416
    %3145 = vmatprep.subr.bf16.mxu0 %v1421
    %3146 = vmatpush1.bf16.msra.mxu0 %v1420
    %3147 = vmatprep.subr.bf16.mxu0 0
    %3148 = vmatpush1.bf16.msra.mxu0 0
    %3149 = vmatprep.subr.bf16.mxu0 0
    %3150 = vmatpush1.bf16.msra.mxu0 0
    %3151 = vmatprep.subr.bf16.mxu0 0
    %3152 = vmatpush1.bf16.msra.mxu0 0
    %3153 = vmatprep.subr.bf16.mxu0 0
    %3154 = vmatpush1.bf16.msra.mxu0 0
    %3155 = vmatprep.subr.bf16.mxu0 0
    %3156 = vmatpush1.bf16.msra.mxu0 0
    %3157 = vmatprep.subr.bf16.mxu0 0
    %3158 = vmatpush1.bf16.msra.mxu0 0
    %3159 = vmatprep.subr.bf16.mxu0 0
    %3160 = vmatpush1.bf16.msra.mxu0 0
    %3161 = vmatprep.subr.bf16.mxu0 0
    %3162 = vmatpush1.bf16.msra.mxu0 0
    %3163 = vmatprep.mubr.bf16.mxu0 0
    %3164 = vmatmul.mubr.bf16.gmra.mrb[0].mxu0 %v2932
    %v3165 = vpop.f32.mrb[0].mxu0
    %v3166 = vadd.f32 %v3084, %v3165
    %v3167 = vpop.f32.mrb[0].mxu0
    %v3168 = vadd.f32 %v3086, %v3167
    %v3169 = vpop.f32.mrb[0].mxu0
    %v3170 = vpop.f32.mrb[0].mxu0
    %3171 = vdwg.mxu0
    %3172 = vmatprep.subr.bf16.mxu0 %v1395
    %3173 = vmatpush1.bf16.msra.mxu0 %v1394
    %3174 = vmatprep.subr.bf16.mxu0 %v1399
    %3175 = vmatpush1.bf16.msra.mxu0 %v1398
    %3176 = vmatprep.subr.bf16.mxu0 %v1403
    %3177 = vmatpush1.bf16.msra.mxu0 %v1402
    %3178 = vmatprep.subr.bf16.mxu0 %v1407
    %3179 = vmatpush1.bf16.msra.mxu0 %v1406
    %3180 = vmatprep.subr.bf16.mxu0 %v1411
    %3181 = vmatpush1.bf16.msra.mxu0 %v1410
    %3182 = vmatprep.subr.bf16.mxu0 %v1415
    %3183 = vmatpush1.bf16.msra.mxu0 %v1414
    %3184 = vmatprep.subr.bf16.mxu0 %v1419
    %3185 = vmatpush1.bf16.msra.mxu0 %v1418
    %3186 = vmatprep.subr.bf16.mxu0 %v1423
    %3187 = vmatpush1.bf16.msra.mxu0 %v1422
    %3188 = vmatprep.subr.bf16.mxu0 0
    %3189 = vmatpush1.bf16.msra.mxu0 0
    %3190 = vmatprep.subr.bf16.mxu0 0
    %3191 = vmatpush1.bf16.msra.mxu0 0
    %3192 = vmatprep.subr.bf16.mxu0 0
    %3193 = vmatpush1.bf16.msra.mxu0 0
    %3194 = vmatprep.subr.bf16.mxu0 0
    %3195 = vmatpush1.bf16.msra.mxu0 0
    %3196 = vmatprep.subr.bf16.mxu0 0
    %3197 = vmatpush1.bf16.msra.mxu0 0
    %3198 = vmatprep.subr.bf16.mxu0 0
    %3199 = vmatpush1.bf16.msra.mxu0 0
    %3200 = vmatprep.subr.bf16.mxu0 0
    %3201 = vmatpush1.bf16.msra.mxu0 0
    %3202 = vmatprep.subr.bf16.mxu0 0
    %3203 = vmatpush1.bf16.msra.mxu0 0
    %3204 = vmatprep.mubr.bf16.mxu0 0
    %3205 = vmatmul.mubr.bf16.gmra.mrb[0].mxu0 %v2932
    %v3206 = vpop.f32.mrb[0].mxu0
    %v3207 = vadd.f32 %v3125, %v3206
    %v3208 = vpop.f32.mrb[0].mxu0
    %v3209 = vadd.f32 %v3127, %v3208
    %v3210 = vpop.f32.mrb[0].mxu0
    %v3211 = vpop.f32.mrb[0].mxu0
    %3212 = vdwg.mxu0
    %v3213 = vadd.f32 %v3166, %v1542
    %v3214 = vadd.f32 %v3168, %v1546
    %v3215 = vadd.f32 %v3207, %v1550
    %v3216 = vadd.f32 %v3209, %v1554
    %v3217 = vxor.u32 %v3213, 2147483648
    %v3218 = vxor.u32 %v3214, 2147483648
    %v3219 = vmul.f32 %v3217, 1.442695
    %v3220 = vpow.pop %v3219
    %v3221 = vmul.f32 %v3218, 1.442695
    %v3222 = vpow.pop %v3221
    %v3223 = vadd.f32 %v3220, 1.0
    %v3224 = vadd.f32 %v3222, 1.0
    %v3225 = vrcp.pop %v3223
    %v3226 = vmul.f32 1.0, %v3225
    %v3227 = vrcp.pop %v3224
    %v3228 = vmul.f32 1.0, %v3227
    %v3229 = vtanh.pop %v3215
    %v3230 = vxor.u32 %v3216, 2147483648
    %v3231 = vmul.f32 %v3230, 1.442695
    %v3232 = vpow.pop %v3231
    %v3233 = vadd.f32 %v3232, 1.0
    %v3234 = vrcp.pop %v3233
    %v3235 = vmul.f32 1.0, %v3234
    %v3236 = vmul.f32 %v3228, %v2736
    %v3237 = vmul.f32 %v3226, %v3229
    %v3238 = vadd.f32 %v3236, %v3237
    %v3239 = vtanh.pop %v3238
    %v3240 = vmul.f32 %v3235, %v3239
    %3241 = vmatprep.subr.bf16.mxu0 %v1993
    %3242 = vmatpush1.bf16.msra.mxu0 %v1992
    %3243 = vmatprep.subr.bf16.mxu0 %v1997
    %3244 = vmatpush1.bf16.msra.mxu0 %v1996
    %3245 = vmatprep.subr.bf16.mxu0 %v2001
    %3246 = vmatpush1.bf16.msra.mxu0 %v2000
    %3247 = vmatprep.subr.bf16.mxu0 %v2005
    %3248 = vmatpush1.bf16.msra.mxu0 %v2004
    %3249 = vmatprep.subr.bf16.mxu0 %v2009
    %3250 = vmatpush1.bf16.msra.mxu0 %v2008
    %3251 = vmatprep.subr.bf16.mxu0 %v2013
    %3252 = vmatpush1.bf16.msra.mxu0 %v2012
    %3253 = vmatprep.subr.bf16.mxu0 %v2017
    %3254 = vmatpush1.bf16.msra.mxu0 %v2016
    %3255 = vmatprep.subr.bf16.mxu0 %v2021
    %3256 = vmatpush1.bf16.msra.mxu0 %v2020
    %3257 = vmatprep.subr.bf16.mxu0 0
    %3258 = vmatpush1.bf16.msra.mxu0 0
    %3259 = vmatprep.subr.bf16.mxu0 0
    %3260 = vmatpush1.bf16.msra.mxu0 0
    %3261 = vmatprep.subr.bf16.mxu0 0
    %3262 = vmatpush1.bf16.msra.mxu0 0
    %3263 = vmatprep.subr.bf16.mxu0 0
    %3264 = vmatpush1.bf16.msra.mxu0 0
    %3265 = vmatprep.subr.bf16.mxu0 0
    %3266 = vmatpush1.bf16.msra.mxu0 0
    %3267 = vmatprep.subr.bf16.mxu0 0
    %3268 = vmatpush1.bf16.msra.mxu0 0
    %3269 = vmatprep.subr.bf16.mxu0 0
    %3270 = vmatpush1.bf16.msra.mxu0 0
    %3271 = vmatprep.subr.bf16.mxu0 0
    %3272 = vmatpush1.bf16.msra.mxu0 0
    %3273 = vmatprep.mubr.bf16.mxu0 0
    %3274 = vmatmul.mubr.bf16.gmra.mrb[0].mxu0 %v2934
    %v3275 = vpop.f32.mrb[0].mxu0
    %v3276 = vadd.f32 0.0, %v3275
    %v3277 = vpop.f32.mrb[0].mxu0
    %v3278 = vadd.f32 0.0, %v3277
    %v3279 = vpop.f32.mrb[0].mxu0
    %v3280 = vpop.f32.mrb[0].mxu0
    %3281 = vdwg.mxu0
    %3282 = vmatprep.subr.bf16.mxu0 %v1995
    %3283 = vmatpush1.bf16.msra.mxu0 %v1994
    %3284 = vmatprep.subr.bf16.mxu0 %v1999
    %3285 = vmatpush1.bf16.msra.mxu0 %v1998
    %3286 = vmatprep.subr.bf16.mxu0 %v2003
    %3287 = vmatpush1.bf16.msra.mxu0 %v2002
    %3288 = vmatprep.subr.bf16.mxu0 %v2007
    %3289 = vmatpush1.bf16.msra.mxu0 %v2006
    %3290 = vmatprep.subr.bf16.mxu0 %v2011
    %3291 = vmatpush1.bf16.msra.mxu0 %v2010
    %3292 = vmatprep.subr.bf16.mxu0 %v2015
    %3293 = vmatpush1.bf16.msra.mxu0 %v2014
    %3294 = vmatprep.subr.bf16.mxu0 %v2019
    %3295 = vmatpush1.bf16.msra.mxu0 %v2018
    %3296 = vmatprep.subr.bf16.mxu0 %v2023
    %3297 = vmatpush1.bf16.msra.mxu0 %v2022
    %3298 = vmatprep.subr.bf16.mxu0 0
    %3299 = vmatpush1.bf16.msra.mxu0 0
    %3300 = vmatprep.subr.bf16.mxu0 0
    %3301 = vmatpush1.bf16.msra.mxu0 0
    %3302 = vmatprep.subr.bf16.mxu0 0
    %3303 = vmatpush1.bf16.msra.mxu0 0
    %3304 = vmatprep.subr.bf16.mxu0 0
    %3305 = vmatpush1.bf16.msra.mxu0 0
    %3306 = vmatprep.subr.bf16.mxu0 0
    %3307 = vmatpush1.bf16.msra.mxu0 0
    %3308 = vmatprep.subr.bf16.mxu0 0
    %3309 = vmatpush1.bf16.msra.mxu0 0
    %3310 = vmatprep.subr.bf16.mxu0 0
    %3311 = vmatpush1.bf16.msra.mxu0 0
    %3312 = vmatprep.subr.bf16.mxu0 0
    %3313 = vmatpush1.bf16.msra.mxu0 0
    %3314 = vmatprep.mubr.bf16.mxu0 0
    %3315 = vmatmul.mubr.bf16.gmra.mrb[0].mxu0 %v2934
    %v3316 = vpop.f32.mrb[0].mxu0
    %v3317 = vadd.f32 0.0, %v3316
    %v3318 = vpop.f32.mrb[0].mxu0
    %v3319 = vadd.f32 0.0, %v3318
    %v3320 = vpop.f32.mrb[0].mxu0
    %v3321 = vpop.f32.mrb[0].mxu0
    %3322 = vdwg.mxu0
    %3323 = vmatprep.subr.bf16.mxu0 %v2235
    %3324 = vmatpush1.bf16.msra.mxu0 %v2234
    %3325 = vmatprep.subr.bf16.mxu0 %v2239
    %3326 = vmatpush1.bf16.msra.mxu0 %v2238
    %3327 = vmatprep.subr.bf16.mxu0 %v2243
    %3328 = vmatpush1.bf16.msra.mxu0 %v2242
    %3329 = vmatprep.subr.bf16.mxu0 %v2247
    %3330 = vmatpush1.bf16.msra.mxu0 %v2246
    %3331 = vmatprep.subr.bf16.mxu0 %v2251
    %3332 = vmatpush1.bf16.msra.mxu0 %v2250
    %3333 = vmatprep.subr.bf16.mxu0 %v2255
    %3334 = vmatpush1.bf16.msra.mxu0 %v2254
    %3335 = vmatprep.subr.bf16.mxu0 %v2259
    %3336 = vmatpush1.bf16.msra.mxu0 %v2258
    %3337 = vmatprep.subr.bf16.mxu0 %v2263
    %3338 = vmatpush1.bf16.msra.mxu0 %v2262
    %3339 = vmatprep.subr.bf16.mxu0 0
    %3340 = vmatpush1.bf16.msra.mxu0 0
    %3341 = vmatprep.subr.bf16.mxu0 0
    %3342 = vmatpush1.bf16.msra.mxu0 0
    %3343 = vmatprep.subr.bf16.mxu0 0
    %3344 = vmatpush1.bf16.msra.mxu0 0
    %3345 = vmatprep.subr.bf16.mxu0 0
    %3346 = vmatpush1.bf16.msra.mxu0 0
    %3347 = vmatprep.subr.bf16.mxu0 0
    %3348 = vmatpush1.bf16.msra.mxu0 0
    %3349 = vmatprep.subr.bf16.mxu0 0
    %3350 = vmatpush1.bf16.msra.mxu0 0
    %3351 = vmatprep.subr.bf16.mxu0 0
    %3352 = vmatpush1.bf16.msra.mxu0 0
    %3353 = vmatprep.subr.bf16.mxu0 0
    %3354 = vmatpush1.bf16.msra.mxu0 0
    %3355 = vmatprep.mubr.bf16.mxu0 0
    %3356 = vmatmul.mubr.bf16.gmra.mrb[0].mxu0 %v2933
    %v3357 = vpop.f32.mrb[0].mxu0
    %v3358 = vadd.f32 %v3276, %v3357
    %v3359 = vpop.f32.mrb[0].mxu0
    %v3360 = vadd.f32 %v3278, %v3359
    %v3361 = vpop.f32.mrb[0].mxu0
    %v3362 = vpop.f32.mrb[0].mxu0
    %3363 = vdwg.mxu0
    %3364 = vmatprep.subr.bf16.mxu0 %v2237
    %3365 = vmatpush1.bf16.msra.mxu0 %v2236
    %3366 = vmatprep.subr.bf16.mxu0 %v2241
    %3367 = vmatpush1.bf16.msra.mxu0 %v2240
    %3368 = vmatprep.subr.bf16.mxu0 %v2245
    %3369 = vmatpush1.bf16.msra.mxu0 %v2244
    %3370 = vmatprep.subr.bf16.mxu0 %v2249
    %3371 = vmatpush1.bf16.msra.mxu0 %v2248
    %3372 = vmatprep.subr.bf16.mxu0 %v2253
    %3373 = vmatpush1.bf16.msra.mxu0 %v2252
    %3374 = vmatprep.subr.bf16.mxu0 %v2257
    %3375 = vmatpush1.bf16.msra.mxu0 %v2256
    %3376 = vmatprep.subr.bf16.mxu0 %v2261
    %3377 = vmatpush1.bf16.msra.mxu0 %v2260
    %3378 = vmatprep.subr.bf16.mxu0 %v2265
    %3379 = vmatpush1.bf16.msra.mxu0 %v2264
    %3380 = vmatprep.subr.bf16.mxu0 0
    %3381 = vmatpush1.bf16.msra.mxu0 0
    %3382 = vmatprep.subr.bf16.mxu0 0
    %3383 = vmatpush1.bf16.msra.mxu0 0
    %3384 = vmatprep.subr.bf16.mxu0 0
    %3385 = vmatpush1.bf16.msra.mxu0 0
    %3386 = vmatprep.subr.bf16.mxu0 0
    %3387 = vmatpush1.bf16.msra.mxu0 0
    %3388 = vmatprep.subr.bf16.mxu0 0
    %3389 = vmatpush1.bf16.msra.mxu0 0
    %3390 = vmatprep.subr.bf16.mxu0 0
    %3391 = vmatpush1.bf16.msra.mxu0 0
    %3392 = vmatprep.subr.bf16.mxu0 0
    %3393 = vmatpush1.bf16.msra.mxu0 0
    %3394 = vmatprep.subr.bf16.mxu0 0
    %3395 = vmatpush1.bf16.msra.mxu0 0
    %3396 = vmatprep.mubr.bf16.mxu0 0
    %3397 = vmatmul.mubr.bf16.gmra.mrb[0].mxu0 %v2933
    %v3398 = vpop.f32.mrb[0].mxu0
    %v3399 = vadd.f32 %v3317, %v3398
    %v3400 = vpop.f32.mrb[0].mxu0
    %v3401 = vadd.f32 %v3319, %v3400
    %v3402 = vpop.f32.mrb[0].mxu0
    %v3403 = vpop.f32.mrb[0].mxu0
    %3404 = vdwg.mxu0
    %v3405 = vadd.f32 %v3358, %v2384
    %v3406 = vadd.f32 %v3360, %v2388
    %v3407 = vadd.f32 %v3399, %v2392
    %v3408 = vadd.f32 %v3401, %v2396
    %v3409 = vxor.u32 %v3405, 2147483648
    %v3410 = vxor.u32 %v3406, 2147483648
    %v3411 = vmul.f32 %v3409, 1.442695
    %v3412 = vpow.pop %v3411
    %v3413 = vmul.f32 %v3410, 1.442695
    %v3414 = vpow.pop %v3413
    %v3415 = vadd.f32 %v3412, 1.0
    %v3416 = vadd.f32 %v3414, 1.0
    %v3417 = vrcp.pop %v3415
    %v3418 = vmul.f32 1.0, %v3417
    %v3419 = vrcp.pop %v3416
    %v3420 = vmul.f32 1.0, %v3419
    %v3421 = vtanh.pop %v3407
    %v3422 = vxor.u32 %v3408, 2147483648
    %v3423 = vmul.f32 %v3422, 1.442695
    %v3424 = vpow.pop %v3423
    %v3425 = vadd.f32 %v3424, 1.0
    %v3426 = vrcp.pop %v3425
    %v3427 = vmul.f32 1.0, %v3426
    %v3428 = vmul.f32 %v3420, %v2928
    %v3429 = vmul.f32 %v3418, %v3421
    %v3430 = vadd.f32 %v3428, %v3429
    %v3431 = vtanh.pop %v3430
    %v3432 = vmul.f32 %v3427, %v3431
    %3433 = vst [vmem:[#allocation3 + $0x10] sm:$0xff] %v3432
    %v3434 = vpack.c.bf16 %v3048, %v3048
    %v3435 = vpack.c.bf16 %v3240, %v3240
    %v3436 = vpack.c.bf16 %v3432, %v3432
    %v3437 = vld [vmem:[#allocation2 + $0xa0] sm:$0xff]
    %v3438 = vld [vmem:[#allocation2 + $0xa8] sm:$0xff]
    %v3439 = vld [vmem:[#allocation2 + $0xb0] sm:$0xff]
    %v3440 = vld [vmem:[#allocation2 + $0xb8] sm:$0xff]
    %3441 = vmatprep.subr.bf16.mxu0 %v765
    %3442 = vmatpush1.bf16.msra.mxu0 %v764
    %3443 = vmatprep.subr.bf16.mxu0 %v769
    %3444 = vmatpush1.bf16.msra.mxu0 %v768
    %3445 = vmatprep.subr.bf16.mxu0 %v773
    %3446 = vmatpush1.bf16.msra.mxu0 %v772
    %3447 = vmatprep.subr.bf16.mxu0 %v777
    %3448 = vmatpush1.bf16.msra.mxu0 %v776
    %3449 = vmatprep.subr.bf16.mxu0 %v781
    %3450 = vmatpush1.bf16.msra.mxu0 %v780
    %3451 = vmatprep.subr.bf16.mxu0 %v785
    %3452 = vmatpush1.bf16.msra.mxu0 %v784
    %3453 = vmatprep.subr.bf16.mxu0 %v789
    %3454 = vmatpush1.bf16.msra.mxu0 %v788
    %3455 = vmatprep.subr.bf16.mxu0 %v793
    %3456 = vmatpush1.bf16.msra.mxu0 %v792
    %3457 = vmatprep.subr.bf16.mxu0 0
    %3458 = vmatpush1.bf16.msra.mxu0 0
    %3459 = vmatprep.subr.bf16.mxu0 0
    %3460 = vmatpush1.bf16.msra.mxu0 0
    %3461 = vmatprep.subr.bf16.mxu0 0
    %3462 = vmatpush1.bf16.msra.mxu0 0
    %3463 = vmatprep.subr.bf16.mxu0 0
    %3464 = vmatpush1.bf16.msra.mxu0 0
    %3465 = vmatprep.subr.bf16.mxu0 0
    %3466 = vmatpush1.bf16.msra.mxu0 0
    %3467 = vmatprep.subr.bf16.mxu0 0
    %3468 = vmatpush1.bf16.msra.mxu0 0
    %3469 = vmatprep.subr.bf16.mxu0 0
    %3470 = vmatpush1.bf16.msra.mxu0 0
    %3471 = vmatprep.subr.bf16.mxu0 0
    %3472 = vmatpush1.bf16.msra.mxu0 0
    %3473 = vmatprep.mubr.bf16.mxu0 0
    %3474 = vmatmul.mubr.bf16.gmra.mrb[0].mxu0 %v3434
    %v3475 = vpop.f32.mrb[0].mxu0
    %v3476 = vadd.f32 0.0, %v3475
    %v3477 = vpop.f32.mrb[0].mxu0
    %v3478 = vadd.f32 0.0, %v3477
    %v3479 = vpop.f32.mrb[0].mxu0
    %v3480 = vpop.f32.mrb[0].mxu0
    %3481 = vdwg.mxu0
    %3482 = vmatprep.subr.bf16.mxu0 %v767
    %3483 = vmatpush1.bf16.msra.mxu0 %v766
    %3484 = vmatprep.subr.bf16.mxu0 %v771
    %3485 = vmatpush1.bf16.msra.mxu0 %v770
    %3486 = vmatprep.subr.bf16.mxu0 %v775
    %3487 = vmatpush1.bf16.msra.mxu0 %v774
    %3488 = vmatprep.subr.bf16.mxu0 %v779
    %3489 = vmatpush1.bf16.msra.mxu0 %v778
    %3490 = vmatprep.subr.bf16.mxu0 %v783
    %3491 = vmatpush1.bf16.msra.mxu0 %v782
    %3492 = vmatprep.subr.bf16.mxu0 %v787
    %3493 = vmatpush1.bf16.msra.mxu0 %v786
    %3494 = vmatprep.subr.bf16.mxu0 %v791
    %3495 = vmatpush1.bf16.msra.mxu0 %v790
    %3496 = vmatprep.subr.bf16.mxu0 %v795
    %3497 = vmatpush1.bf16.msra.mxu0 %v794
    %3498 = vmatprep.subr.bf16.mxu0 0
    %3499 = vmatpush1.bf16.msra.mxu0 0
    %3500 = vmatprep.subr.bf16.mxu0 0
    %3501 = vmatpush1.bf16.msra.mxu0 0
    %3502 = vmatprep.subr.bf16.mxu0 0
    %3503 = vmatpush1.bf16.msra.mxu0 0
    %3504 = vmatprep.subr.bf16.mxu0 0
    %3505 = vmatpush1.bf16.msra.mxu0 0
    %3506 = vmatprep.subr.bf16.mxu0 0
    %3507 = vmatpush1.bf16.msra.mxu0 0
    %3508 = vmatprep.subr.bf16.mxu0 0
    %3509 = vmatpush1.bf16.msra.mxu0 0
    %3510 = vmatprep.subr.bf16.mxu0 0
    %3511 = vmatpush1.bf16.msra.mxu0 0
    %3512 = vmatprep.subr.bf16.mxu0 0
    %3513 = vmatpush1.bf16.msra.mxu0 0
    %3514 = vmatprep.mubr.bf16.mxu0 0
    %3515 = vmatmul.mubr.bf16.gmra.mrb[0].mxu0 %v3434
    %v3516 = vpop.f32.mrb[0].mxu0
    %v3517 = vadd.f32 0.0, %v3516
    %v3518 = vpop.f32.mrb[0].mxu0
    %v3519 = vadd.f32 0.0, %v3518
    %v3520 = vpop.f32.mrb[0].mxu0
    %v3521 = vpop.f32.mrb[0].mxu0
    %3522 = vdwg.mxu0
    %v3523 = vadd.f32 %v3437, %v3476
    %v3524 = vadd.f32 %v3438, %v3478
    %v3525 = vadd.f32 %v3439, %v3517
    %v3526 = vadd.f32 %v3440, %v3519
    %v3527 = vxor.u32 %v3523, 2147483648
    %v3528 = vxor.u32 %v3524, 2147483648
    %v3529 = vmul.f32 %v3527, 1.442695
    %v3530 = vpow.pop %v3529
    %v3531 = vmul.f32 %v3528, 1.442695
    %v3532 = vpow.pop %v3531
    %v3533 = vadd.f32 %v3530, 1.0
    %v3534 = vadd.f32 %v3532, 1.0
    %v3535 = vrcp.pop %v3533
    %v3536 = vmul.f32 1.0, %v3535
    %v3537 = vrcp.pop %v3534
    %v3538 = vmul.f32 1.0, %v3537
    %v3539 = vtanh.pop %v3525
    %v3540 = vxor.u32 %v3526, 2147483648
    %v3541 = vmul.f32 %v3540, 1.442695
    %v3542 = vpow.pop %v3541
    %v3543 = vadd.f32 %v3542, 1.0
    %v3544 = vrcp.pop %v3543
    %v3545 = vmul.f32 1.0, %v3544
    %v3546 = vmul.f32 %v3538, %v3046
    %v3547 = vmul.f32 %v3536, %v3539
    %v3548 = vadd.f32 %v3546, %v3547
    %v3549 = vtanh.pop %v3548
    %v3550 = vmul.f32 %v3545, %v3549
    %3551 = vmatprep.subr.bf16.mxu0 %v1151
    %3552 = vmatpush1.bf16.msra.mxu0 %v1150
    %3553 = vmatprep.subr.bf16.mxu0 %v1155
    %3554 = vmatpush1.bf16.msra.mxu0 %v1154
    %3555 = vmatprep.subr.bf16.mxu0 %v1159
    %3556 = vmatpush1.bf16.msra.mxu0 %v1158
    %3557 = vmatprep.subr.bf16.mxu0 %v1163
    %3558 = vmatpush1.bf16.msra.mxu0 %v1162
    %3559 = vmatprep.subr.bf16.mxu0 %v1167
    %3560 = vmatpush1.bf16.msra.mxu0 %v1166
    %3561 = vmatprep.subr.bf16.mxu0 %v1171
    %3562 = vmatpush1.bf16.msra.mxu0 %v1170
    %3563 = vmatprep.subr.bf16.mxu0 %v1175
    %3564 = vmatpush1.bf16.msra.mxu0 %v1174
    %3565 = vmatprep.subr.bf16.mxu0 %v1179
    %3566 = vmatpush1.bf16.msra.mxu0 %v1178
    %3567 = vmatprep.subr.bf16.mxu0 0
    %3568 = vmatpush1.bf16.msra.mxu0 0
    %3569 = vmatprep.subr.bf16.mxu0 0
    %3570 = vmatpush1.bf16.msra.mxu0 0
    %3571 = vmatprep.subr.bf16.mxu0 0
    %3572 = vmatpush1.bf16.msra.mxu0 0
    %3573 = vmatprep.subr.bf16.mxu0 0
    %3574 = vmatpush1.bf16.msra.mxu0 0
    %3575 = vmatprep.subr.bf16.mxu0 0
    %3576 = vmatpush1.bf16.msra.mxu0 0
    %3577 = vmatprep.subr.bf16.mxu0 0
    %3578 = vmatpush1.bf16.msra.mxu0 0
    %3579 = vmatprep.subr.bf16.mxu0 0
    %3580 = vmatpush1.bf16.msra.mxu0 0
    %3581 = vmatprep.subr.bf16.mxu0 0
    %3582 = vmatpush1.bf16.msra.mxu0 0
    %3583 = vmatprep.mubr.bf16.mxu0 0
    %3584 = vmatmul.mubr.bf16.gmra.mrb[0].mxu0 %v3435
    %v3585 = vpop.f32.mrb[0].mxu0
    %v3586 = vadd.f32 0.0, %v3585
    %v3587 = vpop.f32.mrb[0].mxu0
    %v3588 = vadd.f32 0.0, %v3587
    %v3589 = vpop.f32.mrb[0].mxu0
    %v3590 = vpop.f32.mrb[0].mxu0
    %3591 = vdwg.mxu0
    %3592 = vmatprep.subr.bf16.mxu0 %v1153
    %3593 = vmatpush1.bf16.msra.mxu0 %v1152
    %3594 = vmatprep.subr.bf16.mxu0 %v1157
    %3595 = vmatpush1.bf16.msra.mxu0 %v1156
    %3596 = vmatprep.subr.bf16.mxu0 %v1161
    %3597 = vmatpush1.bf16.msra.mxu0 %v1160
    %3598 = vmatprep.subr.bf16.mxu0 %v1165
    %3599 = vmatpush1.bf16.msra.mxu0 %v1164
    %3600 = vmatprep.subr.bf16.mxu0 %v1169
    %3601 = vmatpush1.bf16.msra.mxu0 %v1168
    %3602 = vmatprep.subr.bf16.mxu0 %v1173
    %3603 = vmatpush1.bf16.msra.mxu0 %v1172
    %3604 = vmatprep.subr.bf16.mxu0 %v1177
    %3605 = vmatpush1.bf16.msra.mxu0 %v1176
    %3606 = vmatprep.subr.bf16.mxu0 %v1181
    %3607 = vmatpush1.bf16.msra.mxu0 %v1180
    %3608 = vmatprep.subr.bf16.mxu0 0
    %3609 = vmatpush1.bf16.msra.mxu0 0
    %3610 = vmatprep.subr.bf16.mxu0 0
    %3611 = vmatpush1.bf16.msra.mxu0 0
    %3612 = vmatprep.subr.bf16.mxu0 0
    %3613 = vmatpush1.bf16.msra.mxu0 0
    %3614 = vmatprep.subr.bf16.mxu0 0
    %3615 = vmatpush1.bf16.msra.mxu0 0
    %3616 = vmatprep.subr.bf16.mxu0 0
    %3617 = vmatpush1.bf16.msra.mxu0 0
    %3618 = vmatprep.subr.bf16.mxu0 0
    %3619 = vmatpush1.bf16.msra.mxu0 0
    %3620 = vmatprep.subr.bf16.mxu0 0
    %3621 = vmatpush1.bf16.msra.mxu0 0
    %3622 = vmatprep.subr.bf16.mxu0 0
    %3623 = vmatpush1.bf16.msra.mxu0 0
    %3624 = vmatprep.mubr.bf16.mxu0 0
    %3625 = vmatmul.mubr.bf16.gmra.mrb[0].mxu0 %v3435
    %v3626 = vpop.f32.mrb[0].mxu0
    %v3627 = vadd.f32 0.0, %v3626
    %v3628 = vpop.f32.mrb[0].mxu0
    %v3629 = vadd.f32 0.0, %v3628
    %v3630 = vpop.f32.mrb[0].mxu0
    %v3631 = vpop.f32.mrb[0].mxu0
    %3632 = vdwg.mxu0
    %3633 = vmatprep.subr.bf16.mxu0 %v1393
    %3634 = vmatpush1.bf16.msra.mxu0 %v1392
    %3635 = vmatprep.subr.bf16.mxu0 %v1397
    %3636 = vmatpush1.bf16.msra.mxu0 %v1396
    %3637 = vmatprep.subr.bf16.mxu0 %v1401
    %3638 = vmatpush1.bf16.msra.mxu0 %v1400
    %3639 = vmatprep.subr.bf16.mxu0 %v1405
    %3640 = vmatpush1.bf16.msra.mxu0 %v1404
    %3641 = vmatprep.subr.bf16.mxu0 %v1409
    %3642 = vmatpush1.bf16.msra.mxu0 %v1408
    %3643 = vmatprep.subr.bf16.mxu0 %v1413
    %3644 = vmatpush1.bf16.msra.mxu0 %v1412
    %3645 = vmatprep.subr.bf16.mxu0 %v1417
    %3646 = vmatpush1.bf16.msra.mxu0 %v1416
    %3647 = vmatprep.subr.bf16.mxu0 %v1421
    %3648 = vmatpush1.bf16.msra.mxu0 %v1420
    %3649 = vmatprep.subr.bf16.mxu0 0
    %3650 = vmatpush1.bf16.msra.mxu0 0
    %3651 = vmatprep.subr.bf16.mxu0 0
    %3652 = vmatpush1.bf16.msra.mxu0 0
    %3653 = vmatprep.subr.bf16.mxu0 0
    %3654 = vmatpush1.bf16.msra.mxu0 0
    %3655 = vmatprep.subr.bf16.mxu0 0
    %3656 = vmatpush1.bf16.msra.mxu0 0
    %3657 = vmatprep.subr.bf16.mxu0 0
    %3658 = vmatpush1.bf16.msra.mxu0 0
    %3659 = vmatprep.subr.bf16.mxu0 0
    %3660 = vmatpush1.bf16.msra.mxu0 0
    %3661 = vmatprep.subr.bf16.mxu0 0
    %3662 = vmatpush1.bf16.msra.mxu0 0
    %3663 = vmatprep.subr.bf16.mxu0 0
    %3664 = vmatpush1.bf16.msra.mxu0 0
    %3665 = vmatprep.mubr.bf16.mxu0 0
    %3666 = vmatmul.mubr.bf16.gmra.mrb[0].mxu0 %v3434
    %v3667 = vpop.f32.mrb[0].mxu0
    %v3668 = vadd.f32 %v3586, %v3667
    %v3669 = vpop.f32.mrb[0].mxu0
    %v3670 = vadd.f32 %v3588, %v3669
    %v3671 = vpop.f32.mrb[0].mxu0
    %v3672 = vpop.f32.mrb[0].mxu0
    %3673 = vdwg.mxu0
    %3674 = vmatprep.subr.bf16.mxu0 %v1395
    %3675 = vmatpush1.bf16.msra.mxu0 %v1394
    %3676 = vmatprep.subr.bf16.mxu0 %v1399
    %3677 = vmatpush1.bf16.msra.mxu0 %v1398
    %3678 = vmatprep.subr.bf16.mxu0 %v1403
    %3679 = vmatpush1.bf16.msra.mxu0 %v1402
    %3680 = vmatprep.subr.bf16.mxu0 %v1407
    %3681 = vmatpush1.bf16.msra.mxu0 %v1406
    %3682 = vmatprep.subr.bf16.mxu0 %v1411
    %3683 = vmatpush1.bf16.msra.mxu0 %v1410
    %3684 = vmatprep.subr.bf16.mxu0 %v1415
    %3685 = vmatpush1.bf16.msra.mxu0 %v1414
    %3686 = vmatprep.subr.bf16.mxu0 %v1419
    %3687 = vmatpush1.bf16.msra.mxu0 %v1418
    %3688 = vmatprep.subr.bf16.mxu0 %v1423
    %3689 = vmatpush1.bf16.msra.mxu0 %v1422
    %3690 = vmatprep.subr.bf16.mxu0 0
    %3691 = vmatpush1.bf16.msra.mxu0 0
    %3692 = vmatprep.subr.bf16.mxu0 0
    %3693 = vmatpush1.bf16.msra.mxu0 0
    %3694 = vmatprep.subr.bf16.mxu0 0
    %3695 = vmatpush1.bf16.msra.mxu0 0
    %3696 = vmatprep.subr.bf16.mxu0 0
    %3697 = vmatpush1.bf16.msra.mxu0 0
    %3698 = vmatprep.subr.bf16.mxu0 0
    %3699 = vmatpush1.bf16.msra.mxu0 0
    %3700 = vmatprep.subr.bf16.mxu0 0
    %3701 = vmatpush1.bf16.msra.mxu0 0
    %3702 = vmatprep.subr.bf16.mxu0 0
    %3703 = vmatpush1.bf16.msra.mxu0 0
    %3704 = vmatprep.subr.bf16.mxu0 0
    %3705 = vmatpush1.bf16.msra.mxu0 0
    %3706 = vmatprep.mubr.bf16.mxu0 0
    %3707 = vmatmul.mubr.bf16.gmra.mrb[0].mxu0 %v3434
    %v3708 = vpop.f32.mrb[0].mxu0
    %v3709 = vadd.f32 %v3627, %v3708
    %v3710 = vpop.f32.mrb[0].mxu0
    %v3711 = vadd.f32 %v3629, %v3710
    %v3712 = vpop.f32.mrb[0].mxu0
    %v3713 = vpop.f32.mrb[0].mxu0
    %3714 = vdwg.mxu0
    %v3715 = vadd.f32 %v3668, %v1542
    %v3716 = vadd.f32 %v3670, %v1546
    %v3717 = vadd.f32 %v3709, %v1550
    %v3718 = vadd.f32 %v3711, %v1554
    %v3719 = vxor.u32 %v3715, 2147483648
    %v3720 = vxor.u32 %v3716, 2147483648
    %v3721 = vmul.f32 %v3719, 1.442695
    %v3722 = vpow.pop %v3721
    %v3723 = vmul.f32 %v3720, 1.442695
    %v3724 = vpow.pop %v3723
    %v3725 = vadd.f32 %v3722, 1.0
    %v3726 = vadd.f32 %v3724, 1.0
    %v3727 = vrcp.pop %v3725
    %v3728 = vmul.f32 1.0, %v3727
    %v3729 = vrcp.pop %v3726
    %v3730 = vmul.f32 1.0, %v3729
    %v3731 = vtanh.pop %v3717
    %v3732 = vxor.u32 %v3718, 2147483648
    %v3733 = vmul.f32 %v3732, 1.442695
    %v3734 = vpow.pop %v3733
    %v3735 = vadd.f32 %v3734, 1.0
    %v3736 = vrcp.pop %v3735
    %v3737 = vmul.f32 1.0, %v3736
    %v3738 = vmul.f32 %v3730, %v3238
    %v3739 = vmul.f32 %v3728, %v3731
    %v3740 = vadd.f32 %v3738, %v3739
    %v3741 = vtanh.pop %v3740
    %v3742 = vmul.f32 %v3737, %v3741
    %3743 = vmatprep.subr.bf16.mxu0 %v1993
    %3744 = vmatpush1.bf16.msra.mxu0 %v1992
    %3745 = vmatprep.subr.bf16.mxu0 %v1997
    %3746 = vmatpush1.bf16.msra.mxu0 %v1996
    %3747 = vmatprep.subr.bf16.mxu0 %v2001
    %3748 = vmatpush1.bf16.msra.mxu0 %v2000
    %3749 = vmatprep.subr.bf16.mxu0 %v2005
    %3750 = vmatpush1.bf16.msra.mxu0 %v2004
    %3751 = vmatprep.subr.bf16.mxu0 %v2009
    %3752 = vmatpush1.bf16.msra.mxu0 %v2008
    %3753 = vmatprep.subr.bf16.mxu0 %v2013
    %3754 = vmatpush1.bf16.msra.mxu0 %v2012
    %3755 = vmatprep.subr.bf16.mxu0 %v2017
    %3756 = vmatpush1.bf16.msra.mxu0 %v2016
    %3757 = vmatprep.subr.bf16.mxu0 %v2021
    %3758 = vmatpush1.bf16.msra.mxu0 %v2020
    %3759 = vmatprep.subr.bf16.mxu0 0
    %3760 = vmatpush1.bf16.msra.mxu0 0
    %3761 = vmatprep.subr.bf16.mxu0 0
    %3762 = vmatpush1.bf16.msra.mxu0 0
    %3763 = vmatprep.subr.bf16.mxu0 0
    %3764 = vmatpush1.bf16.msra.mxu0 0
    %3765 = vmatprep.subr.bf16.mxu0 0
    %3766 = vmatpush1.bf16.msra.mxu0 0
    %3767 = vmatprep.subr.bf16.mxu0 0
    %3768 = vmatpush1.bf16.msra.mxu0 0
    %3769 = vmatprep.subr.bf16.mxu0 0
    %3770 = vmatpush1.bf16.msra.mxu0 0
    %3771 = vmatprep.subr.bf16.mxu0 0
    %3772 = vmatpush1.bf16.msra.mxu0 0
    %3773 = vmatprep.subr.bf16.mxu0 0
    %3774 = vmatpush1.bf16.msra.mxu0 0
    %3775 = vmatprep.mubr.bf16.mxu0 0
    %3776 = vmatmul.mubr.bf16.gmra.mrb[0].mxu0 %v3436
    %v3777 = vpop.f32.mrb[0].mxu0
    %v3778 = vadd.f32 0.0, %v3777
    %v3779 = vpop.f32.mrb[0].mxu0
    %v3780 = vadd.f32 0.0, %v3779
    %v3781 = vpop.f32.mrb[0].mxu0
    %v3782 = vpop.f32.mrb[0].mxu0
    %3783 = vdwg.mxu0
    %3784 = vmatprep.subr.bf16.mxu0 %v1995
    %3785 = vmatpush1.bf16.msra.mxu0 %v1994
    %3786 = vmatprep.subr.bf16.mxu0 %v1999
    %3787 = vmatpush1.bf16.msra.mxu0 %v1998
    %3788 = vmatprep.subr.bf16.mxu0 %v2003
    %3789 = vmatpush1.bf16.msra.mxu0 %v2002
    %3790 = vmatprep.subr.bf16.mxu0 %v2007
    %3791 = vmatpush1.bf16.msra.mxu0 %v2006
    %3792 = vmatprep.subr.bf16.mxu0 %v2011
    %3793 = vmatpush1.bf16.msra.mxu0 %v2010
    %3794 = vmatprep.subr.bf16.mxu0 %v2015
    %3795 = vmatpush1.bf16.msra.mxu0 %v2014
    %3796 = vmatprep.subr.bf16.mxu0 %v2019
    %3797 = vmatpush1.bf16.msra.mxu0 %v2018
    %3798 = vmatprep.subr.bf16.mxu0 %v2023
    %3799 = vmatpush1.bf16.msra.mxu0 %v2022
    %3800 = vmatprep.subr.bf16.mxu0 0
    %3801 = vmatpush1.bf16.msra.mxu0 0
    %3802 = vmatprep.subr.bf16.mxu0 0
    %3803 = vmatpush1.bf16.msra.mxu0 0
    %3804 = vmatprep.subr.bf16.mxu0 0
    %3805 = vmatpush1.bf16.msra.mxu0 0
    %3806 = vmatprep.subr.bf16.mxu0 0
    %3807 = vmatpush1.bf16.msra.mxu0 0
    %3808 = vmatprep.subr.bf16.mxu0 0
    %3809 = vmatpush1.bf16.msra.mxu0 0
    %3810 = vmatprep.subr.bf16.mxu0 0
    %3811 = vmatpush1.bf16.msra.mxu0 0
    %3812 = vmatprep.subr.bf16.mxu0 0
    %3813 = vmatpush1.bf16.msra.mxu0 0
    %3814 = vmatprep.subr.bf16.mxu0 0
    %3815 = vmatpush1.bf16.msra.mxu0 0
    %3816 = vmatprep.mubr.bf16.mxu0 0
    %3817 = vmatmul.mubr.bf16.gmra.mrb[0].mxu0 %v3436
    %v3818 = vpop.f32.mrb[0].mxu0
    %v3819 = vadd.f32 0.0, %v3818
    %v3820 = vpop.f32.mrb[0].mxu0
    %v3821 = vadd.f32 0.0, %v3820
    %v3822 = vpop.f32.mrb[0].mxu0
    %v3823 = vpop.f32.mrb[0].mxu0
    %3824 = vdwg.mxu0
    %3825 = vmatprep.subr.bf16.mxu0 %v2235
    %3826 = vmatpush1.bf16.msra.mxu0 %v2234
    %3827 = vmatprep.subr.bf16.mxu0 %v2239
    %3828 = vmatpush1.bf16.msra.mxu0 %v2238
    %3829 = vmatprep.subr.bf16.mxu0 %v2243
    %3830 = vmatpush1.bf16.msra.mxu0 %v2242
    %3831 = vmatprep.subr.bf16.mxu0 %v2247
    %3832 = vmatpush1.bf16.msra.mxu0 %v2246
    %3833 = vmatprep.subr.bf16.mxu0 %v2251
    %3834 = vmatpush1.bf16.msra.mxu0 %v2250
    %3835 = vmatprep.subr.bf16.mxu0 %v2255
    %3836 = vmatpush1.bf16.msra.mxu0 %v2254
    %3837 = vmatprep.subr.bf16.mxu0 %v2259
    %3838 = vmatpush1.bf16.msra.mxu0 %v2258
    %3839 = vmatprep.subr.bf16.mxu0 %v2263
    %3840 = vmatpush1.bf16.msra.mxu0 %v2262
    %3841 = vmatprep.subr.bf16.mxu0 0
    %3842 = vmatpush1.bf16.msra.mxu0 0
    %3843 = vmatprep.subr.bf16.mxu0 0
    %3844 = vmatpush1.bf16.msra.mxu0 0
    %3845 = vmatprep.subr.bf16.mxu0 0
    %3846 = vmatpush1.bf16.msra.mxu0 0
    %3847 = vmatprep.subr.bf16.mxu0 0
    %3848 = vmatpush1.bf16.msra.mxu0 0
    %3849 = vmatprep.subr.bf16.mxu0 0
    %3850 = vmatpush1.bf16.msra.mxu0 0
    %3851 = vmatprep.subr.bf16.mxu0 0
    %3852 = vmatpush1.bf16.msra.mxu0 0
    %3853 = vmatprep.subr.bf16.mxu0 0
    %3854 = vmatpush1.bf16.msra.mxu0 0
    %3855 = vmatprep.subr.bf16.mxu0 0
    %3856 = vmatpush1.bf16.msra.mxu0 0
    %3857 = vmatprep.mubr.bf16.mxu0 0
    %3858 = vmatmul.mubr.bf16.gmra.mrb[0].mxu0 %v3435
    %v3859 = vpop.f32.mrb[0].mxu0
    %v3860 = vadd.f32 %v3778, %v3859
    %v3861 = vpop.f32.mrb[0].mxu0
    %v3862 = vadd.f32 %v3780, %v3861
    %v3863 = vpop.f32.mrb[0].mxu0
    %v3864 = vpop.f32.mrb[0].mxu0
    %3865 = vdwg.mxu0
    %3866 = vmatprep.subr.bf16.mxu0 %v2237
    %3867 = vmatpush1.bf16.msra.mxu0 %v2236
    %3868 = vmatprep.subr.bf16.mxu0 %v2241
    %3869 = vmatpush1.bf16.msra.mxu0 %v2240
    %3870 = vmatprep.subr.bf16.mxu0 %v2245
    %3871 = vmatpush1.bf16.msra.mxu0 %v2244
    %3872 = vmatprep.subr.bf16.mxu0 %v2249
    %3873 = vmatpush1.bf16.msra.mxu0 %v2248
    %3874 = vmatprep.subr.bf16.mxu0 %v2253
    %3875 = vmatpush1.bf16.msra.mxu0 %v2252
    %3876 = vmatprep.subr.bf16.mxu0 %v2257
    %3877 = vmatpush1.bf16.msra.mxu0 %v2256
    %3878 = vmatprep.subr.bf16.mxu0 %v2261
    %3879 = vmatpush1.bf16.msra.mxu0 %v2260
    %3880 = vmatprep.subr.bf16.mxu0 %v2265
    %3881 = vmatpush1.bf16.msra.mxu0 %v2264
    %3882 = vmatprep.subr.bf16.mxu0 0
    %3883 = vmatpush1.bf16.msra.mxu0 0
    %3884 = vmatprep.subr.bf16.mxu0 0
    %3885 = vmatpush1.bf16.msra.mxu0 0
    %3886 = vmatprep.subr.bf16.mxu0 0
    %3887 = vmatpush1.bf16.msra.mxu0 0
    %3888 = vmatprep.subr.bf16.mxu0 0
    %3889 = vmatpush1.bf16.msra.mxu0 0
    %3890 = vmatprep.subr.bf16.mxu0 0
    %3891 = vmatpush1.bf16.msra.mxu0 0
    %3892 = vmatprep.subr.bf16.mxu0 0
    %3893 = vmatpush1.bf16.msra.mxu0 0
    %3894 = vmatprep.subr.bf16.mxu0 0
    %3895 = vmatpush1.bf16.msra.mxu0 0
    %3896 = vmatprep.subr.bf16.mxu0 0
    %3897 = vmatpush1.bf16.msra.mxu0 0
    %3898 = vmatprep.mubr.bf16.mxu0 0
    %3899 = vmatmul.mubr.bf16.gmra.mrb[0].mxu0 %v3435
    %v3900 = vpop.f32.mrb[0].mxu0
    %v3901 = vadd.f32 %v3819, %v3900
    %v3902 = vpop.f32.mrb[0].mxu0
    %v3903 = vadd.f32 %v3821, %v3902
    %v3904 = vpop.f32.mrb[0].mxu0
    %v3905 = vpop.f32.mrb[0].mxu0
    %3906 = vdwg.mxu0
    %v3907 = vadd.f32 %v3860, %v2384
    %v3908 = vadd.f32 %v3862, %v2388
    %v3909 = vadd.f32 %v3901, %v2392
    %v3910 = vadd.f32 %v3903, %v2396
    %v3911 = vxor.u32 %v3907, 2147483648
    %v3912 = vxor.u32 %v3908, 2147483648
    %v3913 = vmul.f32 %v3911, 1.442695
    %v3914 = vpow.pop %v3913
    %v3915 = vmul.f32 %v3912, 1.442695
    %v3916 = vpow.pop %v3915
    %v3917 = vadd.f32 %v3914, 1.0
    %v3918 = vadd.f32 %v3916, 1.0
    %v3919 = vrcp.pop %v3917
    %v3920 = vmul.f32 1.0, %v3919
    %v3921 = vrcp.pop %v3918
    %v3922 = vmul.f32 1.0, %v3921
    %v3923 = vtanh.pop %v3909
    %v3924 = vxor.u32 %v3910, 2147483648
    %v3925 = vmul.f32 %v3924, 1.442695
    %v3926 = vpow.pop %v3925
    %v3927 = vadd.f32 %v3926, 1.0
    %v3928 = vrcp.pop %v3927
    %v3929 = vmul.f32 1.0, %v3928
    %v3930 = vmul.f32 %v3922, %v3430
    %v3931 = vmul.f32 %v3920, %v3923
    %v3932 = vadd.f32 %v3930, %v3931
    %v3933 = vtanh.pop %v3932
    %v3934 = vmul.f32 %v3929, %v3933
    %3935 = vst [vmem:[#allocation3 + $0x18] sm:$0xff] %v3934
    %v3936 = vpack.c.bf16 %v3550, %v3550
    %v3937 = vpack.c.bf16 %v3742, %v3742
    %v3938 = vpack.c.bf16 %v3934, %v3934
    %v3939 = vld [vmem:[#allocation2 + $0xc0] sm:$0xff]
    %v3940 = vld [vmem:[#allocation2 + $0xc8] sm:$0xff]
    %v3941 = vld [vmem:[#allocation2 + $0xd0] sm:$0xff]
    %v3942 = vld [vmem:[#allocation2 + $0xd8] sm:$0xff]
    %3943 = vmatprep.subr.bf16.mxu0 %v765
    %3944 = vmatpush1.bf16.msra.mxu0 %v764
    %3945 = vmatprep.subr.bf16.mxu0 %v769
    %3946 = vmatpush1.bf16.msra.mxu0 %v768
    %3947 = vmatprep.subr.bf16.mxu0 %v773
    %3948 = vmatpush1.bf16.msra.mxu0 %v772
    %3949 = vmatprep.subr.bf16.mxu0 %v777
    %3950 = vmatpush1.bf16.msra.mxu0 %v776
    %3951 = vmatprep.subr.bf16.mxu0 %v781
    %3952 = vmatpush1.bf16.msra.mxu0 %v780
    %3953 = vmatprep.subr.bf16.mxu0 %v785
    %3954 = vmatpush1.bf16.msra.mxu0 %v784
    %3955 = vmatprep.subr.bf16.mxu0 %v789
    %3956 = vmatpush1.bf16.msra.mxu0 %v788
    %3957 = vmatprep.subr.bf16.mxu0 %v793
    %3958 = vmatpush1.bf16.msra.mxu0 %v792
    %3959 = vmatprep.subr.bf16.mxu0 0
    %3960 = vmatpush1.bf16.msra.mxu0 0
    %3961 = vmatprep.subr.bf16.mxu0 0
    %3962 = vmatpush1.bf16.msra.mxu0 0
    %3963 = vmatprep.subr.bf16.mxu0 0
    %3964 = vmatpush1.bf16.msra.mxu0 0
    %3965 = vmatprep.subr.bf16.mxu0 0
    %3966 = vmatpush1.bf16.msra.mxu0 0
    %3967 = vmatprep.subr.bf16.mxu0 0
    %3968 = vmatpush1.bf16.msra.mxu0 0
    %3969 = vmatprep.subr.bf16.mxu0 0
    %3970 = vmatpush1.bf16.msra.mxu0 0
    %3971 = vmatprep.subr.bf16.mxu0 0
    %3972 = vmatpush1.bf16.msra.mxu0 0
    %3973 = vmatprep.subr.bf16.mxu0 0
    %3974 = vmatpush1.bf16.msra.mxu0 0
    %3975 = vmatprep.mubr.bf16.mxu0 0
    %3976 = vmatmul.mubr.bf16.gmra.mrb[0].mxu0 %v3936
    %v3977 = vpop.f32.mrb[0].mxu0
    %v3978 = vadd.f32 0.0, %v3977
    %v3979 = vpop.f32.mrb[0].mxu0
    %v3980 = vadd.f32 0.0, %v3979
    %v3981 = vpop.f32.mrb[0].mxu0
    %v3982 = vpop.f32.mrb[0].mxu0
    %3983 = vdwg.mxu0
    %3984 = vmatprep.subr.bf16.mxu0 %v767
    %3985 = vmatpush1.bf16.msra.mxu0 %v766
    %3986 = vmatprep.subr.bf16.mxu0 %v771
    %3987 = vmatpush1.bf16.msra.mxu0 %v770
    %3988 = vmatprep.subr.bf16.mxu0 %v775
    %3989 = vmatpush1.bf16.msra.mxu0 %v774
    %3990 = vmatprep.subr.bf16.mxu0 %v779
    %3991 = vmatpush1.bf16.msra.mxu0 %v778
    %3992 = vmatprep.subr.bf16.mxu0 %v783
    %3993 = vmatpush1.bf16.msra.mxu0 %v782
    %3994 = vmatprep.subr.bf16.mxu0 %v787
    %3995 = vmatpush1.bf16.msra.mxu0 %v786
    %3996 = vmatprep.subr.bf16.mxu0 %v791
    %3997 = vmatpush1.bf16.msra.mxu0 %v790
    %3998 = vmatprep.subr.bf16.mxu0 %v795
    %3999 = vmatpush1.bf16.msra.mxu0 %v794
    %4000 = vmatprep.subr.bf16.mxu0 0
    %4001 = vmatpush1.bf16.msra.mxu0 0
    %4002 = vmatprep.subr.bf16.mxu0 0
    %4003 = vmatpush1.bf16.msra.mxu0 0
    %4004 = vmatprep.subr.bf16.mxu0 0
    %4005 = vmatpush1.bf16.msra.mxu0 0
    %4006 = vmatprep.subr.bf16.mxu0 0
    %4007 = vmatpush1.bf16.msra.mxu0 0
    %4008 = vmatprep.subr.bf16.mxu0 0
    %4009 = vmatpush1.bf16.msra.mxu0 0
    %4010 = vmatprep.subr.bf16.mxu0 0
    %4011 = vmatpush1.bf16.msra.mxu0 0
    %4012 = vmatprep.subr.bf16.mxu0 0
    %4013 = vmatpush1.bf16.msra.mxu0 0
    %4014 = vmatprep.subr.bf16.mxu0 0
    %4015 = vmatpush1.bf16.msra.mxu0 0
    %4016 = vmatprep.mubr.bf16.mxu0 0
    %4017 = vmatmul.mubr.bf16.gmra.mrb[0].mxu0 %v3936
    %v4018 = vpop.f32.mrb[0].mxu0
    %v4019 = vadd.f32 0.0, %v4018
    %v4020 = vpop.f32.mrb[0].mxu0
    %v4021 = vadd.f32 0.0, %v4020
    %v4022 = vpop.f32.mrb[0].mxu0
    %v4023 = vpop.f32.mrb[0].mxu0
    %4024 = vdwg.mxu0
    %v4025 = vadd.f32 %v3939, %v3978
    %v4026 = vadd.f32 %v3940, %v3980
    %v4027 = vadd.f32 %v3941, %v4019
    %v4028 = vadd.f32 %v3942, %v4021
    %v4029 = vxor.u32 %v4025, 2147483648
    %v4030 = vxor.u32 %v4026, 2147483648
    %v4031 = vmul.f32 %v4029, 1.442695
    %v4032 = vpow.pop %v4031
    %v4033 = vmul.f32 %v4030, 1.442695
    %v4034 = vpow.pop %v4033
    %v4035 = vadd.f32 %v4032, 1.0
    %v4036 = vadd.f32 %v4034, 1.0
    %v4037 = vrcp.pop %v4035
    %v4038 = vmul.f32 1.0, %v4037
    %v4039 = vrcp.pop %v4036
    %v4040 = vmul.f32 1.0, %v4039
    %v4041 = vtanh.pop %v4027
    %v4042 = vxor.u32 %v4028, 2147483648
    %v4043 = vmul.f32 %v4042, 1.442695
    %v4044 = vpow.pop %v4043
    %v4045 = vadd.f32 %v4044, 1.0
    %v4046 = vrcp.pop %v4045
    %v4047 = vmul.f32 1.0, %v4046
    %v4048 = vmul.f32 %v4040, %v3548
    %v4049 = vmul.f32 %v4038, %v4041
    %v4050 = vadd.f32 %v4048, %v4049
    %v4051 = vtanh.pop %v4050
    %v4052 = vmul.f32 %v4047, %v4051
    %4053 = vmatprep.subr.bf16.mxu0 %v1151
    %4054 = vmatpush1.bf16.msra.mxu0 %v1150
    %4055 = vmatprep.subr.bf16.mxu0 %v1155
    %4056 = vmatpush1.bf16.msra.mxu0 %v1154
    %4057 = vmatprep.subr.bf16.mxu0 %v1159
    %4058 = vmatpush1.bf16.msra.mxu0 %v1158
    %4059 = vmatprep.subr.bf16.mxu0 %v1163
    %4060 = vmatpush1.bf16.msra.mxu0 %v1162
    %4061 = vmatprep.subr.bf16.mxu0 %v1167
    %4062 = vmatpush1.bf16.msra.mxu0 %v1166
    %4063 = vmatprep.subr.bf16.mxu0 %v1171
    %4064 = vmatpush1.bf16.msra.mxu0 %v1170
    %4065 = vmatprep.subr.bf16.mxu0 %v1175
    %4066 = vmatpush1.bf16.msra.mxu0 %v1174
    %4067 = vmatprep.subr.bf16.mxu0 %v1179
    %4068 = vmatpush1.bf16.msra.mxu0 %v1178
    %4069 = vmatprep.subr.bf16.mxu0 0
    %4070 = vmatpush1.bf16.msra.mxu0 0
    %4071 = vmatprep.subr.bf16.mxu0 0
    %4072 = vmatpush1.bf16.msra.mxu0 0
    %4073 = vmatprep.subr.bf16.mxu0 0
    %4074 = vmatpush1.bf16.msra.mxu0 0
    %4075 = vmatprep.subr.bf16.mxu0 0
    %4076 = vmatpush1.bf16.msra.mxu0 0
    %4077 = vmatprep.subr.bf16.mxu0 0
    %4078 = vmatpush1.bf16.msra.mxu0 0
    %4079 = vmatprep.subr.bf16.mxu0 0
    %4080 = vmatpush1.bf16.msra.mxu0 0
    %4081 = vmatprep.subr.bf16.mxu0 0
    %4082 = vmatpush1.bf16.msra.mxu0 0
    %4083 = vmatprep.subr.bf16.mxu0 0
    %4084 = vmatpush1.bf16.msra.mxu0 0
    %4085 = vmatprep.mubr.bf16.mxu0 0
    %4086 = vmatmul.mubr.bf16.gmra.mrb[0].mxu0 %v3937
    %v4087 = vpop.f32.mrb[0].mxu0
    %v4088 = vadd.f32 0.0, %v4087
    %v4089 = vpop.f32.mrb[0].mxu0
    %v4090 = vadd.f32 0.0, %v4089
    %v4091 = vpop.f32.mrb[0].mxu0
    %v4092 = vpop.f32.mrb[0].mxu0
    %4093 = vdwg.mxu0
    %4094 = vmatprep.subr.bf16.mxu0 %v1153
    %4095 = vmatpush1.bf16.msra.mxu0 %v1152
    %4096 = vmatprep.subr.bf16.mxu0 %v1157
    %4097 = vmatpush1.bf16.msra.mxu0 %v1156
    %4098 = vmatprep.subr.bf16.mxu0 %v1161
    %4099 = vmatpush1.bf16.msra.mxu0 %v1160
    %4100 = vmatprep.subr.bf16.mxu0 %v1165
    %4101 = vmatpush1.bf16.msra.mxu0 %v1164
    %4102 = vmatprep.subr.bf16.mxu0 %v1169
    %4103 = vmatpush1.bf16.msra.mxu0 %v1168
    %4104 = vmatprep.subr.bf16.mxu0 %v1173
    %4105 = vmatpush1.bf16.msra.mxu0 %v1172
    %4106 = vmatprep.subr.bf16.mxu0 %v1177
    %4107 = vmatpush1.bf16.msra.mxu0 %v1176
    %4108 = vmatprep.subr.bf16.mxu0 %v1181
    %4109 = vmatpush1.bf16.msra.mxu0 %v1180
    %4110 = vmatprep.subr.bf16.mxu0 0
    %4111 = vmatpush1.bf16.msra.mxu0 0
    %4112 = vmatprep.subr.bf16.mxu0 0
    %4113 = vmatpush1.bf16.msra.mxu0 0
    %4114 = vmatprep.subr.bf16.mxu0 0
    %4115 = vmatpush1.bf16.msra.mxu0 0
    %4116 = vmatprep.subr.bf16.mxu0 0
    %4117 = vmatpush1.bf16.msra.mxu0 0
    %4118 = vmatprep.subr.bf16.mxu0 0
    %4119 = vmatpush1.bf16.msra.mxu0 0
    %4120 = vmatprep.subr.bf16.mxu0 0
    %4121 = vmatpush1.bf16.msra.mxu0 0
    %4122 = vmatprep.subr.bf16.mxu0 0
    %4123 = vmatpush1.bf16.msra.mxu0 0
    %4124 = vmatprep.subr.bf16.mxu0 0
    %4125 = vmatpush1.bf16.msra.mxu0 0
    %4126 = vmatprep.mubr.bf16.mxu0 0
    %4127 = vmatmul.mubr.bf16.gmra.mrb[0].mxu0 %v3937
    %v4128 = vpop.f32.mrb[0].mxu0
    %v4129 = vadd.f32 0.0, %v4128
    %v4130 = vpop.f32.mrb[0].mxu0
    %v4131 = vadd.f32 0.0, %v4130
    %v4132 = vpop.f32.mrb[0].mxu0
    %v4133 = vpop.f32.mrb[0].mxu0
    %4134 = vdwg.mxu0
    %4135 = vmatprep.subr.bf16.mxu0 %v1393
    %4136 = vmatpush1.bf16.msra.mxu0 %v1392
    %4137 = vmatprep.subr.bf16.mxu0 %v1397
    %4138 = vmatpush1.bf16.msra.mxu0 %v1396
    %4139 = vmatprep.subr.bf16.mxu0 %v1401
    %4140 = vmatpush1.bf16.msra.mxu0 %v1400
    %4141 = vmatprep.subr.bf16.mxu0 %v1405
    %4142 = vmatpush1.bf16.msra.mxu0 %v1404
    %4143 = vmatprep.subr.bf16.mxu0 %v1409
    %4144 = vmatpush1.bf16.msra.mxu0 %v1408
    %4145 = vmatprep.subr.bf16.mxu0 %v1413
    %4146 = vmatpush1.bf16.msra.mxu0 %v1412
    %4147 = vmatprep.subr.bf16.mxu0 %v1417
    %4148 = vmatpush1.bf16.msra.mxu0 %v1416
    %4149 = vmatprep.subr.bf16.mxu0 %v1421
    %4150 = vmatpush1.bf16.msra.mxu0 %v1420
    %4151 = vmatprep.subr.bf16.mxu0 0
    %4152 = vmatpush1.bf16.msra.mxu0 0
    %4153 = vmatprep.subr.bf16.mxu0 0
    %4154 = vmatpush1.bf16.msra.mxu0 0
    %4155 = vmatprep.subr.bf16.mxu0 0
    %4156 = vmatpush1.bf16.msra.mxu0 0
    %4157 = vmatprep.subr.bf16.mxu0 0
    %4158 = vmatpush1.bf16.msra.mxu0 0
    %4159 = vmatprep.subr.bf16.mxu0 0
    %4160 = vmatpush1.bf16.msra.mxu0 0
    %4161 = vmatprep.subr.bf16.mxu0 0
    %4162 = vmatpush1.bf16.msra.mxu0 0
    %4163 = vmatprep.subr.bf16.mxu0 0
    %4164 = vmatpush1.bf16.msra.mxu0 0
    %4165 = vmatprep.subr.bf16.mxu0 0
    %4166 = vmatpush1.bf16.msra.mxu0 0
    %4167 = vmatprep.mubr.bf16.mxu0 0
    %4168 = vmatmul.mubr.bf16.gmra.mrb[0].mxu0 %v3936
    %v4169 = vpop.f32.mrb[0].mxu0
    %v4170 = vadd.f32 %v4088, %v4169
    %v4171 = vpop.f32.mrb[0].mxu0
    %v4172 = vadd.f32 %v4090, %v4171
    %v4173 = vpop.f32.mrb[0].mxu0
    %v4174 = vpop.f32.mrb[0].mxu0
    %4175 = vdwg.mxu0
    %4176 = vmatprep.subr.bf16.mxu0 %v1395
    %4177 = vmatpush1.bf16.msra.mxu0 %v1394
    %4178 = vmatprep.subr.bf16.mxu0 %v1399
    %4179 = vmatpush1.bf16.msra.mxu0 %v1398
    %4180 = vmatprep.subr.bf16.mxu0 %v1403
    %4181 = vmatpush1.bf16.msra.mxu0 %v1402
    %4182 = vmatprep.subr.bf16.mxu0 %v1407
    %4183 = vmatpush1.bf16.msra.mxu0 %v1406
    %4184 = vmatprep.subr.bf16.mxu0 %v1411
    %4185 = vmatpush1.bf16.msra.mxu0 %v1410
    %4186 = vmatprep.subr.bf16.mxu0 %v1415
    %4187 = vmatpush1.bf16.msra.mxu0 %v1414
    %4188 = vmatprep.subr.bf16.mxu0 %v1419
    %4189 = vmatpush1.bf16.msra.mxu0 %v1418
    %4190 = vmatprep.subr.bf16.mxu0 %v1423
    %4191 = vmatpush1.bf16.msra.mxu0 %v1422
    %4192 = vmatprep.subr.bf16.mxu0 0
    %4193 = vmatpush1.bf16.msra.mxu0 0
    %4194 = vmatprep.subr.bf16.mxu0 0
    %4195 = vmatpush1.bf16.msra.mxu0 0
    %4196 = vmatprep.subr.bf16.mxu0 0
    %4197 = vmatpush1.bf16.msra.mxu0 0
    %4198 = vmatprep.subr.bf16.mxu0 0
    %4199 = vmatpush1.bf16.msra.mxu0 0
    %4200 = vmatprep.subr.bf16.mxu0 0
    %4201 = vmatpush1.bf16.msra.mxu0 0
    %4202 = vmatprep.subr.bf16.mxu0 0
    %4203 = vmatpush1.bf16.msra.mxu0 0
    %4204 = vmatprep.subr.bf16.mxu0 0
    %4205 = vmatpush1.bf16.msra.mxu0 0
    %4206 = vmatprep.subr.bf16.mxu0 0
    %4207 = vmatpush1.bf16.msra.mxu0 0
    %4208 = vmatprep.mubr.bf16.mxu0 0
    %4209 = vmatmul.mubr.bf16.gmra.mrb[0].mxu0 %v3936
    %v4210 = vpop.f32.mrb[0].mxu0
    %v4211 = vadd.f32 %v4129, %v4210
    %v4212 = vpop.f32.mrb[0].mxu0
    %v4213 = vadd.f32 %v4131, %v4212
    %v4214 = vpop.f32.mrb[0].mxu0
    %v4215 = vpop.f32.mrb[0].mxu0
    %4216 = vdwg.mxu0
    %v4217 = vadd.f32 %v4170, %v1542
    %v4218 = vadd.f32 %v4172, %v1546
    %v4219 = vadd.f32 %v4211, %v1550
    %v4220 = vadd.f32 %v4213, %v1554
    %v4221 = vxor.u32 %v4217, 2147483648
    %v4222 = vxor.u32 %v4218, 2147483648
    %v4223 = vmul.f32 %v4221, 1.442695
    %v4224 = vpow.pop %v4223
    %v4225 = vmul.f32 %v4222, 1.442695
    %v4226 = vpow.pop %v4225
    %v4227 = vadd.f32 %v4224, 1.0
    %v4228 = vadd.f32 %v4226, 1.0
    %v4229 = vrcp.pop %v4227
    %v4230 = vmul.f32 1.0, %v4229
    %v4231 = vrcp.pop %v4228
    %v4232 = vmul.f32 1.0, %v4231
    %v4233 = vtanh.pop %v4219
    %v4234 = vxor.u32 %v4220, 2147483648
    %v4235 = vmul.f32 %v4234, 1.442695
    %v4236 = vpow.pop %v4235
    %v4237 = vadd.f32 %v4236, 1.0
    %v4238 = vrcp.pop %v4237
    %v4239 = vmul.f32 1.0, %v4238
    %v4240 = vmul.f32 %v4232, %v3740
    %v4241 = vmul.f32 %v4230, %v4233
    %v4242 = vadd.f32 %v4240, %v4241
    %v4243 = vtanh.pop %v4242
    %v4244 = vmul.f32 %v4239, %v4243
    %4245 = vmatprep.subr.bf16.mxu0 %v1993
    %4246 = vmatpush1.bf16.msra.mxu0 %v1992
    %4247 = vmatprep.subr.bf16.mxu0 %v1997
    %4248 = vmatpush1.bf16.msra.mxu0 %v1996
    %4249 = vmatprep.subr.bf16.mxu0 %v2001
    %4250 = vmatpush1.bf16.msra.mxu0 %v2000
    %4251 = vmatprep.subr.bf16.mxu0 %v2005
    %4252 = vmatpush1.bf16.msra.mxu0 %v2004
    %4253 = vmatprep.subr.bf16.mxu0 %v2009
    %4254 = vmatpush1.bf16.msra.mxu0 %v2008
    %4255 = vmatprep.subr.bf16.mxu0 %v2013
    %4256 = vmatpush1.bf16.msra.mxu0 %v2012
    %4257 = vmatprep.subr.bf16.mxu0 %v2017
    %4258 = vmatpush1.bf16.msra.mxu0 %v2016
    %4259 = vmatprep.subr.bf16.mxu0 %v2021
    %4260 = vmatpush1.bf16.msra.mxu0 %v2020
    %4261 = vmatprep.subr.bf16.mxu0 0
    %4262 = vmatpush1.bf16.msra.mxu0 0
    %4263 = vmatprep.subr.bf16.mxu0 0
    %4264 = vmatpush1.bf16.msra.mxu0 0
    %4265 = vmatprep.subr.bf16.mxu0 0
    %4266 = vmatpush1.bf16.msra.mxu0 0
    %4267 = vmatprep.subr.bf16.mxu0 0
    %4268 = vmatpush1.bf16.msra.mxu0 0
    %4269 = vmatprep.subr.bf16.mxu0 0
    %4270 = vmatpush1.bf16.msra.mxu0 0
    %4271 = vmatprep.subr.bf16.mxu0 0
    %4272 = vmatpush1.bf16.msra.mxu0 0
    %4273 = vmatprep.subr.bf16.mxu0 0
    %4274 = vmatpush1.bf16.msra.mxu0 0
    %4275 = vmatprep.subr.bf16.mxu0 0
    %4276 = vmatpush1.bf16.msra.mxu0 0
    %4277 = vmatprep.mubr.bf16.mxu0 0
    %4278 = vmatmul.mubr.bf16.gmra.mrb[0].mxu0 %v3938
    %v4279 = vpop.f32.mrb[0].mxu0
    %v4280 = vadd.f32 0.0, %v4279
    %v4281 = vpop.f32.mrb[0].mxu0
    %v4282 = vadd.f32 0.0, %v4281
    %v4283 = vpop.f32.mrb[0].mxu0
    %v4284 = vpop.f32.mrb[0].mxu0
    %4285 = vdwg.mxu0
    %4286 = vmatprep.subr.bf16.mxu0 %v1995
    %4287 = vmatpush1.bf16.msra.mxu0 %v1994
    %4288 = vmatprep.subr.bf16.mxu0 %v1999
    %4289 = vmatpush1.bf16.msra.mxu0 %v1998
    %4290 = vmatprep.subr.bf16.mxu0 %v2003
    %4291 = vmatpush1.bf16.msra.mxu0 %v2002
    %4292 = vmatprep.subr.bf16.mxu0 %v2007
    %4293 = vmatpush1.bf16.msra.mxu0 %v2006
    %4294 = vmatprep.subr.bf16.mxu0 %v2011
    %4295 = vmatpush1.bf16.msra.mxu0 %v2010
    %4296 = vmatprep.subr.bf16.mxu0 %v2015
    %4297 = vmatpush1.bf16.msra.mxu0 %v2014
    %4298 = vmatprep.subr.bf16.mxu0 %v2019
    %4299 = vmatpush1.bf16.msra.mxu0 %v2018
    %4300 = vmatprep.subr.bf16.mxu0 %v2023
    %4301 = vmatpush1.bf16.msra.mxu0 %v2022
    %4302 = vmatprep.subr.bf16.mxu0 0
    %4303 = vmatpush1.bf16.msra.mxu0 0
    %4304 = vmatprep.subr.bf16.mxu0 0
    %4305 = vmatpush1.bf16.msra.mxu0 0
    %4306 = vmatprep.subr.bf16.mxu0 0
    %4307 = vmatpush1.bf16.msra.mxu0 0
    %4308 = vmatprep.subr.bf16.mxu0 0
    %4309 = vmatpush1.bf16.msra.mxu0 0
    %4310 = vmatprep.subr.bf16.mxu0 0
    %4311 = vmatpush1.bf16.msra.mxu0 0
    %4312 = vmatprep.subr.bf16.mxu0 0
    %4313 = vmatpush1.bf16.msra.mxu0 0
    %4314 = vmatprep.subr.bf16.mxu0 0
    %4315 = vmatpush1.bf16.msra.mxu0 0
    %4316 = vmatprep.subr.bf16.mxu0 0
    %4317 = vmatpush1.bf16.msra.mxu0 0
    %4318 = vmatprep.mubr.bf16.mxu0 0
    %4319 = vmatmul.mubr.bf16.gmra.mrb[0].mxu0 %v3938
    %v4320 = vpop.f32.mrb[0].mxu0
    %v4321 = vadd.f32 0.0, %v4320
    %v4322 = vpop.f32.mrb[0].mxu0
    %v4323 = vadd.f32 0.0, %v4322
    %v4324 = vpop.f32.mrb[0].mxu0
    %v4325 = vpop.f32.mrb[0].mxu0
    %4326 = vdwg.mxu0
    %4327 = vmatprep.subr.bf16.mxu0 %v2235
    %4328 = vmatpush1.bf16.msra.mxu0 %v2234
    %4329 = vmatprep.subr.bf16.mxu0 %v2239
    %4330 = vmatpush1.bf16.msra.mxu0 %v2238
    %4331 = vmatprep.subr.bf16.mxu0 %v2243
    %4332 = vmatpush1.bf16.msra.mxu0 %v2242
    %4333 = vmatprep.subr.bf16.mxu0 %v2247
    %4334 = vmatpush1.bf16.msra.mxu0 %v2246
    %4335 = vmatprep.subr.bf16.mxu0 %v2251
    %4336 = vmatpush1.bf16.msra.mxu0 %v2250
    %4337 = vmatprep.subr.bf16.mxu0 %v2255
    %4338 = vmatpush1.bf16.msra.mxu0 %v2254
    %4339 = vmatprep.subr.bf16.mxu0 %v2259
    %4340 = vmatpush1.bf16.msra.mxu0 %v2258
    %4341 = vmatprep.subr.bf16.mxu0 %v2263
    %4342 = vmatpush1.bf16.msra.mxu0 %v2262
    %4343 = vmatprep.subr.bf16.mxu0 0
    %4344 = vmatpush1.bf16.msra.mxu0 0
    %4345 = vmatprep.subr.bf16.mxu0 0
    %4346 = vmatpush1.bf16.msra.mxu0 0
    %4347 = vmatprep.subr.bf16.mxu0 0
    %4348 = vmatpush1.bf16.msra.mxu0 0
    %4349 = vmatprep.subr.bf16.mxu0 0
    %4350 = vmatpush1.bf16.msra.mxu0 0
    %4351 = vmatprep.subr.bf16.mxu0 0
    %4352 = vmatpush1.bf16.msra.mxu0 0
    %4353 = vmatprep.subr.bf16.mxu0 0
    %4354 = vmatpush1.bf16.msra.mxu0 0
    %4355 = vmatprep.subr.bf16.mxu0 0
    %4356 = vmatpush1.bf16.msra.mxu0 0
    %4357 = vmatprep.subr.bf16.mxu0 0
    %4358 = vmatpush1.bf16.msra.mxu0 0
    %4359 = vmatprep.mubr.bf16.mxu0 0
    %4360 = vmatmul.mubr.bf16.gmra.mrb[0].mxu0 %v3937
    %v4361 = vpop.f32.mrb[0].mxu0
    %v4362 = vadd.f32 %v4280, %v4361
    %v4363 = vpop.f32.mrb[0].mxu0
    %v4364 = vadd.f32 %v4282, %v4363
    %v4365 = vpop.f32.mrb[0].mxu0
    %v4366 = vpop.f32.mrb[0].mxu0
    %4367 = vdwg.mxu0
    %4368 = vmatprep.subr.bf16.mxu0 %v2237
    %4369 = vmatpush1.bf16.msra.mxu0 %v2236
    %4370 = vmatprep.subr.bf16.mxu0 %v2241
    %4371 = vmatpush1.bf16.msra.mxu0 %v2240
    %4372 = vmatprep.subr.bf16.mxu0 %v2245
    %4373 = vmatpush1.bf16.msra.mxu0 %v2244
    %4374 = vmatprep.subr.bf16.mxu0 %v2249
    %4375 = vmatpush1.bf16.msra.mxu0 %v2248
    %4376 = vmatprep.subr.bf16.mxu0 %v2253
    %4377 = vmatpush1.bf16.msra.mxu0 %v2252
    %4378 = vmatprep.subr.bf16.mxu0 %v2257
    %4379 = vmatpush1.bf16.msra.mxu0 %v2256
    %4380 = vmatprep.subr.bf16.mxu0 %v2261
    %4381 = vmatpush1.bf16.msra.mxu0 %v2260
    %4382 = vmatprep.subr.bf16.mxu0 %v2265
    %4383 = vmatpush1.bf16.msra.mxu0 %v2264
    %4384 = vmatprep.subr.bf16.mxu0 0
    %4385 = vmatpush1.bf16.msra.mxu0 0
    %4386 = vmatprep.subr.bf16.mxu0 0
    %4387 = vmatpush1.bf16.msra.mxu0 0
    %4388 = vmatprep.subr.bf16.mxu0 0
    %4389 = vmatpush1.bf16.msra.mxu0 0
    %4390 = vmatprep.subr.bf16.mxu0 0
    %4391 = vmatpush1.bf16.msra.mxu0 0
    %4392 = vmatprep.subr.bf16.mxu0 0
    %4393 = vmatpush1.bf16.msra.mxu0 0
    %4394 = vmatprep.subr.bf16.mxu0 0
    %4395 = vmatpush1.bf16.msra.mxu0 0
    %4396 = vmatprep.subr.bf16.mxu0 0
    %4397 = vmatpush1.bf16.msra.mxu0 0
    %4398 = vmatprep.subr.bf16.mxu0 0
    %4399 = vmatpush1.bf16.msra.mxu0 0
    %4400 = vmatprep.mubr.bf16.mxu0 0
    %4401 = vmatmul.mubr.bf16.gmra.mrb[0].mxu0 %v3937
    %v4402 = vpop.f32.mrb[0].mxu0
    %v4403 = vadd.f32 %v4321, %v4402
    %v4404 = vpop.f32.mrb[0].mxu0
    %v4405 = vadd.f32 %v4323, %v4404
    %v4406 = vpop.f32.mrb[0].mxu0
    %v4407 = vpop.f32.mrb[0].mxu0
    %4408 = vdwg.mxu0
    %v4409 = vadd.f32 %v4362, %v2384
    %v4410 = vadd.f32 %v4364, %v2388
    %v4411 = vadd.f32 %v4403, %v2392
    %v4412 = vadd.f32 %v4405, %v2396
    %v4413 = vxor.u32 %v4409, 2147483648
    %v4414 = vxor.u32 %v4410, 2147483648
    %v4415 = vmul.f32 %v4413, 1.442695
    %v4416 = vpow.pop %v4415
    %v4417 = vmul.f32 %v4414, 1.442695
    %v4418 = vpow.pop %v4417
    %v4419 = vadd.f32 %v4416, 1.0
    %v4420 = vadd.f32 %v4418, 1.0
    %v4421 = vrcp.pop %v4419
    %v4422 = vmul.f32 1.0, %v4421
    %v4423 = vrcp.pop %v4420
    %v4424 = vmul.f32 1.0, %v4423
    %v4425 = vtanh.pop %v4411
    %v4426 = vxor.u32 %v4412, 2147483648
    %v4427 = vmul.f32 %v4426, 1.442695
    %v4428 = vpow.pop %v4427
    %v4429 = vadd.f32 %v4428, 1.0
    %v4430 = vrcp.pop %v4429
    %v4431 = vmul.f32 1.0, %v4430
    %v4432 = vmul.f32 %v4424, %v3932
    %v4433 = vmul.f32 %v4422, %v4425
    %v4434 = vadd.f32 %v4432, %v4433
    %v4435 = vtanh.pop %v4434
    %v4436 = vmul.f32 %v4431, %v4435
    %4437 = vst [vmem:[#allocation3 + $0x20] sm:$0xff] %v4436
    %v4438 = vpack.c.bf16 %v4052, %v4052
    %v4439 = vpack.c.bf16 %v4244, %v4244
    %v4440 = vpack.c.bf16 %v4436, %v4436
    %v4441 = vld [vmem:[#allocation2 + $0xe0] sm:$0xff]
    %v4442 = vld [vmem:[#allocation2 + $0xe8] sm:$0xff]
    %v4443 = vld [vmem:[#allocation2 + $0xf0] sm:$0xff]
    %v4444 = vld [vmem:[#allocation2 + $0xf8] sm:$0xff]
    %4445 = vmatprep.subr.bf16.mxu0 %v765
    %4446 = vmatpush1.bf16.msra.mxu0 %v764
    %4447 = vmatprep.subr.bf16.mxu0 %v769
    %4448 = vmatpush1.bf16.msra.mxu0 %v768
    %4449 = vmatprep.subr.bf16.mxu0 %v773
    %4450 = vmatpush1.bf16.msra.mxu0 %v772
    %4451 = vmatprep.subr.bf16.mxu0 %v777
    %4452 = vmatpush1.bf16.msra.mxu0 %v776
    %4453 = vmatprep.subr.bf16.mxu0 %v781
    %4454 = vmatpush1.bf16.msra.mxu0 %v780
    %4455 = vmatprep.subr.bf16.mxu0 %v785
    %4456 = vmatpush1.bf16.msra.mxu0 %v784
    %4457 = vmatprep.subr.bf16.mxu0 %v789
    %4458 = vmatpush1.bf16.msra.mxu0 %v788
    %4459 = vmatprep.subr.bf16.mxu0 %v793
    %4460 = vmatpush1.bf16.msra.mxu0 %v792
    %4461 = vmatprep.subr.bf16.mxu0 0
    %4462 = vmatpush1.bf16.msra.mxu0 0
    %4463 = vmatprep.subr.bf16.mxu0 0
    %4464 = vmatpush1.bf16.msra.mxu0 0
    %4465 = vmatprep.subr.bf16.mxu0 0
    %4466 = vmatpush1.bf16.msra.mxu0 0
    %4467 = vmatprep.subr.bf16.mxu0 0
    %4468 = vmatpush1.bf16.msra.mxu0 0
    %4469 = vmatprep.subr.bf16.mxu0 0
    %4470 = vmatpush1.bf16.msra.mxu0 0
    %4471 = vmatprep.subr.bf16.mxu0 0
    %4472 = vmatpush1.bf16.msra.mxu0 0
    %4473 = vmatprep.subr.bf16.mxu0 0
    %4474 = vmatpush1.bf16.msra.mxu0 0
    %4475 = vmatprep.subr.bf16.mxu0 0
    %4476 = vmatpush1.bf16.msra.mxu0 0
    %4477 = vmatprep.mubr.bf16.mxu0 0
    %4478 = vmatmul.mubr.bf16.gmra.mrb[0].mxu0 %v4438
    %v4479 = vpop.f32.mrb[0].mxu0
    %v4480 = vadd.f32 0.0, %v4479
    %v4481 = vpop.f32.mrb[0].mxu0
    %v4482 = vadd.f32 0.0, %v4481
    %v4483 = vpop.f32.mrb[0].mxu0
    %v4484 = vpop.f32.mrb[0].mxu0
    %4485 = vdwg.mxu0
    %4486 = vmatprep.subr.bf16.mxu0 %v767
    %4487 = vmatpush1.bf16.msra.mxu0 %v766
    %4488 = vmatprep.subr.bf16.mxu0 %v771
    %4489 = vmatpush1.bf16.msra.mxu0 %v770
    %4490 = vmatprep.subr.bf16.mxu0 %v775
    %4491 = vmatpush1.bf16.msra.mxu0 %v774
    %4492 = vmatprep.subr.bf16.mxu0 %v779
    %4493 = vmatpush1.bf16.msra.mxu0 %v778
    %4494 = vmatprep.subr.bf16.mxu0 %v783
    %4495 = vmatpush1.bf16.msra.mxu0 %v782
    %4496 = vmatprep.subr.bf16.mxu0 %v787
    %4497 = vmatpush1.bf16.msra.mxu0 %v786
    %4498 = vmatprep.subr.bf16.mxu0 %v791
    %4499 = vmatpush1.bf16.msra.mxu0 %v790
    %4500 = vmatprep.subr.bf16.mxu0 %v795
    %4501 = vmatpush1.bf16.msra.mxu0 %v794
    %4502 = vmatprep.subr.bf16.mxu0 0
    %4503 = vmatpush1.bf16.msra.mxu0 0
    %4504 = vmatprep.subr.bf16.mxu0 0
    %4505 = vmatpush1.bf16.msra.mxu0 0
    %4506 = vmatprep.subr.bf16.mxu0 0
    %4507 = vmatpush1.bf16.msra.mxu0 0
    %4508 = vmatprep.subr.bf16.mxu0 0
    %4509 = vmatpush1.bf16.msra.mxu0 0
    %4510 = vmatprep.subr.bf16.mxu0 0
    %4511 = vmatpush1.bf16.msra.mxu0 0
    %4512 = vmatprep.subr.bf16.mxu0 0
    %4513 = vmatpush1.bf16.msra.mxu0 0
    %4514 = vmatprep.subr.bf16.mxu0 0
    %4515 = vmatpush1.bf16.msra.mxu0 0
    %4516 = vmatprep.subr.bf16.mxu0 0
    %4517 = vmatpush1.bf16.msra.mxu0 0
    %4518 = vmatprep.mubr.bf16.mxu0 0
    %4519 = vmatmul.mubr.bf16.gmra.mrb[0].mxu0 %v4438
    %v4520 = vpop.f32.mrb[0].mxu0
    %v4521 = vadd.f32 0.0, %v4520
    %v4522 = vpop.f32.mrb[0].mxu0
    %v4523 = vadd.f32 0.0, %v4522
    %v4524 = vpop.f32.mrb[0].mxu0
    %v4525 = vpop.f32.mrb[0].mxu0
    %4526 = vdwg.mxu0
    %v4527 = vadd.f32 %v4441, %v4480
    %v4528 = vadd.f32 %v4442, %v4482
    %v4529 = vadd.f32 %v4443, %v4521
    %v4530 = vadd.f32 %v4444, %v4523
    %v4531 = vxor.u32 %v4527, 2147483648
    %v4532 = vxor.u32 %v4528, 2147483648
    %v4533 = vmul.f32 %v4531, 1.442695
    %v4534 = vpow.pop %v4533
    %v4535 = vmul.f32 %v4532, 1.442695
    %v4536 = vpow.pop %v4535
    %v4537 = vadd.f32 %v4534, 1.0
    %v4538 = vadd.f32 %v4536, 1.0
    %v4539 = vrcp.pop %v4537
    %v4540 = vmul.f32 1.0, %v4539
    %v4541 = vrcp.pop %v4538
    %v4542 = vmul.f32 1.0, %v4541
    %v4543 = vtanh.pop %v4529
    %v4544 = vxor.u32 %v4530, 2147483648
    %v4545 = vmul.f32 %v4544, 1.442695
    %v4546 = vpow.pop %v4545
    %v4547 = vadd.f32 %v4546, 1.0
    %v4548 = vrcp.pop %v4547
    %v4549 = vmul.f32 1.0, %v4548
    %v4550 = vmul.f32 %v4542, %v4050
    %v4551 = vmul.f32 %v4540, %v4543
    %v4552 = vadd.f32 %v4550, %v4551
    %v4553 = vtanh.pop %v4552
    %v4554 = vmul.f32 %v4549, %v4553
    %4555 = vmatprep.subr.bf16.mxu0 %v1151
    %4556 = vmatpush1.bf16.msra.mxu0 %v1150
    %4557 = vmatprep.subr.bf16.mxu0 %v1155
    %4558 = vmatpush1.bf16.msra.mxu0 %v1154
    %4559 = vmatprep.subr.bf16.mxu0 %v1159
    %4560 = vmatpush1.bf16.msra.mxu0 %v1158
    %4561 = vmatprep.subr.bf16.mxu0 %v1163
    %4562 = vmatpush1.bf16.msra.mxu0 %v1162
    %4563 = vmatprep.subr.bf16.mxu0 %v1167
    %4564 = vmatpush1.bf16.msra.mxu0 %v1166
    %4565 = vmatprep.subr.bf16.mxu0 %v1171
    %4566 = vmatpush1.bf16.msra.mxu0 %v1170
    %4567 = vmatprep.subr.bf16.mxu0 %v1175
    %4568 = vmatpush1.bf16.msra.mxu0 %v1174
    %4569 = vmatprep.subr.bf16.mxu0 %v1179
    %4570 = vmatpush1.bf16.msra.mxu0 %v1178
    %4571 = vmatprep.subr.bf16.mxu0 0
    %4572 = vmatpush1.bf16.msra.mxu0 0
    %4573 = vmatprep.subr.bf16.mxu0 0
    %4574 = vmatpush1.bf16.msra.mxu0 0
    %4575 = vmatprep.subr.bf16.mxu0 0
    %4576 = vmatpush1.bf16.msra.mxu0 0
    %4577 = vmatprep.subr.bf16.mxu0 0
    %4578 = vmatpush1.bf16.msra.mxu0 0
    %4579 = vmatprep.subr.bf16.mxu0 0
    %4580 = vmatpush1.bf16.msra.mxu0 0
    %4581 = vmatprep.subr.bf16.mxu0 0
    %4582 = vmatpush1.bf16.msra.mxu0 0
    %4583 = vmatprep.subr.bf16.mxu0 0
    %4584 = vmatpush1.bf16.msra.mxu0 0
    %4585 = vmatprep.subr.bf16.mxu0 0
    %4586 = vmatpush1.bf16.msra.mxu0 0
    %4587 = vmatprep.mubr.bf16.mxu0 0
    %4588 = vmatmul.mubr.bf16.gmra.mrb[0].mxu0 %v4439
    %v4589 = vpop.f32.mrb[0].mxu0
    %v4590 = vadd.f32 0.0, %v4589
    %v4591 = vpop.f32.mrb[0].mxu0
    %v4592 = vadd.f32 0.0, %v4591
    %v4593 = vpop.f32.mrb[0].mxu0
    %v4594 = vpop.f32.mrb[0].mxu0
    %4595 = vdwg.mxu0
    %4596 = vmatprep.subr.bf16.mxu0 %v1153
    %4597 = vmatpush1.bf16.msra.mxu0 %v1152
    %4598 = vmatprep.subr.bf16.mxu0 %v1157
    %4599 = vmatpush1.bf16.msra.mxu0 %v1156
    %4600 = vmatprep.subr.bf16.mxu0 %v1161
    %4601 = vmatpush1.bf16.msra.mxu0 %v1160
    %4602 = vmatprep.subr.bf16.mxu0 %v1165
    %4603 = vmatpush1.bf16.msra.mxu0 %v1164
    %4604 = vmatprep.subr.bf16.mxu0 %v1169
    %4605 = vmatpush1.bf16.msra.mxu0 %v1168
    %4606 = vmatprep.subr.bf16.mxu0 %v1173
    %4607 = vmatpush1.bf16.msra.mxu0 %v1172
    %4608 = vmatprep.subr.bf16.mxu0 %v1177
    %4609 = vmatpush1.bf16.msra.mxu0 %v1176
    %4610 = vmatprep.subr.bf16.mxu0 %v1181
    %4611 = vmatpush1.bf16.msra.mxu0 %v1180
    %4612 = vmatprep.subr.bf16.mxu0 0
    %4613 = vmatpush1.bf16.msra.mxu0 0
    %4614 = vmatprep.subr.bf16.mxu0 0
    %4615 = vmatpush1.bf16.msra.mxu0 0
    %4616 = vmatprep.subr.bf16.mxu0 0
    %4617 = vmatpush1.bf16.msra.mxu0 0
    %4618 = vmatprep.subr.bf16.mxu0 0
    %4619 = vmatpush1.bf16.msra.mxu0 0
    %4620 = vmatprep.subr.bf16.mxu0 0
    %4621 = vmatpush1.bf16.msra.mxu0 0
    %4622 = vmatprep.subr.bf16.mxu0 0
    %4623 = vmatpush1.bf16.msra.mxu0 0
    %4624 = vmatprep.subr.bf16.mxu0 0
    %4625 = vmatpush1.bf16.msra.mxu0 0
    %4626 = vmatprep.subr.bf16.mxu0 0
    %4627 = vmatpush1.bf16.msra.mxu0 0
    %4628 = vmatprep.mubr.bf16.mxu0 0
    %4629 = vmatmul.mubr.bf16.gmra.mrb[0].mxu0 %v4439
    %v4630 = vpop.f32.mrb[0].mxu0
    %v4631 = vadd.f32 0.0, %v4630
    %v4632 = vpop.f32.mrb[0].mxu0
    %v4633 = vadd.f32 0.0, %v4632
    %v4634 = vpop.f32.mrb[0].mxu0
    %v4635 = vpop.f32.mrb[0].mxu0
    %4636 = vdwg.mxu0
    %4637 = vmatprep.subr.bf16.mxu0 %v1393
    %4638 = vmatpush1.bf16.msra.mxu0 %v1392
    %4639 = vmatprep.subr.bf16.mxu0 %v1397
    %4640 = vmatpush1.bf16.msra.mxu0 %v1396
    %4641 = vmatprep.subr.bf16.mxu0 %v1401
    %4642 = vmatpush1.bf16.msra.mxu0 %v1400
    %4643 = vmatprep.subr.bf16.mxu0 %v1405
    %4644 = vmatpush1.bf16.msra.mxu0 %v1404
    %4645 = vmatprep.subr.bf16.mxu0 %v1409
    %4646 = vmatpush1.bf16.msra.mxu0 %v1408
    %4647 = vmatprep.subr.bf16.mxu0 %v1413
    %4648 = vmatpush1.bf16.msra.mxu0 %v1412
    %4649 = vmatprep.subr.bf16.mxu0 %v1417
    %4650 = vmatpush1.bf16.msra.mxu0 %v1416
    %4651 = vmatprep.subr.bf16.mxu0 %v1421
    %4652 = vmatpush1.bf16.msra.mxu0 %v1420
    %4653 = vmatprep.subr.bf16.mxu0 0
    %4654 = vmatpush1.bf16.msra.mxu0 0
    %4655 = vmatprep.subr.bf16.mxu0 0
    %4656 = vmatpush1.bf16.msra.mxu0 0
    %4657 = vmatprep.subr.bf16.mxu0 0
    %4658 = vmatpush1.bf16.msra.mxu0 0
    %4659 = vmatprep.subr.bf16.mxu0 0
    %4660 = vmatpush1.bf16.msra.mxu0 0
    %4661 = vmatprep.subr.bf16.mxu0 0
    %4662 = vmatpush1.bf16.msra.mxu0 0
    %4663 = vmatprep.subr.bf16.mxu0 0
    %4664 = vmatpush1.bf16.msra.mxu0 0
    %4665 = vmatprep.subr.bf16.mxu0 0
    %4666 = vmatpush1.bf16.msra.mxu0 0
    %4667 = vmatprep.subr.bf16.mxu0 0
    %4668 = vmatpush1.bf16.msra.mxu0 0
    %4669 = vmatprep.mubr.bf16.mxu0 0
    %4670 = vmatmul.mubr.bf16.gmra.mrb[0].mxu0 %v4438
    %v4671 = vpop.f32.mrb[0].mxu0
    %v4672 = vadd.f32 %v4590, %v4671
    %v4673 = vpop.f32.mrb[0].mxu0
    %v4674 = vadd.f32 %v4592, %v4673
    %v4675 = vpop.f32.mrb[0].mxu0
    %v4676 = vpop.f32.mrb[0].mxu0
    %4677 = vdwg.mxu0
    %4678 = vmatprep.subr.bf16.mxu0 %v1395
    %4679 = vmatpush1.bf16.msra.mxu0 %v1394
    %4680 = vmatprep.subr.bf16.mxu0 %v1399
    %4681 = vmatpush1.bf16.msra.mxu0 %v1398
    %4682 = vmatprep.subr.bf16.mxu0 %v1403
    %4683 = vmatpush1.bf16.msra.mxu0 %v1402
    %4684 = vmatprep.subr.bf16.mxu0 %v1407
    %4685 = vmatpush1.bf16.msra.mxu0 %v1406
    %4686 = vmatprep.subr.bf16.mxu0 %v1411
    %4687 = vmatpush1.bf16.msra.mxu0 %v1410
    %4688 = vmatprep.subr.bf16.mxu0 %v1415
    %4689 = vmatpush1.bf16.msra.mxu0 %v1414
    %4690 = vmatprep.subr.bf16.mxu0 %v1419
    %4691 = vmatpush1.bf16.msra.mxu0 %v1418
    %4692 = vmatprep.subr.bf16.mxu0 %v1423
    %4693 = vmatpush1.bf16.msra.mxu0 %v1422
    %4694 = vmatprep.subr.bf16.mxu0 0
    %4695 = vmatpush1.bf16.msra.mxu0 0
    %4696 = vmatprep.subr.bf16.mxu0 0
    %4697 = vmatpush1.bf16.msra.mxu0 0
    %4698 = vmatprep.subr.bf16.mxu0 0
    %4699 = vmatpush1.bf16.msra.mxu0 0
    %4700 = vmatprep.subr.bf16.mxu0 0
    %4701 = vmatpush1.bf16.msra.mxu0 0
    %4702 = vmatprep.subr.bf16.mxu0 0
    %4703 = vmatpush1.bf16.msra.mxu0 0
    %4704 = vmatprep.subr.bf16.mxu0 0
    %4705 = vmatpush1.bf16.msra.mxu0 0
    %4706 = vmatprep.subr.bf16.mxu0 0
    %4707 = vmatpush1.bf16.msra.mxu0 0
    %4708 = vmatprep.subr.bf16.mxu0 0
    %4709 = vmatpush1.bf16.msra.mxu0 0
    %4710 = vmatprep.mubr.bf16.mxu0 0
    %4711 = vmatmul.mubr.bf16.gmra.mrb[0].mxu0 %v4438
    %v4712 = vpop.f32.mrb[0].mxu0
    %v4713 = vadd.f32 %v4631, %v4712
    %v4714 = vpop.f32.mrb[0].mxu0
    %v4715 = vadd.f32 %v4633, %v4714
    %v4716 = vpop.f32.mrb[0].mxu0
    %v4717 = vpop.f32.mrb[0].mxu0
    %4718 = vdwg.mxu0
    %v4719 = vadd.f32 %v4672, %v1542
    %v4720 = vadd.f32 %v4674, %v1546
    %v4721 = vadd.f32 %v4713, %v1550
    %v4722 = vadd.f32 %v4715, %v1554
    %v4723 = vxor.u32 %v4719, 2147483648
    %v4724 = vxor.u32 %v4720, 2147483648
    %v4725 = vmul.f32 %v4723, 1.442695
    %v4726 = vpow.pop %v4725
    %v4727 = vmul.f32 %v4724, 1.442695
    %v4728 = vpow.pop %v4727
    %v4729 = vadd.f32 %v4726, 1.0
    %v4730 = vadd.f32 %v4728, 1.0
    %v4731 = vrcp.pop %v4729
    %v4732 = vmul.f32 1.0, %v4731
    %v4733 = vrcp.pop %v4730
    %v4734 = vmul.f32 1.0, %v4733
    %v4735 = vtanh.pop %v4721
    %v4736 = vxor.u32 %v4722, 2147483648
    %v4737 = vmul.f32 %v4736, 1.442695
    %v4738 = vpow.pop %v4737
    %v4739 = vadd.f32 %v4738, 1.0
    %v4740 = vrcp.pop %v4739
    %v4741 = vmul.f32 1.0, %v4740
    %v4742 = vmul.f32 %v4734, %v4242
    %v4743 = vmul.f32 %v4732, %v4735
    %v4744 = vadd.f32 %v4742, %v4743
    %v4745 = vtanh.pop %v4744
    %v4746 = vmul.f32 %v4741, %v4745
    %4747 = vmatprep.subr.bf16.mxu0 %v1993
    %4748 = vmatpush1.bf16.msra.mxu0 %v1992
    %4749 = vmatprep.subr.bf16.mxu0 %v1997
    %4750 = vmatpush1.bf16.msra.mxu0 %v1996
    %4751 = vmatprep.subr.bf16.mxu0 %v2001
    %4752 = vmatpush1.bf16.msra.mxu0 %v2000
    %4753 = vmatprep.subr.bf16.mxu0 %v2005
    %4754 = vmatpush1.bf16.msra.mxu0 %v2004
    %4755 = vmatprep.subr.bf16.mxu0 %v2009
    %4756 = vmatpush1.bf16.msra.mxu0 %v2008
    %4757 = vmatprep.subr.bf16.mxu0 %v2013
    %4758 = vmatpush1.bf16.msra.mxu0 %v2012
    %4759 = vmatprep.subr.bf16.mxu0 %v2017
    %4760 = vmatpush1.bf16.msra.mxu0 %v2016
    %4761 = vmatprep.subr.bf16.mxu0 %v2021
    %4762 = vmatpush1.bf16.msra.mxu0 %v2020
    %4763 = vmatprep.subr.bf16.mxu0 0
    %4764 = vmatpush1.bf16.msra.mxu0 0
    %4765 = vmatprep.subr.bf16.mxu0 0
    %4766 = vmatpush1.bf16.msra.mxu0 0
    %4767 = vmatprep.subr.bf16.mxu0 0
    %4768 = vmatpush1.bf16.msra.mxu0 0
    %4769 = vmatprep.subr.bf16.mxu0 0
    %4770 = vmatpush1.bf16.msra.mxu0 0
    %4771 = vmatprep.subr.bf16.mxu0 0
    %4772 = vmatpush1.bf16.msra.mxu0 0
    %4773 = vmatprep.subr.bf16.mxu0 0
    %4774 = vmatpush1.bf16.msra.mxu0 0
    %4775 = vmatprep.subr.bf16.mxu0 0
    %4776 = vmatpush1.bf16.msra.mxu0 0
    %4777 = vmatprep.subr.bf16.mxu0 0
    %4778 = vmatpush1.bf16.msra.mxu0 0
    %4779 = vmatprep.mubr.bf16.mxu0 0
    %4780 = vmatmul.mubr.bf16.gmra.mrb[0].mxu0 %v4440
    %v4781 = vpop.f32.mrb[0].mxu0
    %v4782 = vadd.f32 0.0, %v4781
    %v4783 = vpop.f32.mrb[0].mxu0
    %v4784 = vadd.f32 0.0, %v4783
    %v4785 = vpop.f32.mrb[0].mxu0
    %v4786 = vpop.f32.mrb[0].mxu0
    %4787 = vdwg.mxu0
    %4788 = vmatprep.subr.bf16.mxu0 %v1995
    %4789 = vmatpush1.bf16.msra.mxu0 %v1994
    %4790 = vmatprep.subr.bf16.mxu0 %v1999
    %4791 = vmatpush1.bf16.msra.mxu0 %v1998
    %4792 = vmatprep.subr.bf16.mxu0 %v2003
    %4793 = vmatpush1.bf16.msra.mxu0 %v2002
    %4794 = vmatprep.subr.bf16.mxu0 %v2007
    %4795 = vmatpush1.bf16.msra.mxu0 %v2006
    %4796 = vmatprep.subr.bf16.mxu0 %v2011
    %4797 = vmatpush1.bf16.msra.mxu0 %v2010
    %4798 = vmatprep.subr.bf16.mxu0 %v2015
    %4799 = vmatpush1.bf16.msra.mxu0 %v2014
    %4800 = vmatprep.subr.bf16.mxu0 %v2019
    %4801 = vmatpush1.bf16.msra.mxu0 %v2018
    %4802 = vmatprep.subr.bf16.mxu0 %v2023
    %4803 = vmatpush1.bf16.msra.mxu0 %v2022
    %4804 = vmatprep.subr.bf16.mxu0 0
    %4805 = vmatpush1.bf16.msra.mxu0 0
    %4806 = vmatprep.subr.bf16.mxu0 0
    %4807 = vmatpush1.bf16.msra.mxu0 0
    %4808 = vmatprep.subr.bf16.mxu0 0
    %4809 = vmatpush1.bf16.msra.mxu0 0
    %4810 = vmatprep.subr.bf16.mxu0 0
    %4811 = vmatpush1.bf16.msra.mxu0 0
    %4812 = vmatprep.subr.bf16.mxu0 0
    %4813 = vmatpush1.bf16.msra.mxu0 0
    %4814 = vmatprep.subr.bf16.mxu0 0
    %4815 = vmatpush1.bf16.msra.mxu0 0
    %4816 = vmatprep.subr.bf16.mxu0 0
    %4817 = vmatpush1.bf16.msra.mxu0 0
    %4818 = vmatprep.subr.bf16.mxu0 0
    %4819 = vmatpush1.bf16.msra.mxu0 0
    %4820 = vmatprep.mubr.bf16.mxu0 0
    %4821 = vmatmul.mubr.bf16.gmra.mrb[0].mxu0 %v4440
    %v4822 = vpop.f32.mrb[0].mxu0
    %v4823 = vadd.f32 0.0, %v4822
    %v4824 = vpop.f32.mrb[0].mxu0
    %v4825 = vadd.f32 0.0, %v4824
    %v4826 = vpop.f32.mrb[0].mxu0
    %v4827 = vpop.f32.mrb[0].mxu0
    %4828 = vdwg.mxu0
    %4829 = vmatprep.subr.bf16.mxu0 %v2235
    %4830 = vmatpush1.bf16.msra.mxu0 %v2234
    %4831 = vmatprep.subr.bf16.mxu0 %v2239
    %4832 = vmatpush1.bf16.msra.mxu0 %v2238
    %4833 = vmatprep.subr.bf16.mxu0 %v2243
    %4834 = vmatpush1.bf16.msra.mxu0 %v2242
    %4835 = vmatprep.subr.bf16.mxu0 %v2247
    %4836 = vmatpush1.bf16.msra.mxu0 %v2246
    %4837 = vmatprep.subr.bf16.mxu0 %v2251
    %4838 = vmatpush1.bf16.msra.mxu0 %v2250
    %4839 = vmatprep.subr.bf16.mxu0 %v2255
    %4840 = vmatpush1.bf16.msra.mxu0 %v2254
    %4841 = vmatprep.subr.bf16.mxu0 %v2259
    %4842 = vmatpush1.bf16.msra.mxu0 %v2258
    %4843 = vmatprep.subr.bf16.mxu0 %v2263
    %4844 = vmatpush1.bf16.msra.mxu0 %v2262
    %4845 = vmatprep.subr.bf16.mxu0 0
    %4846 = vmatpush1.bf16.msra.mxu0 0
    %4847 = vmatprep.subr.bf16.mxu0 0
    %4848 = vmatpush1.bf16.msra.mxu0 0
    %4849 = vmatprep.subr.bf16.mxu0 0
    %4850 = vmatpush1.bf16.msra.mxu0 0
    %4851 = vmatprep.subr.bf16.mxu0 0
    %4852 = vmatpush1.bf16.msra.mxu0 0
    %4853 = vmatprep.subr.bf16.mxu0 0
    %4854 = vmatpush1.bf16.msra.mxu0 0
    %4855 = vmatprep.subr.bf16.mxu0 0
    %4856 = vmatpush1.bf16.msra.mxu0 0
    %4857 = vmatprep.subr.bf16.mxu0 0
    %4858 = vmatpush1.bf16.msra.mxu0 0
    %4859 = vmatprep.subr.bf16.mxu0 0
    %4860 = vmatpush1.bf16.msra.mxu0 0
    %4861 = vmatprep.mubr.bf16.mxu0 0
    %4862 = vmatmul.mubr.bf16.gmra.mrb[0].mxu0 %v4439
    %v4863 = vpop.f32.mrb[0].mxu0
    %v4864 = vadd.f32 %v4782, %v4863
    %v4865 = vpop.f32.mrb[0].mxu0
    %v4866 = vadd.f32 %v4784, %v4865
    %v4867 = vpop.f32.mrb[0].mxu0
    %v4868 = vpop.f32.mrb[0].mxu0
    %4869 = vdwg.mxu0
    %4870 = vmatprep.subr.bf16.mxu0 %v2237
    %4871 = vmatpush1.bf16.msra.mxu0 %v2236
    %4872 = vmatprep.subr.bf16.mxu0 %v2241
    %4873 = vmatpush1.bf16.msra.mxu0 %v2240
    %4874 = vmatprep.subr.bf16.mxu0 %v2245
    %4875 = vmatpush1.bf16.msra.mxu0 %v2244
    %4876 = vmatprep.subr.bf16.mxu0 %v2249
    %4877 = vmatpush1.bf16.msra.mxu0 %v2248
    %4878 = vmatprep.subr.bf16.mxu0 %v2253
    %4879 = vmatpush1.bf16.msra.mxu0 %v2252
    %4880 = vmatprep.subr.bf16.mxu0 %v2257
    %4881 = vmatpush1.bf16.msra.mxu0 %v2256
    %4882 = vmatprep.subr.bf16.mxu0 %v2261
    %4883 = vmatpush1.bf16.msra.mxu0 %v2260
    %4884 = vmatprep.subr.bf16.mxu0 %v2265
    %4885 = vmatpush1.bf16.msra.mxu0 %v2264
    %4886 = vmatprep.subr.bf16.mxu0 0
    %4887 = vmatpush1.bf16.msra.mxu0 0
    %4888 = vmatprep.subr.bf16.mxu0 0
    %4889 = vmatpush1.bf16.msra.mxu0 0
    %4890 = vmatprep.subr.bf16.mxu0 0
    %4891 = vmatpush1.bf16.msra.mxu0 0
    %4892 = vmatprep.subr.bf16.mxu0 0
    %4893 = vmatpush1.bf16.msra.mxu0 0
    %4894 = vmatprep.subr.bf16.mxu0 0
    %4895 = vmatpush1.bf16.msra.mxu0 0
    %4896 = vmatprep.subr.bf16.mxu0 0
    %4897 = vmatpush1.bf16.msra.mxu0 0
    %4898 = vmatprep.subr.bf16.mxu0 0
    %4899 = vmatpush1.bf16.msra.mxu0 0
    %4900 = vmatprep.subr.bf16.mxu0 0
    %4901 = vmatpush1.bf16.msra.mxu0 0
    %4902 = vmatprep.mubr.bf16.mxu0 0
    %4903 = vmatmul.mubr.bf16.gmra.mrb[0].mxu0 %v4439
    %v4904 = vpop.f32.mrb[0].mxu0
    %v4905 = vadd.f32 %v4823, %v4904
    %v4906 = vpop.f32.mrb[0].mxu0
    %v4907 = vadd.f32 %v4825, %v4906
    %v4908 = vpop.f32.mrb[0].mxu0
    %v4909 = vpop.f32.mrb[0].mxu0
    %4910 = vdwg.mxu0
    %v4911 = vadd.f32 %v4864, %v2384
    %v4912 = vadd.f32 %v4866, %v2388
    %v4913 = vadd.f32 %v4905, %v2392
    %v4914 = vadd.f32 %v4907, %v2396
    %v4915 = vxor.u32 %v4911, 2147483648
    %v4916 = vxor.u32 %v4912, 2147483648
    %v4917 = vmul.f32 %v4915, 1.442695
    %v4918 = vpow.pop %v4917
    %v4919 = vmul.f32 %v4916, 1.442695
    %v4920 = vpow.pop %v4919
    %v4921 = vadd.f32 %v4918, 1.0
    %v4922 = vadd.f32 %v4920, 1.0
    %v4923 = vrcp.pop %v4921
    %v4924 = vmul.f32 1.0, %v4923
    %v4925 = vrcp.pop %v4922
    %v4926 = vmul.f32 1.0, %v4925
    %v4927 = vtanh.pop %v4913
    %v4928 = vxor.u32 %v4914, 2147483648
    %v4929 = vmul.f32 %v4928, 1.442695
    %v4930 = vpow.pop %v4929
    %v4931 = vadd.f32 %v4930, 1.0
    %v4932 = vrcp.pop %v4931
    %v4933 = vmul.f32 1.0, %v4932
    %v4934 = vmul.f32 %v4926, %v4434
    %v4935 = vmul.f32 %v4924, %v4927
    %v4936 = vadd.f32 %v4934, %v4935
    %v4937 = vtanh.pop %v4936
    %v4938 = vmul.f32 %v4933, %v4937
    %4939 = vst [vmem:[#allocation3 + $0x28] sm:$0xff] %v4938
    %v4940 = vpack.c.bf16 %v4554, %v4554
    %v4941 = vpack.c.bf16 %v4746, %v4746
    %v4942 = vpack.c.bf16 %v4938, %v4938
    %4943 = vmatprep.subr.bf16.mxu0 %v1151
    %4944 = vmatpush1.bf16.msra.mxu0 %v1150
    %4945 = vmatprep.subr.bf16.mxu0 %v1155
    %4946 = vmatpush1.bf16.msra.mxu0 %v1154
    %4947 = vmatprep.subr.bf16.mxu0 %v1159
    %4948 = vmatpush1.bf16.msra.mxu0 %v1158
    %4949 = vmatprep.subr.bf16.mxu0 %v1163
    %4950 = vmatpush1.bf16.msra.mxu0 %v1162
    %4951 = vmatprep.subr.bf16.mxu0 %v1167
    %4952 = vmatpush1.bf16.msra.mxu0 %v1166
    %4953 = vmatprep.subr.bf16.mxu0 %v1171
    %4954 = vmatpush1.bf16.msra.mxu0 %v1170
    %4955 = vmatprep.subr.bf16.mxu0 %v1175
    %4956 = vmatpush1.bf16.msra.mxu0 %v1174
    %4957 = vmatprep.subr.bf16.mxu0 %v1179
    %4958 = vmatpush1.bf16.msra.mxu0 %v1178
    %4959 = vmatprep.subr.bf16.mxu0 0
    %4960 = vmatpush1.bf16.msra.mxu0 0
    %4961 = vmatprep.subr.bf16.mxu0 0
    %4962 = vmatpush1.bf16.msra.mxu0 0
    %4963 = vmatprep.subr.bf16.mxu0 0
    %4964 = vmatpush1.bf16.msra.mxu0 0
    %4965 = vmatprep.subr.bf16.mxu0 0
    %4966 = vmatpush1.bf16.msra.mxu0 0
    %4967 = vmatprep.subr.bf16.mxu0 0
    %4968 = vmatpush1.bf16.msra.mxu0 0
    %4969 = vmatprep.subr.bf16.mxu0 0
    %4970 = vmatpush1.bf16.msra.mxu0 0
    %4971 = vmatprep.subr.bf16.mxu0 0
    %4972 = vmatpush1.bf16.msra.mxu0 0
    %4973 = vmatprep.subr.bf16.mxu0 0
    %4974 = vmatpush1.bf16.msra.mxu0 0
    %4975 = vmatprep.mubr.bf16.mxu0 0
    %4976 = vmatmul.mubr.bf16.gmra.mrb[0].mxu0 %v4941
    %v4977 = vpop.f32.mrb[0].mxu0
    %v4978 = vadd.f32 0.0, %v4977
    %v4979 = vpop.f32.mrb[0].mxu0
    %v4980 = vadd.f32 0.0, %v4979
    %v4981 = vpop.f32.mrb[0].mxu0
    %v4982 = vpop.f32.mrb[0].mxu0
    %4983 = vdwg.mxu0
    %4984 = vmatprep.subr.bf16.mxu0 %v1153
    %4985 = vmatpush1.bf16.msra.mxu0 %v1152
    %4986 = vmatprep.subr.bf16.mxu0 %v1157
    %4987 = vmatpush1.bf16.msra.mxu0 %v1156
    %4988 = vmatprep.subr.bf16.mxu0 %v1161
    %4989 = vmatpush1.bf16.msra.mxu0 %v1160
    %4990 = vmatprep.subr.bf16.mxu0 %v1165
    %4991 = vmatpush1.bf16.msra.mxu0 %v1164
    %4992 = vmatprep.subr.bf16.mxu0 %v1169
    %4993 = vmatpush1.bf16.msra.mxu0 %v1168
    %4994 = vmatprep.subr.bf16.mxu0 %v1173
    %4995 = vmatpush1.bf16.msra.mxu0 %v1172
    %4996 = vmatprep.subr.bf16.mxu0 %v1177
    %4997 = vmatpush1.bf16.msra.mxu0 %v1176
    %4998 = vmatprep.subr.bf16.mxu0 %v1181
    %4999 = vmatpush1.bf16.msra.mxu0 %v1180
    %5000 = vmatprep.subr.bf16.mxu0 0
    %5001 = vmatpush1.bf16.msra.mxu0 0
    %5002 = vmatprep.subr.bf16.mxu0 0
    %5003 = vmatpush1.bf16.msra.mxu0 0
    %5004 = vmatprep.subr.bf16.mxu0 0
    %5005 = vmatpush1.bf16.msra.mxu0 0
    %5006 = vmatprep.subr.bf16.mxu0 0
    %5007 = vmatpush1.bf16.msra.mxu0 0
    %5008 = vmatprep.subr.bf16.mxu0 0
    %5009 = vmatpush1.bf16.msra.mxu0 0
    %5010 = vmatprep.subr.bf16.mxu0 0
    %5011 = vmatpush1.bf16.msra.mxu0 0
    %5012 = vmatprep.subr.bf16.mxu0 0
    %5013 = vmatpush1.bf16.msra.mxu0 0
    %5014 = vmatprep.subr.bf16.mxu0 0
    %5015 = vmatpush1.bf16.msra.mxu0 0
    %5016 = vmatprep.mubr.bf16.mxu0 0
    %5017 = vmatmul.mubr.bf16.gmra.mrb[0].mxu0 %v4941
    %v5018 = vpop.f32.mrb[0].mxu0
    %v5019 = vadd.f32 0.0, %v5018
    %v5020 = vpop.f32.mrb[0].mxu0
    %v5021 = vadd.f32 0.0, %v5020
    %v5022 = vpop.f32.mrb[0].mxu0
    %v5023 = vpop.f32.mrb[0].mxu0
    %5024 = vdwg.mxu0
    %5025 = vmatprep.subr.bf16.mxu0 %v1393
    %5026 = vmatpush1.bf16.msra.mxu0 %v1392
    %5027 = vmatprep.subr.bf16.mxu0 %v1397
    %5028 = vmatpush1.bf16.msra.mxu0 %v1396
    %5029 = vmatprep.subr.bf16.mxu0 %v1401
    %5030 = vmatpush1.bf16.msra.mxu0 %v1400
    %5031 = vmatprep.subr.bf16.mxu0 %v1405
    %5032 = vmatpush1.bf16.msra.mxu0 %v1404
    %5033 = vmatprep.subr.bf16.mxu0 %v1409
    %5034 = vmatpush1.bf16.msra.mxu0 %v1408
    %5035 = vmatprep.subr.bf16.mxu0 %v1413
    %5036 = vmatpush1.bf16.msra.mxu0 %v1412
    %5037 = vmatprep.subr.bf16.mxu0 %v1417
    %5038 = vmatpush1.bf16.msra.mxu0 %v1416
    %5039 = vmatprep.subr.bf16.mxu0 %v1421
    %5040 = vmatpush1.bf16.msra.mxu0 %v1420
    %5041 = vmatprep.subr.bf16.mxu0 0
    %5042 = vmatpush1.bf16.msra.mxu0 0
    %5043 = vmatprep.subr.bf16.mxu0 0
    %5044 = vmatpush1.bf16.msra.mxu0 0
    %5045 = vmatprep.subr.bf16.mxu0 0
    %5046 = vmatpush1.bf16.msra.mxu0 0
    %5047 = vmatprep.subr.bf16.mxu0 0
    %5048 = vmatpush1.bf16.msra.mxu0 0
    %5049 = vmatprep.subr.bf16.mxu0 0
    %5050 = vmatpush1.bf16.msra.mxu0 0
    %5051 = vmatprep.subr.bf16.mxu0 0
    %5052 = vmatpush1.bf16.msra.mxu0 0
    %5053 = vmatprep.subr.bf16.mxu0 0
    %5054 = vmatpush1.bf16.msra.mxu0 0
    %5055 = vmatprep.subr.bf16.mxu0 0
    %5056 = vmatpush1.bf16.msra.mxu0 0
    %5057 = vmatprep.mubr.bf16.mxu0 0
    %5058 = vmatmul.mubr.bf16.gmra.mrb[0].mxu0 %v4940
    %v5059 = vpop.f32.mrb[0].mxu0
    %v5060 = vadd.f32 %v4978, %v5059
    %v5061 = vpop.f32.mrb[0].mxu0
    %v5062 = vadd.f32 %v4980, %v5061
    %v5063 = vpop.f32.mrb[0].mxu0
    %v5064 = vpop.f32.mrb[0].mxu0
    %5065 = vdwg.mxu0
    %5066 = vmatprep.subr.bf16.mxu0 %v1395
    %5067 = vmatpush1.bf16.msra.mxu0 %v1394
    %5068 = vmatprep.subr.bf16.mxu0 %v1399
    %5069 = vmatpush1.bf16.msra.mxu0 %v1398
    %5070 = vmatprep.subr.bf16.mxu0 %v1403
    %5071 = vmatpush1.bf16.msra.mxu0 %v1402
    %5072 = vmatprep.subr.bf16.mxu0 %v1407
    %5073 = vmatpush1.bf16.msra.mxu0 %v1406
    %5074 = vmatprep.subr.bf16.mxu0 %v1411
    %5075 = vmatpush1.bf16.msra.mxu0 %v1410
    %5076 = vmatprep.subr.bf16.mxu0 %v1415
    %5077 = vmatpush1.bf16.msra.mxu0 %v1414
    %5078 = vmatprep.subr.bf16.mxu0 %v1419
    %5079 = vmatpush1.bf16.msra.mxu0 %v1418
    %5080 = vmatprep.subr.bf16.mxu0 %v1423
    %5081 = vmatpush1.bf16.msra.mxu0 %v1422
    %5082 = vmatprep.subr.bf16.mxu0 0
    %5083 = vmatpush1.bf16.msra.mxu0 0
    %5084 = vmatprep.subr.bf16.mxu0 0
    %5085 = vmatpush1.bf16.msra.mxu0 0
    %5086 = vmatprep.subr.bf16.mxu0 0
    %5087 = vmatpush1.bf16.msra.mxu0 0
    %5088 = vmatprep.subr.bf16.mxu0 0
    %5089 = vmatpush1.bf16.msra.mxu0 0
    %5090 = vmatprep.subr.bf16.mxu0 0
    %5091 = vmatpush1.bf16.msra.mxu0 0
    %5092 = vmatprep.subr.bf16.mxu0 0
    %5093 = vmatpush1.bf16.msra.mxu0 0
    %5094 = vmatprep.subr.bf16.mxu0 0
    %5095 = vmatpush1.bf16.msra.mxu0 0
    %5096 = vmatprep.subr.bf16.mxu0 0
    %5097 = vmatpush1.bf16.msra.mxu0 0
    %5098 = vmatprep.mubr.bf16.mxu0 0
    %5099 = vmatmul.mubr.bf16.gmra.mrb[0].mxu0 %v4940
    %v5100 = vpop.f32.mrb[0].mxu0
    %v5101 = vadd.f32 %v5019, %v5100
    %v5102 = vpop.f32.mrb[0].mxu0
    %v5103 = vadd.f32 %v5021, %v5102
    %v5104 = vpop.f32.mrb[0].mxu0
    %v5105 = vpop.f32.mrb[0].mxu0
    %5106 = vdwg.mxu0
    %v5107 = vadd.f32 %v5060, %v1542
    %v5108 = vadd.f32 %v5062, %v1546
    %v5109 = vadd.f32 %v5101, %v1550
    %v5110 = vadd.f32 %v5103, %v1554
    %v5111 = vxor.u32 %v5107, 2147483648
    %v5112 = vxor.u32 %v5108, 2147483648
    %v5113 = vmul.f32 %v5111, 1.442695
    %v5114 = vpow.pop %v5113
    %v5115 = vmul.f32 %v5112, 1.442695
    %v5116 = vpow.pop %v5115
    %v5117 = vadd.f32 %v5114, 1.0
    %v5118 = vadd.f32 %v5116, 1.0
    %v5119 = vrcp.pop %v5117
    %v5120 = vmul.f32 1.0, %v5119
    %v5121 = vrcp.pop %v5118
    %v5122 = vmul.f32 1.0, %v5121
    %v5123 = vtanh.pop %v5109
    %v5124 = vxor.u32 %v5110, 2147483648
    %v5125 = vmul.f32 %v5124, 1.442695
    %v5126 = vpow.pop %v5125
    %v5127 = vadd.f32 %v5126, 1.0
    %v5128 = vrcp.pop %v5127
    %v5129 = vmul.f32 1.0, %v5128
    %v5130 = vmul.f32 %v5122, %v4744
    %v5131 = vmul.f32 %v5120, %v5123
    %v5132 = vadd.f32 %v5130, %v5131
    %v5133 = vtanh.pop %v5132
    %v5134 = vmul.f32 %v5129, %v5133
    %5135 = vmatprep.subr.bf16.mxu0 %v1993
    %5136 = vmatpush1.bf16.msra.mxu0 %v1992
    %5137 = vmatprep.subr.bf16.mxu0 %v1997
    %5138 = vmatpush1.bf16.msra.mxu0 %v1996
    %5139 = vmatprep.subr.bf16.mxu0 %v2001
    %5140 = vmatpush1.bf16.msra.mxu0 %v2000
    %5141 = vmatprep.subr.bf16.mxu0 %v2005
    %5142 = vmatpush1.bf16.msra.mxu0 %v2004
    %5143 = vmatprep.subr.bf16.mxu0 %v2009
    %5144 = vmatpush1.bf16.msra.mxu0 %v2008
    %5145 = vmatprep.subr.bf16.mxu0 %v2013
    %5146 = vmatpush1.bf16.msra.mxu0 %v2012
    %5147 = vmatprep.subr.bf16.mxu0 %v2017
    %5148 = vmatpush1.bf16.msra.mxu0 %v2016
    %5149 = vmatprep.subr.bf16.mxu0 %v2021
    %5150 = vmatpush1.bf16.msra.mxu0 %v2020
    %5151 = vmatprep.subr.bf16.mxu0 0
    %5152 = vmatpush1.bf16.msra.mxu0 0
    %5153 = vmatprep.subr.bf16.mxu0 0
    %5154 = vmatpush1.bf16.msra.mxu0 0
    %5155 = vmatprep.subr.bf16.mxu0 0
    %5156 = vmatpush1.bf16.msra.mxu0 0
    %5157 = vmatprep.subr.bf16.mxu0 0
    %5158 = vmatpush1.bf16.msra.mxu0 0
    %5159 = vmatprep.subr.bf16.mxu0 0
    %5160 = vmatpush1.bf16.msra.mxu0 0
    %5161 = vmatprep.subr.bf16.mxu0 0
    %5162 = vmatpush1.bf16.msra.mxu0 0
    %5163 = vmatprep.subr.bf16.mxu0 0
    %5164 = vmatpush1.bf16.msra.mxu0 0
    %5165 = vmatprep.subr.bf16.mxu0 0
    %5166 = vmatpush1.bf16.msra.mxu0 0
    %5167 = vmatprep.mubr.bf16.mxu0 0
    %5168 = vmatmul.mubr.bf16.gmra.mrb[0].mxu0 %v4942
    %v5169 = vpop.f32.mrb[0].mxu0
    %v5170 = vadd.f32 0.0, %v5169
    %v5171 = vpop.f32.mrb[0].mxu0
    %v5172 = vadd.f32 0.0, %v5171
    %v5173 = vpop.f32.mrb[0].mxu0
    %v5174 = vpop.f32.mrb[0].mxu0
    %5175 = vdwg.mxu0
    %5176 = vmatprep.subr.bf16.mxu0 %v1995
    %5177 = vmatpush1.bf16.msra.mxu0 %v1994
    %5178 = vmatprep.subr.bf16.mxu0 %v1999
    %5179 = vmatpush1.bf16.msra.mxu0 %v1998
    %5180 = vmatprep.subr.bf16.mxu0 %v2003
    %5181 = vmatpush1.bf16.msra.mxu0 %v2002
    %5182 = vmatprep.subr.bf16.mxu0 %v2007
    %5183 = vmatpush1.bf16.msra.mxu0 %v2006
    %5184 = vmatprep.subr.bf16.mxu0 %v2011
    %5185 = vmatpush1.bf16.msra.mxu0 %v2010
    %5186 = vmatprep.subr.bf16.mxu0 %v2015
    %5187 = vmatpush1.bf16.msra.mxu0 %v2014
    %5188 = vmatprep.subr.bf16.mxu0 %v2019
    %5189 = vmatpush1.bf16.msra.mxu0 %v2018
    %5190 = vmatprep.subr.bf16.mxu0 %v2023
    %5191 = vmatpush1.bf16.msra.mxu0 %v2022
    %5192 = vmatprep.subr.bf16.mxu0 0
    %5193 = vmatpush1.bf16.msra.mxu0 0
    %5194 = vmatprep.subr.bf16.mxu0 0
    %5195 = vmatpush1.bf16.msra.mxu0 0
    %5196 = vmatprep.subr.bf16.mxu0 0
    %5197 = vmatpush1.bf16.msra.mxu0 0
    %5198 = vmatprep.subr.bf16.mxu0 0
    %5199 = vmatpush1.bf16.msra.mxu0 0
    %5200 = vmatprep.subr.bf16.mxu0 0
    %5201 = vmatpush1.bf16.msra.mxu0 0
    %5202 = vmatprep.subr.bf16.mxu0 0
    %5203 = vmatpush1.bf16.msra.mxu0 0
    %5204 = vmatprep.subr.bf16.mxu0 0
    %5205 = vmatpush1.bf16.msra.mxu0 0
    %5206 = vmatprep.subr.bf16.mxu0 0
    %5207 = vmatpush1.bf16.msra.mxu0 0
    %5208 = vmatprep.mubr.bf16.mxu0 0
    %5209 = vmatmul.mubr.bf16.gmra.mrb[0].mxu0 %v4942
    %v5210 = vpop.f32.mrb[0].mxu0
    %v5211 = vadd.f32 0.0, %v5210
    %v5212 = vpop.f32.mrb[0].mxu0
    %v5213 = vadd.f32 0.0, %v5212
    %v5214 = vpop.f32.mrb[0].mxu0
    %v5215 = vpop.f32.mrb[0].mxu0
    %5216 = vdwg.mxu0
    %5217 = vmatprep.subr.bf16.mxu0 %v2235
    %5218 = vmatpush1.bf16.msra.mxu0 %v2234
    %5219 = vmatprep.subr.bf16.mxu0 %v2239
    %5220 = vmatpush1.bf16.msra.mxu0 %v2238
    %5221 = vmatprep.subr.bf16.mxu0 %v2243
    %5222 = vmatpush1.bf16.msra.mxu0 %v2242
    %5223 = vmatprep.subr.bf16.mxu0 %v2247
    %5224 = vmatpush1.bf16.msra.mxu0 %v2246
    %5225 = vmatprep.subr.bf16.mxu0 %v2251
    %5226 = vmatpush1.bf16.msra.mxu0 %v2250
    %5227 = vmatprep.subr.bf16.mxu0 %v2255
    %5228 = vmatpush1.bf16.msra.mxu0 %v2254
    %5229 = vmatprep.subr.bf16.mxu0 %v2259
    %5230 = vmatpush1.bf16.msra.mxu0 %v2258
    %5231 = vmatprep.subr.bf16.mxu0 %v2263
    %5232 = vmatpush1.bf16.msra.mxu0 %v2262
    %5233 = vmatprep.subr.bf16.mxu0 0
    %5234 = vmatpush1.bf16.msra.mxu0 0
    %5235 = vmatprep.subr.bf16.mxu0 0
    %5236 = vmatpush1.bf16.msra.mxu0 0
    %5237 = vmatprep.subr.bf16.mxu0 0
    %5238 = vmatpush1.bf16.msra.mxu0 0
    %5239 = vmatprep.subr.bf16.mxu0 0
    %5240 = vmatpush1.bf16.msra.mxu0 0
    %5241 = vmatprep.subr.bf16.mxu0 0
    %5242 = vmatpush1.bf16.msra.mxu0 0
    %5243 = vmatprep.subr.bf16.mxu0 0
    %5244 = vmatpush1.bf16.msra.mxu0 0
    %5245 = vmatprep.subr.bf16.mxu0 0
    %5246 = vmatpush1.bf16.msra.mxu0 0
    %5247 = vmatprep.subr.bf16.mxu0 0
    %5248 = vmatpush1.bf16.msra.mxu0 0
    %5249 = vmatprep.mubr.bf16.mxu0 0
    %5250 = vmatmul.mubr.bf16.gmra.mrb[0].mxu0 %v4941
    %v5251 = vpop.f32.mrb[0].mxu0
    %v5252 = vadd.f32 %v5170, %v5251
    %v5253 = vpop.f32.mrb[0].mxu0
    %v5254 = vadd.f32 %v5172, %v5253
    %v5255 = vpop.f32.mrb[0].mxu0
    %v5256 = vpop.f32.mrb[0].mxu0
    %5257 = vdwg.mxu0
    %5258 = vmatprep.subr.bf16.mxu0 %v2237
    %5259 = vmatpush1.bf16.msra.mxu0 %v2236
    %5260 = vmatprep.subr.bf16.mxu0 %v2241
    %5261 = vmatpush1.bf16.msra.mxu0 %v2240
    %5262 = vmatprep.subr.bf16.mxu0 %v2245
    %5263 = vmatpush1.bf16.msra.mxu0 %v2244
    %5264 = vmatprep.subr.bf16.mxu0 %v2249
    %5265 = vmatpush1.bf16.msra.mxu0 %v2248
    %5266 = vmatprep.subr.bf16.mxu0 %v2253
    %5267 = vmatpush1.bf16.msra.mxu0 %v2252
    %5268 = vmatprep.subr.bf16.mxu0 %v2257
    %5269 = vmatpush1.bf16.msra.mxu0 %v2256
    %5270 = vmatprep.subr.bf16.mxu0 %v2261
    %5271 = vmatpush1.bf16.msra.mxu0 %v2260
    %5272 = vmatprep.subr.bf16.mxu0 %v2265
    %5273 = vmatpush1.bf16.msra.mxu0 %v2264
    %5274 = vmatprep.subr.bf16.mxu0 0
    %5275 = vmatpush1.bf16.msra.mxu0 0
    %5276 = vmatprep.subr.bf16.mxu0 0
    %5277 = vmatpush1.bf16.msra.mxu0 0
    %5278 = vmatprep.subr.bf16.mxu0 0
    %5279 = vmatpush1.bf16.msra.mxu0 0
    %5280 = vmatprep.subr.bf16.mxu0 0
    %5281 = vmatpush1.bf16.msra.mxu0 0
    %5282 = vmatprep.subr.bf16.mxu0 0
    %5283 = vmatpush1.bf16.msra.mxu0 0
    %5284 = vmatprep.subr.bf16.mxu0 0
    %5285 = vmatpush1.bf16.msra.mxu0 0
    %5286 = vmatprep.subr.bf16.mxu0 0
    %5287 = vmatpush1.bf16.msra.mxu0 0
    %5288 = vmatprep.subr.bf16.mxu0 0
    %5289 = vmatpush1.bf16.msra.mxu0 0
    %5290 = vmatprep.mubr.bf16.mxu0 0
    %5291 = vmatmul.mubr.bf16.gmra.mrb[0].mxu0 %v4941
    %v5292 = vpop.f32.mrb[0].mxu0
    %v5293 = vadd.f32 %v5211, %v5292
    %v5294 = vpop.f32.mrb[0].mxu0
    %v5295 = vadd.f32 %v5213, %v5294
    %v5296 = vpop.f32.mrb[0].mxu0
    %v5297 = vpop.f32.mrb[0].mxu0
    %5298 = vdwg.mxu0
    %v5299 = vadd.f32 %v5252, %v2384
    %v5300 = vadd.f32 %v5254, %v2388
    %v5301 = vadd.f32 %v5293, %v2392
    %v5302 = vadd.f32 %v5295, %v2396
    %v5303 = vxor.u32 %v5299, 2147483648
    %v5304 = vxor.u32 %v5300, 2147483648
    %v5305 = vmul.f32 %v5303, 1.442695
    %v5306 = vpow.pop %v5305
    %v5307 = vmul.f32 %v5304, 1.442695
    %v5308 = vpow.pop %v5307
    %v5309 = vadd.f32 %v5306, 1.0
    %v5310 = vadd.f32 %v5308, 1.0
    %v5311 = vrcp.pop %v5309
    %v5312 = vmul.f32 1.0, %v5311
    %v5313 = vrcp.pop %v5310
    %v5314 = vmul.f32 1.0, %v5313
    %v5315 = vtanh.pop %v5301
    %v5316 = vxor.u32 %v5302, 2147483648
    %v5317 = vmul.f32 %v5316, 1.442695
    %v5318 = vpow.pop %v5317
    %v5319 = vadd.f32 %v5318, 1.0
    %v5320 = vrcp.pop %v5319
    %v5321 = vmul.f32 1.0, %v5320
    %v5322 = vmul.f32 %v5314, %v4936
    %v5323 = vmul.f32 %v5312, %v5315
    %v5324 = vadd.f32 %v5322, %v5323
    %v5325 = vtanh.pop %v5324
    %v5326 = vmul.f32 %v5321, %v5325
    %5327 = vst [vmem:[#allocation3 + $0x30] sm:$0xff] %v5326
    %v5328 = vpack.c.bf16 %v5134, %v5134
    %v5329 = vpack.c.bf16 %v5326, %v5326
    %5330 = vmatprep.subr.bf16.mxu0 %v1993
    %5331 = vmatpush1.bf16.msra.mxu0 %v1992
    %5332 = vmatprep.subr.bf16.mxu0 %v1997
    %5333 = vmatpush1.bf16.msra.mxu0 %v1996
    %5334 = vmatprep.subr.bf16.mxu0 %v2001
    %5335 = vmatpush1.bf16.msra.mxu0 %v2000
    %5336 = vmatprep.subr.bf16.mxu0 %v2005
    %5337 = vmatpush1.bf16.msra.mxu0 %v2004
    %5338 = vmatprep.subr.bf16.mxu0 %v2009
    %5339 = vmatpush1.bf16.msra.mxu0 %v2008
    %5340 = vmatprep.subr.bf16.mxu0 %v2013
    %5341 = vmatpush1.bf16.msra.mxu0 %v2012
    %5342 = vmatprep.subr.bf16.mxu0 %v2017
    %5343 = vmatpush1.bf16.msra.mxu0 %v2016
    %5344 = vmatprep.subr.bf16.mxu0 %v2021
    %5345 = vmatpush1.bf16.msra.mxu0 %v2020
    %5346 = vmatprep.subr.bf16.mxu0 0
    %5347 = vmatpush1.bf16.msra.mxu0 0
    %5348 = vmatprep.subr.bf16.mxu0 0
    %5349 = vmatpush1.bf16.msra.mxu0 0
    %5350 = vmatprep.subr.bf16.mxu0 0
    %5351 = vmatpush1.bf16.msra.mxu0 0
    %5352 = vmatprep.subr.bf16.mxu0 0
    %5353 = vmatpush1.bf16.msra.mxu0 0
    %5354 = vmatprep.subr.bf16.mxu0 0
    %5355 = vmatpush1.bf16.msra.mxu0 0
    %5356 = vmatprep.subr.bf16.mxu0 0
    %5357 = vmatpush1.bf16.msra.mxu0 0
    %5358 = vmatprep.subr.bf16.mxu0 0
    %5359 = vmatpush1.bf16.msra.mxu0 0
    %5360 = vmatprep.subr.bf16.mxu0 0
    %5361 = vmatpush1.bf16.msra.mxu0 0
    %5362 = vmatprep.mubr.bf16.mxu0 0
    %5363 = vmatmul.mubr.bf16.gmra.mrb[0].mxu0 %v5329
    %v5364 = vpop.f32.mrb[0].mxu0
    %v5365 = vadd.f32 0.0, %v5364
    %v5366 = vpop.f32.mrb[0].mxu0
    %v5367 = vadd.f32 0.0, %v5366
    %v5368 = vpop.f32.mrb[0].mxu0
    %v5369 = vpop.f32.mrb[0].mxu0
    %5370 = vdwg.mxu0
    %5371 = vmatprep.subr.bf16.mxu0 %v1995
    %5372 = vmatpush1.bf16.msra.mxu0 %v1994
    %5373 = vmatprep.subr.bf16.mxu0 %v1999
    %5374 = vmatpush1.bf16.msra.mxu0 %v1998
    %5375 = vmatprep.subr.bf16.mxu0 %v2003
    %5376 = vmatpush1.bf16.msra.mxu0 %v2002
    %5377 = vmatprep.subr.bf16.mxu0 %v2007
    %5378 = vmatpush1.bf16.msra.mxu0 %v2006
    %5379 = vmatprep.subr.bf16.mxu0 %v2011
    %5380 = vmatpush1.bf16.msra.mxu0 %v2010
    %5381 = vmatprep.subr.bf16.mxu0 %v2015
    %5382 = vmatpush1.bf16.msra.mxu0 %v2014
    %5383 = vmatprep.subr.bf16.mxu0 %v2019
    %5384 = vmatpush1.bf16.msra.mxu0 %v2018
    %5385 = vmatprep.subr.bf16.mxu0 %v2023
    %5386 = vmatpush1.bf16.msra.mxu0 %v2022
    %5387 = vmatprep.subr.bf16.mxu0 0
    %5388 = vmatpush1.bf16.msra.mxu0 0
    %5389 = vmatprep.subr.bf16.mxu0 0
    %5390 = vmatpush1.bf16.msra.mxu0 0
    %5391 = vmatprep.subr.bf16.mxu0 0
    %5392 = vmatpush1.bf16.msra.mxu0 0
    %5393 = vmatprep.subr.bf16.mxu0 0
    %5394 = vmatpush1.bf16.msra.mxu0 0
    %5395 = vmatprep.subr.bf16.mxu0 0
    %5396 = vmatpush1.bf16.msra.mxu0 0
    %5397 = vmatprep.subr.bf16.mxu0 0
    %5398 = vmatpush1.bf16.msra.mxu0 0
    %5399 = vmatprep.subr.bf16.mxu0 0
    %5400 = vmatpush1.bf16.msra.mxu0 0
    %5401 = vmatprep.subr.bf16.mxu0 0
    %5402 = vmatpush1.bf16.msra.mxu0 0
    %5403 = vmatprep.mubr.bf16.mxu0 0
    %5404 = vmatmul.mubr.bf16.gmra.mrb[0].mxu0 %v5329
    %v5405 = vpop.f32.mrb[0].mxu0
    %v5406 = vadd.f32 0.0, %v5405
    %v5407 = vpop.f32.mrb[0].mxu0
    %v5408 = vadd.f32 0.0, %v5407
    %v5409 = vpop.f32.mrb[0].mxu0
    %v5410 = vpop.f32.mrb[0].mxu0
    %5411 = vdwg.mxu0
    %5412 = vmatprep.subr.bf16.mxu0 %v2235
    %5413 = vmatpush1.bf16.msra.mxu0 %v2234
    %5414 = vmatprep.subr.bf16.mxu0 %v2239
    %5415 = vmatpush1.bf16.msra.mxu0 %v2238
    %5416 = vmatprep.subr.bf16.mxu0 %v2243
    %5417 = vmatpush1.bf16.msra.mxu0 %v2242
    %5418 = vmatprep.subr.bf16.mxu0 %v2247
    %5419 = vmatpush1.bf16.msra.mxu0 %v2246
    %5420 = vmatprep.subr.bf16.mxu0 %v2251
    %5421 = vmatpush1.bf16.msra.mxu0 %v2250
    %5422 = vmatprep.subr.bf16.mxu0 %v2255
    %5423 = vmatpush1.bf16.msra.mxu0 %v2254
    %5424 = vmatprep.subr.bf16.mxu0 %v2259
    %5425 = vmatpush1.bf16.msra.mxu0 %v2258
    %5426 = vmatprep.subr.bf16.mxu0 %v2263
    %5427 = vmatpush1.bf16.msra.mxu0 %v2262
    %5428 = vmatprep.subr.bf16.mxu0 0
    %5429 = vmatpush1.bf16.msra.mxu0 0
    %5430 = vmatprep.subr.bf16.mxu0 0
    %5431 = vmatpush1.bf16.msra.mxu0 0
    %5432 = vmatprep.subr.bf16.mxu0 0
    %5433 = vmatpush1.bf16.msra.mxu0 0
    %5434 = vmatprep.subr.bf16.mxu0 0
    %5435 = vmatpush1.bf16.msra.mxu0 0
    %5436 = vmatprep.subr.bf16.mxu0 0
    %5437 = vmatpush1.bf16.msra.mxu0 0
    %5438 = vmatprep.subr.bf16.mxu0 0
    %5439 = vmatpush1.bf16.msra.mxu0 0
    %5440 = vmatprep.subr.bf16.mxu0 0
    %5441 = vmatpush1.bf16.msra.mxu0 0
    %5442 = vmatprep.subr.bf16.mxu0 0
    %5443 = vmatpush1.bf16.msra.mxu0 0
    %5444 = vmatprep.mubr.bf16.mxu0 0
    %5445 = vmatmul.mubr.bf16.gmra.mrb[0].mxu0 %v5328
    %v5446 = vpop.f32.mrb[0].mxu0
    %v5447 = vadd.f32 %v5365, %v5446
    %v5448 = vpop.f32.mrb[0].mxu0
    %v5449 = vadd.f32 %v5367, %v5448
    %v5450 = vpop.f32.mrb[0].mxu0
    %v5451 = vpop.f32.mrb[0].mxu0
    %5452 = vdwg.mxu0
    %5453 = vmatprep.subr.bf16.mxu0 %v2237
    %5454 = vmatpush1.bf16.msra.mxu0 %v2236
    %5455 = vmatprep.subr.bf16.mxu0 %v2241
    %5456 = vmatpush1.bf16.msra.mxu0 %v2240
    %5457 = vmatprep.subr.bf16.mxu0 %v2245
    %5458 = vmatpush1.bf16.msra.mxu0 %v2244
    %5459 = vmatprep.subr.bf16.mxu0 %v2249
    %5460 = vmatpush1.bf16.msra.mxu0 %v2248
    %5461 = vmatprep.subr.bf16.mxu0 %v2253
    %5462 = vmatpush1.bf16.msra.mxu0 %v2252
    %5463 = vmatprep.subr.bf16.mxu0 %v2257
    %5464 = vmatpush1.bf16.msra.mxu0 %v2256
    %5465 = vmatprep.subr.bf16.mxu0 %v2261
    %5466 = vmatpush1.bf16.msra.mxu0 %v2260
    %5467 = vmatprep.subr.bf16.mxu0 %v2265
    %5468 = vmatpush1.bf16.msra.mxu0 %v2264
    %5469 = vmatprep.subr.bf16.mxu0 0
    %5470 = vmatpush1.bf16.msra.mxu0 0
    %5471 = vmatprep.subr.bf16.mxu0 0
    %5472 = vmatpush1.bf16.msra.mxu0 0
    %5473 = vmatprep.subr.bf16.mxu0 0
    %5474 = vmatpush1.bf16.msra.mxu0 0
    %5475 = vmatprep.subr.bf16.mxu0 0
    %5476 = vmatpush1.bf16.msra.mxu0 0
    %5477 = vmatprep.subr.bf16.mxu0 0
    %5478 = vmatpush1.bf16.msra.mxu0 0
    %5479 = vmatprep.subr.bf16.mxu0 0
    %5480 = vmatpush1.bf16.msra.mxu0 0
    %5481 = vmatprep.subr.bf16.mxu0 0
    %5482 = vmatpush1.bf16.msra.mxu0 0
    %5483 = vmatprep.subr.bf16.mxu0 0
    %5484 = vmatpush1.bf16.msra.mxu0 0
    %5485 = vmatprep.mubr.bf16.mxu0 0
    %5486 = vmatmul.mubr.bf16.gmra.mrb[0].mxu0 %v5328
    %v5487 = vpop.f32.mrb[0].mxu0
    %v5488 = vadd.f32 %v5406, %v5487
    %v5489 = vpop.f32.mrb[0].mxu0
    %v5490 = vadd.f32 %v5408, %v5489
    %v5491 = vpop.f32.mrb[0].mxu0
    %v5492 = vpop.f32.mrb[0].mxu0
    %5493 = vdwg.mxu0
    %v5494 = vadd.f32 %v5447, %v2384
    %v5495 = vadd.f32 %v5449, %v2388
    %v5496 = vadd.f32 %v5488, %v2392
    %v5497 = vadd.f32 %v5490, %v2396
    %v5498 = vxor.u32 %v5494, 2147483648
    %v5499 = vxor.u32 %v5495, 2147483648
    %v5500 = vmul.f32 %v5498, 1.442695
    %v5501 = vpow.pop %v5500
    %v5502 = vmul.f32 %v5499, 1.442695
    %v5503 = vpow.pop %v5502
    %v5504 = vadd.f32 %v5501, 1.0
    %v5505 = vadd.f32 %v5503, 1.0
    %v5506 = vrcp.pop %v5504
    %v5507 = vmul.f32 1.0, %v5506
    %v5508 = vrcp.pop %v5505
    %v5509 = vmul.f32 1.0, %v5508
    %v5510 = vtanh.pop %v5496
    %v5511 = vxor.u32 %v5497, 2147483648
    %v5512 = vmul.f32 %v5511, 1.442695
    %v5513 = vpow.pop %v5512
    %v5514 = vadd.f32 %v5513, 1.0
    %v5515 = vrcp.pop %v5514
    %v5516 = vmul.f32 1.0, %v5515
    %v5517 = vmul.f32 %v5509, %v5324
    %v5518 = vmul.f32 %v5507, %v5510
    %v5519 = vadd.f32 %v5517, %v5518
    %v5520 = vtanh.pop %v5519
    %v5521 = vmul.f32 %v5516, %v5520
    %5522 = vst [vmem:[#allocation3 + $0x38] sm:$0xff] %v5521
    %5523 = vst [vmem:[%s9] sm:$0xff] %v4554
    %5524 = vst [vmem:[%s10] sm:$0xff] %v4552
    %s5525 = scalar_lea.vmem %s9, 8
    %5526 = vst [vmem:[%s5525] sm:$0xff] %v5134
    %s5527 = scalar_lea.vmem %s10, 8
    %5528 = vst [vmem:[%s5527] sm:$0xff] %v5132
    %s5529 = scalar_lea.vmem %s9, 16
    %5530 = vst [vmem:[%s5529] sm:$0xff] %v5521
    %s5531 = scalar_lea.vmem %s10, 16
    %5532 = vst [vmem:[%s5531] sm:$0xff] %v5519
    %v5533 = vld [vmem:[#allocation3] sm:$0xff]
    %v5534 = vld [vmem:[#allocation3 + $0x8] sm:$0xff]
    %v5535 = vld [vmem:[#allocation3 + $0x10] sm:$0xff]
    %v5536 = vld [vmem:[#allocation3 + $0x18] sm:$0xff]
    %v5537 = vld [vmem:[#allocation3 + $0x20] sm:$0xff]
    %v5538 = vld [vmem:[#allocation3 + $0x28] sm:$0xff]
    %v5539 = vld [vmem:[#allocation3 + $0x30] sm:$0xff]
    %v5540 = vld [vmem:[#allocation3 + $0x38] sm:$0xff]
    %v5541 = vpack.c.bf16 %v5534, %v5533
    %v5542 = vpack.c.bf16 %v5536, %v5535
    %v5543 = vpack.c.bf16 %v5538, %v5537
    %v5544 = vpack.c.bf16 %v5540, %v5539
    %v5545 = vld [vmem:[%s6] sm:$0xf]
    %v5546 = vld [vmem:[%s6 + $0x4] sm:$0xf]
    %v5547 = vld [vmem:[%s6 + $0x8] sm:$0xf]
    %v5548 = vld [vmem:[%s6 + $0xc] sm:$0xf]
    %v5549 = vld [vmem:[%s6 + $0x10] sm:$0xf]
    %v5550 = vld [vmem:[%s6 + $0x14] sm:$0xf]
    %v5551 = vld [vmem:[%s6 + $0x18] sm:$0xf]
    %v5552 = vld [vmem:[%s6 + $0x1c] sm:$0xf]
    %v5553 = vld [vmem:[%s6 + $0x20] sm:$0xf]
    %v5554 = vld [vmem:[%s6 + $0x24] sm:$0xf]
    %v5555 = vld [vmem:[%s6 + $0x28] sm:$0xf]
    %v5556 = vld [vmem:[%s6 + $0x2c] sm:$0xf]
    %v5557 = vld [vmem:[%s6 + $0x30] sm:$0xf]
    %v5558 = vld [vmem:[%s6 + $0x34] sm:$0xf]
    %v5559 = vld [vmem:[%s6 + $0x38] sm:$0xf]
    %v5560 = vld [vmem:[%s6 + $0x3c] sm:$0xf]
    %v5561 = vld [vmem:[%s7] sm:$0x1]
    %v5563 = vlaneseq
    %v5564 = vshrl.u32 %v5563, 7
    %v5565 = vsub.s32 0, %v5564
    %v5566 = vrot.slane %v5561, %v5565
    %v5584 = vunpack.c.l.b16 %v5545
    %v5585 = vunpack.c.l.b16 %v5546
    %v5586 = vunpack.c.l.b16 %v5547
    %v5587 = vunpack.c.l.b16 %v5548
    %v5588 = vunpack.c.l.b16 %v5549
    %v5589 = vunpack.c.l.b16 %v5550
    %v5590 = vunpack.c.l.b16 %v5551
    %v5591 = vunpack.c.l.b16 %v5552
    %v5592 = vunpack.c.l.b16 %v5553
    %v5593 = vunpack.c.l.b16 %v5554
    %v5594 = vunpack.c.l.b16 %v5555
    %v5595 = vunpack.c.l.b16 %v5556
    %v5596 = vunpack.c.l.b16 %v5557
    %v5597 = vunpack.c.l.b16 %v5558
    %v5598 = vunpack.c.l.b16 %v5559
    %v5599 = vunpack.c.l.b16 %v5560
    %v5600 = vpack.c.b16 %v5585, %v5584
    %v5601 = vpack.c.b16 %v5587, %v5586
    %v5602 = vpack.c.b16 %v5589, %v5588
    %v5603 = vpack.c.b16 %v5591, %v5590
    %v5604 = vpack.c.b16 %v5593, %v5592
    %v5605 = vpack.c.b16 %v5595, %v5594
    %v5606 = vpack.c.b16 %v5597, %v5596
    %v5607 = vpack.c.b16 %v5599, %v5598
    %5616 = vmatprep.subr.bf16.mxu0 0
    %5617 = vmatpush1.bf16.msra.mxu0 %v5600
    %5618 = vmatprep.subr.bf16.mxu0 0
    %5619 = vmatpush1.bf16.msra.mxu0 %v5601
    %5620 = vmatprep.subr.bf16.mxu0 0
    %5621 = vmatpush1.bf16.msra.mxu0 %v5602
    %5622 = vmatprep.subr.bf16.mxu0 0
    %5623 = vmatpush1.bf16.msra.mxu0 %v5603
    %5624 = vmatprep.subr.bf16.mxu0 0
    %5625 = vmatpush1.bf16.msra.mxu0 %v5604
    %5626 = vmatprep.subr.bf16.mxu0 0
    %5627 = vmatpush1.bf16.msra.mxu0 %v5605
    %5628 = vmatprep.subr.bf16.mxu0 0
    %5629 = vmatpush1.bf16.msra.mxu0 %v5606
    %5630 = vmatprep.subr.bf16.mxu0 0
    %5631 = vmatpush1.bf16.msra.mxu0 %v5607
    %5632 = vmatprep.subr.bf16.mxu0 0
    %5633 = vmatpush1.bf16.msra.mxu0 0
    %5634 = vmatprep.subr.bf16.mxu0 0
    %5635 = vmatpush1.bf16.msra.mxu0 0
    %5636 = vmatprep.subr.bf16.mxu0 0
    %5637 = vmatpush1.bf16.msra.mxu0 0
    %5638 = vmatprep.subr.bf16.mxu0 0
    %5639 = vmatpush1.bf16.msra.mxu0 0
    %5640 = vmatprep.subr.bf16.mxu0 0
    %5641 = vmatpush1.bf16.msra.mxu0 0
    %5642 = vmatprep.subr.bf16.mxu0 0
    %5643 = vmatpush1.bf16.msra.mxu0 0
    %5644 = vmatprep.subr.bf16.mxu0 0
    %5645 = vmatpush1.bf16.msra.mxu0 0
    %5646 = vmatprep.subr.bf16.mxu0 0
    %5647 = vmatpush1.bf16.msra.mxu0 0
    %5648 = vmatprep.mubr.bf16.mxu0 0
    %5649 = vmatmul.mubr.bf16.gmra.mrb[0].mxu0 %v5541
    %v5650 = vpop.f32.mrb[0].mxu0
    %v5651 = vadd.f32 %v5566, %v5650
    %v5652 = vpop.f32.mrb[0].mxu0
    %v5653 = vpop.f32.mrb[0].mxu0
    %v5654 = vadd.f32 %v5566, %v5653
    %v5655 = vpop.f32.mrb[0].mxu0
    %5656 = vmatprep.mubr.bf16.mxu0 0
    %5657 = vmatmul.mubr.bf16.gmra.mrb[0].mxu0 %v5542
    %v5658 = vpop.f32.mrb[0].mxu0
    %v5659 = vadd.f32 %v5566, %v5658
    %v5660 = vpop.f32.mrb[0].mxu0
    %v5661 = vpop.f32.mrb[0].mxu0
    %v5662 = vadd.f32 %v5566, %v5661
    %v5663 = vpop.f32.mrb[0].mxu0
    %5664 = vmatprep.mubr.bf16.mxu0 0
    %5665 = vmatmul.mubr.bf16.gmra.mrb[0].mxu0 %v5543
    %v5666 = vpop.f32.mrb[0].mxu0
    %v5667 = vadd.f32 %v5566, %v5666
    %v5668 = vpop.f32.mrb[0].mxu0
    %v5669 = vpop.f32.mrb[0].mxu0
    %v5670 = vadd.f32 %v5566, %v5669
    %v5671 = vpop.f32.mrb[0].mxu0
    %5672 = vmatprep.mubr.bf16.mxu0 0
    %5673 = vmatmul.mubr.bf16.gmra.mrb[0].mxu0 %v5544
    %v5674 = vpop.f32.mrb[0].mxu0
    %v5675 = vadd.f32 %v5566, %v5674
    %v5676 = vpop.f32.mrb[0].mxu0
    %v5677 = vpop.f32.mrb[0].mxu0
    %v5678 = vadd.f32 %v5566, %v5677
    %v5679 = vpop.f32.mrb[0].mxu0
    %5680 = vdwg.mxu0
    %5681 = vst [vmem:[%s8] sm:$0xff] %v5651
    %5682 = vst [vmem:[%s8 + $0x8] sm:$0xff] %v5654
    %5683 = vst [vmem:[%s8 + $0x10] sm:$0xff] %v5659
    %5684 = vst [vmem:[%s8 + $0x18] sm:$0xff] %v5662
    %5685 = vst [vmem:[%s8 + $0x20] sm:$0xff] %v5667
    %5686 = vst [vmem:[%s8 + $0x28] sm:$0xff] %v5670
    %5687 = vst [vmem:[%s8 + $0x30] sm:$0xff] %v5675
    %5688 = vst [vmem:[%s8 + $0x38] sm:$0xff] %v5678
    // Predicated region
    $region42: #{model_forward.1} parent=1 // pred_check
      _
    $region43: #{model_forward.1} parent=1 // pred_check_branch
      %5690 = sbr.rel (0) target = $region45
    $region44: #{model_forward.1} parent=1 // pred_region
      _
    $region45: #{model_forward.1} parent=1 // pred_fallthru
      _
    // Predicated region
    $region46: #{model_forward.1} parent=1 // pred_check
      _
    $region47: #{model_forward.1} parent=1 // pred_check_branch
      %5692 = sbr.rel (0) target = $region49
    $region48: #{model_forward.1} parent=1 // pred_region
      _
    $region49: #{model_forward.1} parent=1 // pred_fallthru
      _
    // Predicated region
    $region50: #{model_forward.1} parent=1 // pred_check
      _
    $region51: #{model_forward.1} parent=1 // pred_check_branch
      %5694 = sbr.rel (0) target = $region53
    $region52: #{model_forward.1} parent=1 // pred_region
      _
    $region53: #{model_forward.1} parent=1 // pred_fallthru
      _
    // Predicated region
    $region54: #{model_forward.1} parent=1 // pred_check
      _
    $region55: #{model_forward.1} parent=1 // pred_check_branch
      %5696 = sbr.rel (0) target = $region57
    $region56: #{model_forward.1} parent=1 // pred_region
      _
    $region57: #{model_forward.1} parent=1 // pred_fallthru
      _
    // Predicated region
    $region58: #{model_forward.1} parent=1 // pred_check
      _
    $region59: #{model_forward.1} parent=1 // pred_check_branch
      %5698 = sbr.rel (0) target = $region61
    $region60: #{model_forward.1} parent=1 // pred_region
      _
    $region61: #{model_forward.1} parent=1 // pred_fallthru
      _
    // Predicated region
    $region62: #{model_forward.1} parent=1 // pred_check
      _
    $region63: #{model_forward.1} parent=1 // pred_check_branch
      %5700 = sbr.rel (0) target = $region65
    $region64: #{model_forward.1} parent=1 // pred_region
      _
    $region65: #{model_forward.1} parent=1 // pred_fallthru
      _
    %5701 = vsyncpa [#allocation5], 1
    %5702 = vsyncpa [#allocation7], 1

</llo_original>
